<compile_context>
chip_gen: v7x
topology: tpu7x:2x2x1
jax: 0.10.0
libtpu: 0.0.40
codegen_flags: <defaults>
</compile_context>

<pallas_src>
import functools

import jax
import jax.numpy as jnp
from jax.experimental import pallas as pl
from jax.experimental.pallas import tpu as pltpu


# ---------------------------------------------------------------------------
# Pallas kernel: fused 3-layer GCN + mean-pool + linear head for a graph block
# ---------------------------------------------------------------------------
def gcn_perturb_fwd_kernel(s_ref, x_ref, pool_ref,
                           w1_ref, b1_ref, w2_ref, b2_ref, w3_ref, b3_ref,
                           wl_ref, bl_ref,
                           out_ref):
    GB, N, _ = s_ref.shape
    prop_dtype = s_ref.dtype          # bf16 (default) or f32 (debug mode)

    def layer(h_flat, w_ref, b_ref, relu):
        # (a) shared-weight lin, batched across all GB graphs in this block:
        #     ONE (GB*N, Fin) @ (Fin, HP) MXU matmul with f32 accumulation.
        hw = jnp.dot(h_flat.astype(w_ref.dtype), w_ref[...],
                     preferred_element_type=jnp.float32)
        # (b) per-graph propagation with the pre-normalized adjacency S (norm folded in
        #     the wrapper): one batched MXU matmul over the GB graphs.
        hw = hw.reshape(GB, N, hw.shape[-1]).astype(prop_dtype)
        agg = jnp.einsum('bij,bjh->bih', s_ref[...], hw,
                         preferred_element_type=jnp.float32)
        # (c) bias (+ ReLU), fused over the whole stacked (GB*N, HP) tile (VPU).
        out = agg.reshape(GB * N, agg.shape[-1]) + b_ref[...]
        return jnp.maximum(out, 0.0) if relu else out

    h = layer(x_ref[...].reshape(GB * N, x_ref.shape[-1]), w1_ref, b1_ref, relu=True)
    h = layer(h, w2_ref, b2_ref, relu=True)    # conv2 + relu
    h = layer(h, w3_ref, b3_ref, relu=False)   # conv3 (no relu in reference forward)

    # global_mean_pool: (GB,1,N) @ (GB,N,HP) -> one (GB, HP) pooled tile.
    HP = h.shape[-1]
    g = jnp.einsum('bin,bnh->bih', pool_ref[...], h.reshape(GB, N, HP),
                   preferred_element_type=jnp.float32).reshape(GB, HP)

    # TODO(synk): F.dropout(p=0.5) is identity here (eval mode); training parity would
    # need a pltpu.prng_seed + pltpu.prng_random_bits mask on g.

    # final Linear head: ONE (GB, HP) @ (HP, CP) matmul + single unmasked (GB, CP) store.
    out_ref[...] = (jnp.dot(g.astype(wl_ref.dtype), wl_ref[...],
                            preferred_element_type=jnp.float32)
                    + bl_ref[...]).astype(out_ref.dtype)


# ---------------------------------------------------------------------------
# Wrapper: padding to lane-dense widths, grid over graph blocks
# ---------------------------------------------------------------------------
def _pad2d(a, rows, cols):
    return jnp.pad(a, ((0, rows - a.shape[0]), (0, cols - a.shape[1])))


def gcn_perturb_forward(S, x, pool, params, *,
                        graphs_per_step=8,
                        compute_dtype=jnp.bfloat16,
                        hidden_pad=128,          # v5e: worth sweeping 32/64 (lin overcompute)
                        class_pad=128,
                        vmem_limit_bytes=32 * 1024 * 1024):
    """Batched GCNPerturb.forward.

    S: (B, N, N) normalized weighted adjacency, x: (B, N, F), pool: (B, 1, N).
    Returns (B, n_classes) logits (f32).  In the default bf16 mode the adjacency,
    features, weights AND intermediate activations are bf16 (f32 MXU accumulation);
    compute_dtype=jnp.float32 gives a full-precision debug path.
    """
    w1, b1, w2, b2, w3, b3, wl, bl = params
    B, N, _ = S.shape
    F = x.shape[-1]
    C = wl.shape[1]
    HP, CP = hidden_pad, class_pad
    GB = graphs_per_step
    assert B % GB == 0, "batch must be divisible by graphs_per_step"
    assert GB % 8 == 0 or GB == B, "graphs_per_step must be a multiple of 8 (output tiling)"

    cd = compute_dtype
    # Zero-pad hidden/class dims to lane-dense widths (exact: extra rows/cols are 0).
    # MXU operands in compute_dtype; biases stay f32 (added to the f32 accumulator).
    w1p, b1p = _pad2d(w1, F, HP).astype(cd), _pad2d(b1, 1, HP)
    w2p, b2p = _pad2d(w2, HP, HP).astype(cd), _pad2d(b2, 1, HP)
    w3p, b3p = _pad2d(w3, HP, HP).astype(cd), _pad2d(b3, 1, HP)
    wlp, blp = _pad2d(wl, HP, CP).astype(cd), _pad2d(bl, 1, CP)

    graph_spec = lambda shape: pl.BlockSpec((GB,) + shape,
                                            lambda i: (i,) + (0,) * len(shape))
    resident = lambda arr: pl.BlockSpec(arr.shape, lambda i: (0, 0))

    out = pl.pallas_call(
        gcn_perturb_fwd_kernel,
        out_shape=jax.ShapeDtypeStruct((B, CP), jnp.float32),
        grid_spec=pltpu.PrefetchScalarGridSpec(
            num_scalar_prefetch=0,
            grid=(B // GB,),
            in_specs=[
                graph_spec((N, N)),      # S    (largest operand; bf16 by default)
                graph_spec((N, F)),      # x
                graph_spec((1, N)),      # pool rows
                resident(w1p), resident(b1p),
                resident(w2p), resident(b2p),
                resident(w3p), resident(b3p),
                resident(wlp), resident(blp),
            ],
            out_specs=pl.BlockSpec((GB, CP), lambda i: (i, 0)),
        ),
        compiler_params=pltpu.CompilerParams(
            dimension_semantics=("parallel",),        # split graph blocks across TCs
            vmem_limit_bytes=vmem_limit_bytes,        # headroom even for v7x 64 MiB
        ),
    )(S.astype(cd), x.astype(cd), pool,
      w1p, b1p, w2p, b2p, w3p, b3p, wlp, blp)

    return out[:, :C]


# ---------------------------------------------------------------------------
# JAX glue: gcn_norm-compatible normalized adjacency (norm folded here, not a
# separate pass -- fused where A and deg are already being computed)
# ---------------------------------------------------------------------------
def build_norm_adj(edge_src, edge_dst, p_vec, num_real_nodes, *, n_pad):
    """Dense per-graph equivalent of gcn_norm.

    Matches add_remaining_self_loops(fill_value=1.0): existing self-loop edges keep their
    sigmoid(P) weight and duplicates sum (scatter_add); fill-value self-loops are only
    added for real nodes lacking one.  Returns S = D^-1/2 (A + I_fill) D^-1/2 with
    S[target, source]; deg^-1/2 is 0 for isolated / padded nodes (inf -> 0, as in gcn_norm).
    """
    w = jax.nn.sigmoid(p_vec).astype(jnp.float32)
    A = jnp.zeros((n_pad, n_pad), jnp.float32)
    A = A.at[edge_dst, edge_src].add(w)                       # aggregate at target
    self_idx = jnp.where(edge_src == edge_dst, edge_src, n_pad)
    has_self = jnp.zeros((n_pad,), bool).at[self_idx].set(True, mode="drop")
    idx = jnp.arange(n_pad)
    loop_w = jnp.where((idx < num_real_nodes) & (~has_self), 1.0, 0.0)
    A = A.at[idx, idx].add(loop_w)
    deg = A.sum(axis=1)                                       # scatter_add over targets
    dinv = jnp.where(deg > 0.0, jax.lax.rsqrt(deg), 0.0)
    return dinv[:, None] * A * dinv[None, :]


# ---------------------------------------------------------------------------
# Pure-JAX reference (full f32 matmul precision) for correctness checking
# ---------------------------------------------------------------------------
def reference_forward(S, x, pool, params):
    w1, b1, w2, b2, w3, b3, wl, bl = params
    with jax.default_matmul_precision("float32"):
        h = jnp.einsum('bij,bjf->bif', S, jnp.einsum('bnf,fh->bnh', x, w1)) + b1
        h = jnp.maximum(h, 0.0)
        h = jnp.einsum('bij,bjf->bif', S, jnp.einsum('bnf,fh->bnh', h, w2)) + b2
        h = jnp.maximum(h, 0.0)
        h = jnp.einsum('bij,bjf->bif', S, jnp.einsum('bnf,fh->bnh', h, w3)) + b3
        g = jnp.einsum('bgn,bnh->bgh', pool, h)
        out = jnp.einsum('bgh,hc->bgc', g, wl) + bl
    return out.reshape(S.shape[0], -1)


# ---------------------------------------------------------------------------
# Main
# ---------------------------------------------------------------------------
if __name__ == "__main__":
    key = jax.random.PRNGKey(0)

    N_GRAPHS = 64           # graphs in the batch
    GRAPHS_PER_STEP = 8     # graphs per grid step -> grid of 8 (>=4 steps per TC on v7x)
    N_PAD = 128             # nodes per graph, padded to a lane/sublane-friendly width
    N_FEATURES = 16
    N_HIDDEN = 32           # logical hidden width (zero-padded to 128 in the wrapper)
    N_CLASSES = 4           # logical class count (zero-padded to 128 in the wrapper)
    N_EDGES = 256           # edges per graph

    keys = jax.random.split(key, 10)

    # per-graph real node counts and random edge lists confined to real nodes
    n_nodes = jax.random.randint(keys[0], (N_GRAPHS,), 24, N_PAD + 1)
    src = jax.random.randint(keys[1], (N_GRAPHS, N_EDGES), 0, 1 << 30) % n_nodes[:, None]
    off = 1 + jax.random.randint(keys[2], (N_GRAPHS, N_EDGES), 0, 1 << 30) % (n_nodes[:, None] - 1)
    dst = (src + off) % n_nodes[:, None]     # no self-loops in the synthetic edge lists

    # perturbation vector (module init: ones) -> sigmoid gives the edge weights
    P_vec = jnp.ones((N_GRAPHS, N_EDGES), jnp.float32)

    # node features; padded nodes are zeroed (they are also isolated, so inert anyway)
    node_mask = jnp.arange(N_PAD)[None, :] < n_nodes[:, None]          # (B, N)
    x = jax.random.normal(keys[3], (N_GRAPHS, N_PAD, N_FEATURES), jnp.float32)
    x = x * node_mask[..., None]

    # global_mean_pool as a per-graph (1, N) row: 1/n for real nodes, 0 for padding
    pool = jnp.where(node_mask, 1.0 / n_nodes[:, None].astype(jnp.float32), 0.0)
    pool = pool.astype(jnp.float32)[:, None, :]                        # (B, 1, N)

    # pre-normalized adjacency S = D^-1/2 (A + I_fill) D^-1/2
    S = jax.vmap(functools.partial(build_norm_adj, n_pad=N_PAD))(src, dst, P_vec, n_nodes)

    # deterministic parameter init (PyTorch Linear weights, stored as (in, out))
    def init_linear(k, fin, fout, scale=0.1):
        kw, kb = jax.random.split(k)
        return (scale * jax.random.normal(kw, (fin, fout), jnp.float32),
                scale * jax.random.normal(kb, (1, fout), jnp.float32))

    w1, b1 = init_linear(keys[4], N_FEATURES, N_HIDDEN)
    w2, b2 = init_linear(keys[5], N_HIDDEN, N_HIDDEN)
    w3, b3 = init_linear(keys[6], N_HIDDEN, N_HIDDEN)
    wl, bl = init_linear(keys[7], N_HIDDEN, N_CLASSES)
    params = (w1, b1, w2, b2, w3, b3, wl, bl)

    ref = reference_forward(S, x, pool, params)

    # f32 debug path: tight check against the full-precision JAX reference
    out_f32 = gcn_perturb_forward(S, x, pool, params,
                                  graphs_per_step=GRAPHS_PER_STEP,
                                  compute_dtype=jnp.float32)
    out_f32 = jax.block_until_ready(out_f32)
    assert out_f32.shape == (N_GRAPHS, N_CLASSES)
    assert jnp.allclose(out_f32, ref, atol=5e-3, rtol=5e-3), "f32 kernel mismatch vs reference"

    # default bf16 path: adjacency, features, weights and intermediate activations in bf16
    # (f32 MXU accumulation) -> native MXU rate, half the HBM/VMEM traffic of S
    out_bf16 = gcn_perturb_forward(S, x, pool, params,
                                   graphs_per_step=GRAPHS_PER_STEP)
    out_bf16 = jax.block_until_ready(out_bf16)
    assert out_bf16.shape == (N_GRAPHS, N_CLASSES)
    assert jnp.allclose(out_bf16, ref, atol=3e-2, rtol=3e-2), "bf16 kernel mismatch vs reference"

    print("KERNEL_OK")
</pallas_src>

<mosaic_0001>
module attributes {stable_mosaic.version = 11 : i64} {
  func.func @gcn_perturb_fwd_kernel(%arg0: i32, %arg1: memref<8x128x128xf32, #tpu.memory_space<vmem>>, %arg2: memref<8x128x16xf32, #tpu.memory_space<vmem>>, %arg3: memref<8x1x128xf32, #tpu.memory_space<vmem>>, %arg4: memref<16x128xf32, #tpu.memory_space<vmem>>, %arg5: memref<1x128xf32, #tpu.memory_space<vmem>>, %arg6: memref<128x128xf32, #tpu.memory_space<vmem>>, %arg7: memref<1x128xf32, #tpu.memory_space<vmem>>, %arg8: memref<128x128xf32, #tpu.memory_space<vmem>>, %arg9: memref<1x128xf32, #tpu.memory_space<vmem>>, %arg10: memref<128x128xf32, #tpu.memory_space<vmem>>, %arg11: memref<1x128xf32, #tpu.memory_space<vmem>>, %arg12: memref<8x128xf32, #tpu.memory_space<vmem>>) attributes {dimension_semantics = [#tpu.dimension_semantics<parallel>], iteration_bounds = array<i64: 8>, scalar_prefetch = 0 : i64, scratch_operands = 0 : i64, tpu.core_type = #tpu.core_type<tc>, window_params = [{transform_indices = @transform_0, window_bounds = array<i64: 8, 128, 128>}, {transform_indices = @transform_1, window_bounds = array<i64: 8, 128, 16>}, {transform_indices = @transform_2, window_bounds = array<i64: 8, 1, 128>}, {pipeline_mode = #tpu.pipeline_mode<synchronous>, transform_indices = @transform_3, window_bounds = array<i64: 16, 128>}, {pipeline_mode = #tpu.pipeline_mode<synchronous>, transform_indices = @transform_4, window_bounds = array<i64: 1, 128>}, {pipeline_mode = #tpu.pipeline_mode<synchronous>, transform_indices = @transform_5, window_bounds = array<i64: 128, 128>}, {pipeline_mode = #tpu.pipeline_mode<synchronous>, transform_indices = @transform_6, window_bounds = array<i64: 1, 128>}, {pipeline_mode = #tpu.pipeline_mode<synchronous>, transform_indices = @transform_7, window_bounds = array<i64: 128, 128>}, {pipeline_mode = #tpu.pipeline_mode<synchronous>, transform_indices = @transform_8, window_bounds = array<i64: 1, 128>}, {pipeline_mode = #tpu.pipeline_mode<synchronous>, transform_indices = @transform_9, window_bounds = array<i64: 128, 128>}, {pipeline_mode = #tpu.pipeline_mode<synchronous>, transform_indices = @transform_10, window_bounds = array<i64: 1, 128>}, {transform_indices = @transform_11, window_bounds = array<i64: 8, 128>}]} {
    %c0 = arith.constant 0 : index
    %c0_0 = arith.constant 0 : index
    %c0_1 = arith.constant 0 : index
    %0 = vector.load %arg2[%c0, %c0_0, %c0_1] : memref<8x128x16xf32, #tpu.memory_space<vmem>>, vector<8x128x16xf32>
    %1 = vector.shape_cast %0 : vector<8x128x16xf32> to vector<1024x16xf32>
    %c0_2 = arith.constant 0 : index
    %c0_3 = arith.constant 0 : index
    %2 = vector.load %arg4[%c0_2, %c0_3] : memref<16x128xf32, #tpu.memory_space<vmem>>, vector<16x128xf32>
    %cst = arith.constant dense<0.000000e+00> : vector<1024x128xf32>
    %3 = tpu.matmul %1, %2, %cst {dimension_numbers = #tpu.dot_dimension_numbers<[1], [0], [0], [1], [0, 0, 1, 1], [], []>} : vector<1024x16xf32>, vector<16x128xf32>, vector<1024x128xf32> -> vector<1024x128xf32>
    %4 = vector.shape_cast %3 : vector<1024x128xf32> to vector<8x128x128xf32>
    %c0_4 = arith.constant 0 : index
    %c0_5 = arith.constant 0 : index
    %c0_6 = arith.constant 0 : index
    %5 = vector.load %arg1[%c0_4, %c0_5, %c0_6] : memref<8x128x128xf32, #tpu.memory_space<vmem>>, vector<8x128x128xf32>
    "tpu.trace_start"() <{level = 10 : i32, message = "bij,bjh->bih"}> : () -> ()
    %cst_7 = arith.constant dense<0.000000e+00> : vector<8x128x128xf32>
    %6 = tpu.matmul %5, %4, %cst_7 {dimension_numbers = #tpu.dot_dimension_numbers<[2], [1], [1], [2], [0, 0, 0, 1, 1, 2], [0], [0]>} : vector<8x128x128xf32>, vector<8x128x128xf32>, vector<8x128x128xf32> -> vector<8x128x128xf32>
    "tpu.trace_stop"() : () -> ()
    %7 = vector.shape_cast %6 : vector<8x128x128xf32> to vector<1024x128xf32>
    %c0_8 = arith.constant 0 : index
    %c0_9 = arith.constant 0 : index
    %8 = vector.load %arg5[%c0_8, %c0_9] : memref<1x128xf32, #tpu.memory_space<vmem>>, vector<1x128xf32>
    %9 = vector.broadcast %8 : vector<1x128xf32> to vector<1024x128xf32>
    %10 = arith.addf %7, %9 : vector<1024x128xf32>
    %cst_10 = arith.constant 0.000000e+00 : f32
    %11 = vector.broadcast %cst_10 : f32 to vector<1024x128xf32>
    %12 = arith.maximumf %10, %11 : vector<1024x128xf32>
    %c0_11 = arith.constant 0 : index
    %c0_12 = arith.constant 0 : index
    %13 = vector.load %arg6[%c0_11, %c0_12] : memref<128x128xf32, #tpu.memory_space<vmem>>, vector<128x128xf32>
    %cst_13 = arith.constant dense<0.000000e+00> : vector<1024x128xf32>
    %14 = tpu.matmul %12, %13, %cst_13 {dimension_numbers = #tpu.dot_dimension_numbers<[1], [0], [0], [1], [0, 0, 1, 1], [], []>} : vector<1024x128xf32>, vector<128x128xf32>, vector<1024x128xf32> -> vector<1024x128xf32>
    %15 = vector.shape_cast %14 : vector<1024x128xf32> to vector<8x128x128xf32>
    %c0_14 = arith.constant 0 : index
    %c0_15 = arith.constant 0 : index
    %c0_16 = arith.constant 0 : index
    %16 = vector.load %arg1[%c0_14, %c0_15, %c0_16] : memref<8x128x128xf32, #tpu.memory_space<vmem>>, vector<8x128x128xf32>
    "tpu.trace_start"() <{level = 10 : i32, message = "bij,bjh->bih"}> : () -> ()
    %cst_17 = arith.constant dense<0.000000e+00> : vector<8x128x128xf32>
    %17 = tpu.matmul %16, %15, %cst_17 {dimension_numbers = #tpu.dot_dimension_numbers<[2], [1], [1], [2], [0, 0, 0, 1, 1, 2], [0], [0]>} : vector<8x128x128xf32>, vector<8x128x128xf32>, vector<8x128x128xf32> -> vector<8x128x128xf32>
    "tpu.trace_stop"() : () -> ()
    %18 = vector.shape_cast %17 : vector<8x128x128xf32> to vector<1024x128xf32>
    %c0_18 = arith.constant 0 : index
    %c0_19 = arith.constant 0 : index
    %19 = vector.load %arg7[%c0_18, %c0_19] : memref<1x128xf32, #tpu.memory_space<vmem>>, vector<1x128xf32>
    %20 = vector.broadcast %19 : vector<1x128xf32> to vector<1024x128xf32>
    %21 = arith.addf %18, %20 : vector<1024x128xf32>
    %cst_20 = arith.constant 0.000000e+00 : f32
    %22 = vector.broadcast %cst_20 : f32 to vector<1024x128xf32>
    %23 = arith.maximumf %21, %22 : vector<1024x128xf32>
    %c0_21 = arith.constant 0 : index
    %c0_22 = arith.constant 0 : index
    %24 = vector.load %arg8[%c0_21, %c0_22] : memref<128x128xf32, #tpu.memory_space<vmem>>, vector<128x128xf32>
    %cst_23 = arith.constant dense<0.000000e+00> : vector<1024x128xf32>
    %25 = tpu.matmul %23, %24, %cst_23 {dimension_numbers = #tpu.dot_dimension_numbers<[1], [0], [0], [1], [0, 0, 1, 1], [], []>} : vector<1024x128xf32>, vector<128x128xf32>, vector<1024x128xf32> -> vector<1024x128xf32>
    %26 = vector.shape_cast %25 : vector<1024x128xf32> to vector<8x128x128xf32>
    %c0_24 = arith.constant 0 : index
    %c0_25 = arith.constant 0 : index
    %c0_26 = arith.constant 0 : index
    %27 = vector.load %arg1[%c0_24, %c0_25, %c0_26] : memref<8x128x128xf32, #tpu.memory_space<vmem>>, vector<8x128x128xf32>
    "tpu.trace_start"() <{level = 10 : i32, message = "bij,bjh->bih"}> : () -> ()
    %cst_27 = arith.constant dense<0.000000e+00> : vector<8x128x128xf32>
    %28 = tpu.matmul %27, %26, %cst_27 {dimension_numbers = #tpu.dot_dimension_numbers<[2], [1], [1], [2], [0, 0, 0, 1, 1, 2], [0], [0]>} : vector<8x128x128xf32>, vector<8x128x128xf32>, vector<8x128x128xf32> -> vector<8x128x128xf32>
    "tpu.trace_stop"() : () -> ()
    %29 = vector.shape_cast %28 : vector<8x128x128xf32> to vector<1024x128xf32>
    %c0_28 = arith.constant 0 : index
    %c0_29 = arith.constant 0 : index
    %30 = vector.load %arg9[%c0_28, %c0_29] : memref<1x128xf32, #tpu.memory_space<vmem>>, vector<1x128xf32>
    %31 = vector.broadcast %30 : vector<1x128xf32> to vector<1024x128xf32>
    %32 = arith.addf %29, %31 : vector<1024x128xf32>
    %c0_30 = arith.constant 0 : index
    %c0_31 = arith.constant 0 : index
    %c0_32 = arith.constant 0 : index
    %33 = vector.load %arg3[%c0_30, %c0_31, %c0_32] : memref<8x1x128xf32, #tpu.memory_space<vmem>>, vector<8x1x128xf32>
    %34 = vector.shape_cast %32 : vector<1024x128xf32> to vector<8x128x128xf32>
    "tpu.trace_start"() <{level = 10 : i32, message = "bin,bnh->bih"}> : () -> ()
    %cst_33 = arith.constant dense<0.000000e+00> : vector<8x1x128xf32>
    %35 = tpu.matmul %33, %34, %cst_33 {dimension_numbers = #tpu.dot_dimension_numbers<[2], [1], [1], [2], [0, 0, 0, 1, 1, 2], [0], [0]>} : vector<8x1x128xf32>, vector<8x128x128xf32>, vector<8x1x128xf32> -> vector<8x1x128xf32>
    "tpu.trace_stop"() : () -> ()
    %36 = vector.shape_cast %35 : vector<8x1x128xf32> to vector<8x128xf32>
    %c0_34 = arith.constant 0 : index
    %c0_35 = arith.constant 0 : index
    %37 = vector.load %arg10[%c0_34, %c0_35] : memref<128x128xf32, #tpu.memory_space<vmem>>, vector<128x128xf32>
    %cst_36 = arith.constant dense<0.000000e+00> : vector<8x128xf32>
    %38 = tpu.matmul %36, %37, %cst_36 {dimension_numbers = #tpu.dot_dimension_numbers<[1], [0], [0], [1], [0, 0, 1, 1], [], []>} : vector<8x128xf32>, vector<128x128xf32>, vector<8x128xf32> -> vector<8x128xf32>
    %c0_37 = arith.constant 0 : index
    %c0_38 = arith.constant 0 : index
    %39 = vector.load %arg11[%c0_37, %c0_38] : memref<1x128xf32, #tpu.memory_space<vmem>>, vector<1x128xf32>
    %40 = vector.broadcast %39 : vector<1x128xf32> to vector<8x128xf32>
    %41 = arith.addf %38, %40 : vector<8x128xf32>
    %c0_39 = arith.constant 0 : index
    %c0_40 = arith.constant 0 : index
    %42 = vector.load %arg12[%c0_39, %c0_40] : memref<8x128xf32, #tpu.memory_space<vmem>>, vector<8x128xf32>
    tpu.vector_store %arg12[%c0_39, %c0_40], %41 {strides = array<i32>} : memref<8x128xf32, #tpu.memory_space<vmem>>, vector<8x128xf32>,
    return
  }
  func.func @transform_0(%arg0: i32) -> (i32, i32, i32) {
    %c0_i32 = arith.constant 0 : i32
    %c0_i32_0 = arith.constant 0 : i32
    %c0_i32_1 = arith.constant 0 : i32
    return %arg0, %c0_i32, %c0_i32_0 : i32, i32, i32
  }
  func.func @transform_1(%arg0: i32) -> (i32, i32, i32) {
    %c0_i32 = arith.constant 0 : i32
    %c0_i32_0 = arith.constant 0 : i32
    %c0_i32_1 = arith.constant 0 : i32
    return %arg0, %c0_i32, %c0_i32_0 : i32, i32, i32
  }
  func.func @transform_2(%arg0: i32) -> (i32, i32, i32) {
    %c0_i32 = arith.constant 0 : i32
    %c0_i32_0 = arith.constant 0 : i32
    %c0_i32_1 = arith.constant 0 : i32
    return %arg0, %c0_i32, %c0_i32_0 : i32, i32, i32
  }
  func.func @transform_3(%arg0: i32) -> (i32, i32) {
    %c0_i32 = arith.constant 0 : i32
    %c0_i32_0 = arith.constant 0 : i32
    %c0_i32_1 = arith.constant 0 : i32
    return %c0_i32, %c0_i32_0 : i32, i32
  }
  func.func @transform_4(%arg0: i32) -> (i32, i32) {
    %c0_i32 = arith.constant 0 : i32
    %c0_i32_0 = arith.constant 0 : i32
    %c0_i32_1 = arith.constant 0 : i32
    return %c0_i32, %c0_i32_0 : i32, i32
  }
  func.func @transform_5(%arg0: i32) -> (i32, i32) {
    %c0_i32 = arith.constant 0 : i32
    %c0_i32_0 = arith.constant 0 : i32
    %c0_i32_1 = arith.constant 0 : i32
    return %c0_i32, %c0_i32_0 : i32, i32
  }
  func.func @transform_6(%arg0: i32) -> (i32, i32) {
    %c0_i32 = arith.constant 0 : i32
    %c0_i32_0 = arith.constant 0 : i32
    %c0_i32_1 = arith.constant 0 : i32
    return %c0_i32, %c0_i32_0 : i32, i32
  }
  func.func @transform_7(%arg0: i32) -> (i32, i32) {
    %c0_i32 = arith.constant 0 : i32
    %c0_i32_0 = arith.constant 0 : i32
    %c0_i32_1 = arith.constant 0 : i32
    return %c0_i32, %c0_i32_0 : i32, i32
  }
  func.func @transform_8(%arg0: i32) -> (i32, i32) {
    %c0_i32 = arith.constant 0 : i32
    %c0_i32_0 = arith.constant 0 : i32
    %c0_i32_1 = arith.constant 0 : i32
    return %c0_i32, %c0_i32_0 : i32, i32
  }
  func.func @transform_9(%arg0: i32) -> (i32, i32) {
    %c0_i32 = arith.constant 0 : i32
    %c0_i32_0 = arith.constant 0 : i32
    %c0_i32_1 = arith.constant 0 : i32
    return %c0_i32, %c0_i32_0 : i32, i32
  }
  func.func @transform_10(%arg0: i32) -> (i32, i32) {
    %c0_i32 = arith.constant 0 : i32
    %c0_i32_0 = arith.constant 0 : i32
    %c0_i32_1 = arith.constant 0 : i32
    return %c0_i32, %c0_i32_0 : i32, i32
  }
  func.func @transform_11(%arg0: i32) -> (i32, i32) {
    %c0_i32 = arith.constant 0 : i32
    %c0_i32_0 = arith.constant 0 : i32
    return %arg0, %c0_i32 : i32, i32
  }
}

</mosaic_0001>

<llo_original>
// kernel: tpu_custom_call.1
$region0: #{tpu_custom_call.1}
  #allocation0 [shape = 'u32[]', space=smem, size = 0x4, offset = 0x4, fixed_abs, tag = 'smem constant byte address 0x4 - core index']
  #allocation1 [shape = 'u32[144,128]{1,0:T(1,128)}', space=vmem, size = 0x12000, scoped, tag = 'internal scratch']
  %s0 = inlined_call_operand.vmem [shape: f32[64,128,128], index: 0, kind: input, shape index: {}]
  %s1 = inlined_call_operand.vmem [shape: f32[64,128,16], index: 1, kind: input, shape index: {}]
  %s2 = inlined_call_operand.vmem [shape: f32[64,1,128], index: 2, kind: input, shape index: {}]
  %s3 = inlined_call_operand.vmem [shape: f32[16,128], index: 3, kind: input, shape index: {}]
  %s4 = inlined_call_operand.vmem [shape: f32[1,128], index: 4, kind: input, shape index: {}]
  %s5 = inlined_call_operand.vmem [shape: f32[128,128], index: 5, kind: input, shape index: {}]
  %s6 = inlined_call_operand.vmem [shape: f32[1,128], index: 6, kind: input, shape index: {}]
  %s7 = inlined_call_operand.vmem [shape: f32[128,128], index: 7, kind: input, shape index: {}]
  %s8 = inlined_call_operand.vmem [shape: f32[1,128], index: 8, kind: input, shape index: {}]
  %s9 = inlined_call_operand.vmem [shape: f32[128,128], index: 9, kind: input, shape index: {}]
  %s10 = inlined_call_operand.vmem [shape: f32[1,128], index: 10, kind: input, shape index: {}]
  %s11 = inlined_call_operand.hbm [shape: f32[64,128], index: 11, kind: output, shape index: {}]
  %s12 = sld [smem:[#allocation0]]
  $region77: #{tpu_custom_call.1} parent=0
    _
  %s14 = ssub.s32 1, %s12
  %s15 = scalar_select 0, %s14, %s12
  $region1: #{tpu_custom_call.1} parent=0
    #allocation2 [shape = 'u8[8192]{0}', space=vmem, size = 0x2000, scoped, tag = 'output window, operand 0']
    #allocation3 [shape = 's32[2]{0}', space=sflag, size = 0x8, scoped, tag = 'scoped memory for tpu_custom_call.1']
    %16 = vsyncpa [#allocation3], 0
    %s17 = scalar_lea.sflag [#allocation3], 1
    %18 = vsyncpa %s17, 0
    loop: start=0, step=1, limit=10
    $region2: #{tpu_custom_call.1} parent=1 // loop_pre_header
      _
    $region3: #{tpu_custom_call.1} parent=1 // loop_header
      %s20 = sphi 0, %s24
      %p21 = scmp.ge.s32.totalorder %s20, 10
      %s30 = sphi 0, %s32
      %s33 = sphi 0, %s30
      %s34 = sphi 0, %s33
      %s50 = sphi 0, %s34
      %s56 = sphi 0, %s58
      %s59 = sphi 0, %s56
      %s60 = sphi 0, %s59
      %s76 = sphi 0, %s60
      %s82 = sphi 0, %s84
      %s85 = sphi 0, %s82
      %s86 = sphi 0, %s85
      %s102 = sphi 0, %s86
      %s106 = sphi 0, %s106
      %s108 = sphi 0, %s106
      %s109 = sphi 0, %s108
      %s123 = sphi 0, %s109
      %s127 = sphi 0, %s127
      %s129 = sphi 0, %s127
      %s130 = sphi 0, %s129
      %s144 = sphi 0, %s130
      %s148 = sphi 0, %s148
      %s150 = sphi 0, %s148
      %s151 = sphi 0, %s150
      %s165 = sphi 0, %s151
      %s169 = sphi 0, %s169
      %s171 = sphi 0, %s169
      %s172 = sphi 0, %s171
      %s186 = sphi 0, %s172
      %s190 = sphi 0, %s190
      %s192 = sphi 0, %s190
      %s193 = sphi 0, %s192
      %s207 = sphi 0, %s193
      %s211 = sphi 0, %s211
      %s213 = sphi 0, %s211
      %s214 = sphi 0, %s213
      %s228 = sphi 0, %s214
      %s232 = sphi 0, %s232
      %s234 = sphi 0, %s232
      %s235 = sphi 0, %s234
      %s249 = sphi 0, %s235
      %s253 = sphi 0, %s253
      %s255 = sphi 0, %s253
      %s256 = sphi 0, %s255
      %s270 = sphi 0, %s256
      %s276 = sphi 0, %s278
      %s279 = sphi 0, %s276
      %s280 = sphi 0, %s279
      %s296 = sphi 0, %s280
    $region4: #{tpu_custom_call.1} parent=1 // loop_header_branch
      %23 = sbr.rel (%p21) target = $region8
    $region5: #{tpu_custom_call.1} parent=1 // loop_body
      %s25 = ssub.s32 %s20, 1
      %s26 = ssub.s32 %s20, 2
      %s27 = sadd.s32 %s20, 1
      %s28 = ssub.s32 %s20, %s27
      %p29 = scmp.eq.s32.totalorder %s28, 0
      %s31 = sadd.s32 %s30, 1
      %s32 = scalar_select %p29, %s30, %s31
      %p35 = pneg %p29
      %p36 = scmp.eq.s32.totalorder %s20, 7
      %p37 = por %p35, %p36
      %p38 = scmp.ne.s32.totalorder %s30, %s33
      %p39 = scmp.eq.s32.totalorder %s20, 0
      %p40 = por %p38, %p39
      %p41 = scmp.ne.s32.totalorder %s30, %s33
      %p42 = scmp.eq.s32.totalorder %s25, 7
      %p43 = por %p41, %p42
      %p44 = scmp.ne.s32.totalorder %s33, %s34
      %p45 = scmp.eq.s32.totalorder %s25, 0
      %p46 = por %p44, %p45
      %p47 = scmp.ne.s32.totalorder %s33, %s34
      %p48 = scmp.eq.s32.totalorder %s26, 7
      %p49 = por %p47, %p48
      %p51 = scmp.ne.s32.totalorder %s34, %s50
      %p52 = scmp.eq.s32.totalorder %s26, 0
      %p53 = por %p51, %p52
      %s54 = ssub.s32 %s20, %s27
      %p55 = scmp.eq.s32.totalorder %s54, 0
      %s57 = sadd.s32 %s56, 1
      %s58 = scalar_select %p55, %s56, %s57
      %p61 = pneg %p55
      %p62 = scmp.eq.s32.totalorder %s20, 7
      %p63 = por %p61, %p62
      %p64 = scmp.ne.s32.totalorder %s56, %s59
      %p65 = scmp.eq.s32.totalorder %s20, 0
      %p66 = por %p64, %p65
      %p67 = scmp.ne.s32.totalorder %s56, %s59
      %p68 = scmp.eq.s32.totalorder %s25, 7
      %p69 = por %p67, %p68
      %p70 = scmp.ne.s32.totalorder %s59, %s60
      %p71 = scmp.eq.s32.totalorder %s25, 0
      %p72 = por %p70, %p71
      %p73 = scmp.ne.s32.totalorder %s59, %s60
      %p74 = scmp.eq.s32.totalorder %s26, 7
      %p75 = por %p73, %p74
      %p77 = scmp.ne.s32.totalorder %s60, %s76
      %p78 = scmp.eq.s32.totalorder %s26, 0
      %p79 = por %p77, %p78
      %s80 = ssub.s32 %s20, %s27
      %p81 = scmp.eq.s32.totalorder %s80, 0
      %s83 = sadd.s32 %s82, 1
      %s84 = scalar_select %p81, %s82, %s83
      %p87 = pneg %p81
      %p88 = scmp.eq.s32.totalorder %s20, 7
      %p89 = por %p87, %p88
      %p90 = scmp.ne.s32.totalorder %s82, %s85
      %p91 = scmp.eq.s32.totalorder %s20, 0
      %p92 = por %p90, %p91
      %p93 = scmp.ne.s32.totalorder %s82, %s85
      %p94 = scmp.eq.s32.totalorder %s25, 7
      %p95 = por %p93, %p94
      %p96 = scmp.ne.s32.totalorder %s85, %s86
      %p97 = scmp.eq.s32.totalorder %s25, 0
      %p98 = por %p96, %p97
      %p99 = scmp.ne.s32.totalorder %s85, %s86
      %p100 = scmp.eq.s32.totalorder %s26, 7
      %p101 = por %p99, %p100
      %p103 = scmp.ne.s32.totalorder %s86, %s102
      %p104 = scmp.eq.s32.totalorder %s26, 0
      %p105 = por %p103, %p104
      %s107 = sadd.s32 %s106, 1
      %p110 = scmp.eq.s32.totalorder %s20, 7
      %p111 = scmp.ne.s32.totalorder %s106, %s108
      %p112 = scmp.eq.s32.totalorder %s20, 0
      %p113 = por %p111, %p112
      %p114 = scmp.ne.s32.totalorder %s106, %s108
      %p115 = scmp.eq.s32.totalorder %s25, 7
      %p116 = por %p114, %p115
      %p117 = scmp.ne.s32.totalorder %s108, %s109
      %p118 = scmp.eq.s32.totalorder %s25, 0
      %p119 = por %p117, %p118
      %p120 = scmp.ne.s32.totalorder %s108, %s109
      %p121 = scmp.eq.s32.totalorder %s26, 7
      %p122 = por %p120, %p121
      %p124 = scmp.ne.s32.totalorder %s109, %s123
      %p125 = scmp.eq.s32.totalorder %s26, 0
      %p126 = por %p124, %p125
      %s128 = sadd.s32 %s127, 1
      %p131 = scmp.eq.s32.totalorder %s20, 7
      %p132 = scmp.ne.s32.totalorder %s127, %s129
      %p133 = scmp.eq.s32.totalorder %s20, 0
      %p134 = por %p132, %p133
      %p135 = scmp.ne.s32.totalorder %s127, %s129
      %p136 = scmp.eq.s32.totalorder %s25, 7
      %p137 = por %p135, %p136
      %p138 = scmp.ne.s32.totalorder %s129, %s130
      %p139 = scmp.eq.s32.totalorder %s25, 0
      %p140 = por %p138, %p139
      %p141 = scmp.ne.s32.totalorder %s129, %s130
      %p142 = scmp.eq.s32.totalorder %s26, 7
      %p143 = por %p141, %p142
      %p145 = scmp.ne.s32.totalorder %s130, %s144
      %p146 = scmp.eq.s32.totalorder %s26, 0
      %p147 = por %p145, %p146
      %s149 = sadd.s32 %s148, 1
      %p152 = scmp.eq.s32.totalorder %s20, 7
      %p153 = scmp.ne.s32.totalorder %s148, %s150
      %p154 = scmp.eq.s32.totalorder %s20, 0
      %p155 = por %p153, %p154
      %p156 = scmp.ne.s32.totalorder %s148, %s150
      %p157 = scmp.eq.s32.totalorder %s25, 7
      %p158 = por %p156, %p157
      %p159 = scmp.ne.s32.totalorder %s150, %s151
      %p160 = scmp.eq.s32.totalorder %s25, 0
      %p161 = por %p159, %p160
      %p162 = scmp.ne.s32.totalorder %s150, %s151
      %p163 = scmp.eq.s32.totalorder %s26, 7
      %p164 = por %p162, %p163
      %p166 = scmp.ne.s32.totalorder %s151, %s165
      %p167 = scmp.eq.s32.totalorder %s26, 0
      %p168 = por %p166, %p167
      %s170 = sadd.s32 %s169, 1
      %p173 = scmp.eq.s32.totalorder %s20, 7
      %p174 = scmp.ne.s32.totalorder %s169, %s171
      %p175 = scmp.eq.s32.totalorder %s20, 0
      %p176 = por %p174, %p175
      %p177 = scmp.ne.s32.totalorder %s169, %s171
      %p178 = scmp.eq.s32.totalorder %s25, 7
      %p179 = por %p177, %p178
      %p180 = scmp.ne.s32.totalorder %s171, %s172
      %p181 = scmp.eq.s32.totalorder %s25, 0
      %p182 = por %p180, %p181
      %p183 = scmp.ne.s32.totalorder %s171, %s172
      %p184 = scmp.eq.s32.totalorder %s26, 7
      %p185 = por %p183, %p184
      %p187 = scmp.ne.s32.totalorder %s172, %s186
      %p188 = scmp.eq.s32.totalorder %s26, 0
      %p189 = por %p187, %p188
      %s191 = sadd.s32 %s190, 1
      %p194 = scmp.eq.s32.totalorder %s20, 7
      %p195 = scmp.ne.s32.totalorder %s190, %s192
      %p196 = scmp.eq.s32.totalorder %s20, 0
      %p197 = por %p195, %p196
      %p198 = scmp.ne.s32.totalorder %s190, %s192
      %p199 = scmp.eq.s32.totalorder %s25, 7
      %p200 = por %p198, %p199
      %p201 = scmp.ne.s32.totalorder %s192, %s193
      %p202 = scmp.eq.s32.totalorder %s25, 0
      %p203 = por %p201, %p202
      %p204 = scmp.ne.s32.totalorder %s192, %s193
      %p205 = scmp.eq.s32.totalorder %s26, 7
      %p206 = por %p204, %p205
      %p208 = scmp.ne.s32.totalorder %s193, %s207
      %p209 = scmp.eq.s32.totalorder %s26, 0
      %p210 = por %p208, %p209
      %s212 = sadd.s32 %s211, 1
      %p215 = scmp.eq.s32.totalorder %s20, 7
      %p216 = scmp.ne.s32.totalorder %s211, %s213
      %p217 = scmp.eq.s32.totalorder %s20, 0
      %p218 = por %p216, %p217
      %p219 = scmp.ne.s32.totalorder %s211, %s213
      %p220 = scmp.eq.s32.totalorder %s25, 7
      %p221 = por %p219, %p220
      %p222 = scmp.ne.s32.totalorder %s213, %s214
      %p223 = scmp.eq.s32.totalorder %s25, 0
      %p224 = por %p222, %p223
      %p225 = scmp.ne.s32.totalorder %s213, %s214
      %p226 = scmp.eq.s32.totalorder %s26, 7
      %p227 = por %p225, %p226
      %p229 = scmp.ne.s32.totalorder %s214, %s228
      %p230 = scmp.eq.s32.totalorder %s26, 0
      %p231 = por %p229, %p230
      %s233 = sadd.s32 %s232, 1
      %p236 = scmp.eq.s32.totalorder %s20, 7
      %p237 = scmp.ne.s32.totalorder %s232, %s234
      %p238 = scmp.eq.s32.totalorder %s20, 0
      %p239 = por %p237, %p238
      %p240 = scmp.ne.s32.totalorder %s232, %s234
      %p241 = scmp.eq.s32.totalorder %s25, 7
      %p242 = por %p240, %p241
      %p243 = scmp.ne.s32.totalorder %s234, %s235
      %p244 = scmp.eq.s32.totalorder %s25, 0
      %p245 = por %p243, %p244
      %p246 = scmp.ne.s32.totalorder %s234, %s235
      %p247 = scmp.eq.s32.totalorder %s26, 7
      %p248 = por %p246, %p247
      %p250 = scmp.ne.s32.totalorder %s235, %s249
      %p251 = scmp.eq.s32.totalorder %s26, 0
      %p252 = por %p250, %p251
      %s254 = sadd.s32 %s253, 1
      %p257 = scmp.eq.s32.totalorder %s20, 7
      %p258 = scmp.ne.s32.totalorder %s253, %s255
      %p259 = scmp.eq.s32.totalorder %s20, 0
      %p260 = por %p258, %p259
      %p261 = scmp.ne.s32.totalorder %s253, %s255
      %p262 = scmp.eq.s32.totalorder %s25, 7
      %p263 = por %p261, %p262
      %p264 = scmp.ne.s32.totalorder %s255, %s256
      %p265 = scmp.eq.s32.totalorder %s25, 0
      %p266 = por %p264, %p265
      %p267 = scmp.ne.s32.totalorder %s255, %s256
      %p268 = scmp.eq.s32.totalorder %s26, 7
      %p269 = por %p267, %p268
      %p271 = scmp.ne.s32.totalorder %s256, %s270
      %p272 = scmp.eq.s32.totalorder %s26, 0
      %p273 = por %p271, %p272
      %s274 = ssub.s32 %s20, %s27
      %p275 = scmp.eq.s32.totalorder %s274, 0
      %s277 = sadd.s32 %s276, 1
      %s278 = scalar_select %p275, %s276, %s277
      %p281 = pneg %p275
      %p282 = scmp.eq.s32.totalorder %s20, 7
      %p283 = por %p281, %p282
      %p284 = scmp.ne.s32.totalorder %s276, %s279
      %p285 = scmp.eq.s32.totalorder %s20, 0
      %p286 = por %p284, %p285
      %p287 = scmp.ne.s32.totalorder %s276, %s279
      %p288 = scmp.eq.s32.totalorder %s25, 7
      %p289 = por %p287, %p288
      %p290 = scmp.ne.s32.totalorder %s279, %s280
      %p291 = scmp.eq.s32.totalorder %s25, 0
      %p292 = por %p290, %p291
      %p293 = scmp.ne.s32.totalorder %s279, %s280
      %p294 = scmp.eq.s32.totalorder %s26, 7
      %p295 = por %p293, %p294
      %p297 = scmp.ne.s32.totalorder %s280, %s296
      %p298 = scmp.eq.s32.totalorder %s26, 0
      %p299 = por %p297, %p298
      %p300 = scmp.le.s32.totalorder 1, %s20
      %p301 = scmp.lt.s32.totalorder %s20, 9
      %p302 = pnand %p300, %p301
      %p303 = pneg %p302
      // Predicated region
      $region9: #{tpu_custom_call.1} parent=5 // pred_check
        _
      $region10: #{tpu_custom_call.1} parent=5 // pred_check_branch
        %305 = sbr.rel (%p302) target = $region12
      $region11: #{tpu_custom_call.1} parent=5 // pred_region
        %s306 = ssub.s32 %s20, 1
        // Predicated region
        $region13: #{tpu_custom_call.1} parent=11 // pred_check
          %p307 = pneg %p119
        $region14: #{tpu_custom_call.1} parent=11 // pred_check_branch
          %309 = sbr.rel (%p307) target = $region16
        $region15: #{tpu_custom_call.1} parent=11 // pred_region
          _
        $region16: #{tpu_custom_call.1} parent=11 // pred_fallthru
          _
        // Predicated region
        $region17: #{tpu_custom_call.1} parent=11 // pred_check
          %p310 = pneg %p140
        $region18: #{tpu_custom_call.1} parent=11 // pred_check_branch
          %312 = sbr.rel (%p310) target = $region20
        $region19: #{tpu_custom_call.1} parent=11 // pred_region
          _
        $region20: #{tpu_custom_call.1} parent=11 // pred_fallthru
          _
        // Predicated region
        $region21: #{tpu_custom_call.1} parent=11 // pred_check
          %p313 = pneg %p161
        $region22: #{tpu_custom_call.1} parent=11 // pred_check_branch
          %315 = sbr.rel (%p313) target = $region24
        $region23: #{tpu_custom_call.1} parent=11 // pred_region
          _
        $region24: #{tpu_custom_call.1} parent=11 // pred_fallthru
          _
        // Predicated region
        $region25: #{tpu_custom_call.1} parent=11 // pred_check
          %p316 = pneg %p182
        $region26: #{tpu_custom_call.1} parent=11 // pred_check_branch
          %318 = sbr.rel (%p316) target = $region28
        $region27: #{tpu_custom_call.1} parent=11 // pred_region
          _
        $region28: #{tpu_custom_call.1} parent=11 // pred_fallthru
          _
        // Predicated region
        $region29: #{tpu_custom_call.1} parent=11 // pred_check
          %p319 = pneg %p203
        $region30: #{tpu_custom_call.1} parent=11 // pred_check_branch
          %321 = sbr.rel (%p319) target = $region32
        $region31: #{tpu_custom_call.1} parent=11 // pred_region
          _
        $region32: #{tpu_custom_call.1} parent=11 // pred_fallthru
          _
        // Predicated region
        $region33: #{tpu_custom_call.1} parent=11 // pred_check
          %p322 = pneg %p224
        $region34: #{tpu_custom_call.1} parent=11 // pred_check_branch
          %324 = sbr.rel (%p322) target = $region36
        $region35: #{tpu_custom_call.1} parent=11 // pred_region
          _
        $region36: #{tpu_custom_call.1} parent=11 // pred_fallthru
          _
        // Predicated region
        $region37: #{tpu_custom_call.1} parent=11 // pred_check
          %p325 = pneg %p245
        $region38: #{tpu_custom_call.1} parent=11 // pred_check_branch
          %327 = sbr.rel (%p325) target = $region40
        $region39: #{tpu_custom_call.1} parent=11 // pred_region
          _
        $region40: #{tpu_custom_call.1} parent=11 // pred_fallthru
          _
        // Predicated region
        $region41: #{tpu_custom_call.1} parent=11 // pred_check
          %p328 = pneg %p266
        $region42: #{tpu_custom_call.1} parent=11 // pred_check_branch
          %330 = sbr.rel (%p328) target = $region44
        $region43: #{tpu_custom_call.1} parent=11 // pred_region
          _
        $region44: #{tpu_custom_call.1} parent=11 // pred_fallthru
          _
      $region12: #{tpu_custom_call.1} parent=5 // pred_fallthru
        _
      %p331 = scmp.lt.s32.totalorder %s20, 8
      // Predicated region
      $region45: #{tpu_custom_call.1} parent=5 // pred_check
        %p332 = pneg %p331
      $region46: #{tpu_custom_call.1} parent=5 // pred_check_branch
        %334 = sbr.rel (%p332) target = $region48
      $region47: #{tpu_custom_call.1} parent=5 // pred_region
        // Predicated region
        $region49: #{tpu_custom_call.1} parent=47 // pred_check
          %p335 = pneg %p40
        $region50: #{tpu_custom_call.1} parent=47 // pred_check_branch
          %337 = sbr.rel (%p335) target = $region52
        $region51: #{tpu_custom_call.1} parent=47 // pred_region
          %s338 = smul.u32 8, %s20
          %p339 = scmp.lt.s32.totalorder %s338, 63
          %s340 = scalar_select %p339, %s338, 63
          %s341 = smul.addr %s340, 16
          %s342 = smul.addr %s341, 8
          %s343 = scalar_lea.vmem %s0, %s342
          %s344 = smul.u32 8, %s20
        $region52: #{tpu_custom_call.1} parent=47 // pred_fallthru
          _
        // Predicated region
        $region53: #{tpu_custom_call.1} parent=47 // pred_check
          %p345 = pneg %p66
        $region54: #{tpu_custom_call.1} parent=47 // pred_check_branch
          %347 = sbr.rel (%p345) target = $region56
        $region55: #{tpu_custom_call.1} parent=47 // pred_region
          %s348 = smul.u32 8, %s20
          %p349 = scmp.lt.s32.totalorder %s348, 63
          %s350 = scalar_select %p349, %s348, 63
          %s351 = smul.addr %s350, 16
          %s352 = smul.addr %s351, 8
          %s353 = scalar_lea.vmem %s1, %s352
          %s354 = smul.u32 8, %s20
        $region56: #{tpu_custom_call.1} parent=47 // pred_fallthru
          _
        // Predicated region
        $region57: #{tpu_custom_call.1} parent=47 // pred_check
          %p355 = pneg %p92
        $region58: #{tpu_custom_call.1} parent=47 // pred_check_branch
          %357 = sbr.rel (%p355) target = $region60
        $region59: #{tpu_custom_call.1} parent=47 // pred_region
          %s358 = smul.u32 8, %s20
          %p359 = scmp.lt.s32.totalorder %s358, 63
          %s360 = scalar_select %p359, %s358, 63
          %s361 = scalar_lea.vmem %s2, %s360
          %s362 = smul.u32 8, %s20
        $region60: #{tpu_custom_call.1} parent=47 // pred_fallthru
          _
      $region48: #{tpu_custom_call.1} parent=5 // pred_fallthru
        _
      %p363 = scmp.le.s32.totalorder 1, %s20
      %p364 = scmp.lt.s32.totalorder %s20, 9
      %p365 = pnand %p363, %p364
      %p366 = pneg %p365
      // Predicated region
      $region61: #{tpu_custom_call.1} parent=5 // pred_check
        _
      $region62: #{tpu_custom_call.1} parent=5 // pred_check_branch
        %368 = sbr.rel (%p365) target = $region64
      $region63: #{tpu_custom_call.1} parent=5 // pred_region
        %s369 = ssub.s32 %s20, 1
        %s370 = smul.u32 8, %s25
        %p371 = scmp.lt.s32.totalorder %s370, 63
        %s372 = scalar_select %p371, %s370, 63
        %s373 = smul.addr %s372, 16
        %s374 = smul.addr %s373, 8
        %s375 = scalar_lea.vmem %s0, %s374
        %p376 = pneg %p46
        %p377 = pneg %p43
        %s378 = smul.u32 8, %s25
        %p379 = scmp.lt.s32.totalorder %s378, 63
        %s380 = scalar_select %p379, %s378, 63
        %s381 = smul.addr %s380, 16
        %s382 = smul.addr %s381, 8
        %s383 = scalar_lea.vmem %s1, %s382
        %p384 = pneg %p72
        %p385 = pneg %p69
        %s386 = smul.u32 8, %s25
        %p387 = scmp.lt.s32.totalorder %s386, 63
        %s388 = scalar_select %p387, %s386, 63
        %s389 = scalar_lea.vmem %s2, %s388
        %p390 = pneg %p98
        %p391 = pneg %p95
        %p392 = pneg %p119
        %p393 = pneg %p116
        %p394 = pneg %p140
        %p395 = pneg %p137
        %p396 = pneg %p161
        %p397 = pneg %p158
        %p398 = pneg %p182
        %p399 = pneg %p179
        %p400 = pneg %p203
        %p401 = pneg %p200
        %p402 = pneg %p224
        %p403 = pneg %p221
        %p404 = pneg %p245
        %p405 = pneg %p242
        %p406 = pneg %p266
        %p407 = pneg %p263
        %p408 = pneg %p292
        %p409 = pneg %p289
        %s410 = sand.u32 %s279, 1
        %s411 = scalar_lea.sflag [#allocation3], %s410
        %s412 = sand.u32 %s279, 1
        %s413 = smul.addr %s412, 8
        %s414 = scalar_lea.vmem [#allocation2], %s413
        %s415 = smul.u32 8, %s25
        %p416 = scmp.lt.s32.totalorder %s415, 63
        %s417 = scalar_select %p416, %s415, 63
        %s418 = smul.addr %s417, 16
        %s419 = smul.addr %s418, 8
        %s420 = scalar_lea.vmem %s0, %s419
        %s421 = smul.u32 8, %s25
        %s422 = smul.u32 8, %s25
        %p423 = scmp.lt.s32.totalorder %s422, 63
        %s424 = scalar_select %p423, %s422, 63
        %s425 = smul.addr %s424, 16
        %s426 = smul.addr %s425, 8
        %s427 = scalar_lea.vmem %s1, %s426
        %s428 = smul.u32 8, %s25
        %s429 = smul.u32 8, %s25
        %p430 = scmp.lt.s32.totalorder %s429, 63
        %s431 = scalar_select %p430, %s429, 63
        %s432 = scalar_lea.vmem %s2, %s431
        %s433 = smul.u32 8, %s25
        %v434 = vld [vmem:[%s427] sm:$0xff]
        %v435 = vld [vmem:[%s427 + $0x8] sm:$0xff]
        %v436 = vld [vmem:[%s427 + $0x10] sm:$0xff]
        %v437 = vld [vmem:[%s427 + $0x18] sm:$0xff]
        %v438 = vld [vmem:[%s427 + $0x20] sm:$0xff]
        %v439 = vld [vmem:[%s427 + $0x28] sm:$0xff]
        %v440 = vld [vmem:[%s427 + $0x30] sm:$0xff]
        %v441 = vld [vmem:[%s427 + $0x38] sm:$0xff]
        %v442 = vld [vmem:[%s427 + $0x40] sm:$0xff]
        %v443 = vld [vmem:[%s427 + $0x48] sm:$0xff]
        %v444 = vld [vmem:[%s427 + $0x50] sm:$0xff]
        %v445 = vld [vmem:[%s427 + $0x58] sm:$0xff]
        %v446 = vld [vmem:[%s427 + $0x60] sm:$0xff]
        %v447 = vld [vmem:[%s427 + $0x68] sm:$0xff]
        %v448 = vld [vmem:[%s427 + $0x70] sm:$0xff]
        %v449 = vld [vmem:[%s427 + $0x78] sm:$0xff]
        %v450 = vld [vmem:[%s427 + $0x80] sm:$0xff]
        %v451 = vld [vmem:[%s427 + $0x88] sm:$0xff]
        %v452 = vld [vmem:[%s427 + $0x90] sm:$0xff]
        %v453 = vld [vmem:[%s427 + $0x98] sm:$0xff]
        %v454 = vld [vmem:[%s427 + $0xa0] sm:$0xff]
        %v455 = vld [vmem:[%s427 + $0xa8] sm:$0xff]
        %v456 = vld [vmem:[%s427 + $0xb0] sm:$0xff]
        %v457 = vld [vmem:[%s427 + $0xb8] sm:$0xff]
        %v458 = vld [vmem:[%s427 + $0xc0] sm:$0xff]
        %v459 = vld [vmem:[%s427 + $0xc8] sm:$0xff]
        %v460 = vld [vmem:[%s427 + $0xd0] sm:$0xff]
        %v461 = vld [vmem:[%s427 + $0xd8] sm:$0xff]
        %v462 = vld [vmem:[%s427 + $0xe0] sm:$0xff]
        %v463 = vld [vmem:[%s427 + $0xe8] sm:$0xff]
        %v464 = vld [vmem:[%s427 + $0xf0] sm:$0xff]
        %v465 = vld [vmem:[%s427 + $0xf8] sm:$0xff]
        %v466 = vld [vmem:[%s427 + $0x100] sm:$0xff]
        %v467 = vld [vmem:[%s427 + $0x108] sm:$0xff]
        %v468 = vld [vmem:[%s427 + $0x110] sm:$0xff]
        %v469 = vld [vmem:[%s427 + $0x118] sm:$0xff]
        %v470 = vld [vmem:[%s427 + $0x120] sm:$0xff]
        %v471 = vld [vmem:[%s427 + $0x128] sm:$0xff]
        %v472 = vld [vmem:[%s427 + $0x130] sm:$0xff]
        %v473 = vld [vmem:[%s427 + $0x138] sm:$0xff]
        %v474 = vld [vmem:[%s427 + $0x140] sm:$0xff]
        %v475 = vld [vmem:[%s427 + $0x148] sm:$0xff]
        %v476 = vld [vmem:[%s427 + $0x150] sm:$0xff]
        %v477 = vld [vmem:[%s427 + $0x158] sm:$0xff]
        %v478 = vld [vmem:[%s427 + $0x160] sm:$0xff]
        %v479 = vld [vmem:[%s427 + $0x168] sm:$0xff]
        %v480 = vld [vmem:[%s427 + $0x170] sm:$0xff]
        %v481 = vld [vmem:[%s427 + $0x178] sm:$0xff]
        %v482 = vld [vmem:[%s427 + $0x180] sm:$0xff]
        %v483 = vld [vmem:[%s427 + $0x188] sm:$0xff]
        %v484 = vld [vmem:[%s427 + $0x190] sm:$0xff]
        %v485 = vld [vmem:[%s427 + $0x198] sm:$0xff]
        %v486 = vld [vmem:[%s427 + $0x1a0] sm:$0xff]
        %v487 = vld [vmem:[%s427 + $0x1a8] sm:$0xff]
        %v488 = vld [vmem:[%s427 + $0x1b0] sm:$0xff]
        %v489 = vld [vmem:[%s427 + $0x1b8] sm:$0xff]
        %v490 = vld [vmem:[%s427 + $0x1c0] sm:$0xff]
        %v491 = vld [vmem:[%s427 + $0x1c8] sm:$0xff]
        %v492 = vld [vmem:[%s427 + $0x1d0] sm:$0xff]
        %v493 = vld [vmem:[%s427 + $0x1d8] sm:$0xff]
        %v494 = vld [vmem:[%s427 + $0x1e0] sm:$0xff]
        %v495 = vld [vmem:[%s427 + $0x1e8] sm:$0xff]
        %v496 = vld [vmem:[%s427 + $0x1f0] sm:$0xff]
        %v497 = vld [vmem:[%s427 + $0x1f8] sm:$0xff]
        %v498 = vld [vmem:[%s427 + $0x200] sm:$0xff]
        %v499 = vld [vmem:[%s427 + $0x208] sm:$0xff]
        %v500 = vld [vmem:[%s427 + $0x210] sm:$0xff]
        %v501 = vld [vmem:[%s427 + $0x218] sm:$0xff]
        %v502 = vld [vmem:[%s427 + $0x220] sm:$0xff]
        %v503 = vld [vmem:[%s427 + $0x228] sm:$0xff]
        %v504 = vld [vmem:[%s427 + $0x230] sm:$0xff]
        %v505 = vld [vmem:[%s427 + $0x238] sm:$0xff]
        %v506 = vld [vmem:[%s427 + $0x240] sm:$0xff]
        %v507 = vld [vmem:[%s427 + $0x248] sm:$0xff]
        %v508 = vld [vmem:[%s427 + $0x250] sm:$0xff]
        %v509 = vld [vmem:[%s427 + $0x258] sm:$0xff]
        %v510 = vld [vmem:[%s427 + $0x260] sm:$0xff]
        %v511 = vld [vmem:[%s427 + $0x268] sm:$0xff]
        %v512 = vld [vmem:[%s427 + $0x270] sm:$0xff]
        %v513 = vld [vmem:[%s427 + $0x278] sm:$0xff]
        %v514 = vld [vmem:[%s427 + $0x280] sm:$0xff]
        %v515 = vld [vmem:[%s427 + $0x288] sm:$0xff]
        %v516 = vld [vmem:[%s427 + $0x290] sm:$0xff]
        %v517 = vld [vmem:[%s427 + $0x298] sm:$0xff]
        %v518 = vld [vmem:[%s427 + $0x2a0] sm:$0xff]
        %v519 = vld [vmem:[%s427 + $0x2a8] sm:$0xff]
        %v520 = vld [vmem:[%s427 + $0x2b0] sm:$0xff]
        %v521 = vld [vmem:[%s427 + $0x2b8] sm:$0xff]
        %v522 = vld [vmem:[%s427 + $0x2c0] sm:$0xff]
        %v523 = vld [vmem:[%s427 + $0x2c8] sm:$0xff]
        %v524 = vld [vmem:[%s427 + $0x2d0] sm:$0xff]
        %v525 = vld [vmem:[%s427 + $0x2d8] sm:$0xff]
        %v526 = vld [vmem:[%s427 + $0x2e0] sm:$0xff]
        %v527 = vld [vmem:[%s427 + $0x2e8] sm:$0xff]
        %v528 = vld [vmem:[%s427 + $0x2f0] sm:$0xff]
        %v529 = vld [vmem:[%s427 + $0x2f8] sm:$0xff]
        %v530 = vld [vmem:[%s427 + $0x300] sm:$0xff]
        %v531 = vld [vmem:[%s427 + $0x308] sm:$0xff]
        %v532 = vld [vmem:[%s427 + $0x310] sm:$0xff]
        %v533 = vld [vmem:[%s427 + $0x318] sm:$0xff]
        %v534 = vld [vmem:[%s427 + $0x320] sm:$0xff]
        %v535 = vld [vmem:[%s427 + $0x328] sm:$0xff]
        %v536 = vld [vmem:[%s427 + $0x330] sm:$0xff]
        %v537 = vld [vmem:[%s427 + $0x338] sm:$0xff]
        %v538 = vld [vmem:[%s427 + $0x340] sm:$0xff]
        %v539 = vld [vmem:[%s427 + $0x348] sm:$0xff]
        %v540 = vld [vmem:[%s427 + $0x350] sm:$0xff]
        %v541 = vld [vmem:[%s427 + $0x358] sm:$0xff]
        %v542 = vld [vmem:[%s427 + $0x360] sm:$0xff]
        %v543 = vld [vmem:[%s427 + $0x368] sm:$0xff]
        %v544 = vld [vmem:[%s427 + $0x370] sm:$0xff]
        %v545 = vld [vmem:[%s427 + $0x378] sm:$0xff]
        %v546 = vld [vmem:[%s427 + $0x380] sm:$0xff]
        %v547 = vld [vmem:[%s427 + $0x388] sm:$0xff]
        %v548 = vld [vmem:[%s427 + $0x390] sm:$0xff]
        %v549 = vld [vmem:[%s427 + $0x398] sm:$0xff]
        %v550 = vld [vmem:[%s427 + $0x3a0] sm:$0xff]
        %v551 = vld [vmem:[%s427 + $0x3a8] sm:$0xff]
        %v552 = vld [vmem:[%s427 + $0x3b0] sm:$0xff]
        %v553 = vld [vmem:[%s427 + $0x3b8] sm:$0xff]
        %v554 = vld [vmem:[%s427 + $0x3c0] sm:$0xff]
        %v555 = vld [vmem:[%s427 + $0x3c8] sm:$0xff]
        %v556 = vld [vmem:[%s427 + $0x3d0] sm:$0xff]
        %v557 = vld [vmem:[%s427 + $0x3d8] sm:$0xff]
        %v558 = vld [vmem:[%s427 + $0x3e0] sm:$0xff]
        %v559 = vld [vmem:[%s427 + $0x3e8] sm:$0xff]
        %v560 = vld [vmem:[%s427 + $0x3f0] sm:$0xff]
        %v561 = vld [vmem:[%s427 + $0x3f8] sm:$0xff]
        %v562 = vld [vmem:[%s3] sm:$0xff]
        %v563 = vld [vmem:[%s3 + $0x8] sm:$0xff]
        %vm564 = vcmask 130048
        %v566 = vsel %vm564, %v434, 0
        %v569 = vsel %vm564, %v435, 0
        %v572 = vsel %vm564, %v436, 0
        %v575 = vsel %vm564, %v437, 0
        %v578 = vsel %vm564, %v438, 0
        %v581 = vsel %vm564, %v439, 0
        %v584 = vsel %vm564, %v440, 0
        %v587 = vsel %vm564, %v441, 0
        %v590 = vsel %vm564, %v442, 0
        %v593 = vsel %vm564, %v443, 0
        %v596 = vsel %vm564, %v444, 0
        %v599 = vsel %vm564, %v445, 0
        %v602 = vsel %vm564, %v446, 0
        %v605 = vsel %vm564, %v447, 0
        %v608 = vsel %vm564, %v448, 0
        %v611 = vsel %vm564, %v449, 0
        %v614 = vsel %vm564, %v450, 0
        %v617 = vsel %vm564, %v451, 0
        %v620 = vsel %vm564, %v452, 0
        %v623 = vsel %vm564, %v453, 0
        %v626 = vsel %vm564, %v454, 0
        %v629 = vsel %vm564, %v455, 0
        %v632 = vsel %vm564, %v456, 0
        %v635 = vsel %vm564, %v457, 0
        %v638 = vsel %vm564, %v458, 0
        %v641 = vsel %vm564, %v459, 0
        %v644 = vsel %vm564, %v460, 0
        %v647 = vsel %vm564, %v461, 0
        %v650 = vsel %vm564, %v462, 0
        %v653 = vsel %vm564, %v463, 0
        %v656 = vsel %vm564, %v464, 0
        %v659 = vsel %vm564, %v465, 0
        %v662 = vsel %vm564, %v466, 0
        %v665 = vsel %vm564, %v467, 0
        %v668 = vsel %vm564, %v468, 0
        %v671 = vsel %vm564, %v469, 0
        %v674 = vsel %vm564, %v470, 0
        %v677 = vsel %vm564, %v471, 0
        %v680 = vsel %vm564, %v472, 0
        %v683 = vsel %vm564, %v473, 0
        %v686 = vsel %vm564, %v474, 0
        %v689 = vsel %vm564, %v475, 0
        %v692 = vsel %vm564, %v476, 0
        %v695 = vsel %vm564, %v477, 0
        %v698 = vsel %vm564, %v478, 0
        %v701 = vsel %vm564, %v479, 0
        %v704 = vsel %vm564, %v480, 0
        %v707 = vsel %vm564, %v481, 0
        %v710 = vsel %vm564, %v482, 0
        %v713 = vsel %vm564, %v483, 0
        %v716 = vsel %vm564, %v484, 0
        %v719 = vsel %vm564, %v485, 0
        %v722 = vsel %vm564, %v486, 0
        %v725 = vsel %vm564, %v487, 0
        %v728 = vsel %vm564, %v488, 0
        %v731 = vsel %vm564, %v489, 0
        %v734 = vsel %vm564, %v490, 0
        %v737 = vsel %vm564, %v491, 0
        %v740 = vsel %vm564, %v492, 0
        %v743 = vsel %vm564, %v493, 0
        %v746 = vsel %vm564, %v494, 0
        %v749 = vsel %vm564, %v495, 0
        %v752 = vsel %vm564, %v496, 0
        %v755 = vsel %vm564, %v497, 0
        %v758 = vsel %vm564, %v498, 0
        %v761 = vsel %vm564, %v499, 0
        %v764 = vsel %vm564, %v500, 0
        %v767 = vsel %vm564, %v501, 0
        %v770 = vsel %vm564, %v502, 0
        %v773 = vsel %vm564, %v503, 0
        %v776 = vsel %vm564, %v504, 0
        %v779 = vsel %vm564, %v505, 0
        %v782 = vsel %vm564, %v506, 0
        %v785 = vsel %vm564, %v507, 0
        %v788 = vsel %vm564, %v508, 0
        %v791 = vsel %vm564, %v509, 0
        %v794 = vsel %vm564, %v510, 0
        %v797 = vsel %vm564, %v511, 0
        %v800 = vsel %vm564, %v512, 0
        %v803 = vsel %vm564, %v513, 0
        %v806 = vsel %vm564, %v514, 0
        %v809 = vsel %vm564, %v515, 0
        %v812 = vsel %vm564, %v516, 0
        %v815 = vsel %vm564, %v517, 0
        %v818 = vsel %vm564, %v518, 0
        %v821 = vsel %vm564, %v519, 0
        %v824 = vsel %vm564, %v520, 0
        %v827 = vsel %vm564, %v521, 0
        %v830 = vsel %vm564, %v522, 0
        %v833 = vsel %vm564, %v523, 0
        %v836 = vsel %vm564, %v524, 0
        %v839 = vsel %vm564, %v525, 0
        %v842 = vsel %vm564, %v526, 0
        %v845 = vsel %vm564, %v527, 0
        %v848 = vsel %vm564, %v528, 0
        %v851 = vsel %vm564, %v529, 0
        %v854 = vsel %vm564, %v530, 0
        %v857 = vsel %vm564, %v531, 0
        %v860 = vsel %vm564, %v532, 0
        %v863 = vsel %vm564, %v533, 0
        %v866 = vsel %vm564, %v534, 0
        %v869 = vsel %vm564, %v535, 0
        %v872 = vsel %vm564, %v536, 0
        %v875 = vsel %vm564, %v537, 0
        %v878 = vsel %vm564, %v538, 0
        %v881 = vsel %vm564, %v539, 0
        %v884 = vsel %vm564, %v540, 0
        %v887 = vsel %vm564, %v541, 0
        %v890 = vsel %vm564, %v542, 0
        %v893 = vsel %vm564, %v543, 0
        %v896 = vsel %vm564, %v544, 0
        %v899 = vsel %vm564, %v545, 0
        %v902 = vsel %vm564, %v546, 0
        %v905 = vsel %vm564, %v547, 0
        %v908 = vsel %vm564, %v548, 0
        %v911 = vsel %vm564, %v549, 0
        %v914 = vsel %vm564, %v550, 0
        %v917 = vsel %vm564, %v551, 0
        %v920 = vsel %vm564, %v552, 0
        %v923 = vsel %vm564, %v553, 0
        %v926 = vsel %vm564, %v554, 0
        %v929 = vsel %vm564, %v555, 0
        %v932 = vsel %vm564, %v556, 0
        %v935 = vsel %vm564, %v557, 0
        %v938 = vsel %vm564, %v558, 0
        %v941 = vsel %vm564, %v559, 0
        %v944 = vsel %vm564, %v560, 0
        %v947 = vsel %vm564, %v561, 0
        %949 = vmatprep.subr.mxu0 0.0
        %950 = vmatpush1.msra.mxu0 %v562
        %951 = vmatprep.subr.mxu0 0.0
        %952 = vmatpush1.msra.mxu0 %v563
        %953 = vmatprep.subr.mxu0 0.0
        %954 = vmatpush1.msra.mxu0 0.0
        %955 = vmatprep.subr.mxu0 0.0
        %956 = vmatpush1.msra.mxu0 0.0
        %957 = vmatprep.subr.mxu0 0.0
        %958 = vmatpush1.msra.mxu0 0.0
        %959 = vmatprep.subr.mxu0 0.0
        %960 = vmatpush1.msra.mxu0 0.0
        %961 = vmatprep.subr.mxu0 0.0
        %962 = vmatpush1.msra.mxu0 0.0
        %963 = vmatprep.subr.mxu0 0.0
        %964 = vmatpush1.msra.mxu0 0.0
        %965 = vmatprep.subr.mxu0 0.0
        %966 = vmatpush1.msra.mxu0 0.0
        %967 = vmatprep.subr.mxu0 0.0
        %968 = vmatpush1.msra.mxu0 0.0
        %969 = vmatprep.subr.mxu0 0.0
        %970 = vmatpush1.msra.mxu0 0.0
        %971 = vmatprep.subr.mxu0 0.0
        %972 = vmatpush1.msra.mxu0 0.0
        %973 = vmatprep.subr.mxu0 0.0
        %974 = vmatpush1.msra.mxu0 0.0
        %975 = vmatprep.subr.mxu0 0.0
        %976 = vmatpush1.msra.mxu0 0.0
        %977 = vmatprep.subr.mxu0 0.0
        %978 = vmatpush1.msra.mxu0 0.0
        %979 = vmatprep.subr.mxu0 0.0
        %980 = vmatpush1.msra.mxu0 0.0
        %981 = vmatprep.subr.mxu0 0.0
        %982 = vmatpush1.msra.mxu0 0.0
        %983 = vmatprep.subr.mxu0 0.0
        %984 = vmatpush1.msra.mxu0 0.0
        %985 = vmatprep.subr.mxu0 0.0
        %986 = vmatpush1.msra.mxu0 0.0
        %987 = vmatprep.subr.mxu0 0.0
        %988 = vmatpush1.msra.mxu0 0.0
        %989 = vmatprep.subr.mxu0 0.0
        %990 = vmatpush1.msra.mxu0 0.0
        %991 = vmatprep.subr.mxu0 0.0
        %992 = vmatpush1.msra.mxu0 0.0
        %993 = vmatprep.subr.mxu0 0.0
        %994 = vmatpush1.msra.mxu0 0.0
        %995 = vmatprep.subr.mxu0 0.0
        %996 = vmatpush1.msra.mxu0 0.0
        %997 = vmatprep.subr.mxu0 0.0
        %998 = vmatpush1.msra.mxu0 0.0
        %999 = vmatprep.subr.mxu0 0.0
        %1000 = vmatpush1.msra.mxu0 0.0
        %1001 = vmatprep.subr.mxu0 0.0
        %1002 = vmatpush1.msra.mxu0 0.0
        %1003 = vmatprep.subr.mxu0 0.0
        %1004 = vmatpush1.msra.mxu0 0.0
        %1005 = vmatprep.subr.mxu0 0.0
        %1006 = vmatpush1.msra.mxu0 0.0
        %1007 = vmatprep.subr.mxu0 0.0
        %1008 = vmatpush1.msra.mxu0 0.0
        %1009 = vmatprep.subr.mxu0 0.0
        %1010 = vmatpush1.msra.mxu0 0.0
        %1011 = vmatprep.subr.mxu0 0.0
        %1012 = vmatpush1.msra.mxu0 0.0
        %1013 = vmatprep.mubr.f32.mxu0 0.0
        %1014 = vmatmul.mubr.f32.gmra.mrb[0].mxu0 %v566
        %v1015 = vpop.f32.mrb[0].mxu0
        %v1016 = vadd.f32 0.0, %v1015
        %v1017 = vpop.f32.mrb[0].mxu0
        %1018 = vmatprep.mubr.f32.mxu0 0.0
        %1019 = vmatmul.mubr.f32.gmra.mrb[0].mxu0 %v569
        %v1020 = vpop.f32.mrb[0].mxu0
        %v1021 = vadd.f32 0.0, %v1020
        %v1022 = vpop.f32.mrb[0].mxu0
        %1023 = vmatprep.mubr.f32.mxu0 0.0
        %1024 = vmatmul.mubr.f32.gmra.mrb[0].mxu0 %v572
        %v1025 = vpop.f32.mrb[0].mxu0
        %v1026 = vadd.f32 0.0, %v1025
        %v1027 = vpop.f32.mrb[0].mxu0
        %1028 = vmatprep.mubr.f32.mxu0 0.0
        %1029 = vmatmul.mubr.f32.gmra.mrb[0].mxu0 %v575
        %v1030 = vpop.f32.mrb[0].mxu0
        %v1031 = vadd.f32 0.0, %v1030
        %v1032 = vpop.f32.mrb[0].mxu0
        %1033 = vmatprep.mubr.f32.mxu0 0.0
        %1034 = vmatmul.mubr.f32.gmra.mrb[0].mxu0 %v578
        %v1035 = vpop.f32.mrb[0].mxu0
        %v1036 = vadd.f32 0.0, %v1035
        %v1037 = vpop.f32.mrb[0].mxu0
        %1038 = vmatprep.mubr.f32.mxu0 0.0
        %1039 = vmatmul.mubr.f32.gmra.mrb[0].mxu0 %v581
        %v1040 = vpop.f32.mrb[0].mxu0
        %v1041 = vadd.f32 0.0, %v1040
        %v1042 = vpop.f32.mrb[0].mxu0
        %1043 = vmatprep.mubr.f32.mxu0 0.0
        %1044 = vmatmul.mubr.f32.gmra.mrb[0].mxu0 %v584
        %v1045 = vpop.f32.mrb[0].mxu0
        %v1046 = vadd.f32 0.0, %v1045
        %v1047 = vpop.f32.mrb[0].mxu0
        %1048 = vmatprep.mubr.f32.mxu0 0.0
        %1049 = vmatmul.mubr.f32.gmra.mrb[0].mxu0 %v587
        %v1050 = vpop.f32.mrb[0].mxu0
        %v1051 = vadd.f32 0.0, %v1050
        %v1052 = vpop.f32.mrb[0].mxu0
        %1053 = vmatprep.mubr.f32.mxu0 0.0
        %1054 = vmatmul.mubr.f32.gmra.mrb[0].mxu0 %v590
        %v1055 = vpop.f32.mrb[0].mxu0
        %v1056 = vadd.f32 0.0, %v1055
        %v1057 = vpop.f32.mrb[0].mxu0
        %1058 = vmatprep.mubr.f32.mxu0 0.0
        %1059 = vmatmul.mubr.f32.gmra.mrb[0].mxu0 %v593
        %v1060 = vpop.f32.mrb[0].mxu0
        %v1061 = vadd.f32 0.0, %v1060
        %v1062 = vpop.f32.mrb[0].mxu0
        %1063 = vmatprep.mubr.f32.mxu0 0.0
        %1064 = vmatmul.mubr.f32.gmra.mrb[0].mxu0 %v596
        %v1065 = vpop.f32.mrb[0].mxu0
        %v1066 = vadd.f32 0.0, %v1065
        %v1067 = vpop.f32.mrb[0].mxu0
        %1068 = vmatprep.mubr.f32.mxu0 0.0
        %1069 = vmatmul.mubr.f32.gmra.mrb[0].mxu0 %v599
        %v1070 = vpop.f32.mrb[0].mxu0
        %v1071 = vadd.f32 0.0, %v1070
        %v1072 = vpop.f32.mrb[0].mxu0
        %1073 = vmatprep.mubr.f32.mxu0 0.0
        %1074 = vmatmul.mubr.f32.gmra.mrb[0].mxu0 %v602
        %v1075 = vpop.f32.mrb[0].mxu0
        %v1076 = vadd.f32 0.0, %v1075
        %v1077 = vpop.f32.mrb[0].mxu0
        %1078 = vmatprep.mubr.f32.mxu0 0.0
        %1079 = vmatmul.mubr.f32.gmra.mrb[0].mxu0 %v605
        %v1080 = vpop.f32.mrb[0].mxu0
        %v1081 = vadd.f32 0.0, %v1080
        %v1082 = vpop.f32.mrb[0].mxu0
        %1083 = vmatprep.mubr.f32.mxu0 0.0
        %1084 = vmatmul.mubr.f32.gmra.mrb[0].mxu0 %v608
        %v1085 = vpop.f32.mrb[0].mxu0
        %v1086 = vadd.f32 0.0, %v1085
        %v1087 = vpop.f32.mrb[0].mxu0
        %1088 = vmatprep.mubr.f32.mxu0 0.0
        %1089 = vmatmul.mubr.f32.gmra.mrb[0].mxu0 %v611
        %v1090 = vpop.f32.mrb[0].mxu0
        %v1091 = vadd.f32 0.0, %v1090
        %v1092 = vpop.f32.mrb[0].mxu0
        %1093 = vmatprep.mubr.f32.mxu0 0.0
        %1094 = vmatmul.mubr.f32.gmra.mrb[0].mxu0 %v614
        %v1095 = vpop.f32.mrb[0].mxu0
        %v1096 = vadd.f32 0.0, %v1095
        %v1097 = vpop.f32.mrb[0].mxu0
        %1098 = vmatprep.mubr.f32.mxu0 0.0
        %1099 = vmatmul.mubr.f32.gmra.mrb[0].mxu0 %v617
        %v1100 = vpop.f32.mrb[0].mxu0
        %v1101 = vadd.f32 0.0, %v1100
        %v1102 = vpop.f32.mrb[0].mxu0
        %1103 = vmatprep.mubr.f32.mxu0 0.0
        %1104 = vmatmul.mubr.f32.gmra.mrb[0].mxu0 %v620
        %v1105 = vpop.f32.mrb[0].mxu0
        %v1106 = vadd.f32 0.0, %v1105
        %v1107 = vpop.f32.mrb[0].mxu0
        %1108 = vmatprep.mubr.f32.mxu0 0.0
        %1109 = vmatmul.mubr.f32.gmra.mrb[0].mxu0 %v623
        %v1110 = vpop.f32.mrb[0].mxu0
        %v1111 = vadd.f32 0.0, %v1110
        %v1112 = vpop.f32.mrb[0].mxu0
        %1113 = vmatprep.mubr.f32.mxu0 0.0
        %1114 = vmatmul.mubr.f32.gmra.mrb[0].mxu0 %v626
        %v1115 = vpop.f32.mrb[0].mxu0
        %v1116 = vadd.f32 0.0, %v1115
        %v1117 = vpop.f32.mrb[0].mxu0
        %1118 = vmatprep.mubr.f32.mxu0 0.0
        %1119 = vmatmul.mubr.f32.gmra.mrb[0].mxu0 %v629
        %v1120 = vpop.f32.mrb[0].mxu0
        %v1121 = vadd.f32 0.0, %v1120
        %v1122 = vpop.f32.mrb[0].mxu0
        %1123 = vmatprep.mubr.f32.mxu0 0.0
        %1124 = vmatmul.mubr.f32.gmra.mrb[0].mxu0 %v632
        %v1125 = vpop.f32.mrb[0].mxu0
        %v1126 = vadd.f32 0.0, %v1125
        %v1127 = vpop.f32.mrb[0].mxu0
        %1128 = vmatprep.mubr.f32.mxu0 0.0
        %1129 = vmatmul.mubr.f32.gmra.mrb[0].mxu0 %v635
        %v1130 = vpop.f32.mrb[0].mxu0
        %v1131 = vadd.f32 0.0, %v1130
        %v1132 = vpop.f32.mrb[0].mxu0
        %1133 = vmatprep.mubr.f32.mxu0 0.0
        %1134 = vmatmul.mubr.f32.gmra.mrb[0].mxu0 %v638
        %v1135 = vpop.f32.mrb[0].mxu0
        %v1136 = vadd.f32 0.0, %v1135
        %v1137 = vpop.f32.mrb[0].mxu0
        %1138 = vmatprep.mubr.f32.mxu0 0.0
        %1139 = vmatmul.mubr.f32.gmra.mrb[0].mxu0 %v641
        %v1140 = vpop.f32.mrb[0].mxu0
        %v1141 = vadd.f32 0.0, %v1140
        %v1142 = vpop.f32.mrb[0].mxu0
        %1143 = vmatprep.mubr.f32.mxu0 0.0
        %1144 = vmatmul.mubr.f32.gmra.mrb[0].mxu0 %v644
        %v1145 = vpop.f32.mrb[0].mxu0
        %v1146 = vadd.f32 0.0, %v1145
        %v1147 = vpop.f32.mrb[0].mxu0
        %1148 = vmatprep.mubr.f32.mxu0 0.0
        %1149 = vmatmul.mubr.f32.gmra.mrb[0].mxu0 %v647
        %v1150 = vpop.f32.mrb[0].mxu0
        %v1151 = vadd.f32 0.0, %v1150
        %v1152 = vpop.f32.mrb[0].mxu0
        %1153 = vmatprep.mubr.f32.mxu0 0.0
        %1154 = vmatmul.mubr.f32.gmra.mrb[0].mxu0 %v650
        %v1155 = vpop.f32.mrb[0].mxu0
        %v1156 = vadd.f32 0.0, %v1155
        %v1157 = vpop.f32.mrb[0].mxu0
        %1158 = vmatprep.mubr.f32.mxu0 0.0
        %1159 = vmatmul.mubr.f32.gmra.mrb[0].mxu0 %v653
        %v1160 = vpop.f32.mrb[0].mxu0
        %v1161 = vadd.f32 0.0, %v1160
        %v1162 = vpop.f32.mrb[0].mxu0
        %1163 = vmatprep.mubr.f32.mxu0 0.0
        %1164 = vmatmul.mubr.f32.gmra.mrb[0].mxu0 %v656
        %v1165 = vpop.f32.mrb[0].mxu0
        %v1166 = vadd.f32 0.0, %v1165
        %v1167 = vpop.f32.mrb[0].mxu0
        %1168 = vmatprep.mubr.f32.mxu0 0.0
        %1169 = vmatmul.mubr.f32.gmra.mrb[0].mxu0 %v659
        %v1170 = vpop.f32.mrb[0].mxu0
        %v1171 = vadd.f32 0.0, %v1170
        %v1172 = vpop.f32.mrb[0].mxu0
        %1173 = vmatprep.mubr.f32.mxu0 0.0
        %1174 = vmatmul.mubr.f32.gmra.mrb[0].mxu0 %v662
        %v1175 = vpop.f32.mrb[0].mxu0
        %v1176 = vadd.f32 0.0, %v1175
        %v1177 = vpop.f32.mrb[0].mxu0
        %1178 = vmatprep.mubr.f32.mxu0 0.0
        %1179 = vmatmul.mubr.f32.gmra.mrb[0].mxu0 %v665
        %v1180 = vpop.f32.mrb[0].mxu0
        %v1181 = vadd.f32 0.0, %v1180
        %v1182 = vpop.f32.mrb[0].mxu0
        %1183 = vmatprep.mubr.f32.mxu0 0.0
        %1184 = vmatmul.mubr.f32.gmra.mrb[0].mxu0 %v668
        %v1185 = vpop.f32.mrb[0].mxu0
        %v1186 = vadd.f32 0.0, %v1185
        %v1187 = vpop.f32.mrb[0].mxu0
        %1188 = vmatprep.mubr.f32.mxu0 0.0
        %1189 = vmatmul.mubr.f32.gmra.mrb[0].mxu0 %v671
        %v1190 = vpop.f32.mrb[0].mxu0
        %v1191 = vadd.f32 0.0, %v1190
        %v1192 = vpop.f32.mrb[0].mxu0
        %1193 = vmatprep.mubr.f32.mxu0 0.0
        %1194 = vmatmul.mubr.f32.gmra.mrb[0].mxu0 %v674
        %v1195 = vpop.f32.mrb[0].mxu0
        %v1196 = vadd.f32 0.0, %v1195
        %v1197 = vpop.f32.mrb[0].mxu0
        %1198 = vmatprep.mubr.f32.mxu0 0.0
        %1199 = vmatmul.mubr.f32.gmra.mrb[0].mxu0 %v677
        %v1200 = vpop.f32.mrb[0].mxu0
        %v1201 = vadd.f32 0.0, %v1200
        %v1202 = vpop.f32.mrb[0].mxu0
        %1203 = vmatprep.mubr.f32.mxu0 0.0
        %1204 = vmatmul.mubr.f32.gmra.mrb[0].mxu0 %v680
        %v1205 = vpop.f32.mrb[0].mxu0
        %v1206 = vadd.f32 0.0, %v1205
        %v1207 = vpop.f32.mrb[0].mxu0
        %1208 = vmatprep.mubr.f32.mxu0 0.0
        %1209 = vmatmul.mubr.f32.gmra.mrb[0].mxu0 %v683
        %v1210 = vpop.f32.mrb[0].mxu0
        %v1211 = vadd.f32 0.0, %v1210
        %v1212 = vpop.f32.mrb[0].mxu0
        %1213 = vmatprep.mubr.f32.mxu0 0.0
        %1214 = vmatmul.mubr.f32.gmra.mrb[0].mxu0 %v686
        %v1215 = vpop.f32.mrb[0].mxu0
        %v1216 = vadd.f32 0.0, %v1215
        %v1217 = vpop.f32.mrb[0].mxu0
        %1218 = vmatprep.mubr.f32.mxu0 0.0
        %1219 = vmatmul.mubr.f32.gmra.mrb[0].mxu0 %v689
        %v1220 = vpop.f32.mrb[0].mxu0
        %v1221 = vadd.f32 0.0, %v1220
        %v1222 = vpop.f32.mrb[0].mxu0
        %1223 = vmatprep.mubr.f32.mxu0 0.0
        %1224 = vmatmul.mubr.f32.gmra.mrb[0].mxu0 %v692
        %v1225 = vpop.f32.mrb[0].mxu0
        %v1226 = vadd.f32 0.0, %v1225
        %v1227 = vpop.f32.mrb[0].mxu0
        %1228 = vmatprep.mubr.f32.mxu0 0.0
        %1229 = vmatmul.mubr.f32.gmra.mrb[0].mxu0 %v695
        %v1230 = vpop.f32.mrb[0].mxu0
        %v1231 = vadd.f32 0.0, %v1230
        %v1232 = vpop.f32.mrb[0].mxu0
        %1233 = vmatprep.mubr.f32.mxu0 0.0
        %1234 = vmatmul.mubr.f32.gmra.mrb[0].mxu0 %v698
        %v1235 = vpop.f32.mrb[0].mxu0
        %v1236 = vadd.f32 0.0, %v1235
        %v1237 = vpop.f32.mrb[0].mxu0
        %1238 = vmatprep.mubr.f32.mxu0 0.0
        %1239 = vmatmul.mubr.f32.gmra.mrb[0].mxu0 %v701
        %v1240 = vpop.f32.mrb[0].mxu0
        %v1241 = vadd.f32 0.0, %v1240
        %v1242 = vpop.f32.mrb[0].mxu0
        %1243 = vmatprep.mubr.f32.mxu0 0.0
        %1244 = vmatmul.mubr.f32.gmra.mrb[0].mxu0 %v704
        %v1245 = vpop.f32.mrb[0].mxu0
        %v1246 = vadd.f32 0.0, %v1245
        %v1247 = vpop.f32.mrb[0].mxu0
        %1248 = vmatprep.mubr.f32.mxu0 0.0
        %1249 = vmatmul.mubr.f32.gmra.mrb[0].mxu0 %v707
        %v1250 = vpop.f32.mrb[0].mxu0
        %v1251 = vadd.f32 0.0, %v1250
        %v1252 = vpop.f32.mrb[0].mxu0
        %1253 = vmatprep.mubr.f32.mxu0 0.0
        %1254 = vmatmul.mubr.f32.gmra.mrb[0].mxu0 %v710
        %v1255 = vpop.f32.mrb[0].mxu0
        %v1256 = vadd.f32 0.0, %v1255
        %v1257 = vpop.f32.mrb[0].mxu0
        %1258 = vmatprep.mubr.f32.mxu0 0.0
        %1259 = vmatmul.mubr.f32.gmra.mrb[0].mxu0 %v713
        %v1260 = vpop.f32.mrb[0].mxu0
        %v1261 = vadd.f32 0.0, %v1260
        %v1262 = vpop.f32.mrb[0].mxu0
        %1263 = vmatprep.mubr.f32.mxu0 0.0
        %1264 = vmatmul.mubr.f32.gmra.mrb[0].mxu0 %v716
        %v1265 = vpop.f32.mrb[0].mxu0
        %v1266 = vadd.f32 0.0, %v1265
        %v1267 = vpop.f32.mrb[0].mxu0
        %1268 = vmatprep.mubr.f32.mxu0 0.0
        %1269 = vmatmul.mubr.f32.gmra.mrb[0].mxu0 %v719
        %v1270 = vpop.f32.mrb[0].mxu0
        %v1271 = vadd.f32 0.0, %v1270
        %v1272 = vpop.f32.mrb[0].mxu0
        %1273 = vmatprep.mubr.f32.mxu0 0.0
        %1274 = vmatmul.mubr.f32.gmra.mrb[0].mxu0 %v722
        %v1275 = vpop.f32.mrb[0].mxu0
        %v1276 = vadd.f32 0.0, %v1275
        %v1277 = vpop.f32.mrb[0].mxu0
        %1278 = vmatprep.mubr.f32.mxu0 0.0
        %1279 = vmatmul.mubr.f32.gmra.mrb[0].mxu0 %v725
        %v1280 = vpop.f32.mrb[0].mxu0
        %v1281 = vadd.f32 0.0, %v1280
        %v1282 = vpop.f32.mrb[0].mxu0
        %1283 = vmatprep.mubr.f32.mxu0 0.0
        %1284 = vmatmul.mubr.f32.gmra.mrb[0].mxu0 %v728
        %v1285 = vpop.f32.mrb[0].mxu0
        %v1286 = vadd.f32 0.0, %v1285
        %v1287 = vpop.f32.mrb[0].mxu0
        %1288 = vmatprep.mubr.f32.mxu0 0.0
        %1289 = vmatmul.mubr.f32.gmra.mrb[0].mxu0 %v731
        %v1290 = vpop.f32.mrb[0].mxu0
        %v1291 = vadd.f32 0.0, %v1290
        %v1292 = vpop.f32.mrb[0].mxu0
        %1293 = vmatprep.mubr.f32.mxu0 0.0
        %1294 = vmatmul.mubr.f32.gmra.mrb[0].mxu0 %v734
        %v1295 = vpop.f32.mrb[0].mxu0
        %v1296 = vadd.f32 0.0, %v1295
        %v1297 = vpop.f32.mrb[0].mxu0
        %1298 = vmatprep.mubr.f32.mxu0 0.0
        %1299 = vmatmul.mubr.f32.gmra.mrb[0].mxu0 %v737
        %v1300 = vpop.f32.mrb[0].mxu0
        %v1301 = vadd.f32 0.0, %v1300
        %v1302 = vpop.f32.mrb[0].mxu0
        %1303 = vmatprep.mubr.f32.mxu0 0.0
        %1304 = vmatmul.mubr.f32.gmra.mrb[0].mxu0 %v740
        %v1305 = vpop.f32.mrb[0].mxu0
        %v1306 = vadd.f32 0.0, %v1305
        %v1307 = vpop.f32.mrb[0].mxu0
        %1308 = vmatprep.mubr.f32.mxu0 0.0
        %1309 = vmatmul.mubr.f32.gmra.mrb[0].mxu0 %v743
        %v1310 = vpop.f32.mrb[0].mxu0
        %v1311 = vadd.f32 0.0, %v1310
        %v1312 = vpop.f32.mrb[0].mxu0
        %1313 = vmatprep.mubr.f32.mxu0 0.0
        %1314 = vmatmul.mubr.f32.gmra.mrb[0].mxu0 %v746
        %v1315 = vpop.f32.mrb[0].mxu0
        %v1316 = vadd.f32 0.0, %v1315
        %v1317 = vpop.f32.mrb[0].mxu0
        %1318 = vmatprep.mubr.f32.mxu0 0.0
        %1319 = vmatmul.mubr.f32.gmra.mrb[0].mxu0 %v749
        %v1320 = vpop.f32.mrb[0].mxu0
        %v1321 = vadd.f32 0.0, %v1320
        %v1322 = vpop.f32.mrb[0].mxu0
        %1323 = vmatprep.mubr.f32.mxu0 0.0
        %1324 = vmatmul.mubr.f32.gmra.mrb[0].mxu0 %v752
        %v1325 = vpop.f32.mrb[0].mxu0
        %v1326 = vadd.f32 0.0, %v1325
        %v1327 = vpop.f32.mrb[0].mxu0
        %1328 = vmatprep.mubr.f32.mxu0 0.0
        %1329 = vmatmul.mubr.f32.gmra.mrb[0].mxu0 %v755
        %v1330 = vpop.f32.mrb[0].mxu0
        %v1331 = vadd.f32 0.0, %v1330
        %v1332 = vpop.f32.mrb[0].mxu0
        %1333 = vmatprep.mubr.f32.mxu0 0.0
        %1334 = vmatmul.mubr.f32.gmra.mrb[0].mxu0 %v758
        %v1335 = vpop.f32.mrb[0].mxu0
        %v1336 = vadd.f32 0.0, %v1335
        %v1337 = vpop.f32.mrb[0].mxu0
        %1338 = vmatprep.mubr.f32.mxu0 0.0
        %1339 = vmatmul.mubr.f32.gmra.mrb[0].mxu0 %v761
        %v1340 = vpop.f32.mrb[0].mxu0
        %v1341 = vadd.f32 0.0, %v1340
        %v1342 = vpop.f32.mrb[0].mxu0
        %1343 = vmatprep.mubr.f32.mxu0 0.0
        %1344 = vmatmul.mubr.f32.gmra.mrb[0].mxu0 %v764
        %v1345 = vpop.f32.mrb[0].mxu0
        %v1346 = vadd.f32 0.0, %v1345
        %v1347 = vpop.f32.mrb[0].mxu0
        %1348 = vmatprep.mubr.f32.mxu0 0.0
        %1349 = vmatmul.mubr.f32.gmra.mrb[0].mxu0 %v767
        %v1350 = vpop.f32.mrb[0].mxu0
        %v1351 = vadd.f32 0.0, %v1350
        %v1352 = vpop.f32.mrb[0].mxu0
        %1353 = vmatprep.mubr.f32.mxu0 0.0
        %1354 = vmatmul.mubr.f32.gmra.mrb[0].mxu0 %v770
        %v1355 = vpop.f32.mrb[0].mxu0
        %v1356 = vadd.f32 0.0, %v1355
        %v1357 = vpop.f32.mrb[0].mxu0
        %1358 = vmatprep.mubr.f32.mxu0 0.0
        %1359 = vmatmul.mubr.f32.gmra.mrb[0].mxu0 %v773
        %v1360 = vpop.f32.mrb[0].mxu0
        %v1361 = vadd.f32 0.0, %v1360
        %v1362 = vpop.f32.mrb[0].mxu0
        %1363 = vmatprep.mubr.f32.mxu0 0.0
        %1364 = vmatmul.mubr.f32.gmra.mrb[0].mxu0 %v776
        %v1365 = vpop.f32.mrb[0].mxu0
        %v1366 = vadd.f32 0.0, %v1365
        %v1367 = vpop.f32.mrb[0].mxu0
        %1368 = vmatprep.mubr.f32.mxu0 0.0
        %1369 = vmatmul.mubr.f32.gmra.mrb[0].mxu0 %v779
        %v1370 = vpop.f32.mrb[0].mxu0
        %v1371 = vadd.f32 0.0, %v1370
        %v1372 = vpop.f32.mrb[0].mxu0
        %1373 = vmatprep.mubr.f32.mxu0 0.0
        %1374 = vmatmul.mubr.f32.gmra.mrb[0].mxu0 %v782
        %v1375 = vpop.f32.mrb[0].mxu0
        %v1376 = vadd.f32 0.0, %v1375
        %v1377 = vpop.f32.mrb[0].mxu0
        %1378 = vmatprep.mubr.f32.mxu0 0.0
        %1379 = vmatmul.mubr.f32.gmra.mrb[0].mxu0 %v785
        %v1380 = vpop.f32.mrb[0].mxu0
        %v1381 = vadd.f32 0.0, %v1380
        %v1382 = vpop.f32.mrb[0].mxu0
        %1383 = vmatprep.mubr.f32.mxu0 0.0
        %1384 = vmatmul.mubr.f32.gmra.mrb[0].mxu0 %v788
        %v1385 = vpop.f32.mrb[0].mxu0
        %v1386 = vadd.f32 0.0, %v1385
        %v1387 = vpop.f32.mrb[0].mxu0
        %1388 = vmatprep.mubr.f32.mxu0 0.0
        %1389 = vmatmul.mubr.f32.gmra.mrb[0].mxu0 %v791
        %v1390 = vpop.f32.mrb[0].mxu0
        %v1391 = vadd.f32 0.0, %v1390
        %v1392 = vpop.f32.mrb[0].mxu0
        %1393 = vmatprep.mubr.f32.mxu0 0.0
        %1394 = vmatmul.mubr.f32.gmra.mrb[0].mxu0 %v794
        %v1395 = vpop.f32.mrb[0].mxu0
        %v1396 = vadd.f32 0.0, %v1395
        %v1397 = vpop.f32.mrb[0].mxu0
        %1398 = vmatprep.mubr.f32.mxu0 0.0
        %1399 = vmatmul.mubr.f32.gmra.mrb[0].mxu0 %v797
        %v1400 = vpop.f32.mrb[0].mxu0
        %v1401 = vadd.f32 0.0, %v1400
        %v1402 = vpop.f32.mrb[0].mxu0
        %1403 = vmatprep.mubr.f32.mxu0 0.0
        %1404 = vmatmul.mubr.f32.gmra.mrb[0].mxu0 %v800
        %v1405 = vpop.f32.mrb[0].mxu0
        %v1406 = vadd.f32 0.0, %v1405
        %v1407 = vpop.f32.mrb[0].mxu0
        %1408 = vmatprep.mubr.f32.mxu0 0.0
        %1409 = vmatmul.mubr.f32.gmra.mrb[0].mxu0 %v803
        %v1410 = vpop.f32.mrb[0].mxu0
        %v1411 = vadd.f32 0.0, %v1410
        %v1412 = vpop.f32.mrb[0].mxu0
        %1413 = vmatprep.mubr.f32.mxu0 0.0
        %1414 = vmatmul.mubr.f32.gmra.mrb[0].mxu0 %v806
        %v1415 = vpop.f32.mrb[0].mxu0
        %v1416 = vadd.f32 0.0, %v1415
        %v1417 = vpop.f32.mrb[0].mxu0
        %1418 = vmatprep.mubr.f32.mxu0 0.0
        %1419 = vmatmul.mubr.f32.gmra.mrb[0].mxu0 %v809
        %v1420 = vpop.f32.mrb[0].mxu0
        %v1421 = vadd.f32 0.0, %v1420
        %v1422 = vpop.f32.mrb[0].mxu0
        %1423 = vmatprep.mubr.f32.mxu0 0.0
        %1424 = vmatmul.mubr.f32.gmra.mrb[0].mxu0 %v812
        %v1425 = vpop.f32.mrb[0].mxu0
        %v1426 = vadd.f32 0.0, %v1425
        %v1427 = vpop.f32.mrb[0].mxu0
        %1428 = vmatprep.mubr.f32.mxu0 0.0
        %1429 = vmatmul.mubr.f32.gmra.mrb[0].mxu0 %v815
        %v1430 = vpop.f32.mrb[0].mxu0
        %v1431 = vadd.f32 0.0, %v1430
        %v1432 = vpop.f32.mrb[0].mxu0
        %1433 = vmatprep.mubr.f32.mxu0 0.0
        %1434 = vmatmul.mubr.f32.gmra.mrb[0].mxu0 %v818
        %v1435 = vpop.f32.mrb[0].mxu0
        %v1436 = vadd.f32 0.0, %v1435
        %v1437 = vpop.f32.mrb[0].mxu0
        %1438 = vmatprep.mubr.f32.mxu0 0.0
        %1439 = vmatmul.mubr.f32.gmra.mrb[0].mxu0 %v821
        %v1440 = vpop.f32.mrb[0].mxu0
        %v1441 = vadd.f32 0.0, %v1440
        %v1442 = vpop.f32.mrb[0].mxu0
        %1443 = vmatprep.mubr.f32.mxu0 0.0
        %1444 = vmatmul.mubr.f32.gmra.mrb[0].mxu0 %v824
        %v1445 = vpop.f32.mrb[0].mxu0
        %v1446 = vadd.f32 0.0, %v1445
        %v1447 = vpop.f32.mrb[0].mxu0
        %1448 = vmatprep.mubr.f32.mxu0 0.0
        %1449 = vmatmul.mubr.f32.gmra.mrb[0].mxu0 %v827
        %v1450 = vpop.f32.mrb[0].mxu0
        %v1451 = vadd.f32 0.0, %v1450
        %v1452 = vpop.f32.mrb[0].mxu0
        %1453 = vmatprep.mubr.f32.mxu0 0.0
        %1454 = vmatmul.mubr.f32.gmra.mrb[0].mxu0 %v830
        %v1455 = vpop.f32.mrb[0].mxu0
        %v1456 = vadd.f32 0.0, %v1455
        %v1457 = vpop.f32.mrb[0].mxu0
        %1458 = vmatprep.mubr.f32.mxu0 0.0
        %1459 = vmatmul.mubr.f32.gmra.mrb[0].mxu0 %v833
        %v1460 = vpop.f32.mrb[0].mxu0
        %v1461 = vadd.f32 0.0, %v1460
        %v1462 = vpop.f32.mrb[0].mxu0
        %1463 = vmatprep.mubr.f32.mxu0 0.0
        %1464 = vmatmul.mubr.f32.gmra.mrb[0].mxu0 %v836
        %v1465 = vpop.f32.mrb[0].mxu0
        %v1466 = vadd.f32 0.0, %v1465
        %v1467 = vpop.f32.mrb[0].mxu0
        %1468 = vmatprep.mubr.f32.mxu0 0.0
        %1469 = vmatmul.mubr.f32.gmra.mrb[0].mxu0 %v839
        %v1470 = vpop.f32.mrb[0].mxu0
        %v1471 = vadd.f32 0.0, %v1470
        %v1472 = vpop.f32.mrb[0].mxu0
        %1473 = vmatprep.mubr.f32.mxu0 0.0
        %1474 = vmatmul.mubr.f32.gmra.mrb[0].mxu0 %v842
        %v1475 = vpop.f32.mrb[0].mxu0
        %v1476 = vadd.f32 0.0, %v1475
        %v1477 = vpop.f32.mrb[0].mxu0
        %1478 = vmatprep.mubr.f32.mxu0 0.0
        %1479 = vmatmul.mubr.f32.gmra.mrb[0].mxu0 %v845
        %v1480 = vpop.f32.mrb[0].mxu0
        %v1481 = vadd.f32 0.0, %v1480
        %v1482 = vpop.f32.mrb[0].mxu0
        %1483 = vmatprep.mubr.f32.mxu0 0.0
        %1484 = vmatmul.mubr.f32.gmra.mrb[0].mxu0 %v848
        %v1485 = vpop.f32.mrb[0].mxu0
        %v1486 = vadd.f32 0.0, %v1485
        %v1487 = vpop.f32.mrb[0].mxu0
        %1488 = vmatprep.mubr.f32.mxu0 0.0
        %1489 = vmatmul.mubr.f32.gmra.mrb[0].mxu0 %v851
        %v1490 = vpop.f32.mrb[0].mxu0
        %v1491 = vadd.f32 0.0, %v1490
        %v1492 = vpop.f32.mrb[0].mxu0
        %1493 = vmatprep.mubr.f32.mxu0 0.0
        %1494 = vmatmul.mubr.f32.gmra.mrb[0].mxu0 %v854
        %v1495 = vpop.f32.mrb[0].mxu0
        %v1496 = vadd.f32 0.0, %v1495
        %v1497 = vpop.f32.mrb[0].mxu0
        %1498 = vmatprep.mubr.f32.mxu0 0.0
        %1499 = vmatmul.mubr.f32.gmra.mrb[0].mxu0 %v857
        %v1500 = vpop.f32.mrb[0].mxu0
        %v1501 = vadd.f32 0.0, %v1500
        %v1502 = vpop.f32.mrb[0].mxu0
        %1503 = vmatprep.mubr.f32.mxu0 0.0
        %1504 = vmatmul.mubr.f32.gmra.mrb[0].mxu0 %v860
        %v1505 = vpop.f32.mrb[0].mxu0
        %v1506 = vadd.f32 0.0, %v1505
        %v1507 = vpop.f32.mrb[0].mxu0
        %1508 = vmatprep.mubr.f32.mxu0 0.0
        %1509 = vmatmul.mubr.f32.gmra.mrb[0].mxu0 %v863
        %v1510 = vpop.f32.mrb[0].mxu0
        %v1511 = vadd.f32 0.0, %v1510
        %v1512 = vpop.f32.mrb[0].mxu0
        %1513 = vmatprep.mubr.f32.mxu0 0.0
        %1514 = vmatmul.mubr.f32.gmra.mrb[0].mxu0 %v866
        %v1515 = vpop.f32.mrb[0].mxu0
        %v1516 = vadd.f32 0.0, %v1515
        %v1517 = vpop.f32.mrb[0].mxu0
        %1518 = vmatprep.mubr.f32.mxu0 0.0
        %1519 = vmatmul.mubr.f32.gmra.mrb[0].mxu0 %v869
        %v1520 = vpop.f32.mrb[0].mxu0
        %v1521 = vadd.f32 0.0, %v1520
        %v1522 = vpop.f32.mrb[0].mxu0
        %1523 = vmatprep.mubr.f32.mxu0 0.0
        %1524 = vmatmul.mubr.f32.gmra.mrb[0].mxu0 %v872
        %v1525 = vpop.f32.mrb[0].mxu0
        %v1526 = vadd.f32 0.0, %v1525
        %v1527 = vpop.f32.mrb[0].mxu0
        %1528 = vmatprep.mubr.f32.mxu0 0.0
        %1529 = vmatmul.mubr.f32.gmra.mrb[0].mxu0 %v875
        %v1530 = vpop.f32.mrb[0].mxu0
        %v1531 = vadd.f32 0.0, %v1530
        %v1532 = vpop.f32.mrb[0].mxu0
        %1533 = vmatprep.mubr.f32.mxu0 0.0
        %1534 = vmatmul.mubr.f32.gmra.mrb[0].mxu0 %v878
        %v1535 = vpop.f32.mrb[0].mxu0
        %v1536 = vadd.f32 0.0, %v1535
        %v1537 = vpop.f32.mrb[0].mxu0
        %1538 = vmatprep.mubr.f32.mxu0 0.0
        %1539 = vmatmul.mubr.f32.gmra.mrb[0].mxu0 %v881
        %v1540 = vpop.f32.mrb[0].mxu0
        %v1541 = vadd.f32 0.0, %v1540
        %v1542 = vpop.f32.mrb[0].mxu0
        %1543 = vmatprep.mubr.f32.mxu0 0.0
        %1544 = vmatmul.mubr.f32.gmra.mrb[0].mxu0 %v884
        %v1545 = vpop.f32.mrb[0].mxu0
        %v1546 = vadd.f32 0.0, %v1545
        %v1547 = vpop.f32.mrb[0].mxu0
        %1548 = vmatprep.mubr.f32.mxu0 0.0
        %1549 = vmatmul.mubr.f32.gmra.mrb[0].mxu0 %v887
        %v1550 = vpop.f32.mrb[0].mxu0
        %v1551 = vadd.f32 0.0, %v1550
        %v1552 = vpop.f32.mrb[0].mxu0
        %1553 = vmatprep.mubr.f32.mxu0 0.0
        %1554 = vmatmul.mubr.f32.gmra.mrb[0].mxu0 %v890
        %v1555 = vpop.f32.mrb[0].mxu0
        %v1556 = vadd.f32 0.0, %v1555
        %v1557 = vpop.f32.mrb[0].mxu0
        %1558 = vmatprep.mubr.f32.mxu0 0.0
        %1559 = vmatmul.mubr.f32.gmra.mrb[0].mxu0 %v893
        %v1560 = vpop.f32.mrb[0].mxu0
        %v1561 = vadd.f32 0.0, %v1560
        %v1562 = vpop.f32.mrb[0].mxu0
        %1563 = vmatprep.mubr.f32.mxu0 0.0
        %1564 = vmatmul.mubr.f32.gmra.mrb[0].mxu0 %v896
        %v1565 = vpop.f32.mrb[0].mxu0
        %v1566 = vadd.f32 0.0, %v1565
        %v1567 = vpop.f32.mrb[0].mxu0
        %1568 = vmatprep.mubr.f32.mxu0 0.0
        %1569 = vmatmul.mubr.f32.gmra.mrb[0].mxu0 %v899
        %v1570 = vpop.f32.mrb[0].mxu0
        %v1571 = vadd.f32 0.0, %v1570
        %v1572 = vpop.f32.mrb[0].mxu0
        %1573 = vmatprep.mubr.f32.mxu0 0.0
        %1574 = vmatmul.mubr.f32.gmra.mrb[0].mxu0 %v902
        %v1575 = vpop.f32.mrb[0].mxu0
        %v1576 = vadd.f32 0.0, %v1575
        %v1577 = vpop.f32.mrb[0].mxu0
        %1578 = vmatprep.mubr.f32.mxu0 0.0
        %1579 = vmatmul.mubr.f32.gmra.mrb[0].mxu0 %v905
        %v1580 = vpop.f32.mrb[0].mxu0
        %v1581 = vadd.f32 0.0, %v1580
        %v1582 = vpop.f32.mrb[0].mxu0
        %1583 = vmatprep.mubr.f32.mxu0 0.0
        %1584 = vmatmul.mubr.f32.gmra.mrb[0].mxu0 %v908
        %v1585 = vpop.f32.mrb[0].mxu0
        %v1586 = vadd.f32 0.0, %v1585
        %v1587 = vpop.f32.mrb[0].mxu0
        %1588 = vmatprep.mubr.f32.mxu0 0.0
        %1589 = vmatmul.mubr.f32.gmra.mrb[0].mxu0 %v911
        %v1590 = vpop.f32.mrb[0].mxu0
        %v1591 = vadd.f32 0.0, %v1590
        %v1592 = vpop.f32.mrb[0].mxu0
        %1593 = vmatprep.mubr.f32.mxu0 0.0
        %1594 = vmatmul.mubr.f32.gmra.mrb[0].mxu0 %v914
        %v1595 = vpop.f32.mrb[0].mxu0
        %v1596 = vadd.f32 0.0, %v1595
        %v1597 = vpop.f32.mrb[0].mxu0
        %1598 = vmatprep.mubr.f32.mxu0 0.0
        %1599 = vmatmul.mubr.f32.gmra.mrb[0].mxu0 %v917
        %v1600 = vpop.f32.mrb[0].mxu0
        %v1601 = vadd.f32 0.0, %v1600
        %v1602 = vpop.f32.mrb[0].mxu0
        %1603 = vmatprep.mubr.f32.mxu0 0.0
        %1604 = vmatmul.mubr.f32.gmra.mrb[0].mxu0 %v920
        %v1605 = vpop.f32.mrb[0].mxu0
        %v1606 = vadd.f32 0.0, %v1605
        %v1607 = vpop.f32.mrb[0].mxu0
        %1608 = vmatprep.mubr.f32.mxu0 0.0
        %1609 = vmatmul.mubr.f32.gmra.mrb[0].mxu0 %v923
        %v1610 = vpop.f32.mrb[0].mxu0
        %v1611 = vadd.f32 0.0, %v1610
        %v1612 = vpop.f32.mrb[0].mxu0
        %1613 = vmatprep.mubr.f32.mxu0 0.0
        %1614 = vmatmul.mubr.f32.gmra.mrb[0].mxu0 %v926
        %v1615 = vpop.f32.mrb[0].mxu0
        %v1616 = vadd.f32 0.0, %v1615
        %v1617 = vpop.f32.mrb[0].mxu0
        %1618 = vmatprep.mubr.f32.mxu0 0.0
        %1619 = vmatmul.mubr.f32.gmra.mrb[0].mxu0 %v929
        %v1620 = vpop.f32.mrb[0].mxu0
        %v1621 = vadd.f32 0.0, %v1620
        %v1622 = vpop.f32.mrb[0].mxu0
        %1623 = vmatprep.mubr.f32.mxu0 0.0
        %1624 = vmatmul.mubr.f32.gmra.mrb[0].mxu0 %v932
        %v1625 = vpop.f32.mrb[0].mxu0
        %v1626 = vadd.f32 0.0, %v1625
        %v1627 = vpop.f32.mrb[0].mxu0
        %1628 = vmatprep.mubr.f32.mxu0 0.0
        %1629 = vmatmul.mubr.f32.gmra.mrb[0].mxu0 %v935
        %v1630 = vpop.f32.mrb[0].mxu0
        %v1631 = vadd.f32 0.0, %v1630
        %v1632 = vpop.f32.mrb[0].mxu0
        %1633 = vmatprep.mubr.f32.mxu0 0.0
        %1634 = vmatmul.mubr.f32.gmra.mrb[0].mxu0 %v938
        %v1635 = vpop.f32.mrb[0].mxu0
        %v1636 = vadd.f32 0.0, %v1635
        %v1637 = vpop.f32.mrb[0].mxu0
        %1638 = vmatprep.mubr.f32.mxu0 0.0
        %1639 = vmatmul.mubr.f32.gmra.mrb[0].mxu0 %v941
        %v1640 = vpop.f32.mrb[0].mxu0
        %v1641 = vadd.f32 0.0, %v1640
        %v1642 = vpop.f32.mrb[0].mxu0
        %1643 = vmatprep.mubr.f32.mxu0 0.0
        %1644 = vmatmul.mubr.f32.gmra.mrb[0].mxu0 %v944
        %v1645 = vpop.f32.mrb[0].mxu0
        %v1646 = vadd.f32 0.0, %v1645
        %v1647 = vpop.f32.mrb[0].mxu0
        %1648 = vmatprep.mubr.f32.mxu0 0.0
        %1649 = vmatmul.mubr.f32.gmra.mrb[0].mxu0 %v947
        %v1650 = vpop.f32.mrb[0].mxu0
        %v1651 = vadd.f32 0.0, %v1650
        %v1652 = vpop.f32.mrb[0].mxu0
        %1653 = vdwg.mxu0
        %v1654 = vld [vmem:[%s420] sm:$0xff]
        %v1655 = vld [vmem:[%s420 + $0x8] sm:$0xff]
        %v1656 = vld [vmem:[%s420 + $0x10] sm:$0xff]
        %v1657 = vld [vmem:[%s420 + $0x18] sm:$0xff]
        %v1658 = vld [vmem:[%s420 + $0x20] sm:$0xff]
        %v1659 = vld [vmem:[%s420 + $0x28] sm:$0xff]
        %v1660 = vld [vmem:[%s420 + $0x30] sm:$0xff]
        %v1661 = vld [vmem:[%s420 + $0x38] sm:$0xff]
        %v1662 = vld [vmem:[%s420 + $0x40] sm:$0xff]
        %v1663 = vld [vmem:[%s420 + $0x48] sm:$0xff]
        %v1664 = vld [vmem:[%s420 + $0x50] sm:$0xff]
        %v1665 = vld [vmem:[%s420 + $0x58] sm:$0xff]
        %v1666 = vld [vmem:[%s420 + $0x60] sm:$0xff]
        %v1667 = vld [vmem:[%s420 + $0x68] sm:$0xff]
        %v1668 = vld [vmem:[%s420 + $0x70] sm:$0xff]
        %v1669 = vld [vmem:[%s420 + $0x78] sm:$0xff]
        %v1670 = vld [vmem:[%s420 + $0x80] sm:$0xff]
        %v1671 = vld [vmem:[%s420 + $0x88] sm:$0xff]
        %v1672 = vld [vmem:[%s420 + $0x90] sm:$0xff]
        %v1673 = vld [vmem:[%s420 + $0x98] sm:$0xff]
        %v1674 = vld [vmem:[%s420 + $0xa0] sm:$0xff]
        %v1675 = vld [vmem:[%s420 + $0xa8] sm:$0xff]
        %v1676 = vld [vmem:[%s420 + $0xb0] sm:$0xff]
        %v1677 = vld [vmem:[%s420 + $0xb8] sm:$0xff]
        %v1678 = vld [vmem:[%s420 + $0xc0] sm:$0xff]
        %v1679 = vld [vmem:[%s420 + $0xc8] sm:$0xff]
        %v1680 = vld [vmem:[%s420 + $0xd0] sm:$0xff]
        %v1681 = vld [vmem:[%s420 + $0xd8] sm:$0xff]
        %v1682 = vld [vmem:[%s420 + $0xe0] sm:$0xff]
        %v1683 = vld [vmem:[%s420 + $0xe8] sm:$0xff]
        %v1684 = vld [vmem:[%s420 + $0xf0] sm:$0xff]
        %v1685 = vld [vmem:[%s420 + $0xf8] sm:$0xff]
        %v1686 = vld [vmem:[%s420 + $0x100] sm:$0xff]
        %v1687 = vld [vmem:[%s420 + $0x108] sm:$0xff]
        %v1688 = vld [vmem:[%s420 + $0x110] sm:$0xff]
        %v1689 = vld [vmem:[%s420 + $0x118] sm:$0xff]
        %v1690 = vld [vmem:[%s420 + $0x120] sm:$0xff]
        %v1691 = vld [vmem:[%s420 + $0x128] sm:$0xff]
        %v1692 = vld [vmem:[%s420 + $0x130] sm:$0xff]
        %v1693 = vld [vmem:[%s420 + $0x138] sm:$0xff]
        %v1694 = vld [vmem:[%s420 + $0x140] sm:$0xff]
        %v1695 = vld [vmem:[%s420 + $0x148] sm:$0xff]
        %v1696 = vld [vmem:[%s420 + $0x150] sm:$0xff]
        %v1697 = vld [vmem:[%s420 + $0x158] sm:$0xff]
        %v1698 = vld [vmem:[%s420 + $0x160] sm:$0xff]
        %v1699 = vld [vmem:[%s420 + $0x168] sm:$0xff]
        %v1700 = vld [vmem:[%s420 + $0x170] sm:$0xff]
        %v1701 = vld [vmem:[%s420 + $0x178] sm:$0xff]
        %v1702 = vld [vmem:[%s420 + $0x180] sm:$0xff]
        %v1703 = vld [vmem:[%s420 + $0x188] sm:$0xff]
        %v1704 = vld [vmem:[%s420 + $0x190] sm:$0xff]
        %v1705 = vld [vmem:[%s420 + $0x198] sm:$0xff]
        %v1706 = vld [vmem:[%s420 + $0x1a0] sm:$0xff]
        %v1707 = vld [vmem:[%s420 + $0x1a8] sm:$0xff]
        %v1708 = vld [vmem:[%s420 + $0x1b0] sm:$0xff]
        %v1709 = vld [vmem:[%s420 + $0x1b8] sm:$0xff]
        %v1710 = vld [vmem:[%s420 + $0x1c0] sm:$0xff]
        %v1711 = vld [vmem:[%s420 + $0x1c8] sm:$0xff]
        %v1712 = vld [vmem:[%s420 + $0x1d0] sm:$0xff]
        %v1713 = vld [vmem:[%s420 + $0x1d8] sm:$0xff]
        %v1714 = vld [vmem:[%s420 + $0x1e0] sm:$0xff]
        %v1715 = vld [vmem:[%s420 + $0x1e8] sm:$0xff]
        %v1716 = vld [vmem:[%s420 + $0x1f0] sm:$0xff]
        %v1717 = vld [vmem:[%s420 + $0x1f8] sm:$0xff]
        %v1718 = vld [vmem:[%s420 + $0x200] sm:$0xff]
        %v1719 = vld [vmem:[%s420 + $0x208] sm:$0xff]
        %v1720 = vld [vmem:[%s420 + $0x210] sm:$0xff]
        %v1721 = vld [vmem:[%s420 + $0x218] sm:$0xff]
        %v1722 = vld [vmem:[%s420 + $0x220] sm:$0xff]
        %v1723 = vld [vmem:[%s420 + $0x228] sm:$0xff]
        %v1724 = vld [vmem:[%s420 + $0x230] sm:$0xff]
        %v1725 = vld [vmem:[%s420 + $0x238] sm:$0xff]
        %v1726 = vld [vmem:[%s420 + $0x240] sm:$0xff]
        %v1727 = vld [vmem:[%s420 + $0x248] sm:$0xff]
        %v1728 = vld [vmem:[%s420 + $0x250] sm:$0xff]
        %v1729 = vld [vmem:[%s420 + $0x258] sm:$0xff]
        %v1730 = vld [vmem:[%s420 + $0x260] sm:$0xff]
        %v1731 = vld [vmem:[%s420 + $0x268] sm:$0xff]
        %v1732 = vld [vmem:[%s420 + $0x270] sm:$0xff]
        %v1733 = vld [vmem:[%s420 + $0x278] sm:$0xff]
        %v1734 = vld [vmem:[%s420 + $0x280] sm:$0xff]
        %v1735 = vld [vmem:[%s420 + $0x288] sm:$0xff]
        %v1736 = vld [vmem:[%s420 + $0x290] sm:$0xff]
        %v1737 = vld [vmem:[%s420 + $0x298] sm:$0xff]
        %v1738 = vld [vmem:[%s420 + $0x2a0] sm:$0xff]
        %v1739 = vld [vmem:[%s420 + $0x2a8] sm:$0xff]
        %v1740 = vld [vmem:[%s420 + $0x2b0] sm:$0xff]
        %v1741 = vld [vmem:[%s420 + $0x2b8] sm:$0xff]
        %v1742 = vld [vmem:[%s420 + $0x2c0] sm:$0xff]
        %v1743 = vld [vmem:[%s420 + $0x2c8] sm:$0xff]
        %v1744 = vld [vmem:[%s420 + $0x2d0] sm:$0xff]
        %v1745 = vld [vmem:[%s420 + $0x2d8] sm:$0xff]
        %v1746 = vld [vmem:[%s420 + $0x2e0] sm:$0xff]
        %v1747 = vld [vmem:[%s420 + $0x2e8] sm:$0xff]
        %v1748 = vld [vmem:[%s420 + $0x2f0] sm:$0xff]
        %v1749 = vld [vmem:[%s420 + $0x2f8] sm:$0xff]
        %v1750 = vld [vmem:[%s420 + $0x300] sm:$0xff]
        %v1751 = vld [vmem:[%s420 + $0x308] sm:$0xff]
        %v1752 = vld [vmem:[%s420 + $0x310] sm:$0xff]
        %v1753 = vld [vmem:[%s420 + $0x318] sm:$0xff]
        %v1754 = vld [vmem:[%s420 + $0x320] sm:$0xff]
        %v1755 = vld [vmem:[%s420 + $0x328] sm:$0xff]
        %v1756 = vld [vmem:[%s420 + $0x330] sm:$0xff]
        %v1757 = vld [vmem:[%s420 + $0x338] sm:$0xff]
        %v1758 = vld [vmem:[%s420 + $0x340] sm:$0xff]
        %v1759 = vld [vmem:[%s420 + $0x348] sm:$0xff]
        %v1760 = vld [vmem:[%s420 + $0x350] sm:$0xff]
        %v1761 = vld [vmem:[%s420 + $0x358] sm:$0xff]
        %v1762 = vld [vmem:[%s420 + $0x360] sm:$0xff]
        %v1763 = vld [vmem:[%s420 + $0x368] sm:$0xff]
        %v1764 = vld [vmem:[%s420 + $0x370] sm:$0xff]
        %v1765 = vld [vmem:[%s420 + $0x378] sm:$0xff]
        %v1766 = vld [vmem:[%s420 + $0x380] sm:$0xff]
        %v1767 = vld [vmem:[%s420 + $0x388] sm:$0xff]
        %v1768 = vld [vmem:[%s420 + $0x390] sm:$0xff]
        %v1769 = vld [vmem:[%s420 + $0x398] sm:$0xff]
        %v1770 = vld [vmem:[%s420 + $0x3a0] sm:$0xff]
        %v1771 = vld [vmem:[%s420 + $0x3a8] sm:$0xff]
        %v1772 = vld [vmem:[%s420 + $0x3b0] sm:$0xff]
        %v1773 = vld [vmem:[%s420 + $0x3b8] sm:$0xff]
        %v1774 = vld [vmem:[%s420 + $0x3c0] sm:$0xff]
        %v1775 = vld [vmem:[%s420 + $0x3c8] sm:$0xff]
        %v1776 = vld [vmem:[%s420 + $0x3d0] sm:$0xff]
        %v1777 = vld [vmem:[%s420 + $0x3d8] sm:$0xff]
        %v1778 = vld [vmem:[%s420 + $0x3e0] sm:$0xff]
        %v1779 = vld [vmem:[%s420 + $0x3e8] sm:$0xff]
        %v1780 = vld [vmem:[%s420 + $0x3f0] sm:$0xff]
        %v1781 = vld [vmem:[%s420 + $0x3f8] sm:$0xff]
        %1782 = vmatprep.subr.mxu0 0.0
        %1783 = vmatpush1.msra.mxu0 %v1016
        %1784 = vmatprep.subr.mxu0 0.0
        %1785 = vmatpush1.msra.mxu0 %v1021
        %1786 = vmatprep.subr.mxu0 0.0
        %1787 = vmatpush1.msra.mxu0 %v1026
        %1788 = vmatprep.subr.mxu0 0.0
        %1789 = vmatpush1.msra.mxu0 %v1031
        %1790 = vmatprep.subr.mxu0 0.0
        %1791 = vmatpush1.msra.mxu0 %v1036
        %1792 = vmatprep.subr.mxu0 0.0
        %1793 = vmatpush1.msra.mxu0 %v1041
        %1794 = vmatprep.subr.mxu0 0.0
        %1795 = vmatpush1.msra.mxu0 %v1046
        %1796 = vmatprep.subr.mxu0 0.0
        %1797 = vmatpush1.msra.mxu0 %v1051
        %1798 = vmatprep.subr.mxu0 0.0
        %1799 = vmatpush1.msra.mxu0 %v1056
        %1800 = vmatprep.subr.mxu0 0.0
        %1801 = vmatpush1.msra.mxu0 %v1061
        %1802 = vmatprep.subr.mxu0 0.0
        %1803 = vmatpush1.msra.mxu0 %v1066
        %1804 = vmatprep.subr.mxu0 0.0
        %1805 = vmatpush1.msra.mxu0 %v1071
        %1806 = vmatprep.subr.mxu0 0.0
        %1807 = vmatpush1.msra.mxu0 %v1076
        %1808 = vmatprep.subr.mxu0 0.0
        %1809 = vmatpush1.msra.mxu0 %v1081
        %1810 = vmatprep.subr.mxu0 0.0
        %1811 = vmatpush1.msra.mxu0 %v1086
        %1812 = vmatprep.subr.mxu0 0.0
        %1813 = vmatpush1.msra.mxu0 %v1091
        %1814 = vmatprep.subr.mxu0 0.0
        %1815 = vmatpush1.msra.mxu0 0.0
        %1816 = vmatprep.subr.mxu0 0.0
        %1817 = vmatpush1.msra.mxu0 0.0
        %1818 = vmatprep.subr.mxu0 0.0
        %1819 = vmatpush1.msra.mxu0 0.0
        %1820 = vmatprep.subr.mxu0 0.0
        %1821 = vmatpush1.msra.mxu0 0.0
        %1822 = vmatprep.subr.mxu0 0.0
        %1823 = vmatpush1.msra.mxu0 0.0
        %1824 = vmatprep.subr.mxu0 0.0
        %1825 = vmatpush1.msra.mxu0 0.0
        %1826 = vmatprep.subr.mxu0 0.0
        %1827 = vmatpush1.msra.mxu0 0.0
        %1828 = vmatprep.subr.mxu0 0.0
        %1829 = vmatpush1.msra.mxu0 0.0
        %1830 = vmatprep.subr.mxu0 0.0
        %1831 = vmatpush1.msra.mxu0 0.0
        %1832 = vmatprep.subr.mxu0 0.0
        %1833 = vmatpush1.msra.mxu0 0.0
        %1834 = vmatprep.subr.mxu0 0.0
        %1835 = vmatpush1.msra.mxu0 0.0
        %1836 = vmatprep.subr.mxu0 0.0
        %1837 = vmatpush1.msra.mxu0 0.0
        %1838 = vmatprep.subr.mxu0 0.0
        %1839 = vmatpush1.msra.mxu0 0.0
        %1840 = vmatprep.subr.mxu0 0.0
        %1841 = vmatpush1.msra.mxu0 0.0
        %1842 = vmatprep.subr.mxu0 0.0
        %1843 = vmatpush1.msra.mxu0 0.0
        %1844 = vmatprep.subr.mxu0 0.0
        %1845 = vmatpush1.msra.mxu0 0.0
        %1846 = vmatprep.mubr.f32.mxu0 0.0
        %1847 = vmatmul.mubr.f32.gmra.mrb[0].mxu0 %v1654
        %v1848 = vpop.f32.mrb[0].mxu0
        %v1849 = vadd.f32 0.0, %v1848
        %v1850 = vpop.f32.mrb[0].mxu0
        %1851 = vmatprep.mubr.f32.mxu0 0.0
        %1852 = vmatmul.mubr.f32.gmra.mrb[0].mxu0 %v1655
        %v1853 = vpop.f32.mrb[0].mxu0
        %v1854 = vadd.f32 0.0, %v1853
        %v1855 = vpop.f32.mrb[0].mxu0
        %1856 = vmatprep.mubr.f32.mxu0 0.0
        %1857 = vmatmul.mubr.f32.gmra.mrb[0].mxu0 %v1656
        %v1858 = vpop.f32.mrb[0].mxu0
        %v1859 = vadd.f32 0.0, %v1858
        %v1860 = vpop.f32.mrb[0].mxu0
        %1861 = vmatprep.mubr.f32.mxu0 0.0
        %1862 = vmatmul.mubr.f32.gmra.mrb[0].mxu0 %v1657
        %v1863 = vpop.f32.mrb[0].mxu0
        %v1864 = vadd.f32 0.0, %v1863
        %v1865 = vpop.f32.mrb[0].mxu0
        %1866 = vmatprep.mubr.f32.mxu0 0.0
        %1867 = vmatmul.mubr.f32.gmra.mrb[0].mxu0 %v1658
        %v1868 = vpop.f32.mrb[0].mxu0
        %v1869 = vadd.f32 0.0, %v1868
        %v1870 = vpop.f32.mrb[0].mxu0
        %1871 = vmatprep.mubr.f32.mxu0 0.0
        %1872 = vmatmul.mubr.f32.gmra.mrb[0].mxu0 %v1659
        %v1873 = vpop.f32.mrb[0].mxu0
        %v1874 = vadd.f32 0.0, %v1873
        %v1875 = vpop.f32.mrb[0].mxu0
        %1876 = vmatprep.mubr.f32.mxu0 0.0
        %1877 = vmatmul.mubr.f32.gmra.mrb[0].mxu0 %v1660
        %v1878 = vpop.f32.mrb[0].mxu0
        %v1879 = vadd.f32 0.0, %v1878
        %v1880 = vpop.f32.mrb[0].mxu0
        %1881 = vmatprep.mubr.f32.mxu0 0.0
        %1882 = vmatmul.mubr.f32.gmra.mrb[0].mxu0 %v1661
        %v1883 = vpop.f32.mrb[0].mxu0
        %v1884 = vadd.f32 0.0, %v1883
        %v1885 = vpop.f32.mrb[0].mxu0
        %1886 = vmatprep.mubr.f32.mxu0 0.0
        %1887 = vmatmul.mubr.f32.gmra.mrb[0].mxu0 %v1662
        %v1888 = vpop.f32.mrb[0].mxu0
        %v1889 = vadd.f32 0.0, %v1888
        %v1890 = vpop.f32.mrb[0].mxu0
        %1891 = vmatprep.mubr.f32.mxu0 0.0
        %1892 = vmatmul.mubr.f32.gmra.mrb[0].mxu0 %v1663
        %v1893 = vpop.f32.mrb[0].mxu0
        %v1894 = vadd.f32 0.0, %v1893
        %v1895 = vpop.f32.mrb[0].mxu0
        %1896 = vmatprep.mubr.f32.mxu0 0.0
        %1897 = vmatmul.mubr.f32.gmra.mrb[0].mxu0 %v1664
        %v1898 = vpop.f32.mrb[0].mxu0
        %v1899 = vadd.f32 0.0, %v1898
        %v1900 = vpop.f32.mrb[0].mxu0
        %1901 = vmatprep.mubr.f32.mxu0 0.0
        %1902 = vmatmul.mubr.f32.gmra.mrb[0].mxu0 %v1665
        %v1903 = vpop.f32.mrb[0].mxu0
        %v1904 = vadd.f32 0.0, %v1903
        %v1905 = vpop.f32.mrb[0].mxu0
        %1906 = vmatprep.mubr.f32.mxu0 0.0
        %1907 = vmatmul.mubr.f32.gmra.mrb[0].mxu0 %v1666
        %v1908 = vpop.f32.mrb[0].mxu0
        %v1909 = vadd.f32 0.0, %v1908
        %v1910 = vpop.f32.mrb[0].mxu0
        %1911 = vmatprep.mubr.f32.mxu0 0.0
        %1912 = vmatmul.mubr.f32.gmra.mrb[0].mxu0 %v1667
        %v1913 = vpop.f32.mrb[0].mxu0
        %v1914 = vadd.f32 0.0, %v1913
        %v1915 = vpop.f32.mrb[0].mxu0
        %1916 = vmatprep.mubr.f32.mxu0 0.0
        %1917 = vmatmul.mubr.f32.gmra.mrb[0].mxu0 %v1668
        %v1918 = vpop.f32.mrb[0].mxu0
        %v1919 = vadd.f32 0.0, %v1918
        %v1920 = vpop.f32.mrb[0].mxu0
        %1921 = vmatprep.mubr.f32.mxu0 0.0
        %1922 = vmatmul.mubr.f32.gmra.mrb[0].mxu0 %v1669
        %v1923 = vpop.f32.mrb[0].mxu0
        %v1924 = vadd.f32 0.0, %v1923
        %v1925 = vpop.f32.mrb[0].mxu0
        %1926 = vdwg.mxu0
        %1927 = vmatprep.subr.mxu0 0.0
        %1928 = vmatpush1.msra.mxu0 %v1096
        %1929 = vmatprep.subr.mxu0 0.0
        %1930 = vmatpush1.msra.mxu0 %v1101
        %1931 = vmatprep.subr.mxu0 0.0
        %1932 = vmatpush1.msra.mxu0 %v1106
        %1933 = vmatprep.subr.mxu0 0.0
        %1934 = vmatpush1.msra.mxu0 %v1111
        %1935 = vmatprep.subr.mxu0 0.0
        %1936 = vmatpush1.msra.mxu0 %v1116
        %1937 = vmatprep.subr.mxu0 0.0
        %1938 = vmatpush1.msra.mxu0 %v1121
        %1939 = vmatprep.subr.mxu0 0.0
        %1940 = vmatpush1.msra.mxu0 %v1126
        %1941 = vmatprep.subr.mxu0 0.0
        %1942 = vmatpush1.msra.mxu0 %v1131
        %1943 = vmatprep.subr.mxu0 0.0
        %1944 = vmatpush1.msra.mxu0 %v1136
        %1945 = vmatprep.subr.mxu0 0.0
        %1946 = vmatpush1.msra.mxu0 %v1141
        %1947 = vmatprep.subr.mxu0 0.0
        %1948 = vmatpush1.msra.mxu0 %v1146
        %1949 = vmatprep.subr.mxu0 0.0
        %1950 = vmatpush1.msra.mxu0 %v1151
        %1951 = vmatprep.subr.mxu0 0.0
        %1952 = vmatpush1.msra.mxu0 %v1156
        %1953 = vmatprep.subr.mxu0 0.0
        %1954 = vmatpush1.msra.mxu0 %v1161
        %1955 = vmatprep.subr.mxu0 0.0
        %1956 = vmatpush1.msra.mxu0 %v1166
        %1957 = vmatprep.subr.mxu0 0.0
        %1958 = vmatpush1.msra.mxu0 %v1171
        %1959 = vmatprep.subr.mxu0 0.0
        %1960 = vmatpush1.msra.mxu0 0.0
        %1961 = vmatprep.subr.mxu0 0.0
        %1962 = vmatpush1.msra.mxu0 0.0
        %1963 = vmatprep.subr.mxu0 0.0
        %1964 = vmatpush1.msra.mxu0 0.0
        %1965 = vmatprep.subr.mxu0 0.0
        %1966 = vmatpush1.msra.mxu0 0.0
        %1967 = vmatprep.subr.mxu0 0.0
        %1968 = vmatpush1.msra.mxu0 0.0
        %1969 = vmatprep.subr.mxu0 0.0
        %1970 = vmatpush1.msra.mxu0 0.0
        %1971 = vmatprep.subr.mxu0 0.0
        %1972 = vmatpush1.msra.mxu0 0.0
        %1973 = vmatprep.subr.mxu0 0.0
        %1974 = vmatpush1.msra.mxu0 0.0
        %1975 = vmatprep.subr.mxu0 0.0
        %1976 = vmatpush1.msra.mxu0 0.0
        %1977 = vmatprep.subr.mxu0 0.0
        %1978 = vmatpush1.msra.mxu0 0.0
        %1979 = vmatprep.subr.mxu0 0.0
        %1980 = vmatpush1.msra.mxu0 0.0
        %1981 = vmatprep.subr.mxu0 0.0
        %1982 = vmatpush1.msra.mxu0 0.0
        %1983 = vmatprep.subr.mxu0 0.0
        %1984 = vmatpush1.msra.mxu0 0.0
        %1985 = vmatprep.subr.mxu0 0.0
        %1986 = vmatpush1.msra.mxu0 0.0
        %1987 = vmatprep.subr.mxu0 0.0
        %1988 = vmatpush1.msra.mxu0 0.0
        %1989 = vmatprep.subr.mxu0 0.0
        %1990 = vmatpush1.msra.mxu0 0.0
        %1991 = vmatprep.mubr.f32.mxu0 0.0
        %1992 = vmatmul.mubr.f32.gmra.mrb[0].mxu0 %v1670
        %v1993 = vpop.f32.mrb[0].mxu0
        %v1994 = vadd.f32 0.0, %v1993
        %v1995 = vpop.f32.mrb[0].mxu0
        %1996 = vmatprep.mubr.f32.mxu0 0.0
        %1997 = vmatmul.mubr.f32.gmra.mrb[0].mxu0 %v1671
        %v1998 = vpop.f32.mrb[0].mxu0
        %v1999 = vadd.f32 0.0, %v1998
        %v2000 = vpop.f32.mrb[0].mxu0
        %2001 = vmatprep.mubr.f32.mxu0 0.0
        %2002 = vmatmul.mubr.f32.gmra.mrb[0].mxu0 %v1672
        %v2003 = vpop.f32.mrb[0].mxu0
        %v2004 = vadd.f32 0.0, %v2003
        %v2005 = vpop.f32.mrb[0].mxu0
        %2006 = vmatprep.mubr.f32.mxu0 0.0
        %2007 = vmatmul.mubr.f32.gmra.mrb[0].mxu0 %v1673
        %v2008 = vpop.f32.mrb[0].mxu0
        %v2009 = vadd.f32 0.0, %v2008
        %v2010 = vpop.f32.mrb[0].mxu0
        %2011 = vmatprep.mubr.f32.mxu0 0.0
        %2012 = vmatmul.mubr.f32.gmra.mrb[0].mxu0 %v1674
        %v2013 = vpop.f32.mrb[0].mxu0
        %v2014 = vadd.f32 0.0, %v2013
        %v2015 = vpop.f32.mrb[0].mxu0
        %2016 = vmatprep.mubr.f32.mxu0 0.0
        %2017 = vmatmul.mubr.f32.gmra.mrb[0].mxu0 %v1675
        %v2018 = vpop.f32.mrb[0].mxu0
        %v2019 = vadd.f32 0.0, %v2018
        %v2020 = vpop.f32.mrb[0].mxu0
        %2021 = vmatprep.mubr.f32.mxu0 0.0
        %2022 = vmatmul.mubr.f32.gmra.mrb[0].mxu0 %v1676
        %v2023 = vpop.f32.mrb[0].mxu0
        %v2024 = vadd.f32 0.0, %v2023
        %v2025 = vpop.f32.mrb[0].mxu0
        %2026 = vmatprep.mubr.f32.mxu0 0.0
        %2027 = vmatmul.mubr.f32.gmra.mrb[0].mxu0 %v1677
        %v2028 = vpop.f32.mrb[0].mxu0
        %v2029 = vadd.f32 0.0, %v2028
        %v2030 = vpop.f32.mrb[0].mxu0
        %2031 = vmatprep.mubr.f32.mxu0 0.0
        %2032 = vmatmul.mubr.f32.gmra.mrb[0].mxu0 %v1678
        %v2033 = vpop.f32.mrb[0].mxu0
        %v2034 = vadd.f32 0.0, %v2033
        %v2035 = vpop.f32.mrb[0].mxu0
        %2036 = vmatprep.mubr.f32.mxu0 0.0
        %2037 = vmatmul.mubr.f32.gmra.mrb[0].mxu0 %v1679
        %v2038 = vpop.f32.mrb[0].mxu0
        %v2039 = vadd.f32 0.0, %v2038
        %v2040 = vpop.f32.mrb[0].mxu0
        %2041 = vmatprep.mubr.f32.mxu0 0.0
        %2042 = vmatmul.mubr.f32.gmra.mrb[0].mxu0 %v1680
        %v2043 = vpop.f32.mrb[0].mxu0
        %v2044 = vadd.f32 0.0, %v2043
        %v2045 = vpop.f32.mrb[0].mxu0
        %2046 = vmatprep.mubr.f32.mxu0 0.0
        %2047 = vmatmul.mubr.f32.gmra.mrb[0].mxu0 %v1681
        %v2048 = vpop.f32.mrb[0].mxu0
        %v2049 = vadd.f32 0.0, %v2048
        %v2050 = vpop.f32.mrb[0].mxu0
        %2051 = vmatprep.mubr.f32.mxu0 0.0
        %2052 = vmatmul.mubr.f32.gmra.mrb[0].mxu0 %v1682
        %v2053 = vpop.f32.mrb[0].mxu0
        %v2054 = vadd.f32 0.0, %v2053
        %v2055 = vpop.f32.mrb[0].mxu0
        %2056 = vmatprep.mubr.f32.mxu0 0.0
        %2057 = vmatmul.mubr.f32.gmra.mrb[0].mxu0 %v1683
        %v2058 = vpop.f32.mrb[0].mxu0
        %v2059 = vadd.f32 0.0, %v2058
        %v2060 = vpop.f32.mrb[0].mxu0
        %2061 = vmatprep.mubr.f32.mxu0 0.0
        %2062 = vmatmul.mubr.f32.gmra.mrb[0].mxu0 %v1684
        %v2063 = vpop.f32.mrb[0].mxu0
        %v2064 = vadd.f32 0.0, %v2063
        %v2065 = vpop.f32.mrb[0].mxu0
        %2066 = vmatprep.mubr.f32.mxu0 0.0
        %2067 = vmatmul.mubr.f32.gmra.mrb[0].mxu0 %v1685
        %v2068 = vpop.f32.mrb[0].mxu0
        %v2069 = vadd.f32 0.0, %v2068
        %v2070 = vpop.f32.mrb[0].mxu0
        %2071 = vdwg.mxu0
        %2072 = vmatprep.subr.mxu0 0.0
        %2073 = vmatpush1.msra.mxu0 %v1176
        %2074 = vmatprep.subr.mxu0 0.0
        %2075 = vmatpush1.msra.mxu0 %v1181
        %2076 = vmatprep.subr.mxu0 0.0
        %2077 = vmatpush1.msra.mxu0 %v1186
        %2078 = vmatprep.subr.mxu0 0.0
        %2079 = vmatpush1.msra.mxu0 %v1191
        %2080 = vmatprep.subr.mxu0 0.0
        %2081 = vmatpush1.msra.mxu0 %v1196
        %2082 = vmatprep.subr.mxu0 0.0
        %2083 = vmatpush1.msra.mxu0 %v1201
        %2084 = vmatprep.subr.mxu0 0.0
        %2085 = vmatpush1.msra.mxu0 %v1206
        %2086 = vmatprep.subr.mxu0 0.0
        %2087 = vmatpush1.msra.mxu0 %v1211
        %2088 = vmatprep.subr.mxu0 0.0
        %2089 = vmatpush1.msra.mxu0 %v1216
        %2090 = vmatprep.subr.mxu0 0.0
        %2091 = vmatpush1.msra.mxu0 %v1221
        %2092 = vmatprep.subr.mxu0 0.0
        %2093 = vmatpush1.msra.mxu0 %v1226
        %2094 = vmatprep.subr.mxu0 0.0
        %2095 = vmatpush1.msra.mxu0 %v1231
        %2096 = vmatprep.subr.mxu0 0.0
        %2097 = vmatpush1.msra.mxu0 %v1236
        %2098 = vmatprep.subr.mxu0 0.0
        %2099 = vmatpush1.msra.mxu0 %v1241
        %2100 = vmatprep.subr.mxu0 0.0
        %2101 = vmatpush1.msra.mxu0 %v1246
        %2102 = vmatprep.subr.mxu0 0.0
        %2103 = vmatpush1.msra.mxu0 %v1251
        %2104 = vmatprep.subr.mxu0 0.0
        %2105 = vmatpush1.msra.mxu0 0.0
        %2106 = vmatprep.subr.mxu0 0.0
        %2107 = vmatpush1.msra.mxu0 0.0
        %2108 = vmatprep.subr.mxu0 0.0
        %2109 = vmatpush1.msra.mxu0 0.0
        %2110 = vmatprep.subr.mxu0 0.0
        %2111 = vmatpush1.msra.mxu0 0.0
        %2112 = vmatprep.subr.mxu0 0.0
        %2113 = vmatpush1.msra.mxu0 0.0
        %2114 = vmatprep.subr.mxu0 0.0
        %2115 = vmatpush1.msra.mxu0 0.0
        %2116 = vmatprep.subr.mxu0 0.0
        %2117 = vmatpush1.msra.mxu0 0.0
        %2118 = vmatprep.subr.mxu0 0.0
        %2119 = vmatpush1.msra.mxu0 0.0
        %2120 = vmatprep.subr.mxu0 0.0
        %2121 = vmatpush1.msra.mxu0 0.0
        %2122 = vmatprep.subr.mxu0 0.0
        %2123 = vmatpush1.msra.mxu0 0.0
        %2124 = vmatprep.subr.mxu0 0.0
        %2125 = vmatpush1.msra.mxu0 0.0
        %2126 = vmatprep.subr.mxu0 0.0
        %2127 = vmatpush1.msra.mxu0 0.0
        %2128 = vmatprep.subr.mxu0 0.0
        %2129 = vmatpush1.msra.mxu0 0.0
        %2130 = vmatprep.subr.mxu0 0.0
        %2131 = vmatpush1.msra.mxu0 0.0
        %2132 = vmatprep.subr.mxu0 0.0
        %2133 = vmatpush1.msra.mxu0 0.0
        %2134 = vmatprep.subr.mxu0 0.0
        %2135 = vmatpush1.msra.mxu0 0.0
        %2136 = vmatprep.mubr.f32.mxu0 0.0
        %2137 = vmatmul.mubr.f32.gmra.mrb[0].mxu0 %v1686
        %v2138 = vpop.f32.mrb[0].mxu0
        %v2139 = vadd.f32 0.0, %v2138
        %v2140 = vpop.f32.mrb[0].mxu0
        %2141 = vmatprep.mubr.f32.mxu0 0.0
        %2142 = vmatmul.mubr.f32.gmra.mrb[0].mxu0 %v1687
        %v2143 = vpop.f32.mrb[0].mxu0
        %v2144 = vadd.f32 0.0, %v2143
        %v2145 = vpop.f32.mrb[0].mxu0
        %2146 = vmatprep.mubr.f32.mxu0 0.0
        %2147 = vmatmul.mubr.f32.gmra.mrb[0].mxu0 %v1688
        %v2148 = vpop.f32.mrb[0].mxu0
        %v2149 = vadd.f32 0.0, %v2148
        %v2150 = vpop.f32.mrb[0].mxu0
        %2151 = vmatprep.mubr.f32.mxu0 0.0
        %2152 = vmatmul.mubr.f32.gmra.mrb[0].mxu0 %v1689
        %v2153 = vpop.f32.mrb[0].mxu0
        %v2154 = vadd.f32 0.0, %v2153
        %v2155 = vpop.f32.mrb[0].mxu0
        %2156 = vmatprep.mubr.f32.mxu0 0.0
        %2157 = vmatmul.mubr.f32.gmra.mrb[0].mxu0 %v1690
        %v2158 = vpop.f32.mrb[0].mxu0
        %v2159 = vadd.f32 0.0, %v2158
        %v2160 = vpop.f32.mrb[0].mxu0
        %2161 = vmatprep.mubr.f32.mxu0 0.0
        %2162 = vmatmul.mubr.f32.gmra.mrb[0].mxu0 %v1691
        %v2163 = vpop.f32.mrb[0].mxu0
        %v2164 = vadd.f32 0.0, %v2163
        %v2165 = vpop.f32.mrb[0].mxu0
        %2166 = vmatprep.mubr.f32.mxu0 0.0
        %2167 = vmatmul.mubr.f32.gmra.mrb[0].mxu0 %v1692
        %v2168 = vpop.f32.mrb[0].mxu0
        %v2169 = vadd.f32 0.0, %v2168
        %v2170 = vpop.f32.mrb[0].mxu0
        %2171 = vmatprep.mubr.f32.mxu0 0.0
        %2172 = vmatmul.mubr.f32.gmra.mrb[0].mxu0 %v1693
        %v2173 = vpop.f32.mrb[0].mxu0
        %v2174 = vadd.f32 0.0, %v2173
        %v2175 = vpop.f32.mrb[0].mxu0
        %2176 = vmatprep.mubr.f32.mxu0 0.0
        %2177 = vmatmul.mubr.f32.gmra.mrb[0].mxu0 %v1694
        %v2178 = vpop.f32.mrb[0].mxu0
        %v2179 = vadd.f32 0.0, %v2178
        %v2180 = vpop.f32.mrb[0].mxu0
        %2181 = vmatprep.mubr.f32.mxu0 0.0
        %2182 = vmatmul.mubr.f32.gmra.mrb[0].mxu0 %v1695
        %v2183 = vpop.f32.mrb[0].mxu0
        %v2184 = vadd.f32 0.0, %v2183
        %v2185 = vpop.f32.mrb[0].mxu0
        %2186 = vmatprep.mubr.f32.mxu0 0.0
        %2187 = vmatmul.mubr.f32.gmra.mrb[0].mxu0 %v1696
        %v2188 = vpop.f32.mrb[0].mxu0
        %v2189 = vadd.f32 0.0, %v2188
        %v2190 = vpop.f32.mrb[0].mxu0
        %2191 = vmatprep.mubr.f32.mxu0 0.0
        %2192 = vmatmul.mubr.f32.gmra.mrb[0].mxu0 %v1697
        %v2193 = vpop.f32.mrb[0].mxu0
        %v2194 = vadd.f32 0.0, %v2193
        %v2195 = vpop.f32.mrb[0].mxu0
        %2196 = vmatprep.mubr.f32.mxu0 0.0
        %2197 = vmatmul.mubr.f32.gmra.mrb[0].mxu0 %v1698
        %v2198 = vpop.f32.mrb[0].mxu0
        %v2199 = vadd.f32 0.0, %v2198
        %v2200 = vpop.f32.mrb[0].mxu0
        %2201 = vmatprep.mubr.f32.mxu0 0.0
        %2202 = vmatmul.mubr.f32.gmra.mrb[0].mxu0 %v1699
        %v2203 = vpop.f32.mrb[0].mxu0
        %v2204 = vadd.f32 0.0, %v2203
        %v2205 = vpop.f32.mrb[0].mxu0
        %2206 = vmatprep.mubr.f32.mxu0 0.0
        %2207 = vmatmul.mubr.f32.gmra.mrb[0].mxu0 %v1700
        %v2208 = vpop.f32.mrb[0].mxu0
        %v2209 = vadd.f32 0.0, %v2208
        %v2210 = vpop.f32.mrb[0].mxu0
        %2211 = vmatprep.mubr.f32.mxu0 0.0
        %2212 = vmatmul.mubr.f32.gmra.mrb[0].mxu0 %v1701
        %v2213 = vpop.f32.mrb[0].mxu0
        %v2214 = vadd.f32 0.0, %v2213
        %v2215 = vpop.f32.mrb[0].mxu0
        %2216 = vdwg.mxu0
        %2217 = vmatprep.subr.mxu0 0.0
        %2218 = vmatpush1.msra.mxu0 %v1256
        %2219 = vmatprep.subr.mxu0 0.0
        %2220 = vmatpush1.msra.mxu0 %v1261
        %2221 = vmatprep.subr.mxu0 0.0
        %2222 = vmatpush1.msra.mxu0 %v1266
        %2223 = vmatprep.subr.mxu0 0.0
        %2224 = vmatpush1.msra.mxu0 %v1271
        %2225 = vmatprep.subr.mxu0 0.0
        %2226 = vmatpush1.msra.mxu0 %v1276
        %2227 = vmatprep.subr.mxu0 0.0
        %2228 = vmatpush1.msra.mxu0 %v1281
        %2229 = vmatprep.subr.mxu0 0.0
        %2230 = vmatpush1.msra.mxu0 %v1286
        %2231 = vmatprep.subr.mxu0 0.0
        %2232 = vmatpush1.msra.mxu0 %v1291
        %2233 = vmatprep.subr.mxu0 0.0
        %2234 = vmatpush1.msra.mxu0 %v1296
        %2235 = vmatprep.subr.mxu0 0.0
        %2236 = vmatpush1.msra.mxu0 %v1301
        %2237 = vmatprep.subr.mxu0 0.0
        %2238 = vmatpush1.msra.mxu0 %v1306
        %2239 = vmatprep.subr.mxu0 0.0
        %2240 = vmatpush1.msra.mxu0 %v1311
        %2241 = vmatprep.subr.mxu0 0.0
        %2242 = vmatpush1.msra.mxu0 %v1316
        %2243 = vmatprep.subr.mxu0 0.0
        %2244 = vmatpush1.msra.mxu0 %v1321
        %2245 = vmatprep.subr.mxu0 0.0
        %2246 = vmatpush1.msra.mxu0 %v1326
        %2247 = vmatprep.subr.mxu0 0.0
        %2248 = vmatpush1.msra.mxu0 %v1331
        %2249 = vmatprep.subr.mxu0 0.0
        %2250 = vmatpush1.msra.mxu0 0.0
        %2251 = vmatprep.subr.mxu0 0.0
        %2252 = vmatpush1.msra.mxu0 0.0
        %2253 = vmatprep.subr.mxu0 0.0
        %2254 = vmatpush1.msra.mxu0 0.0
        %2255 = vmatprep.subr.mxu0 0.0
        %2256 = vmatpush1.msra.mxu0 0.0
        %2257 = vmatprep.subr.mxu0 0.0
        %2258 = vmatpush1.msra.mxu0 0.0
        %2259 = vmatprep.subr.mxu0 0.0
        %2260 = vmatpush1.msra.mxu0 0.0
        %2261 = vmatprep.subr.mxu0 0.0
        %2262 = vmatpush1.msra.mxu0 0.0
        %2263 = vmatprep.subr.mxu0 0.0
        %2264 = vmatpush1.msra.mxu0 0.0
        %2265 = vmatprep.subr.mxu0 0.0
        %2266 = vmatpush1.msra.mxu0 0.0
        %2267 = vmatprep.subr.mxu0 0.0
        %2268 = vmatpush1.msra.mxu0 0.0
        %2269 = vmatprep.subr.mxu0 0.0
        %2270 = vmatpush1.msra.mxu0 0.0
        %2271 = vmatprep.subr.mxu0 0.0
        %2272 = vmatpush1.msra.mxu0 0.0
        %2273 = vmatprep.subr.mxu0 0.0
        %2274 = vmatpush1.msra.mxu0 0.0
        %2275 = vmatprep.subr.mxu0 0.0
        %2276 = vmatpush1.msra.mxu0 0.0
        %2277 = vmatprep.subr.mxu0 0.0
        %2278 = vmatpush1.msra.mxu0 0.0
        %2279 = vmatprep.subr.mxu0 0.0
        %2280 = vmatpush1.msra.mxu0 0.0
        %2281 = vmatprep.mubr.f32.mxu0 0.0
        %2282 = vmatmul.mubr.f32.gmra.mrb[0].mxu0 %v1702
        %v2283 = vpop.f32.mrb[0].mxu0
        %v2284 = vadd.f32 0.0, %v2283
        %v2285 = vpop.f32.mrb[0].mxu0
        %2286 = vmatprep.mubr.f32.mxu0 0.0
        %2287 = vmatmul.mubr.f32.gmra.mrb[0].mxu0 %v1703
        %v2288 = vpop.f32.mrb[0].mxu0
        %v2289 = vadd.f32 0.0, %v2288
        %v2290 = vpop.f32.mrb[0].mxu0
        %2291 = vmatprep.mubr.f32.mxu0 0.0
        %2292 = vmatmul.mubr.f32.gmra.mrb[0].mxu0 %v1704
        %v2293 = vpop.f32.mrb[0].mxu0
        %v2294 = vadd.f32 0.0, %v2293
        %v2295 = vpop.f32.mrb[0].mxu0
        %2296 = vmatprep.mubr.f32.mxu0 0.0
        %2297 = vmatmul.mubr.f32.gmra.mrb[0].mxu0 %v1705
        %v2298 = vpop.f32.mrb[0].mxu0
        %v2299 = vadd.f32 0.0, %v2298
        %v2300 = vpop.f32.mrb[0].mxu0
        %2301 = vmatprep.mubr.f32.mxu0 0.0
        %2302 = vmatmul.mubr.f32.gmra.mrb[0].mxu0 %v1706
        %v2303 = vpop.f32.mrb[0].mxu0
        %v2304 = vadd.f32 0.0, %v2303
        %v2305 = vpop.f32.mrb[0].mxu0
        %2306 = vmatprep.mubr.f32.mxu0 0.0
        %2307 = vmatmul.mubr.f32.gmra.mrb[0].mxu0 %v1707
        %v2308 = vpop.f32.mrb[0].mxu0
        %v2309 = vadd.f32 0.0, %v2308
        %v2310 = vpop.f32.mrb[0].mxu0
        %2311 = vmatprep.mubr.f32.mxu0 0.0
        %2312 = vmatmul.mubr.f32.gmra.mrb[0].mxu0 %v1708
        %v2313 = vpop.f32.mrb[0].mxu0
        %v2314 = vadd.f32 0.0, %v2313
        %v2315 = vpop.f32.mrb[0].mxu0
        %2316 = vmatprep.mubr.f32.mxu0 0.0
        %2317 = vmatmul.mubr.f32.gmra.mrb[0].mxu0 %v1709
        %v2318 = vpop.f32.mrb[0].mxu0
        %v2319 = vadd.f32 0.0, %v2318
        %v2320 = vpop.f32.mrb[0].mxu0
        %2321 = vmatprep.mubr.f32.mxu0 0.0
        %2322 = vmatmul.mubr.f32.gmra.mrb[0].mxu0 %v1710
        %v2323 = vpop.f32.mrb[0].mxu0
        %v2324 = vadd.f32 0.0, %v2323
        %v2325 = vpop.f32.mrb[0].mxu0
        %2326 = vmatprep.mubr.f32.mxu0 0.0
        %2327 = vmatmul.mubr.f32.gmra.mrb[0].mxu0 %v1711
        %v2328 = vpop.f32.mrb[0].mxu0
        %v2329 = vadd.f32 0.0, %v2328
        %v2330 = vpop.f32.mrb[0].mxu0
        %2331 = vmatprep.mubr.f32.mxu0 0.0
        %2332 = vmatmul.mubr.f32.gmra.mrb[0].mxu0 %v1712
        %v2333 = vpop.f32.mrb[0].mxu0
        %v2334 = vadd.f32 0.0, %v2333
        %v2335 = vpop.f32.mrb[0].mxu0
        %2336 = vmatprep.mubr.f32.mxu0 0.0
        %2337 = vmatmul.mubr.f32.gmra.mrb[0].mxu0 %v1713
        %v2338 = vpop.f32.mrb[0].mxu0
        %v2339 = vadd.f32 0.0, %v2338
        %v2340 = vpop.f32.mrb[0].mxu0
        %2341 = vmatprep.mubr.f32.mxu0 0.0
        %2342 = vmatmul.mubr.f32.gmra.mrb[0].mxu0 %v1714
        %v2343 = vpop.f32.mrb[0].mxu0
        %v2344 = vadd.f32 0.0, %v2343
        %v2345 = vpop.f32.mrb[0].mxu0
        %2346 = vmatprep.mubr.f32.mxu0 0.0
        %2347 = vmatmul.mubr.f32.gmra.mrb[0].mxu0 %v1715
        %v2348 = vpop.f32.mrb[0].mxu0
        %v2349 = vadd.f32 0.0, %v2348
        %v2350 = vpop.f32.mrb[0].mxu0
        %2351 = vmatprep.mubr.f32.mxu0 0.0
        %2352 = vmatmul.mubr.f32.gmra.mrb[0].mxu0 %v1716
        %v2353 = vpop.f32.mrb[0].mxu0
        %v2354 = vadd.f32 0.0, %v2353
        %v2355 = vpop.f32.mrb[0].mxu0
        %2356 = vmatprep.mubr.f32.mxu0 0.0
        %2357 = vmatmul.mubr.f32.gmra.mrb[0].mxu0 %v1717
        %v2358 = vpop.f32.mrb[0].mxu0
        %v2359 = vadd.f32 0.0, %v2358
        %v2360 = vpop.f32.mrb[0].mxu0
        %2361 = vdwg.mxu0
        %2362 = vmatprep.subr.mxu0 0.0
        %2363 = vmatpush1.msra.mxu0 %v1336
        %2364 = vmatprep.subr.mxu0 0.0
        %2365 = vmatpush1.msra.mxu0 %v1341
        %2366 = vmatprep.subr.mxu0 0.0
        %2367 = vmatpush1.msra.mxu0 %v1346
        %2368 = vmatprep.subr.mxu0 0.0
        %2369 = vmatpush1.msra.mxu0 %v1351
        %2370 = vmatprep.subr.mxu0 0.0
        %2371 = vmatpush1.msra.mxu0 %v1356
        %2372 = vmatprep.subr.mxu0 0.0
        %2373 = vmatpush1.msra.mxu0 %v1361
        %2374 = vmatprep.subr.mxu0 0.0
        %2375 = vmatpush1.msra.mxu0 %v1366
        %2376 = vmatprep.subr.mxu0 0.0
        %2377 = vmatpush1.msra.mxu0 %v1371
        %2378 = vmatprep.subr.mxu0 0.0
        %2379 = vmatpush1.msra.mxu0 %v1376
        %2380 = vmatprep.subr.mxu0 0.0
        %2381 = vmatpush1.msra.mxu0 %v1381
        %2382 = vmatprep.subr.mxu0 0.0
        %2383 = vmatpush1.msra.mxu0 %v1386
        %2384 = vmatprep.subr.mxu0 0.0
        %2385 = vmatpush1.msra.mxu0 %v1391
        %2386 = vmatprep.subr.mxu0 0.0
        %2387 = vmatpush1.msra.mxu0 %v1396
        %2388 = vmatprep.subr.mxu0 0.0
        %2389 = vmatpush1.msra.mxu0 %v1401
        %2390 = vmatprep.subr.mxu0 0.0
        %2391 = vmatpush1.msra.mxu0 %v1406
        %2392 = vmatprep.subr.mxu0 0.0
        %2393 = vmatpush1.msra.mxu0 %v1411
        %2394 = vmatprep.subr.mxu0 0.0
        %2395 = vmatpush1.msra.mxu0 0.0
        %2396 = vmatprep.subr.mxu0 0.0
        %2397 = vmatpush1.msra.mxu0 0.0
        %2398 = vmatprep.subr.mxu0 0.0
        %2399 = vmatpush1.msra.mxu0 0.0
        %2400 = vmatprep.subr.mxu0 0.0
        %2401 = vmatpush1.msra.mxu0 0.0
        %2402 = vmatprep.subr.mxu0 0.0
        %2403 = vmatpush1.msra.mxu0 0.0
        %2404 = vmatprep.subr.mxu0 0.0
        %2405 = vmatpush1.msra.mxu0 0.0
        %2406 = vmatprep.subr.mxu0 0.0
        %2407 = vmatpush1.msra.mxu0 0.0
        %2408 = vmatprep.subr.mxu0 0.0
        %2409 = vmatpush1.msra.mxu0 0.0
        %2410 = vmatprep.subr.mxu0 0.0
        %2411 = vmatpush1.msra.mxu0 0.0
        %2412 = vmatprep.subr.mxu0 0.0
        %2413 = vmatpush1.msra.mxu0 0.0
        %2414 = vmatprep.subr.mxu0 0.0
        %2415 = vmatpush1.msra.mxu0 0.0
        %2416 = vmatprep.subr.mxu0 0.0
        %2417 = vmatpush1.msra.mxu0 0.0
        %2418 = vmatprep.subr.mxu0 0.0
        %2419 = vmatpush1.msra.mxu0 0.0
        %2420 = vmatprep.subr.mxu0 0.0
        %2421 = vmatpush1.msra.mxu0 0.0
        %2422 = vmatprep.subr.mxu0 0.0
        %2423 = vmatpush1.msra.mxu0 0.0
        %2424 = vmatprep.subr.mxu0 0.0
        %2425 = vmatpush1.msra.mxu0 0.0
        %2426 = vmatprep.mubr.f32.mxu0 0.0
        %2427 = vmatmul.mubr.f32.gmra.mrb[0].mxu0 %v1718
        %v2428 = vpop.f32.mrb[0].mxu0
        %v2429 = vadd.f32 0.0, %v2428
        %v2430 = vpop.f32.mrb[0].mxu0
        %2431 = vmatprep.mubr.f32.mxu0 0.0
        %2432 = vmatmul.mubr.f32.gmra.mrb[0].mxu0 %v1719
        %v2433 = vpop.f32.mrb[0].mxu0
        %v2434 = vadd.f32 0.0, %v2433
        %v2435 = vpop.f32.mrb[0].mxu0
        %2436 = vmatprep.mubr.f32.mxu0 0.0
        %2437 = vmatmul.mubr.f32.gmra.mrb[0].mxu0 %v1720
        %v2438 = vpop.f32.mrb[0].mxu0
        %v2439 = vadd.f32 0.0, %v2438
        %v2440 = vpop.f32.mrb[0].mxu0
        %2441 = vmatprep.mubr.f32.mxu0 0.0
        %2442 = vmatmul.mubr.f32.gmra.mrb[0].mxu0 %v1721
        %v2443 = vpop.f32.mrb[0].mxu0
        %v2444 = vadd.f32 0.0, %v2443
        %v2445 = vpop.f32.mrb[0].mxu0
        %2446 = vmatprep.mubr.f32.mxu0 0.0
        %2447 = vmatmul.mubr.f32.gmra.mrb[0].mxu0 %v1722
        %v2448 = vpop.f32.mrb[0].mxu0
        %v2449 = vadd.f32 0.0, %v2448
        %v2450 = vpop.f32.mrb[0].mxu0
        %2451 = vmatprep.mubr.f32.mxu0 0.0
        %2452 = vmatmul.mubr.f32.gmra.mrb[0].mxu0 %v1723
        %v2453 = vpop.f32.mrb[0].mxu0
        %v2454 = vadd.f32 0.0, %v2453
        %v2455 = vpop.f32.mrb[0].mxu0
        %2456 = vmatprep.mubr.f32.mxu0 0.0
        %2457 = vmatmul.mubr.f32.gmra.mrb[0].mxu0 %v1724
        %v2458 = vpop.f32.mrb[0].mxu0
        %v2459 = vadd.f32 0.0, %v2458
        %v2460 = vpop.f32.mrb[0].mxu0
        %2461 = vmatprep.mubr.f32.mxu0 0.0
        %2462 = vmatmul.mubr.f32.gmra.mrb[0].mxu0 %v1725
        %v2463 = vpop.f32.mrb[0].mxu0
        %v2464 = vadd.f32 0.0, %v2463
        %v2465 = vpop.f32.mrb[0].mxu0
        %2466 = vmatprep.mubr.f32.mxu0 0.0
        %2467 = vmatmul.mubr.f32.gmra.mrb[0].mxu0 %v1726
        %v2468 = vpop.f32.mrb[0].mxu0
        %v2469 = vadd.f32 0.0, %v2468
        %v2470 = vpop.f32.mrb[0].mxu0
        %2471 = vmatprep.mubr.f32.mxu0 0.0
        %2472 = vmatmul.mubr.f32.gmra.mrb[0].mxu0 %v1727
        %v2473 = vpop.f32.mrb[0].mxu0
        %v2474 = vadd.f32 0.0, %v2473
        %v2475 = vpop.f32.mrb[0].mxu0
        %2476 = vmatprep.mubr.f32.mxu0 0.0
        %2477 = vmatmul.mubr.f32.gmra.mrb[0].mxu0 %v1728
        %v2478 = vpop.f32.mrb[0].mxu0
        %v2479 = vadd.f32 0.0, %v2478
        %v2480 = vpop.f32.mrb[0].mxu0
        %2481 = vmatprep.mubr.f32.mxu0 0.0
        %2482 = vmatmul.mubr.f32.gmra.mrb[0].mxu0 %v1729
        %v2483 = vpop.f32.mrb[0].mxu0
        %v2484 = vadd.f32 0.0, %v2483
        %v2485 = vpop.f32.mrb[0].mxu0
        %2486 = vmatprep.mubr.f32.mxu0 0.0
        %2487 = vmatmul.mubr.f32.gmra.mrb[0].mxu0 %v1730
        %v2488 = vpop.f32.mrb[0].mxu0
        %v2489 = vadd.f32 0.0, %v2488
        %v2490 = vpop.f32.mrb[0].mxu0
        %2491 = vmatprep.mubr.f32.mxu0 0.0
        %2492 = vmatmul.mubr.f32.gmra.mrb[0].mxu0 %v1731
        %v2493 = vpop.f32.mrb[0].mxu0
        %v2494 = vadd.f32 0.0, %v2493
        %v2495 = vpop.f32.mrb[0].mxu0
        %2496 = vmatprep.mubr.f32.mxu0 0.0
        %2497 = vmatmul.mubr.f32.gmra.mrb[0].mxu0 %v1732
        %v2498 = vpop.f32.mrb[0].mxu0
        %v2499 = vadd.f32 0.0, %v2498
        %v2500 = vpop.f32.mrb[0].mxu0
        %2501 = vmatprep.mubr.f32.mxu0 0.0
        %2502 = vmatmul.mubr.f32.gmra.mrb[0].mxu0 %v1733
        %v2503 = vpop.f32.mrb[0].mxu0
        %v2504 = vadd.f32 0.0, %v2503
        %v2505 = vpop.f32.mrb[0].mxu0
        %2506 = vdwg.mxu0
        %2507 = vmatprep.subr.mxu0 0.0
        %2508 = vmatpush1.msra.mxu0 %v1416
        %2509 = vmatprep.subr.mxu0 0.0
        %2510 = vmatpush1.msra.mxu0 %v1421
        %2511 = vmatprep.subr.mxu0 0.0
        %2512 = vmatpush1.msra.mxu0 %v1426
        %2513 = vmatprep.subr.mxu0 0.0
        %2514 = vmatpush1.msra.mxu0 %v1431
        %2515 = vmatprep.subr.mxu0 0.0
        %2516 = vmatpush1.msra.mxu0 %v1436
        %2517 = vmatprep.subr.mxu0 0.0
        %2518 = vmatpush1.msra.mxu0 %v1441
        %2519 = vmatprep.subr.mxu0 0.0
        %2520 = vmatpush1.msra.mxu0 %v1446
        %2521 = vmatprep.subr.mxu0 0.0
        %2522 = vmatpush1.msra.mxu0 %v1451
        %2523 = vmatprep.subr.mxu0 0.0
        %2524 = vmatpush1.msra.mxu0 %v1456
        %2525 = vmatprep.subr.mxu0 0.0
        %2526 = vmatpush1.msra.mxu0 %v1461
        %2527 = vmatprep.subr.mxu0 0.0
        %2528 = vmatpush1.msra.mxu0 %v1466
        %2529 = vmatprep.subr.mxu0 0.0
        %2530 = vmatpush1.msra.mxu0 %v1471
        %2531 = vmatprep.subr.mxu0 0.0
        %2532 = vmatpush1.msra.mxu0 %v1476
        %2533 = vmatprep.subr.mxu0 0.0
        %2534 = vmatpush1.msra.mxu0 %v1481
        %2535 = vmatprep.subr.mxu0 0.0
        %2536 = vmatpush1.msra.mxu0 %v1486
        %2537 = vmatprep.subr.mxu0 0.0
        %2538 = vmatpush1.msra.mxu0 %v1491
        %2539 = vmatprep.subr.mxu0 0.0
        %2540 = vmatpush1.msra.mxu0 0.0
        %2541 = vmatprep.subr.mxu0 0.0
        %2542 = vmatpush1.msra.mxu0 0.0
        %2543 = vmatprep.subr.mxu0 0.0
        %2544 = vmatpush1.msra.mxu0 0.0
        %2545 = vmatprep.subr.mxu0 0.0
        %2546 = vmatpush1.msra.mxu0 0.0
        %2547 = vmatprep.subr.mxu0 0.0
        %2548 = vmatpush1.msra.mxu0 0.0
        %2549 = vmatprep.subr.mxu0 0.0
        %2550 = vmatpush1.msra.mxu0 0.0
        %2551 = vmatprep.subr.mxu0 0.0
        %2552 = vmatpush1.msra.mxu0 0.0
        %2553 = vmatprep.subr.mxu0 0.0
        %2554 = vmatpush1.msra.mxu0 0.0
        %2555 = vmatprep.subr.mxu0 0.0
        %2556 = vmatpush1.msra.mxu0 0.0
        %2557 = vmatprep.subr.mxu0 0.0
        %2558 = vmatpush1.msra.mxu0 0.0
        %2559 = vmatprep.subr.mxu0 0.0
        %2560 = vmatpush1.msra.mxu0 0.0
        %2561 = vmatprep.subr.mxu0 0.0
        %2562 = vmatpush1.msra.mxu0 0.0
        %2563 = vmatprep.subr.mxu0 0.0
        %2564 = vmatpush1.msra.mxu0 0.0
        %2565 = vmatprep.subr.mxu0 0.0
        %2566 = vmatpush1.msra.mxu0 0.0
        %2567 = vmatprep.subr.mxu0 0.0
        %2568 = vmatpush1.msra.mxu0 0.0
        %2569 = vmatprep.subr.mxu0 0.0
        %2570 = vmatpush1.msra.mxu0 0.0
        %2571 = vmatprep.mubr.f32.mxu0 0.0
        %2572 = vmatmul.mubr.f32.gmra.mrb[0].mxu0 %v1734
        %v2573 = vpop.f32.mrb[0].mxu0
        %v2574 = vadd.f32 0.0, %v2573
        %v2575 = vpop.f32.mrb[0].mxu0
        %2576 = vmatprep.mubr.f32.mxu0 0.0
        %2577 = vmatmul.mubr.f32.gmra.mrb[0].mxu0 %v1735
        %v2578 = vpop.f32.mrb[0].mxu0
        %v2579 = vadd.f32 0.0, %v2578
        %v2580 = vpop.f32.mrb[0].mxu0
        %2581 = vmatprep.mubr.f32.mxu0 0.0
        %2582 = vmatmul.mubr.f32.gmra.mrb[0].mxu0 %v1736
        %v2583 = vpop.f32.mrb[0].mxu0
        %v2584 = vadd.f32 0.0, %v2583
        %v2585 = vpop.f32.mrb[0].mxu0
        %2586 = vmatprep.mubr.f32.mxu0 0.0
        %2587 = vmatmul.mubr.f32.gmra.mrb[0].mxu0 %v1737
        %v2588 = vpop.f32.mrb[0].mxu0
        %v2589 = vadd.f32 0.0, %v2588
        %v2590 = vpop.f32.mrb[0].mxu0
        %2591 = vmatprep.mubr.f32.mxu0 0.0
        %2592 = vmatmul.mubr.f32.gmra.mrb[0].mxu0 %v1738
        %v2593 = vpop.f32.mrb[0].mxu0
        %v2594 = vadd.f32 0.0, %v2593
        %v2595 = vpop.f32.mrb[0].mxu0
        %2596 = vmatprep.mubr.f32.mxu0 0.0
        %2597 = vmatmul.mubr.f32.gmra.mrb[0].mxu0 %v1739
        %v2598 = vpop.f32.mrb[0].mxu0
        %v2599 = vadd.f32 0.0, %v2598
        %v2600 = vpop.f32.mrb[0].mxu0
        %2601 = vmatprep.mubr.f32.mxu0 0.0
        %2602 = vmatmul.mubr.f32.gmra.mrb[0].mxu0 %v1740
        %v2603 = vpop.f32.mrb[0].mxu0
        %v2604 = vadd.f32 0.0, %v2603
        %v2605 = vpop.f32.mrb[0].mxu0
        %2606 = vmatprep.mubr.f32.mxu0 0.0
        %2607 = vmatmul.mubr.f32.gmra.mrb[0].mxu0 %v1741
        %v2608 = vpop.f32.mrb[0].mxu0
        %v2609 = vadd.f32 0.0, %v2608
        %v2610 = vpop.f32.mrb[0].mxu0
        %2611 = vmatprep.mubr.f32.mxu0 0.0
        %2612 = vmatmul.mubr.f32.gmra.mrb[0].mxu0 %v1742
        %v2613 = vpop.f32.mrb[0].mxu0
        %v2614 = vadd.f32 0.0, %v2613
        %v2615 = vpop.f32.mrb[0].mxu0
        %2616 = vmatprep.mubr.f32.mxu0 0.0
        %2617 = vmatmul.mubr.f32.gmra.mrb[0].mxu0 %v1743
        %v2618 = vpop.f32.mrb[0].mxu0
        %v2619 = vadd.f32 0.0, %v2618
        %v2620 = vpop.f32.mrb[0].mxu0
        %2621 = vmatprep.mubr.f32.mxu0 0.0
        %2622 = vmatmul.mubr.f32.gmra.mrb[0].mxu0 %v1744
        %v2623 = vpop.f32.mrb[0].mxu0
        %v2624 = vadd.f32 0.0, %v2623
        %v2625 = vpop.f32.mrb[0].mxu0
        %2626 = vmatprep.mubr.f32.mxu0 0.0
        %2627 = vmatmul.mubr.f32.gmra.mrb[0].mxu0 %v1745
        %v2628 = vpop.f32.mrb[0].mxu0
        %v2629 = vadd.f32 0.0, %v2628
        %v2630 = vpop.f32.mrb[0].mxu0
        %2631 = vmatprep.mubr.f32.mxu0 0.0
        %2632 = vmatmul.mubr.f32.gmra.mrb[0].mxu0 %v1746
        %v2633 = vpop.f32.mrb[0].mxu0
        %v2634 = vadd.f32 0.0, %v2633
        %v2635 = vpop.f32.mrb[0].mxu0
        %2636 = vmatprep.mubr.f32.mxu0 0.0
        %2637 = vmatmul.mubr.f32.gmra.mrb[0].mxu0 %v1747
        %v2638 = vpop.f32.mrb[0].mxu0
        %v2639 = vadd.f32 0.0, %v2638
        %v2640 = vpop.f32.mrb[0].mxu0
        %2641 = vmatprep.mubr.f32.mxu0 0.0
        %2642 = vmatmul.mubr.f32.gmra.mrb[0].mxu0 %v1748
        %v2643 = vpop.f32.mrb[0].mxu0
        %v2644 = vadd.f32 0.0, %v2643
        %v2645 = vpop.f32.mrb[0].mxu0
        %2646 = vmatprep.mubr.f32.mxu0 0.0
        %2647 = vmatmul.mubr.f32.gmra.mrb[0].mxu0 %v1749
        %v2648 = vpop.f32.mrb[0].mxu0
        %v2649 = vadd.f32 0.0, %v2648
        %v2650 = vpop.f32.mrb[0].mxu0
        %2651 = vdwg.mxu0
        %2652 = vmatprep.subr.mxu0 0.0
        %2653 = vmatpush1.msra.mxu0 %v1496
        %2654 = vmatprep.subr.mxu0 0.0
        %2655 = vmatpush1.msra.mxu0 %v1501
        %2656 = vmatprep.subr.mxu0 0.0
        %2657 = vmatpush1.msra.mxu0 %v1506
        %2658 = vmatprep.subr.mxu0 0.0
        %2659 = vmatpush1.msra.mxu0 %v1511
        %2660 = vmatprep.subr.mxu0 0.0
        %2661 = vmatpush1.msra.mxu0 %v1516
        %2662 = vmatprep.subr.mxu0 0.0
        %2663 = vmatpush1.msra.mxu0 %v1521
        %2664 = vmatprep.subr.mxu0 0.0
        %2665 = vmatpush1.msra.mxu0 %v1526
        %2666 = vmatprep.subr.mxu0 0.0
        %2667 = vmatpush1.msra.mxu0 %v1531
        %2668 = vmatprep.subr.mxu0 0.0
        %2669 = vmatpush1.msra.mxu0 %v1536
        %2670 = vmatprep.subr.mxu0 0.0
        %2671 = vmatpush1.msra.mxu0 %v1541
        %2672 = vmatprep.subr.mxu0 0.0
        %2673 = vmatpush1.msra.mxu0 %v1546
        %2674 = vmatprep.subr.mxu0 0.0
        %2675 = vmatpush1.msra.mxu0 %v1551
        %2676 = vmatprep.subr.mxu0 0.0
        %2677 = vmatpush1.msra.mxu0 %v1556
        %2678 = vmatprep.subr.mxu0 0.0
        %2679 = vmatpush1.msra.mxu0 %v1561
        %2680 = vmatprep.subr.mxu0 0.0
        %2681 = vmatpush1.msra.mxu0 %v1566
        %2682 = vmatprep.subr.mxu0 0.0
        %2683 = vmatpush1.msra.mxu0 %v1571
        %2684 = vmatprep.subr.mxu0 0.0
        %2685 = vmatpush1.msra.mxu0 0.0
        %2686 = vmatprep.subr.mxu0 0.0
        %2687 = vmatpush1.msra.mxu0 0.0
        %2688 = vmatprep.subr.mxu0 0.0
        %2689 = vmatpush1.msra.mxu0 0.0
        %2690 = vmatprep.subr.mxu0 0.0
        %2691 = vmatpush1.msra.mxu0 0.0
        %2692 = vmatprep.subr.mxu0 0.0
        %2693 = vmatpush1.msra.mxu0 0.0
        %2694 = vmatprep.subr.mxu0 0.0
        %2695 = vmatpush1.msra.mxu0 0.0
        %2696 = vmatprep.subr.mxu0 0.0
        %2697 = vmatpush1.msra.mxu0 0.0
        %2698 = vmatprep.subr.mxu0 0.0
        %2699 = vmatpush1.msra.mxu0 0.0
        %2700 = vmatprep.subr.mxu0 0.0
        %2701 = vmatpush1.msra.mxu0 0.0
        %2702 = vmatprep.subr.mxu0 0.0
        %2703 = vmatpush1.msra.mxu0 0.0
        %2704 = vmatprep.subr.mxu0 0.0
        %2705 = vmatpush1.msra.mxu0 0.0
        %2706 = vmatprep.subr.mxu0 0.0
        %2707 = vmatpush1.msra.mxu0 0.0
        %2708 = vmatprep.subr.mxu0 0.0
        %2709 = vmatpush1.msra.mxu0 0.0
        %2710 = vmatprep.subr.mxu0 0.0
        %2711 = vmatpush1.msra.mxu0 0.0
        %2712 = vmatprep.subr.mxu0 0.0
        %2713 = vmatpush1.msra.mxu0 0.0
        %2714 = vmatprep.subr.mxu0 0.0
        %2715 = vmatpush1.msra.mxu0 0.0
        %2716 = vmatprep.mubr.f32.mxu0 0.0
        %2717 = vmatmul.mubr.f32.gmra.mrb[0].mxu0 %v1750
        %v2718 = vpop.f32.mrb[0].mxu0
        %v2719 = vadd.f32 0.0, %v2718
        %v2720 = vpop.f32.mrb[0].mxu0
        %2721 = vmatprep.mubr.f32.mxu0 0.0
        %2722 = vmatmul.mubr.f32.gmra.mrb[0].mxu0 %v1751
        %v2723 = vpop.f32.mrb[0].mxu0
        %v2724 = vadd.f32 0.0, %v2723
        %v2725 = vpop.f32.mrb[0].mxu0
        %2726 = vmatprep.mubr.f32.mxu0 0.0
        %2727 = vmatmul.mubr.f32.gmra.mrb[0].mxu0 %v1752
        %v2728 = vpop.f32.mrb[0].mxu0
        %v2729 = vadd.f32 0.0, %v2728
        %v2730 = vpop.f32.mrb[0].mxu0
        %2731 = vmatprep.mubr.f32.mxu0 0.0
        %2732 = vmatmul.mubr.f32.gmra.mrb[0].mxu0 %v1753
        %v2733 = vpop.f32.mrb[0].mxu0
        %v2734 = vadd.f32 0.0, %v2733
        %v2735 = vpop.f32.mrb[0].mxu0
        %2736 = vmatprep.mubr.f32.mxu0 0.0
        %2737 = vmatmul.mubr.f32.gmra.mrb[0].mxu0 %v1754
        %v2738 = vpop.f32.mrb[0].mxu0
        %v2739 = vadd.f32 0.0, %v2738
        %v2740 = vpop.f32.mrb[0].mxu0
        %2741 = vmatprep.mubr.f32.mxu0 0.0
        %2742 = vmatmul.mubr.f32.gmra.mrb[0].mxu0 %v1755
        %v2743 = vpop.f32.mrb[0].mxu0
        %v2744 = vadd.f32 0.0, %v2743
        %v2745 = vpop.f32.mrb[0].mxu0
        %2746 = vmatprep.mubr.f32.mxu0 0.0
        %2747 = vmatmul.mubr.f32.gmra.mrb[0].mxu0 %v1756
        %v2748 = vpop.f32.mrb[0].mxu0
        %v2749 = vadd.f32 0.0, %v2748
        %v2750 = vpop.f32.mrb[0].mxu0
        %2751 = vmatprep.mubr.f32.mxu0 0.0
        %2752 = vmatmul.mubr.f32.gmra.mrb[0].mxu0 %v1757
        %v2753 = vpop.f32.mrb[0].mxu0
        %v2754 = vadd.f32 0.0, %v2753
        %v2755 = vpop.f32.mrb[0].mxu0
        %2756 = vmatprep.mubr.f32.mxu0 0.0
        %2757 = vmatmul.mubr.f32.gmra.mrb[0].mxu0 %v1758
        %v2758 = vpop.f32.mrb[0].mxu0
        %v2759 = vadd.f32 0.0, %v2758
        %v2760 = vpop.f32.mrb[0].mxu0
        %2761 = vmatprep.mubr.f32.mxu0 0.0
        %2762 = vmatmul.mubr.f32.gmra.mrb[0].mxu0 %v1759
        %v2763 = vpop.f32.mrb[0].mxu0
        %v2764 = vadd.f32 0.0, %v2763
        %v2765 = vpop.f32.mrb[0].mxu0
        %2766 = vmatprep.mubr.f32.mxu0 0.0
        %2767 = vmatmul.mubr.f32.gmra.mrb[0].mxu0 %v1760
        %v2768 = vpop.f32.mrb[0].mxu0
        %v2769 = vadd.f32 0.0, %v2768
        %v2770 = vpop.f32.mrb[0].mxu0
        %2771 = vmatprep.mubr.f32.mxu0 0.0
        %2772 = vmatmul.mubr.f32.gmra.mrb[0].mxu0 %v1761
        %v2773 = vpop.f32.mrb[0].mxu0
        %v2774 = vadd.f32 0.0, %v2773
        %v2775 = vpop.f32.mrb[0].mxu0
        %2776 = vmatprep.mubr.f32.mxu0 0.0
        %2777 = vmatmul.mubr.f32.gmra.mrb[0].mxu0 %v1762
        %v2778 = vpop.f32.mrb[0].mxu0
        %v2779 = vadd.f32 0.0, %v2778
        %v2780 = vpop.f32.mrb[0].mxu0
        %2781 = vmatprep.mubr.f32.mxu0 0.0
        %2782 = vmatmul.mubr.f32.gmra.mrb[0].mxu0 %v1763
        %v2783 = vpop.f32.mrb[0].mxu0
        %v2784 = vadd.f32 0.0, %v2783
        %v2785 = vpop.f32.mrb[0].mxu0
        %2786 = vmatprep.mubr.f32.mxu0 0.0
        %2787 = vmatmul.mubr.f32.gmra.mrb[0].mxu0 %v1764
        %v2788 = vpop.f32.mrb[0].mxu0
        %v2789 = vadd.f32 0.0, %v2788
        %v2790 = vpop.f32.mrb[0].mxu0
        %2791 = vmatprep.mubr.f32.mxu0 0.0
        %2792 = vmatmul.mubr.f32.gmra.mrb[0].mxu0 %v1765
        %v2793 = vpop.f32.mrb[0].mxu0
        %v2794 = vadd.f32 0.0, %v2793
        %v2795 = vpop.f32.mrb[0].mxu0
        %2796 = vdwg.mxu0
        %2797 = vmatprep.subr.mxu0 0.0
        %2798 = vmatpush1.msra.mxu0 %v1576
        %2799 = vmatprep.subr.mxu0 0.0
        %2800 = vmatpush1.msra.mxu0 %v1581
        %2801 = vmatprep.subr.mxu0 0.0
        %2802 = vmatpush1.msra.mxu0 %v1586
        %2803 = vmatprep.subr.mxu0 0.0
        %2804 = vmatpush1.msra.mxu0 %v1591
        %2805 = vmatprep.subr.mxu0 0.0
        %2806 = vmatpush1.msra.mxu0 %v1596
        %2807 = vmatprep.subr.mxu0 0.0
        %2808 = vmatpush1.msra.mxu0 %v1601
        %2809 = vmatprep.subr.mxu0 0.0
        %2810 = vmatpush1.msra.mxu0 %v1606
        %2811 = vmatprep.subr.mxu0 0.0
        %2812 = vmatpush1.msra.mxu0 %v1611
        %2813 = vmatprep.subr.mxu0 0.0
        %2814 = vmatpush1.msra.mxu0 %v1616
        %2815 = vmatprep.subr.mxu0 0.0
        %2816 = vmatpush1.msra.mxu0 %v1621
        %2817 = vmatprep.subr.mxu0 0.0
        %2818 = vmatpush1.msra.mxu0 %v1626
        %2819 = vmatprep.subr.mxu0 0.0
        %2820 = vmatpush1.msra.mxu0 %v1631
        %2821 = vmatprep.subr.mxu0 0.0
        %2822 = vmatpush1.msra.mxu0 %v1636
        %2823 = vmatprep.subr.mxu0 0.0
        %2824 = vmatpush1.msra.mxu0 %v1641
        %2825 = vmatprep.subr.mxu0 0.0
        %2826 = vmatpush1.msra.mxu0 %v1646
        %2827 = vmatprep.subr.mxu0 0.0
        %2828 = vmatpush1.msra.mxu0 %v1651
        %2829 = vmatprep.subr.mxu0 0.0
        %2830 = vmatpush1.msra.mxu0 0.0
        %2831 = vmatprep.subr.mxu0 0.0
        %2832 = vmatpush1.msra.mxu0 0.0
        %2833 = vmatprep.subr.mxu0 0.0
        %2834 = vmatpush1.msra.mxu0 0.0
        %2835 = vmatprep.subr.mxu0 0.0
        %2836 = vmatpush1.msra.mxu0 0.0
        %2837 = vmatprep.subr.mxu0 0.0
        %2838 = vmatpush1.msra.mxu0 0.0
        %2839 = vmatprep.subr.mxu0 0.0
        %2840 = vmatpush1.msra.mxu0 0.0
        %2841 = vmatprep.subr.mxu0 0.0
        %2842 = vmatpush1.msra.mxu0 0.0
        %2843 = vmatprep.subr.mxu0 0.0
        %2844 = vmatpush1.msra.mxu0 0.0
        %2845 = vmatprep.subr.mxu0 0.0
        %2846 = vmatpush1.msra.mxu0 0.0
        %2847 = vmatprep.subr.mxu0 0.0
        %2848 = vmatpush1.msra.mxu0 0.0
        %2849 = vmatprep.subr.mxu0 0.0
        %2850 = vmatpush1.msra.mxu0 0.0
        %2851 = vmatprep.subr.mxu0 0.0
        %2852 = vmatpush1.msra.mxu0 0.0
        %2853 = vmatprep.subr.mxu0 0.0
        %2854 = vmatpush1.msra.mxu0 0.0
        %2855 = vmatprep.subr.mxu0 0.0
        %2856 = vmatpush1.msra.mxu0 0.0
        %2857 = vmatprep.subr.mxu0 0.0
        %2858 = vmatpush1.msra.mxu0 0.0
        %2859 = vmatprep.subr.mxu0 0.0
        %2860 = vmatpush1.msra.mxu0 0.0
        %2861 = vmatprep.mubr.f32.mxu0 0.0
        %2862 = vmatmul.mubr.f32.gmra.mrb[0].mxu0 %v1766
        %v2863 = vpop.f32.mrb[0].mxu0
        %v2864 = vadd.f32 0.0, %v2863
        %v2865 = vpop.f32.mrb[0].mxu0
        %2866 = vmatprep.mubr.f32.mxu0 0.0
        %2867 = vmatmul.mubr.f32.gmra.mrb[0].mxu0 %v1767
        %v2868 = vpop.f32.mrb[0].mxu0
        %v2869 = vadd.f32 0.0, %v2868
        %v2870 = vpop.f32.mrb[0].mxu0
        %2871 = vmatprep.mubr.f32.mxu0 0.0
        %2872 = vmatmul.mubr.f32.gmra.mrb[0].mxu0 %v1768
        %v2873 = vpop.f32.mrb[0].mxu0
        %v2874 = vadd.f32 0.0, %v2873
        %v2875 = vpop.f32.mrb[0].mxu0
        %2876 = vmatprep.mubr.f32.mxu0 0.0
        %2877 = vmatmul.mubr.f32.gmra.mrb[0].mxu0 %v1769
        %v2878 = vpop.f32.mrb[0].mxu0
        %v2879 = vadd.f32 0.0, %v2878
        %v2880 = vpop.f32.mrb[0].mxu0
        %2881 = vmatprep.mubr.f32.mxu0 0.0
        %2882 = vmatmul.mubr.f32.gmra.mrb[0].mxu0 %v1770
        %v2883 = vpop.f32.mrb[0].mxu0
        %v2884 = vadd.f32 0.0, %v2883
        %v2885 = vpop.f32.mrb[0].mxu0
        %2886 = vmatprep.mubr.f32.mxu0 0.0
        %2887 = vmatmul.mubr.f32.gmra.mrb[0].mxu0 %v1771
        %v2888 = vpop.f32.mrb[0].mxu0
        %v2889 = vadd.f32 0.0, %v2888
        %v2890 = vpop.f32.mrb[0].mxu0
        %2891 = vmatprep.mubr.f32.mxu0 0.0
        %2892 = vmatmul.mubr.f32.gmra.mrb[0].mxu0 %v1772
        %v2893 = vpop.f32.mrb[0].mxu0
        %v2894 = vadd.f32 0.0, %v2893
        %v2895 = vpop.f32.mrb[0].mxu0
        %2896 = vmatprep.mubr.f32.mxu0 0.0
        %2897 = vmatmul.mubr.f32.gmra.mrb[0].mxu0 %v1773
        %v2898 = vpop.f32.mrb[0].mxu0
        %v2899 = vadd.f32 0.0, %v2898
        %v2900 = vpop.f32.mrb[0].mxu0
        %2901 = vmatprep.mubr.f32.mxu0 0.0
        %2902 = vmatmul.mubr.f32.gmra.mrb[0].mxu0 %v1774
        %v2903 = vpop.f32.mrb[0].mxu0
        %v2904 = vadd.f32 0.0, %v2903
        %v2905 = vpop.f32.mrb[0].mxu0
        %2906 = vmatprep.mubr.f32.mxu0 0.0
        %2907 = vmatmul.mubr.f32.gmra.mrb[0].mxu0 %v1775
        %v2908 = vpop.f32.mrb[0].mxu0
        %v2909 = vadd.f32 0.0, %v2908
        %v2910 = vpop.f32.mrb[0].mxu0
        %2911 = vmatprep.mubr.f32.mxu0 0.0
        %2912 = vmatmul.mubr.f32.gmra.mrb[0].mxu0 %v1776
        %v2913 = vpop.f32.mrb[0].mxu0
        %v2914 = vadd.f32 0.0, %v2913
        %v2915 = vpop.f32.mrb[0].mxu0
        %2916 = vmatprep.mubr.f32.mxu0 0.0
        %2917 = vmatmul.mubr.f32.gmra.mrb[0].mxu0 %v1777
        %v2918 = vpop.f32.mrb[0].mxu0
        %v2919 = vadd.f32 0.0, %v2918
        %v2920 = vpop.f32.mrb[0].mxu0
        %2921 = vmatprep.mubr.f32.mxu0 0.0
        %2922 = vmatmul.mubr.f32.gmra.mrb[0].mxu0 %v1778
        %v2923 = vpop.f32.mrb[0].mxu0
        %v2924 = vadd.f32 0.0, %v2923
        %v2925 = vpop.f32.mrb[0].mxu0
        %2926 = vmatprep.mubr.f32.mxu0 0.0
        %2927 = vmatmul.mubr.f32.gmra.mrb[0].mxu0 %v1779
        %v2928 = vpop.f32.mrb[0].mxu0
        %v2929 = vadd.f32 0.0, %v2928
        %v2930 = vpop.f32.mrb[0].mxu0
        %2931 = vmatprep.mubr.f32.mxu0 0.0
        %2932 = vmatmul.mubr.f32.gmra.mrb[0].mxu0 %v1780
        %v2933 = vpop.f32.mrb[0].mxu0
        %v2934 = vadd.f32 0.0, %v2933
        %v2935 = vpop.f32.mrb[0].mxu0
        %2936 = vmatprep.mubr.f32.mxu0 0.0
        %2937 = vmatmul.mubr.f32.gmra.mrb[0].mxu0 %v1781
        %v2938 = vpop.f32.mrb[0].mxu0
        %v2939 = vadd.f32 0.0, %v2938
        %v2940 = vpop.f32.mrb[0].mxu0
        %2941 = vdwg.mxu0
        %v2942 = vld [vmem:[%s4] sm:$0x1]
        %v2944 = vlaneseq
        %v2945 = vshrl.u32 %v2944, 7
        %v2946 = vsub.s32 0, %v2945
        %v2947 = vrot.slane %v2942, %v2946
        %v2949 = vadd.f32 %v1849, %v2947
        %v2950 = vadd.f32 %v1854, %v2947
        %v2951 = vadd.f32 %v1859, %v2947
        %v2952 = vadd.f32 %v1864, %v2947
        %v2953 = vadd.f32 %v1869, %v2947
        %v2954 = vadd.f32 %v1874, %v2947
        %v2955 = vadd.f32 %v1879, %v2947
        %v2956 = vadd.f32 %v1884, %v2947
        %v2957 = vadd.f32 %v1889, %v2947
        %v2958 = vadd.f32 %v1894, %v2947
        %v2959 = vadd.f32 %v1899, %v2947
        %v2960 = vadd.f32 %v1904, %v2947
        %v2961 = vadd.f32 %v1909, %v2947
        %v2962 = vadd.f32 %v1914, %v2947
        %v2963 = vadd.f32 %v1919, %v2947
        %v2964 = vadd.f32 %v1924, %v2947
        %v2965 = vadd.f32 %v1994, %v2947
        %v2966 = vadd.f32 %v1999, %v2947
        %v2967 = vadd.f32 %v2004, %v2947
        %v2968 = vadd.f32 %v2009, %v2947
        %v2969 = vadd.f32 %v2014, %v2947
        %v2970 = vadd.f32 %v2019, %v2947
        %v2971 = vadd.f32 %v2024, %v2947
        %v2972 = vadd.f32 %v2029, %v2947
        %v2973 = vadd.f32 %v2034, %v2947
        %v2974 = vadd.f32 %v2039, %v2947
        %v2975 = vadd.f32 %v2044, %v2947
        %v2976 = vadd.f32 %v2049, %v2947
        %v2977 = vadd.f32 %v2054, %v2947
        %v2978 = vadd.f32 %v2059, %v2947
        %v2979 = vadd.f32 %v2064, %v2947
        %v2980 = vadd.f32 %v2069, %v2947
        %v2981 = vadd.f32 %v2139, %v2947
        %v2982 = vadd.f32 %v2144, %v2947
        %v2983 = vadd.f32 %v2149, %v2947
        %v2984 = vadd.f32 %v2154, %v2947
        %v2985 = vadd.f32 %v2159, %v2947
        %v2986 = vadd.f32 %v2164, %v2947
        %v2987 = vadd.f32 %v2169, %v2947
        %v2988 = vadd.f32 %v2174, %v2947
        %v2989 = vadd.f32 %v2179, %v2947
        %v2990 = vadd.f32 %v2184, %v2947
        %v2991 = vadd.f32 %v2189, %v2947
        %v2992 = vadd.f32 %v2194, %v2947
        %v2993 = vadd.f32 %v2199, %v2947
        %v2994 = vadd.f32 %v2204, %v2947
        %v2995 = vadd.f32 %v2209, %v2947
        %v2996 = vadd.f32 %v2214, %v2947
        %v2997 = vadd.f32 %v2284, %v2947
        %v2998 = vadd.f32 %v2289, %v2947
        %v2999 = vadd.f32 %v2294, %v2947
        %v3000 = vadd.f32 %v2299, %v2947
        %v3001 = vadd.f32 %v2304, %v2947
        %v3002 = vadd.f32 %v2309, %v2947
        %v3003 = vadd.f32 %v2314, %v2947
        %v3004 = vadd.f32 %v2319, %v2947
        %v3005 = vadd.f32 %v2324, %v2947
        %v3006 = vadd.f32 %v2329, %v2947
        %v3007 = vadd.f32 %v2334, %v2947
        %v3008 = vadd.f32 %v2339, %v2947
        %v3009 = vadd.f32 %v2344, %v2947
        %v3010 = vadd.f32 %v2349, %v2947
        %v3011 = vadd.f32 %v2354, %v2947
        %v3012 = vadd.f32 %v2359, %v2947
        %v3013 = vadd.f32 %v2429, %v2947
        %v3014 = vadd.f32 %v2434, %v2947
        %v3015 = vadd.f32 %v2439, %v2947
        %v3016 = vadd.f32 %v2444, %v2947
        %v3017 = vadd.f32 %v2449, %v2947
        %v3018 = vadd.f32 %v2454, %v2947
        %v3019 = vadd.f32 %v2459, %v2947
        %v3020 = vadd.f32 %v2464, %v2947
        %v3021 = vadd.f32 %v2469, %v2947
        %v3022 = vadd.f32 %v2474, %v2947
        %v3023 = vadd.f32 %v2479, %v2947
        %v3024 = vadd.f32 %v2484, %v2947
        %v3025 = vadd.f32 %v2489, %v2947
        %v3026 = vadd.f32 %v2494, %v2947
        %v3027 = vadd.f32 %v2499, %v2947
        %v3028 = vadd.f32 %v2504, %v2947
        %v3029 = vadd.f32 %v2574, %v2947
        %v3030 = vadd.f32 %v2579, %v2947
        %v3031 = vadd.f32 %v2584, %v2947
        %v3032 = vadd.f32 %v2589, %v2947
        %v3033 = vadd.f32 %v2594, %v2947
        %v3034 = vadd.f32 %v2599, %v2947
        %v3035 = vadd.f32 %v2604, %v2947
        %v3036 = vadd.f32 %v2609, %v2947
        %v3037 = vadd.f32 %v2614, %v2947
        %v3038 = vadd.f32 %v2619, %v2947
        %v3039 = vadd.f32 %v2624, %v2947
        %v3040 = vadd.f32 %v2629, %v2947
        %v3041 = vadd.f32 %v2634, %v2947
        %v3042 = vadd.f32 %v2639, %v2947
        %v3043 = vadd.f32 %v2644, %v2947
        %v3044 = vadd.f32 %v2649, %v2947
        %v3045 = vadd.f32 %v2719, %v2947
        %v3046 = vadd.f32 %v2724, %v2947
        %v3047 = vadd.f32 %v2729, %v2947
        %v3048 = vadd.f32 %v2734, %v2947
        %v3049 = vadd.f32 %v2739, %v2947
        %v3050 = vadd.f32 %v2744, %v2947
        %v3051 = vadd.f32 %v2749, %v2947
        %v3052 = vadd.f32 %v2754, %v2947
        %v3053 = vadd.f32 %v2759, %v2947
        %v3054 = vadd.f32 %v2764, %v2947
        %v3055 = vadd.f32 %v2769, %v2947
        %v3056 = vadd.f32 %v2774, %v2947
        %v3057 = vadd.f32 %v2779, %v2947
        %v3058 = vadd.f32 %v2784, %v2947
        %v3059 = vadd.f32 %v2789, %v2947
        %v3060 = vadd.f32 %v2794, %v2947
        %v3061 = vadd.f32 %v2864, %v2947
        %v3062 = vadd.f32 %v2869, %v2947
        %v3063 = vadd.f32 %v2874, %v2947
        %v3064 = vadd.f32 %v2879, %v2947
        %v3065 = vadd.f32 %v2884, %v2947
        %v3066 = vadd.f32 %v2889, %v2947
        %v3067 = vadd.f32 %v2894, %v2947
        %v3068 = vadd.f32 %v2899, %v2947
        %v3069 = vadd.f32 %v2904, %v2947
        %v3070 = vadd.f32 %v2909, %v2947
        %v3071 = vadd.f32 %v2914, %v2947
        %v3072 = vadd.f32 %v2919, %v2947
        %v3073 = vadd.f32 %v2924, %v2947
        %v3074 = vadd.f32 %v2929, %v2947
        %v3075 = vadd.f32 %v2934, %v2947
        %v3076 = vadd.f32 %v2939, %v2947
        %v3077 = vmax.f32 %v2949, 0.0
        %v3078 = vmax.f32 %v2950, 0.0
        %v3079 = vmax.f32 %v2951, 0.0
        %v3080 = vmax.f32 %v2952, 0.0
        %v3081 = vmax.f32 %v2953, 0.0
        %v3082 = vmax.f32 %v2954, 0.0
        %v3083 = vmax.f32 %v2955, 0.0
        %v3084 = vmax.f32 %v2956, 0.0
        %v3085 = vmax.f32 %v2957, 0.0
        %v3086 = vmax.f32 %v2958, 0.0
        %v3087 = vmax.f32 %v2959, 0.0
        %v3088 = vmax.f32 %v2960, 0.0
        %v3089 = vmax.f32 %v2961, 0.0
        %v3090 = vmax.f32 %v2962, 0.0
        %v3091 = vmax.f32 %v2963, 0.0
        %v3092 = vmax.f32 %v2964, 0.0
        %v3093 = vmax.f32 %v2965, 0.0
        %v3094 = vmax.f32 %v2966, 0.0
        %v3095 = vmax.f32 %v2967, 0.0
        %v3096 = vmax.f32 %v2968, 0.0
        %v3097 = vmax.f32 %v2969, 0.0
        %v3098 = vmax.f32 %v2970, 0.0
        %v3099 = vmax.f32 %v2971, 0.0
        %v3100 = vmax.f32 %v2972, 0.0
        %v3101 = vmax.f32 %v2973, 0.0
        %v3102 = vmax.f32 %v2974, 0.0
        %v3103 = vmax.f32 %v2975, 0.0
        %v3104 = vmax.f32 %v2976, 0.0
        %v3105 = vmax.f32 %v2977, 0.0
        %v3106 = vmax.f32 %v2978, 0.0
        %v3107 = vmax.f32 %v2979, 0.0
        %v3108 = vmax.f32 %v2980, 0.0
        %v3109 = vmax.f32 %v2981, 0.0
        %v3110 = vmax.f32 %v2982, 0.0
        %v3111 = vmax.f32 %v2983, 0.0
        %v3112 = vmax.f32 %v2984, 0.0
        %v3113 = vmax.f32 %v2985, 0.0
        %v3114 = vmax.f32 %v2986, 0.0
        %v3115 = vmax.f32 %v2987, 0.0
        %v3116 = vmax.f32 %v2988, 0.0
        %v3117 = vmax.f32 %v2989, 0.0
        %v3118 = vmax.f32 %v2990, 0.0
        %v3119 = vmax.f32 %v2991, 0.0
        %v3120 = vmax.f32 %v2992, 0.0
        %v3121 = vmax.f32 %v2993, 0.0
        %v3122 = vmax.f32 %v2994, 0.0
        %v3123 = vmax.f32 %v2995, 0.0
        %v3124 = vmax.f32 %v2996, 0.0
        %v3125 = vmax.f32 %v2997, 0.0
        %v3126 = vmax.f32 %v2998, 0.0
        %v3127 = vmax.f32 %v2999, 0.0
        %v3128 = vmax.f32 %v3000, 0.0
        %v3129 = vmax.f32 %v3001, 0.0
        %v3130 = vmax.f32 %v3002, 0.0
        %v3131 = vmax.f32 %v3003, 0.0
        %v3132 = vmax.f32 %v3004, 0.0
        %v3133 = vmax.f32 %v3005, 0.0
        %v3134 = vmax.f32 %v3006, 0.0
        %v3135 = vmax.f32 %v3007, 0.0
        %v3136 = vmax.f32 %v3008, 0.0
        %v3137 = vmax.f32 %v3009, 0.0
        %v3138 = vmax.f32 %v3010, 0.0
        %v3139 = vmax.f32 %v3011, 0.0
        %v3140 = vmax.f32 %v3012, 0.0
        %v3141 = vmax.f32 %v3013, 0.0
        %v3142 = vmax.f32 %v3014, 0.0
        %v3143 = vmax.f32 %v3015, 0.0
        %v3144 = vmax.f32 %v3016, 0.0
        %v3145 = vmax.f32 %v3017, 0.0
        %v3146 = vmax.f32 %v3018, 0.0
        %v3147 = vmax.f32 %v3019, 0.0
        %v3148 = vmax.f32 %v3020, 0.0
        %v3149 = vmax.f32 %v3021, 0.0
        %v3150 = vmax.f32 %v3022, 0.0
        %v3151 = vmax.f32 %v3023, 0.0
        %v3152 = vmax.f32 %v3024, 0.0
        %v3153 = vmax.f32 %v3025, 0.0
        %v3154 = vmax.f32 %v3026, 0.0
        %v3155 = vmax.f32 %v3027, 0.0
        %v3156 = vmax.f32 %v3028, 0.0
        %v3157 = vmax.f32 %v3029, 0.0
        %v3158 = vmax.f32 %v3030, 0.0
        %v3159 = vmax.f32 %v3031, 0.0
        %v3160 = vmax.f32 %v3032, 0.0
        %v3161 = vmax.f32 %v3033, 0.0
        %v3162 = vmax.f32 %v3034, 0.0
        %v3163 = vmax.f32 %v3035, 0.0
        %v3164 = vmax.f32 %v3036, 0.0
        %v3165 = vmax.f32 %v3037, 0.0
        %v3166 = vmax.f32 %v3038, 0.0
        %v3167 = vmax.f32 %v3039, 0.0
        %v3168 = vmax.f32 %v3040, 0.0
        %v3169 = vmax.f32 %v3041, 0.0
        %v3170 = vmax.f32 %v3042, 0.0
        %v3171 = vmax.f32 %v3043, 0.0
        %v3172 = vmax.f32 %v3044, 0.0
        %v3173 = vmax.f32 %v3045, 0.0
        %v3174 = vmax.f32 %v3046, 0.0
        %v3175 = vmax.f32 %v3047, 0.0
        %v3176 = vmax.f32 %v3048, 0.0
        %v3177 = vmax.f32 %v3049, 0.0
        %v3178 = vmax.f32 %v3050, 0.0
        %v3179 = vmax.f32 %v3051, 0.0
        %v3180 = vmax.f32 %v3052, 0.0
        %v3181 = vmax.f32 %v3053, 0.0
        %v3182 = vmax.f32 %v3054, 0.0
        %v3183 = vmax.f32 %v3055, 0.0
        %v3184 = vmax.f32 %v3056, 0.0
        %v3185 = vmax.f32 %v3057, 0.0
        %v3186 = vmax.f32 %v3058, 0.0
        %v3187 = vmax.f32 %v3059, 0.0
        %v3188 = vmax.f32 %v3060, 0.0
        %v3189 = vmax.f32 %v3061, 0.0
        %v3190 = vmax.f32 %v3062, 0.0
        %v3191 = vmax.f32 %v3063, 0.0
        %v3192 = vmax.f32 %v3064, 0.0
        %v3193 = vmax.f32 %v3065, 0.0
        %v3194 = vmax.f32 %v3066, 0.0
        %v3195 = vmax.f32 %v3067, 0.0
        %v3196 = vmax.f32 %v3068, 0.0
        %v3197 = vmax.f32 %v3069, 0.0
        %v3198 = vmax.f32 %v3070, 0.0
        %v3199 = vmax.f32 %v3071, 0.0
        %v3200 = vmax.f32 %v3072, 0.0
        %v3201 = vmax.f32 %v3073, 0.0
        %v3202 = vmax.f32 %v3074, 0.0
        %v3203 = vmax.f32 %v3075, 0.0
        %v3204 = vmax.f32 %v3076, 0.0
        %v3205 = vld [vmem:[%s5] sm:$0xff]
        %v3206 = vld [vmem:[%s5 + $0x8] sm:$0xff]
        %v3207 = vld [vmem:[%s5 + $0x10] sm:$0xff]
        %v3208 = vld [vmem:[%s5 + $0x18] sm:$0xff]
        %v3209 = vld [vmem:[%s5 + $0x20] sm:$0xff]
        %v3210 = vld [vmem:[%s5 + $0x28] sm:$0xff]
        %v3211 = vld [vmem:[%s5 + $0x30] sm:$0xff]
        %v3212 = vld [vmem:[%s5 + $0x38] sm:$0xff]
        %v3213 = vld [vmem:[%s5 + $0x40] sm:$0xff]
        %v3214 = vld [vmem:[%s5 + $0x48] sm:$0xff]
        %v3215 = vld [vmem:[%s5 + $0x50] sm:$0xff]
        %v3216 = vld [vmem:[%s5 + $0x58] sm:$0xff]
        %v3217 = vld [vmem:[%s5 + $0x60] sm:$0xff]
        %v3218 = vld [vmem:[%s5 + $0x68] sm:$0xff]
        %v3219 = vld [vmem:[%s5 + $0x70] sm:$0xff]
        %v3220 = vld [vmem:[%s5 + $0x78] sm:$0xff]
        %3221 = vmatprep.subr.mxu0 0.0
        %3222 = vmatpush1.msra.mxu0 %v3205
        %3223 = vmatprep.subr.mxu0 0.0
        %3224 = vmatpush1.msra.mxu0 %v3206
        %3225 = vmatprep.subr.mxu0 0.0
        %3226 = vmatpush1.msra.mxu0 %v3207
        %3227 = vmatprep.subr.mxu0 0.0
        %3228 = vmatpush1.msra.mxu0 %v3208
        %3229 = vmatprep.subr.mxu0 0.0
        %3230 = vmatpush1.msra.mxu0 %v3209
        %3231 = vmatprep.subr.mxu0 0.0
        %3232 = vmatpush1.msra.mxu0 %v3210
        %3233 = vmatprep.subr.mxu0 0.0
        %3234 = vmatpush1.msra.mxu0 %v3211
        %3235 = vmatprep.subr.mxu0 0.0
        %3236 = vmatpush1.msra.mxu0 %v3212
        %3237 = vmatprep.subr.mxu0 0.0
        %3238 = vmatpush1.msra.mxu0 %v3213
        %3239 = vmatprep.subr.mxu0 0.0
        %3240 = vmatpush1.msra.mxu0 %v3214
        %3241 = vmatprep.subr.mxu0 0.0
        %3242 = vmatpush1.msra.mxu0 %v3215
        %3243 = vmatprep.subr.mxu0 0.0
        %3244 = vmatpush1.msra.mxu0 %v3216
        %3245 = vmatprep.subr.mxu0 0.0
        %3246 = vmatpush1.msra.mxu0 %v3217
        %3247 = vmatprep.subr.mxu0 0.0
        %3248 = vmatpush1.msra.mxu0 %v3218
        %3249 = vmatprep.subr.mxu0 0.0
        %3250 = vmatpush1.msra.mxu0 %v3219
        %3251 = vmatprep.subr.mxu0 0.0
        %3252 = vmatpush1.msra.mxu0 %v3220
        %3253 = vmatprep.subr.mxu0 0.0
        %3254 = vmatpush1.msra.mxu0 0.0
        %3255 = vmatprep.subr.mxu0 0.0
        %3256 = vmatpush1.msra.mxu0 0.0
        %3257 = vmatprep.subr.mxu0 0.0
        %3258 = vmatpush1.msra.mxu0 0.0
        %3259 = vmatprep.subr.mxu0 0.0
        %3260 = vmatpush1.msra.mxu0 0.0
        %3261 = vmatprep.subr.mxu0 0.0
        %3262 = vmatpush1.msra.mxu0 0.0
        %3263 = vmatprep.subr.mxu0 0.0
        %3264 = vmatpush1.msra.mxu0 0.0
        %3265 = vmatprep.subr.mxu0 0.0
        %3266 = vmatpush1.msra.mxu0 0.0
        %3267 = vmatprep.subr.mxu0 0.0
        %3268 = vmatpush1.msra.mxu0 0.0
        %3269 = vmatprep.subr.mxu0 0.0
        %3270 = vmatpush1.msra.mxu0 0.0
        %3271 = vmatprep.subr.mxu0 0.0
        %3272 = vmatpush1.msra.mxu0 0.0
        %3273 = vmatprep.subr.mxu0 0.0
        %3274 = vmatpush1.msra.mxu0 0.0
        %3275 = vmatprep.subr.mxu0 0.0
        %3276 = vmatpush1.msra.mxu0 0.0
        %3277 = vmatprep.subr.mxu0 0.0
        %3278 = vmatpush1.msra.mxu0 0.0
        %3279 = vmatprep.subr.mxu0 0.0
        %3280 = vmatpush1.msra.mxu0 0.0
        %3281 = vmatprep.subr.mxu0 0.0
        %3282 = vmatpush1.msra.mxu0 0.0
        %3283 = vmatprep.subr.mxu0 0.0
        %3284 = vmatpush1.msra.mxu0 0.0
        %3285 = vmatprep.mubr.f32.mxu0 0.0
        %3286 = vmatmul.mubr.f32.gmra.mrb[0].mxu0 %v3077
        %v3287 = vpop.f32.mrb[0].mxu0
        %v3288 = vadd.f32 0.0, %v3287
        %v3289 = vpop.f32.mrb[0].mxu0
        %3290 = vmatprep.mubr.f32.mxu0 0.0
        %3291 = vmatmul.mubr.f32.gmra.mrb[0].mxu0 %v3078
        %v3292 = vpop.f32.mrb[0].mxu0
        %v3293 = vadd.f32 0.0, %v3292
        %v3294 = vpop.f32.mrb[0].mxu0
        %3295 = vmatprep.mubr.f32.mxu0 0.0
        %3296 = vmatmul.mubr.f32.gmra.mrb[0].mxu0 %v3079
        %v3297 = vpop.f32.mrb[0].mxu0
        %v3298 = vadd.f32 0.0, %v3297
        %v3299 = vpop.f32.mrb[0].mxu0
        %3300 = vmatprep.mubr.f32.mxu0 0.0
        %3301 = vmatmul.mubr.f32.gmra.mrb[0].mxu0 %v3080
        %v3302 = vpop.f32.mrb[0].mxu0
        %v3303 = vadd.f32 0.0, %v3302
        %v3304 = vpop.f32.mrb[0].mxu0
        %3305 = vmatprep.mubr.f32.mxu0 0.0
        %3306 = vmatmul.mubr.f32.gmra.mrb[0].mxu0 %v3081
        %v3307 = vpop.f32.mrb[0].mxu0
        %v3308 = vadd.f32 0.0, %v3307
        %v3309 = vpop.f32.mrb[0].mxu0
        %3310 = vmatprep.mubr.f32.mxu0 0.0
        %3311 = vmatmul.mubr.f32.gmra.mrb[0].mxu0 %v3082
        %v3312 = vpop.f32.mrb[0].mxu0
        %v3313 = vadd.f32 0.0, %v3312
        %v3314 = vpop.f32.mrb[0].mxu0
        %3315 = vmatprep.mubr.f32.mxu0 0.0
        %3316 = vmatmul.mubr.f32.gmra.mrb[0].mxu0 %v3083
        %v3317 = vpop.f32.mrb[0].mxu0
        %v3318 = vadd.f32 0.0, %v3317
        %v3319 = vpop.f32.mrb[0].mxu0
        %3320 = vmatprep.mubr.f32.mxu0 0.0
        %3321 = vmatmul.mubr.f32.gmra.mrb[0].mxu0 %v3084
        %v3322 = vpop.f32.mrb[0].mxu0
        %v3323 = vadd.f32 0.0, %v3322
        %v3324 = vpop.f32.mrb[0].mxu0
        %3325 = vmatprep.mubr.f32.mxu0 0.0
        %3326 = vmatmul.mubr.f32.gmra.mrb[0].mxu0 %v3085
        %v3327 = vpop.f32.mrb[0].mxu0
        %v3328 = vadd.f32 0.0, %v3327
        %v3329 = vpop.f32.mrb[0].mxu0
        %3330 = vmatprep.mubr.f32.mxu0 0.0
        %3331 = vmatmul.mubr.f32.gmra.mrb[0].mxu0 %v3086
        %v3332 = vpop.f32.mrb[0].mxu0
        %v3333 = vadd.f32 0.0, %v3332
        %v3334 = vpop.f32.mrb[0].mxu0
        %3335 = vmatprep.mubr.f32.mxu0 0.0
        %3336 = vmatmul.mubr.f32.gmra.mrb[0].mxu0 %v3087
        %v3337 = vpop.f32.mrb[0].mxu0
        %v3338 = vadd.f32 0.0, %v3337
        %v3339 = vpop.f32.mrb[0].mxu0
        %3340 = vmatprep.mubr.f32.mxu0 0.0
        %3341 = vmatmul.mubr.f32.gmra.mrb[0].mxu0 %v3088
        %v3342 = vpop.f32.mrb[0].mxu0
        %v3343 = vadd.f32 0.0, %v3342
        %v3344 = vpop.f32.mrb[0].mxu0
        %3345 = vmatprep.mubr.f32.mxu0 0.0
        %3346 = vmatmul.mubr.f32.gmra.mrb[0].mxu0 %v3089
        %v3347 = vpop.f32.mrb[0].mxu0
        %v3348 = vadd.f32 0.0, %v3347
        %v3349 = vpop.f32.mrb[0].mxu0
        %3350 = vmatprep.mubr.f32.mxu0 0.0
        %3351 = vmatmul.mubr.f32.gmra.mrb[0].mxu0 %v3090
        %v3352 = vpop.f32.mrb[0].mxu0
        %v3353 = vadd.f32 0.0, %v3352
        %v3354 = vpop.f32.mrb[0].mxu0
        %3355 = vmatprep.mubr.f32.mxu0 0.0
        %3356 = vmatmul.mubr.f32.gmra.mrb[0].mxu0 %v3091
        %v3357 = vpop.f32.mrb[0].mxu0
        %v3358 = vadd.f32 0.0, %v3357
        %v3359 = vpop.f32.mrb[0].mxu0
        %3360 = vmatprep.mubr.f32.mxu0 0.0
        %3361 = vmatmul.mubr.f32.gmra.mrb[0].mxu0 %v3092
        %v3362 = vpop.f32.mrb[0].mxu0
        %v3363 = vadd.f32 0.0, %v3362
        %v3364 = vpop.f32.mrb[0].mxu0
        %3365 = vmatprep.mubr.f32.mxu0 0.0
        %3366 = vmatmul.mubr.f32.gmra.mrb[0].mxu0 %v3093
        %v3367 = vpop.f32.mrb[0].mxu0
        %v3368 = vadd.f32 0.0, %v3367
        %v3369 = vpop.f32.mrb[0].mxu0
        %3370 = vmatprep.mubr.f32.mxu0 0.0
        %3371 = vmatmul.mubr.f32.gmra.mrb[0].mxu0 %v3094
        %v3372 = vpop.f32.mrb[0].mxu0
        %v3373 = vadd.f32 0.0, %v3372
        %v3374 = vpop.f32.mrb[0].mxu0
        %3375 = vmatprep.mubr.f32.mxu0 0.0
        %3376 = vmatmul.mubr.f32.gmra.mrb[0].mxu0 %v3095
        %v3377 = vpop.f32.mrb[0].mxu0
        %v3378 = vadd.f32 0.0, %v3377
        %v3379 = vpop.f32.mrb[0].mxu0
        %3380 = vmatprep.mubr.f32.mxu0 0.0
        %3381 = vmatmul.mubr.f32.gmra.mrb[0].mxu0 %v3096
        %v3382 = vpop.f32.mrb[0].mxu0
        %v3383 = vadd.f32 0.0, %v3382
        %v3384 = vpop.f32.mrb[0].mxu0
        %3385 = vmatprep.mubr.f32.mxu0 0.0
        %3386 = vmatmul.mubr.f32.gmra.mrb[0].mxu0 %v3097
        %v3387 = vpop.f32.mrb[0].mxu0
        %v3388 = vadd.f32 0.0, %v3387
        %v3389 = vpop.f32.mrb[0].mxu0
        %3390 = vmatprep.mubr.f32.mxu0 0.0
        %3391 = vmatmul.mubr.f32.gmra.mrb[0].mxu0 %v3098
        %v3392 = vpop.f32.mrb[0].mxu0
        %v3393 = vadd.f32 0.0, %v3392
        %v3394 = vpop.f32.mrb[0].mxu0
        %3395 = vmatprep.mubr.f32.mxu0 0.0
        %3396 = vmatmul.mubr.f32.gmra.mrb[0].mxu0 %v3099
        %v3397 = vpop.f32.mrb[0].mxu0
        %v3398 = vadd.f32 0.0, %v3397
        %v3399 = vpop.f32.mrb[0].mxu0
        %3400 = vmatprep.mubr.f32.mxu0 0.0
        %3401 = vmatmul.mubr.f32.gmra.mrb[0].mxu0 %v3100
        %v3402 = vpop.f32.mrb[0].mxu0
        %v3403 = vadd.f32 0.0, %v3402
        %v3404 = vpop.f32.mrb[0].mxu0
        %3405 = vmatprep.mubr.f32.mxu0 0.0
        %3406 = vmatmul.mubr.f32.gmra.mrb[0].mxu0 %v3101
        %v3407 = vpop.f32.mrb[0].mxu0
        %v3408 = vadd.f32 0.0, %v3407
        %v3409 = vpop.f32.mrb[0].mxu0
        %3410 = vmatprep.mubr.f32.mxu0 0.0
        %3411 = vmatmul.mubr.f32.gmra.mrb[0].mxu0 %v3102
        %v3412 = vpop.f32.mrb[0].mxu0
        %v3413 = vadd.f32 0.0, %v3412
        %v3414 = vpop.f32.mrb[0].mxu0
        %3415 = vmatprep.mubr.f32.mxu0 0.0
        %3416 = vmatmul.mubr.f32.gmra.mrb[0].mxu0 %v3103
        %v3417 = vpop.f32.mrb[0].mxu0
        %v3418 = vadd.f32 0.0, %v3417
        %v3419 = vpop.f32.mrb[0].mxu0
        %3420 = vmatprep.mubr.f32.mxu0 0.0
        %3421 = vmatmul.mubr.f32.gmra.mrb[0].mxu0 %v3104
        %v3422 = vpop.f32.mrb[0].mxu0
        %v3423 = vadd.f32 0.0, %v3422
        %v3424 = vpop.f32.mrb[0].mxu0
        %3425 = vmatprep.mubr.f32.mxu0 0.0
        %3426 = vmatmul.mubr.f32.gmra.mrb[0].mxu0 %v3105
        %v3427 = vpop.f32.mrb[0].mxu0
        %v3428 = vadd.f32 0.0, %v3427
        %v3429 = vpop.f32.mrb[0].mxu0
        %3430 = vmatprep.mubr.f32.mxu0 0.0
        %3431 = vmatmul.mubr.f32.gmra.mrb[0].mxu0 %v3106
        %v3432 = vpop.f32.mrb[0].mxu0
        %v3433 = vadd.f32 0.0, %v3432
        %v3434 = vpop.f32.mrb[0].mxu0
        %3435 = vmatprep.mubr.f32.mxu0 0.0
        %3436 = vmatmul.mubr.f32.gmra.mrb[0].mxu0 %v3107
        %v3437 = vpop.f32.mrb[0].mxu0
        %v3438 = vadd.f32 0.0, %v3437
        %v3439 = vpop.f32.mrb[0].mxu0
        %3440 = vmatprep.mubr.f32.mxu0 0.0
        %3441 = vmatmul.mubr.f32.gmra.mrb[0].mxu0 %v3108
        %v3442 = vpop.f32.mrb[0].mxu0
        %v3443 = vadd.f32 0.0, %v3442
        %v3444 = vpop.f32.mrb[0].mxu0
        %3445 = vmatprep.mubr.f32.mxu0 0.0
        %3446 = vmatmul.mubr.f32.gmra.mrb[0].mxu0 %v3109
        %v3447 = vpop.f32.mrb[0].mxu0
        %v3448 = vadd.f32 0.0, %v3447
        %v3449 = vpop.f32.mrb[0].mxu0
        %3450 = vmatprep.mubr.f32.mxu0 0.0
        %3451 = vmatmul.mubr.f32.gmra.mrb[0].mxu0 %v3110
        %v3452 = vpop.f32.mrb[0].mxu0
        %v3453 = vadd.f32 0.0, %v3452
        %v3454 = vpop.f32.mrb[0].mxu0
        %3455 = vmatprep.mubr.f32.mxu0 0.0
        %3456 = vmatmul.mubr.f32.gmra.mrb[0].mxu0 %v3111
        %v3457 = vpop.f32.mrb[0].mxu0
        %v3458 = vadd.f32 0.0, %v3457
        %v3459 = vpop.f32.mrb[0].mxu0
        %3460 = vmatprep.mubr.f32.mxu0 0.0
        %3461 = vmatmul.mubr.f32.gmra.mrb[0].mxu0 %v3112
        %v3462 = vpop.f32.mrb[0].mxu0
        %v3463 = vadd.f32 0.0, %v3462
        %v3464 = vpop.f32.mrb[0].mxu0
        %3465 = vmatprep.mubr.f32.mxu0 0.0
        %3466 = vmatmul.mubr.f32.gmra.mrb[0].mxu0 %v3113
        %v3467 = vpop.f32.mrb[0].mxu0
        %v3468 = vadd.f32 0.0, %v3467
        %v3469 = vpop.f32.mrb[0].mxu0
        %3470 = vmatprep.mubr.f32.mxu0 0.0
        %3471 = vmatmul.mubr.f32.gmra.mrb[0].mxu0 %v3114
        %v3472 = vpop.f32.mrb[0].mxu0
        %v3473 = vadd.f32 0.0, %v3472
        %v3474 = vpop.f32.mrb[0].mxu0
        %3475 = vmatprep.mubr.f32.mxu0 0.0
        %3476 = vmatmul.mubr.f32.gmra.mrb[0].mxu0 %v3115
        %v3477 = vpop.f32.mrb[0].mxu0
        %v3478 = vadd.f32 0.0, %v3477
        %v3479 = vpop.f32.mrb[0].mxu0
        %3480 = vmatprep.mubr.f32.mxu0 0.0
        %3481 = vmatmul.mubr.f32.gmra.mrb[0].mxu0 %v3116
        %v3482 = vpop.f32.mrb[0].mxu0
        %v3483 = vadd.f32 0.0, %v3482
        %v3484 = vpop.f32.mrb[0].mxu0
        %3485 = vmatprep.mubr.f32.mxu0 0.0
        %3486 = vmatmul.mubr.f32.gmra.mrb[0].mxu0 %v3117
        %v3487 = vpop.f32.mrb[0].mxu0
        %v3488 = vadd.f32 0.0, %v3487
        %v3489 = vpop.f32.mrb[0].mxu0
        %3490 = vmatprep.mubr.f32.mxu0 0.0
        %3491 = vmatmul.mubr.f32.gmra.mrb[0].mxu0 %v3118
        %v3492 = vpop.f32.mrb[0].mxu0
        %v3493 = vadd.f32 0.0, %v3492
        %v3494 = vpop.f32.mrb[0].mxu0
        %3495 = vmatprep.mubr.f32.mxu0 0.0
        %3496 = vmatmul.mubr.f32.gmra.mrb[0].mxu0 %v3119
        %v3497 = vpop.f32.mrb[0].mxu0
        %v3498 = vadd.f32 0.0, %v3497
        %v3499 = vpop.f32.mrb[0].mxu0
        %3500 = vmatprep.mubr.f32.mxu0 0.0
        %3501 = vmatmul.mubr.f32.gmra.mrb[0].mxu0 %v3120
        %v3502 = vpop.f32.mrb[0].mxu0
        %v3503 = vadd.f32 0.0, %v3502
        %v3504 = vpop.f32.mrb[0].mxu0
        %3505 = vmatprep.mubr.f32.mxu0 0.0
        %3506 = vmatmul.mubr.f32.gmra.mrb[0].mxu0 %v3121
        %v3507 = vpop.f32.mrb[0].mxu0
        %v3508 = vadd.f32 0.0, %v3507
        %v3509 = vpop.f32.mrb[0].mxu0
        %3510 = vmatprep.mubr.f32.mxu0 0.0
        %3511 = vmatmul.mubr.f32.gmra.mrb[0].mxu0 %v3122
        %v3512 = vpop.f32.mrb[0].mxu0
        %v3513 = vadd.f32 0.0, %v3512
        %v3514 = vpop.f32.mrb[0].mxu0
        %3515 = vmatprep.mubr.f32.mxu0 0.0
        %3516 = vmatmul.mubr.f32.gmra.mrb[0].mxu0 %v3123
        %v3517 = vpop.f32.mrb[0].mxu0
        %v3518 = vadd.f32 0.0, %v3517
        %v3519 = vpop.f32.mrb[0].mxu0
        %3520 = vmatprep.mubr.f32.mxu0 0.0
        %3521 = vmatmul.mubr.f32.gmra.mrb[0].mxu0 %v3124
        %v3522 = vpop.f32.mrb[0].mxu0
        %v3523 = vadd.f32 0.0, %v3522
        %v3524 = vpop.f32.mrb[0].mxu0
        %3525 = vmatprep.mubr.f32.mxu0 0.0
        %3526 = vmatmul.mubr.f32.gmra.mrb[0].mxu0 %v3125
        %v3527 = vpop.f32.mrb[0].mxu0
        %v3528 = vadd.f32 0.0, %v3527
        %v3529 = vpop.f32.mrb[0].mxu0
        %3530 = vmatprep.mubr.f32.mxu0 0.0
        %3531 = vmatmul.mubr.f32.gmra.mrb[0].mxu0 %v3126
        %v3532 = vpop.f32.mrb[0].mxu0
        %v3533 = vadd.f32 0.0, %v3532
        %v3534 = vpop.f32.mrb[0].mxu0
        %3535 = vmatprep.mubr.f32.mxu0 0.0
        %3536 = vmatmul.mubr.f32.gmra.mrb[0].mxu0 %v3127
        %v3537 = vpop.f32.mrb[0].mxu0
        %v3538 = vadd.f32 0.0, %v3537
        %v3539 = vpop.f32.mrb[0].mxu0
        %3540 = vmatprep.mubr.f32.mxu0 0.0
        %3541 = vmatmul.mubr.f32.gmra.mrb[0].mxu0 %v3128
        %v3542 = vpop.f32.mrb[0].mxu0
        %v3543 = vadd.f32 0.0, %v3542
        %v3544 = vpop.f32.mrb[0].mxu0
        %3545 = vmatprep.mubr.f32.mxu0 0.0
        %3546 = vmatmul.mubr.f32.gmra.mrb[0].mxu0 %v3129
        %v3547 = vpop.f32.mrb[0].mxu0
        %v3548 = vadd.f32 0.0, %v3547
        %v3549 = vpop.f32.mrb[0].mxu0
        %3550 = vmatprep.mubr.f32.mxu0 0.0
        %3551 = vmatmul.mubr.f32.gmra.mrb[0].mxu0 %v3130
        %v3552 = vpop.f32.mrb[0].mxu0
        %v3553 = vadd.f32 0.0, %v3552
        %v3554 = vpop.f32.mrb[0].mxu0
        %3555 = vmatprep.mubr.f32.mxu0 0.0
        %3556 = vmatmul.mubr.f32.gmra.mrb[0].mxu0 %v3131
        %v3557 = vpop.f32.mrb[0].mxu0
        %v3558 = vadd.f32 0.0, %v3557
        %v3559 = vpop.f32.mrb[0].mxu0
        %3560 = vmatprep.mubr.f32.mxu0 0.0
        %3561 = vmatmul.mubr.f32.gmra.mrb[0].mxu0 %v3132
        %v3562 = vpop.f32.mrb[0].mxu0
        %v3563 = vadd.f32 0.0, %v3562
        %v3564 = vpop.f32.mrb[0].mxu0
        %3565 = vmatprep.mubr.f32.mxu0 0.0
        %3566 = vmatmul.mubr.f32.gmra.mrb[0].mxu0 %v3133
        %v3567 = vpop.f32.mrb[0].mxu0
        %v3568 = vadd.f32 0.0, %v3567
        %v3569 = vpop.f32.mrb[0].mxu0
        %3570 = vmatprep.mubr.f32.mxu0 0.0
        %3571 = vmatmul.mubr.f32.gmra.mrb[0].mxu0 %v3134
        %v3572 = vpop.f32.mrb[0].mxu0
        %v3573 = vadd.f32 0.0, %v3572
        %v3574 = vpop.f32.mrb[0].mxu0
        %3575 = vmatprep.mubr.f32.mxu0 0.0
        %3576 = vmatmul.mubr.f32.gmra.mrb[0].mxu0 %v3135
        %v3577 = vpop.f32.mrb[0].mxu0
        %v3578 = vadd.f32 0.0, %v3577
        %v3579 = vpop.f32.mrb[0].mxu0
        %3580 = vmatprep.mubr.f32.mxu0 0.0
        %3581 = vmatmul.mubr.f32.gmra.mrb[0].mxu0 %v3136
        %v3582 = vpop.f32.mrb[0].mxu0
        %v3583 = vadd.f32 0.0, %v3582
        %v3584 = vpop.f32.mrb[0].mxu0
        %3585 = vmatprep.mubr.f32.mxu0 0.0
        %3586 = vmatmul.mubr.f32.gmra.mrb[0].mxu0 %v3137
        %v3587 = vpop.f32.mrb[0].mxu0
        %v3588 = vadd.f32 0.0, %v3587
        %v3589 = vpop.f32.mrb[0].mxu0
        %3590 = vmatprep.mubr.f32.mxu0 0.0
        %3591 = vmatmul.mubr.f32.gmra.mrb[0].mxu0 %v3138
        %v3592 = vpop.f32.mrb[0].mxu0
        %v3593 = vadd.f32 0.0, %v3592
        %v3594 = vpop.f32.mrb[0].mxu0
        %3595 = vmatprep.mubr.f32.mxu0 0.0
        %3596 = vmatmul.mubr.f32.gmra.mrb[0].mxu0 %v3139
        %v3597 = vpop.f32.mrb[0].mxu0
        %v3598 = vadd.f32 0.0, %v3597
        %v3599 = vpop.f32.mrb[0].mxu0
        %3600 = vmatprep.mubr.f32.mxu0 0.0
        %3601 = vmatmul.mubr.f32.gmra.mrb[0].mxu0 %v3140
        %v3602 = vpop.f32.mrb[0].mxu0
        %v3603 = vadd.f32 0.0, %v3602
        %v3604 = vpop.f32.mrb[0].mxu0
        %3605 = vmatprep.mubr.f32.mxu0 0.0
        %3606 = vmatmul.mubr.f32.gmra.mrb[0].mxu0 %v3141
        %v3607 = vpop.f32.mrb[0].mxu0
        %v3608 = vadd.f32 0.0, %v3607
        %v3609 = vpop.f32.mrb[0].mxu0
        %3610 = vmatprep.mubr.f32.mxu0 0.0
        %3611 = vmatmul.mubr.f32.gmra.mrb[0].mxu0 %v3142
        %v3612 = vpop.f32.mrb[0].mxu0
        %v3613 = vadd.f32 0.0, %v3612
        %v3614 = vpop.f32.mrb[0].mxu0
        %3615 = vmatprep.mubr.f32.mxu0 0.0
        %3616 = vmatmul.mubr.f32.gmra.mrb[0].mxu0 %v3143
        %v3617 = vpop.f32.mrb[0].mxu0
        %v3618 = vadd.f32 0.0, %v3617
        %v3619 = vpop.f32.mrb[0].mxu0
        %3620 = vmatprep.mubr.f32.mxu0 0.0
        %3621 = vmatmul.mubr.f32.gmra.mrb[0].mxu0 %v3144
        %v3622 = vpop.f32.mrb[0].mxu0
        %v3623 = vadd.f32 0.0, %v3622
        %v3624 = vpop.f32.mrb[0].mxu0
        %3625 = vmatprep.mubr.f32.mxu0 0.0
        %3626 = vmatmul.mubr.f32.gmra.mrb[0].mxu0 %v3145
        %v3627 = vpop.f32.mrb[0].mxu0
        %v3628 = vadd.f32 0.0, %v3627
        %v3629 = vpop.f32.mrb[0].mxu0
        %3630 = vmatprep.mubr.f32.mxu0 0.0
        %3631 = vmatmul.mubr.f32.gmra.mrb[0].mxu0 %v3146
        %v3632 = vpop.f32.mrb[0].mxu0
        %v3633 = vadd.f32 0.0, %v3632
        %v3634 = vpop.f32.mrb[0].mxu0
        %3635 = vmatprep.mubr.f32.mxu0 0.0
        %3636 = vmatmul.mubr.f32.gmra.mrb[0].mxu0 %v3147
        %v3637 = vpop.f32.mrb[0].mxu0
        %v3638 = vadd.f32 0.0, %v3637
        %v3639 = vpop.f32.mrb[0].mxu0
        %3640 = vmatprep.mubr.f32.mxu0 0.0
        %3641 = vmatmul.mubr.f32.gmra.mrb[0].mxu0 %v3148
        %v3642 = vpop.f32.mrb[0].mxu0
        %v3643 = vadd.f32 0.0, %v3642
        %v3644 = vpop.f32.mrb[0].mxu0
        %3645 = vmatprep.mubr.f32.mxu0 0.0
        %3646 = vmatmul.mubr.f32.gmra.mrb[0].mxu0 %v3149
        %v3647 = vpop.f32.mrb[0].mxu0
        %v3648 = vadd.f32 0.0, %v3647
        %v3649 = vpop.f32.mrb[0].mxu0
        %3650 = vmatprep.mubr.f32.mxu0 0.0
        %3651 = vmatmul.mubr.f32.gmra.mrb[0].mxu0 %v3150
        %v3652 = vpop.f32.mrb[0].mxu0
        %v3653 = vadd.f32 0.0, %v3652
        %v3654 = vpop.f32.mrb[0].mxu0
        %3655 = vmatprep.mubr.f32.mxu0 0.0
        %3656 = vmatmul.mubr.f32.gmra.mrb[0].mxu0 %v3151
        %v3657 = vpop.f32.mrb[0].mxu0
        %v3658 = vadd.f32 0.0, %v3657
        %v3659 = vpop.f32.mrb[0].mxu0
        %3660 = vmatprep.mubr.f32.mxu0 0.0
        %3661 = vmatmul.mubr.f32.gmra.mrb[0].mxu0 %v3152
        %v3662 = vpop.f32.mrb[0].mxu0
        %v3663 = vadd.f32 0.0, %v3662
        %v3664 = vpop.f32.mrb[0].mxu0
        %3665 = vmatprep.mubr.f32.mxu0 0.0
        %3666 = vmatmul.mubr.f32.gmra.mrb[0].mxu0 %v3153
        %v3667 = vpop.f32.mrb[0].mxu0
        %v3668 = vadd.f32 0.0, %v3667
        %v3669 = vpop.f32.mrb[0].mxu0
        %3670 = vmatprep.mubr.f32.mxu0 0.0
        %3671 = vmatmul.mubr.f32.gmra.mrb[0].mxu0 %v3154
        %v3672 = vpop.f32.mrb[0].mxu0
        %v3673 = vadd.f32 0.0, %v3672
        %v3674 = vpop.f32.mrb[0].mxu0
        %3675 = vmatprep.mubr.f32.mxu0 0.0
        %3676 = vmatmul.mubr.f32.gmra.mrb[0].mxu0 %v3155
        %v3677 = vpop.f32.mrb[0].mxu0
        %v3678 = vadd.f32 0.0, %v3677
        %v3679 = vpop.f32.mrb[0].mxu0
        %3680 = vmatprep.mubr.f32.mxu0 0.0
        %3681 = vmatmul.mubr.f32.gmra.mrb[0].mxu0 %v3156
        %v3682 = vpop.f32.mrb[0].mxu0
        %v3683 = vadd.f32 0.0, %v3682
        %v3684 = vpop.f32.mrb[0].mxu0
        %3685 = vmatprep.mubr.f32.mxu0 0.0
        %3686 = vmatmul.mubr.f32.gmra.mrb[0].mxu0 %v3157
        %v3687 = vpop.f32.mrb[0].mxu0
        %v3688 = vadd.f32 0.0, %v3687
        %v3689 = vpop.f32.mrb[0].mxu0
        %3690 = vmatprep.mubr.f32.mxu0 0.0
        %3691 = vmatmul.mubr.f32.gmra.mrb[0].mxu0 %v3158
        %v3692 = vpop.f32.mrb[0].mxu0
        %v3693 = vadd.f32 0.0, %v3692
        %v3694 = vpop.f32.mrb[0].mxu0
        %3695 = vmatprep.mubr.f32.mxu0 0.0
        %3696 = vmatmul.mubr.f32.gmra.mrb[0].mxu0 %v3159
        %v3697 = vpop.f32.mrb[0].mxu0
        %v3698 = vadd.f32 0.0, %v3697
        %v3699 = vpop.f32.mrb[0].mxu0
        %3700 = vmatprep.mubr.f32.mxu0 0.0
        %3701 = vmatmul.mubr.f32.gmra.mrb[0].mxu0 %v3160
        %v3702 = vpop.f32.mrb[0].mxu0
        %v3703 = vadd.f32 0.0, %v3702
        %v3704 = vpop.f32.mrb[0].mxu0
        %3705 = vmatprep.mubr.f32.mxu0 0.0
        %3706 = vmatmul.mubr.f32.gmra.mrb[0].mxu0 %v3161
        %v3707 = vpop.f32.mrb[0].mxu0
        %v3708 = vadd.f32 0.0, %v3707
        %v3709 = vpop.f32.mrb[0].mxu0
        %3710 = vmatprep.mubr.f32.mxu0 0.0
        %3711 = vmatmul.mubr.f32.gmra.mrb[0].mxu0 %v3162
        %v3712 = vpop.f32.mrb[0].mxu0
        %v3713 = vadd.f32 0.0, %v3712
        %v3714 = vpop.f32.mrb[0].mxu0
        %3715 = vmatprep.mubr.f32.mxu0 0.0
        %3716 = vmatmul.mubr.f32.gmra.mrb[0].mxu0 %v3163
        %v3717 = vpop.f32.mrb[0].mxu0
        %v3718 = vadd.f32 0.0, %v3717
        %v3719 = vpop.f32.mrb[0].mxu0
        %3720 = vmatprep.mubr.f32.mxu0 0.0
        %3721 = vmatmul.mubr.f32.gmra.mrb[0].mxu0 %v3164
        %v3722 = vpop.f32.mrb[0].mxu0
        %v3723 = vadd.f32 0.0, %v3722
        %v3724 = vpop.f32.mrb[0].mxu0
        %3725 = vmatprep.mubr.f32.mxu0 0.0
        %3726 = vmatmul.mubr.f32.gmra.mrb[0].mxu0 %v3165
        %v3727 = vpop.f32.mrb[0].mxu0
        %v3728 = vadd.f32 0.0, %v3727
        %v3729 = vpop.f32.mrb[0].mxu0
        %3730 = vmatprep.mubr.f32.mxu0 0.0
        %3731 = vmatmul.mubr.f32.gmra.mrb[0].mxu0 %v3166
        %v3732 = vpop.f32.mrb[0].mxu0
        %v3733 = vadd.f32 0.0, %v3732
        %v3734 = vpop.f32.mrb[0].mxu0
        %3735 = vmatprep.mubr.f32.mxu0 0.0
        %3736 = vmatmul.mubr.f32.gmra.mrb[0].mxu0 %v3167
        %v3737 = vpop.f32.mrb[0].mxu0
        %v3738 = vadd.f32 0.0, %v3737
        %v3739 = vpop.f32.mrb[0].mxu0
        %3740 = vmatprep.mubr.f32.mxu0 0.0
        %3741 = vmatmul.mubr.f32.gmra.mrb[0].mxu0 %v3168
        %v3742 = vpop.f32.mrb[0].mxu0
        %v3743 = vadd.f32 0.0, %v3742
        %v3744 = vpop.f32.mrb[0].mxu0
        %3745 = vmatprep.mubr.f32.mxu0 0.0
        %3746 = vmatmul.mubr.f32.gmra.mrb[0].mxu0 %v3169
        %v3747 = vpop.f32.mrb[0].mxu0
        %v3748 = vadd.f32 0.0, %v3747
        %v3749 = vpop.f32.mrb[0].mxu0
        %3750 = vmatprep.mubr.f32.mxu0 0.0
        %3751 = vmatmul.mubr.f32.gmra.mrb[0].mxu0 %v3170
        %v3752 = vpop.f32.mrb[0].mxu0
        %v3753 = vadd.f32 0.0, %v3752
        %v3754 = vpop.f32.mrb[0].mxu0
        %3755 = vmatprep.mubr.f32.mxu0 0.0
        %3756 = vmatmul.mubr.f32.gmra.mrb[0].mxu0 %v3171
        %v3757 = vpop.f32.mrb[0].mxu0
        %v3758 = vadd.f32 0.0, %v3757
        %v3759 = vpop.f32.mrb[0].mxu0
        %3760 = vmatprep.mubr.f32.mxu0 0.0
        %3761 = vmatmul.mubr.f32.gmra.mrb[0].mxu0 %v3172
        %v3762 = vpop.f32.mrb[0].mxu0
        %v3763 = vadd.f32 0.0, %v3762
        %v3764 = vpop.f32.mrb[0].mxu0
        %3765 = vmatprep.mubr.f32.mxu0 0.0
        %3766 = vmatmul.mubr.f32.gmra.mrb[0].mxu0 %v3173
        %v3767 = vpop.f32.mrb[0].mxu0
        %v3768 = vadd.f32 0.0, %v3767
        %v3769 = vpop.f32.mrb[0].mxu0
        %3770 = vmatprep.mubr.f32.mxu0 0.0
        %3771 = vmatmul.mubr.f32.gmra.mrb[0].mxu0 %v3174
        %v3772 = vpop.f32.mrb[0].mxu0
        %v3773 = vadd.f32 0.0, %v3772
        %v3774 = vpop.f32.mrb[0].mxu0
        %3775 = vmatprep.mubr.f32.mxu0 0.0
        %3776 = vmatmul.mubr.f32.gmra.mrb[0].mxu0 %v3175
        %v3777 = vpop.f32.mrb[0].mxu0
        %v3778 = vadd.f32 0.0, %v3777
        %v3779 = vpop.f32.mrb[0].mxu0
        %3780 = vmatprep.mubr.f32.mxu0 0.0
        %3781 = vmatmul.mubr.f32.gmra.mrb[0].mxu0 %v3176
        %v3782 = vpop.f32.mrb[0].mxu0
        %v3783 = vadd.f32 0.0, %v3782
        %v3784 = vpop.f32.mrb[0].mxu0
        %3785 = vmatprep.mubr.f32.mxu0 0.0
        %3786 = vmatmul.mubr.f32.gmra.mrb[0].mxu0 %v3177
        %v3787 = vpop.f32.mrb[0].mxu0
        %v3788 = vadd.f32 0.0, %v3787
        %v3789 = vpop.f32.mrb[0].mxu0
        %3790 = vmatprep.mubr.f32.mxu0 0.0
        %3791 = vmatmul.mubr.f32.gmra.mrb[0].mxu0 %v3178
        %v3792 = vpop.f32.mrb[0].mxu0
        %v3793 = vadd.f32 0.0, %v3792
        %v3794 = vpop.f32.mrb[0].mxu0
        %3795 = vmatprep.mubr.f32.mxu0 0.0
        %3796 = vmatmul.mubr.f32.gmra.mrb[0].mxu0 %v3179
        %v3797 = vpop.f32.mrb[0].mxu0
        %v3798 = vadd.f32 0.0, %v3797
        %v3799 = vpop.f32.mrb[0].mxu0
        %3800 = vmatprep.mubr.f32.mxu0 0.0
        %3801 = vmatmul.mubr.f32.gmra.mrb[0].mxu0 %v3180
        %v3802 = vpop.f32.mrb[0].mxu0
        %v3803 = vadd.f32 0.0, %v3802
        %v3804 = vpop.f32.mrb[0].mxu0
        %3805 = vmatprep.mubr.f32.mxu0 0.0
        %3806 = vmatmul.mubr.f32.gmra.mrb[0].mxu0 %v3181
        %v3807 = vpop.f32.mrb[0].mxu0
        %v3808 = vadd.f32 0.0, %v3807
        %v3809 = vpop.f32.mrb[0].mxu0
        %3810 = vmatprep.mubr.f32.mxu0 0.0
        %3811 = vmatmul.mubr.f32.gmra.mrb[0].mxu0 %v3182
        %v3812 = vpop.f32.mrb[0].mxu0
        %v3813 = vadd.f32 0.0, %v3812
        %v3814 = vpop.f32.mrb[0].mxu0
        %3815 = vmatprep.mubr.f32.mxu0 0.0
        %3816 = vmatmul.mubr.f32.gmra.mrb[0].mxu0 %v3183
        %v3817 = vpop.f32.mrb[0].mxu0
        %v3818 = vadd.f32 0.0, %v3817
        %v3819 = vpop.f32.mrb[0].mxu0
        %3820 = vmatprep.mubr.f32.mxu0 0.0
        %3821 = vmatmul.mubr.f32.gmra.mrb[0].mxu0 %v3184
        %v3822 = vpop.f32.mrb[0].mxu0
        %v3823 = vadd.f32 0.0, %v3822
        %v3824 = vpop.f32.mrb[0].mxu0
        %3825 = vmatprep.mubr.f32.mxu0 0.0
        %3826 = vmatmul.mubr.f32.gmra.mrb[0].mxu0 %v3185
        %v3827 = vpop.f32.mrb[0].mxu0
        %v3828 = vadd.f32 0.0, %v3827
        %v3829 = vpop.f32.mrb[0].mxu0
        %3830 = vmatprep.mubr.f32.mxu0 0.0
        %3831 = vmatmul.mubr.f32.gmra.mrb[0].mxu0 %v3186
        %v3832 = vpop.f32.mrb[0].mxu0
        %v3833 = vadd.f32 0.0, %v3832
        %v3834 = vpop.f32.mrb[0].mxu0
        %3835 = vmatprep.mubr.f32.mxu0 0.0
        %3836 = vmatmul.mubr.f32.gmra.mrb[0].mxu0 %v3187
        %v3837 = vpop.f32.mrb[0].mxu0
        %v3838 = vadd.f32 0.0, %v3837
        %v3839 = vpop.f32.mrb[0].mxu0
        %3840 = vmatprep.mubr.f32.mxu0 0.0
        %3841 = vmatmul.mubr.f32.gmra.mrb[0].mxu0 %v3188
        %v3842 = vpop.f32.mrb[0].mxu0
        %v3843 = vadd.f32 0.0, %v3842
        %v3844 = vpop.f32.mrb[0].mxu0
        %3845 = vmatprep.mubr.f32.mxu0 0.0
        %3846 = vmatmul.mubr.f32.gmra.mrb[0].mxu0 %v3189
        %v3847 = vpop.f32.mrb[0].mxu0
        %v3848 = vadd.f32 0.0, %v3847
        %v3849 = vpop.f32.mrb[0].mxu0
        %3850 = vmatprep.mubr.f32.mxu0 0.0
        %3851 = vmatmul.mubr.f32.gmra.mrb[0].mxu0 %v3190
        %v3852 = vpop.f32.mrb[0].mxu0
        %v3853 = vadd.f32 0.0, %v3852
        %v3854 = vpop.f32.mrb[0].mxu0
        %3855 = vmatprep.mubr.f32.mxu0 0.0
        %3856 = vmatmul.mubr.f32.gmra.mrb[0].mxu0 %v3191
        %v3857 = vpop.f32.mrb[0].mxu0
        %v3858 = vadd.f32 0.0, %v3857
        %v3859 = vpop.f32.mrb[0].mxu0
        %3860 = vmatprep.mubr.f32.mxu0 0.0
        %3861 = vmatmul.mubr.f32.gmra.mrb[0].mxu0 %v3192
        %v3862 = vpop.f32.mrb[0].mxu0
        %v3863 = vadd.f32 0.0, %v3862
        %v3864 = vpop.f32.mrb[0].mxu0
        %3865 = vmatprep.mubr.f32.mxu0 0.0
        %3866 = vmatmul.mubr.f32.gmra.mrb[0].mxu0 %v3193
        %v3867 = vpop.f32.mrb[0].mxu0
        %v3868 = vadd.f32 0.0, %v3867
        %v3869 = vpop.f32.mrb[0].mxu0
        %3870 = vmatprep.mubr.f32.mxu0 0.0
        %3871 = vmatmul.mubr.f32.gmra.mrb[0].mxu0 %v3194
        %v3872 = vpop.f32.mrb[0].mxu0
        %v3873 = vadd.f32 0.0, %v3872
        %v3874 = vpop.f32.mrb[0].mxu0
        %3875 = vmatprep.mubr.f32.mxu0 0.0
        %3876 = vmatmul.mubr.f32.gmra.mrb[0].mxu0 %v3195
        %v3877 = vpop.f32.mrb[0].mxu0
        %v3878 = vadd.f32 0.0, %v3877
        %v3879 = vpop.f32.mrb[0].mxu0
        %3880 = vmatprep.mubr.f32.mxu0 0.0
        %3881 = vmatmul.mubr.f32.gmra.mrb[0].mxu0 %v3196
        %v3882 = vpop.f32.mrb[0].mxu0
        %v3883 = vadd.f32 0.0, %v3882
        %v3884 = vpop.f32.mrb[0].mxu0
        %3885 = vmatprep.mubr.f32.mxu0 0.0
        %3886 = vmatmul.mubr.f32.gmra.mrb[0].mxu0 %v3197
        %v3887 = vpop.f32.mrb[0].mxu0
        %v3888 = vadd.f32 0.0, %v3887
        %v3889 = vpop.f32.mrb[0].mxu0
        %3890 = vmatprep.mubr.f32.mxu0 0.0
        %3891 = vmatmul.mubr.f32.gmra.mrb[0].mxu0 %v3198
        %v3892 = vpop.f32.mrb[0].mxu0
        %v3893 = vadd.f32 0.0, %v3892
        %v3894 = vpop.f32.mrb[0].mxu0
        %3895 = vmatprep.mubr.f32.mxu0 0.0
        %3896 = vmatmul.mubr.f32.gmra.mrb[0].mxu0 %v3199
        %v3897 = vpop.f32.mrb[0].mxu0
        %v3898 = vadd.f32 0.0, %v3897
        %v3899 = vpop.f32.mrb[0].mxu0
        %3900 = vmatprep.mubr.f32.mxu0 0.0
        %3901 = vmatmul.mubr.f32.gmra.mrb[0].mxu0 %v3200
        %v3902 = vpop.f32.mrb[0].mxu0
        %v3903 = vadd.f32 0.0, %v3902
        %v3904 = vpop.f32.mrb[0].mxu0
        %3905 = vmatprep.mubr.f32.mxu0 0.0
        %3906 = vmatmul.mubr.f32.gmra.mrb[0].mxu0 %v3201
        %v3907 = vpop.f32.mrb[0].mxu0
        %v3908 = vadd.f32 0.0, %v3907
        %v3909 = vpop.f32.mrb[0].mxu0
        %3910 = vmatprep.mubr.f32.mxu0 0.0
        %3911 = vmatmul.mubr.f32.gmra.mrb[0].mxu0 %v3202
        %v3912 = vpop.f32.mrb[0].mxu0
        %v3913 = vadd.f32 0.0, %v3912
        %v3914 = vpop.f32.mrb[0].mxu0
        %3915 = vmatprep.mubr.f32.mxu0 0.0
        %3916 = vmatmul.mubr.f32.gmra.mrb[0].mxu0 %v3203
        %v3917 = vpop.f32.mrb[0].mxu0
        %v3918 = vadd.f32 0.0, %v3917
        %v3919 = vpop.f32.mrb[0].mxu0
        %3920 = vmatprep.mubr.f32.mxu0 0.0
        %3921 = vmatmul.mubr.f32.gmra.mrb[0].mxu0 %v3204
        %v3922 = vpop.f32.mrb[0].mxu0
        %v3923 = vadd.f32 0.0, %v3922
        %v3924 = vpop.f32.mrb[0].mxu0
        %3925 = vdwg.mxu0
        %v3926 = vld [vmem:[%s420] sm:$0xff]
        %v3927 = vld [vmem:[%s420 + $0x8] sm:$0xff]
        %v3928 = vld [vmem:[%s420 + $0x10] sm:$0xff]
        %v3929 = vld [vmem:[%s420 + $0x18] sm:$0xff]
        %v3930 = vld [vmem:[%s420 + $0x20] sm:$0xff]
        %v3931 = vld [vmem:[%s420 + $0x28] sm:$0xff]
        %v3932 = vld [vmem:[%s420 + $0x30] sm:$0xff]
        %v3933 = vld [vmem:[%s420 + $0x38] sm:$0xff]
        %v3934 = vld [vmem:[%s420 + $0x40] sm:$0xff]
        %v3935 = vld [vmem:[%s420 + $0x48] sm:$0xff]
        %v3936 = vld [vmem:[%s420 + $0x50] sm:$0xff]
        %v3937 = vld [vmem:[%s420 + $0x58] sm:$0xff]
        %v3938 = vld [vmem:[%s420 + $0x60] sm:$0xff]
        %v3939 = vld [vmem:[%s420 + $0x68] sm:$0xff]
        %v3940 = vld [vmem:[%s420 + $0x70] sm:$0xff]
        %v3941 = vld [vmem:[%s420 + $0x78] sm:$0xff]
        %v3942 = vld [vmem:[%s420 + $0x80] sm:$0xff]
        %v3943 = vld [vmem:[%s420 + $0x88] sm:$0xff]
        %v3944 = vld [vmem:[%s420 + $0x90] sm:$0xff]
        %v3945 = vld [vmem:[%s420 + $0x98] sm:$0xff]
        %v3946 = vld [vmem:[%s420 + $0xa0] sm:$0xff]
        %v3947 = vld [vmem:[%s420 + $0xa8] sm:$0xff]
        %v3948 = vld [vmem:[%s420 + $0xb0] sm:$0xff]
        %v3949 = vld [vmem:[%s420 + $0xb8] sm:$0xff]
        %v3950 = vld [vmem:[%s420 + $0xc0] sm:$0xff]
        %v3951 = vld [vmem:[%s420 + $0xc8] sm:$0xff]
        %v3952 = vld [vmem:[%s420 + $0xd0] sm:$0xff]
        %v3953 = vld [vmem:[%s420 + $0xd8] sm:$0xff]
        %v3954 = vld [vmem:[%s420 + $0xe0] sm:$0xff]
        %v3955 = vld [vmem:[%s420 + $0xe8] sm:$0xff]
        %v3956 = vld [vmem:[%s420 + $0xf0] sm:$0xff]
        %v3957 = vld [vmem:[%s420 + $0xf8] sm:$0xff]
        %v3958 = vld [vmem:[%s420 + $0x100] sm:$0xff]
        %v3959 = vld [vmem:[%s420 + $0x108] sm:$0xff]
        %v3960 = vld [vmem:[%s420 + $0x110] sm:$0xff]
        %v3961 = vld [vmem:[%s420 + $0x118] sm:$0xff]
        %v3962 = vld [vmem:[%s420 + $0x120] sm:$0xff]
        %v3963 = vld [vmem:[%s420 + $0x128] sm:$0xff]
        %v3964 = vld [vmem:[%s420 + $0x130] sm:$0xff]
        %v3965 = vld [vmem:[%s420 + $0x138] sm:$0xff]
        %v3966 = vld [vmem:[%s420 + $0x140] sm:$0xff]
        %v3967 = vld [vmem:[%s420 + $0x148] sm:$0xff]
        %v3968 = vld [vmem:[%s420 + $0x150] sm:$0xff]
        %v3969 = vld [vmem:[%s420 + $0x158] sm:$0xff]
        %v3970 = vld [vmem:[%s420 + $0x160] sm:$0xff]
        %v3971 = vld [vmem:[%s420 + $0x168] sm:$0xff]
        %v3972 = vld [vmem:[%s420 + $0x170] sm:$0xff]
        %v3973 = vld [vmem:[%s420 + $0x178] sm:$0xff]
        %v3974 = vld [vmem:[%s420 + $0x180] sm:$0xff]
        %v3975 = vld [vmem:[%s420 + $0x188] sm:$0xff]
        %v3976 = vld [vmem:[%s420 + $0x190] sm:$0xff]
        %v3977 = vld [vmem:[%s420 + $0x198] sm:$0xff]
        %v3978 = vld [vmem:[%s420 + $0x1a0] sm:$0xff]
        %v3979 = vld [vmem:[%s420 + $0x1a8] sm:$0xff]
        %v3980 = vld [vmem:[%s420 + $0x1b0] sm:$0xff]
        %v3981 = vld [vmem:[%s420 + $0x1b8] sm:$0xff]
        %v3982 = vld [vmem:[%s420 + $0x1c0] sm:$0xff]
        %v3983 = vld [vmem:[%s420 + $0x1c8] sm:$0xff]
        %v3984 = vld [vmem:[%s420 + $0x1d0] sm:$0xff]
        %v3985 = vld [vmem:[%s420 + $0x1d8] sm:$0xff]
        %v3986 = vld [vmem:[%s420 + $0x1e0] sm:$0xff]
        %v3987 = vld [vmem:[%s420 + $0x1e8] sm:$0xff]
        %v3988 = vld [vmem:[%s420 + $0x1f0] sm:$0xff]
        %v3989 = vld [vmem:[%s420 + $0x1f8] sm:$0xff]
        %v3990 = vld [vmem:[%s420 + $0x200] sm:$0xff]
        %v3991 = vld [vmem:[%s420 + $0x208] sm:$0xff]
        %v3992 = vld [vmem:[%s420 + $0x210] sm:$0xff]
        %v3993 = vld [vmem:[%s420 + $0x218] sm:$0xff]
        %v3994 = vld [vmem:[%s420 + $0x220] sm:$0xff]
        %v3995 = vld [vmem:[%s420 + $0x228] sm:$0xff]
        %v3996 = vld [vmem:[%s420 + $0x230] sm:$0xff]
        %v3997 = vld [vmem:[%s420 + $0x238] sm:$0xff]
        %v3998 = vld [vmem:[%s420 + $0x240] sm:$0xff]
        %v3999 = vld [vmem:[%s420 + $0x248] sm:$0xff]
        %v4000 = vld [vmem:[%s420 + $0x250] sm:$0xff]
        %v4001 = vld [vmem:[%s420 + $0x258] sm:$0xff]
        %v4002 = vld [vmem:[%s420 + $0x260] sm:$0xff]
        %v4003 = vld [vmem:[%s420 + $0x268] sm:$0xff]
        %v4004 = vld [vmem:[%s420 + $0x270] sm:$0xff]
        %v4005 = vld [vmem:[%s420 + $0x278] sm:$0xff]
        %v4006 = vld [vmem:[%s420 + $0x280] sm:$0xff]
        %v4007 = vld [vmem:[%s420 + $0x288] sm:$0xff]
        %v4008 = vld [vmem:[%s420 + $0x290] sm:$0xff]
        %v4009 = vld [vmem:[%s420 + $0x298] sm:$0xff]
        %v4010 = vld [vmem:[%s420 + $0x2a0] sm:$0xff]
        %v4011 = vld [vmem:[%s420 + $0x2a8] sm:$0xff]
        %v4012 = vld [vmem:[%s420 + $0x2b0] sm:$0xff]
        %v4013 = vld [vmem:[%s420 + $0x2b8] sm:$0xff]
        %v4014 = vld [vmem:[%s420 + $0x2c0] sm:$0xff]
        %v4015 = vld [vmem:[%s420 + $0x2c8] sm:$0xff]
        %v4016 = vld [vmem:[%s420 + $0x2d0] sm:$0xff]
        %v4017 = vld [vmem:[%s420 + $0x2d8] sm:$0xff]
        %v4018 = vld [vmem:[%s420 + $0x2e0] sm:$0xff]
        %v4019 = vld [vmem:[%s420 + $0x2e8] sm:$0xff]
        %v4020 = vld [vmem:[%s420 + $0x2f0] sm:$0xff]
        %v4021 = vld [vmem:[%s420 + $0x2f8] sm:$0xff]
        %v4022 = vld [vmem:[%s420 + $0x300] sm:$0xff]
        %v4023 = vld [vmem:[%s420 + $0x308] sm:$0xff]
        %v4024 = vld [vmem:[%s420 + $0x310] sm:$0xff]
        %v4025 = vld [vmem:[%s420 + $0x318] sm:$0xff]
        %v4026 = vld [vmem:[%s420 + $0x320] sm:$0xff]
        %v4027 = vld [vmem:[%s420 + $0x328] sm:$0xff]
        %v4028 = vld [vmem:[%s420 + $0x330] sm:$0xff]
        %v4029 = vld [vmem:[%s420 + $0x338] sm:$0xff]
        %v4030 = vld [vmem:[%s420 + $0x340] sm:$0xff]
        %v4031 = vld [vmem:[%s420 + $0x348] sm:$0xff]
        %v4032 = vld [vmem:[%s420 + $0x350] sm:$0xff]
        %v4033 = vld [vmem:[%s420 + $0x358] sm:$0xff]
        %v4034 = vld [vmem:[%s420 + $0x360] sm:$0xff]
        %v4035 = vld [vmem:[%s420 + $0x368] sm:$0xff]
        %v4036 = vld [vmem:[%s420 + $0x370] sm:$0xff]
        %v4037 = vld [vmem:[%s420 + $0x378] sm:$0xff]
        %v4038 = vld [vmem:[%s420 + $0x380] sm:$0xff]
        %v4039 = vld [vmem:[%s420 + $0x388] sm:$0xff]
        %v4040 = vld [vmem:[%s420 + $0x390] sm:$0xff]
        %v4041 = vld [vmem:[%s420 + $0x398] sm:$0xff]
        %v4042 = vld [vmem:[%s420 + $0x3a0] sm:$0xff]
        %v4043 = vld [vmem:[%s420 + $0x3a8] sm:$0xff]
        %v4044 = vld [vmem:[%s420 + $0x3b0] sm:$0xff]
        %v4045 = vld [vmem:[%s420 + $0x3b8] sm:$0xff]
        %v4046 = vld [vmem:[%s420 + $0x3c0] sm:$0xff]
        %v4047 = vld [vmem:[%s420 + $0x3c8] sm:$0xff]
        %v4048 = vld [vmem:[%s420 + $0x3d0] sm:$0xff]
        %v4049 = vld [vmem:[%s420 + $0x3d8] sm:$0xff]
        %v4050 = vld [vmem:[%s420 + $0x3e0] sm:$0xff]
        %v4051 = vld [vmem:[%s420 + $0x3e8] sm:$0xff]
        %v4052 = vld [vmem:[%s420 + $0x3f0] sm:$0xff]
        %v4053 = vld [vmem:[%s420 + $0x3f8] sm:$0xff]
        %4054 = vmatprep.subr.mxu0 0.0
        %4055 = vmatpush1.msra.mxu0 %v3288
        %4056 = vmatprep.subr.mxu0 0.0
        %4057 = vmatpush1.msra.mxu0 %v3293
        %4058 = vmatprep.subr.mxu0 0.0
        %4059 = vmatpush1.msra.mxu0 %v3298
        %4060 = vmatprep.subr.mxu0 0.0
        %4061 = vmatpush1.msra.mxu0 %v3303
        %4062 = vmatprep.subr.mxu0 0.0
        %4063 = vmatpush1.msra.mxu0 %v3308
        %4064 = vmatprep.subr.mxu0 0.0
        %4065 = vmatpush1.msra.mxu0 %v3313
        %4066 = vmatprep.subr.mxu0 0.0
        %4067 = vmatpush1.msra.mxu0 %v3318
        %4068 = vmatprep.subr.mxu0 0.0
        %4069 = vmatpush1.msra.mxu0 %v3323
        %4070 = vmatprep.subr.mxu0 0.0
        %4071 = vmatpush1.msra.mxu0 %v3328
        %4072 = vmatprep.subr.mxu0 0.0
        %4073 = vmatpush1.msra.mxu0 %v3333
        %4074 = vmatprep.subr.mxu0 0.0
        %4075 = vmatpush1.msra.mxu0 %v3338
        %4076 = vmatprep.subr.mxu0 0.0
        %4077 = vmatpush1.msra.mxu0 %v3343
        %4078 = vmatprep.subr.mxu0 0.0
        %4079 = vmatpush1.msra.mxu0 %v3348
        %4080 = vmatprep.subr.mxu0 0.0
        %4081 = vmatpush1.msra.mxu0 %v3353
        %4082 = vmatprep.subr.mxu0 0.0
        %4083 = vmatpush1.msra.mxu0 %v3358
        %4084 = vmatprep.subr.mxu0 0.0
        %4085 = vmatpush1.msra.mxu0 %v3363
        %4086 = vmatprep.subr.mxu0 0.0
        %4087 = vmatpush1.msra.mxu0 0.0
        %4088 = vmatprep.subr.mxu0 0.0
        %4089 = vmatpush1.msra.mxu0 0.0
        %4090 = vmatprep.subr.mxu0 0.0
        %4091 = vmatpush1.msra.mxu0 0.0
        %4092 = vmatprep.subr.mxu0 0.0
        %4093 = vmatpush1.msra.mxu0 0.0
        %4094 = vmatprep.subr.mxu0 0.0
        %4095 = vmatpush1.msra.mxu0 0.0
        %4096 = vmatprep.subr.mxu0 0.0
        %4097 = vmatpush1.msra.mxu0 0.0
        %4098 = vmatprep.subr.mxu0 0.0
        %4099 = vmatpush1.msra.mxu0 0.0
        %4100 = vmatprep.subr.mxu0 0.0
        %4101 = vmatpush1.msra.mxu0 0.0
        %4102 = vmatprep.subr.mxu0 0.0
        %4103 = vmatpush1.msra.mxu0 0.0
        %4104 = vmatprep.subr.mxu0 0.0
        %4105 = vmatpush1.msra.mxu0 0.0
        %4106 = vmatprep.subr.mxu0 0.0
        %4107 = vmatpush1.msra.mxu0 0.0
        %4108 = vmatprep.subr.mxu0 0.0
        %4109 = vmatpush1.msra.mxu0 0.0
        %4110 = vmatprep.subr.mxu0 0.0
        %4111 = vmatpush1.msra.mxu0 0.0
        %4112 = vmatprep.subr.mxu0 0.0
        %4113 = vmatpush1.msra.mxu0 0.0
        %4114 = vmatprep.subr.mxu0 0.0
        %4115 = vmatpush1.msra.mxu0 0.0
        %4116 = vmatprep.subr.mxu0 0.0
        %4117 = vmatpush1.msra.mxu0 0.0
        %4118 = vmatprep.mubr.f32.mxu0 0.0
        %4119 = vmatmul.mubr.f32.gmra.mrb[0].mxu0 %v3926
        %v4120 = vpop.f32.mrb[0].mxu0
        %v4121 = vadd.f32 0.0, %v4120
        %v4122 = vpop.f32.mrb[0].mxu0
        %4123 = vmatprep.mubr.f32.mxu0 0.0
        %4124 = vmatmul.mubr.f32.gmra.mrb[0].mxu0 %v3927
        %v4125 = vpop.f32.mrb[0].mxu0
        %v4126 = vadd.f32 0.0, %v4125
        %v4127 = vpop.f32.mrb[0].mxu0
        %4128 = vmatprep.mubr.f32.mxu0 0.0
        %4129 = vmatmul.mubr.f32.gmra.mrb[0].mxu0 %v3928
        %v4130 = vpop.f32.mrb[0].mxu0
        %v4131 = vadd.f32 0.0, %v4130
        %v4132 = vpop.f32.mrb[0].mxu0
        %4133 = vmatprep.mubr.f32.mxu0 0.0
        %4134 = vmatmul.mubr.f32.gmra.mrb[0].mxu0 %v3929
        %v4135 = vpop.f32.mrb[0].mxu0
        %v4136 = vadd.f32 0.0, %v4135
        %v4137 = vpop.f32.mrb[0].mxu0
        %4138 = vmatprep.mubr.f32.mxu0 0.0
        %4139 = vmatmul.mubr.f32.gmra.mrb[0].mxu0 %v3930
        %v4140 = vpop.f32.mrb[0].mxu0
        %v4141 = vadd.f32 0.0, %v4140
        %v4142 = vpop.f32.mrb[0].mxu0
        %4143 = vmatprep.mubr.f32.mxu0 0.0
        %4144 = vmatmul.mubr.f32.gmra.mrb[0].mxu0 %v3931
        %v4145 = vpop.f32.mrb[0].mxu0
        %v4146 = vadd.f32 0.0, %v4145
        %v4147 = vpop.f32.mrb[0].mxu0
        %4148 = vmatprep.mubr.f32.mxu0 0.0
        %4149 = vmatmul.mubr.f32.gmra.mrb[0].mxu0 %v3932
        %v4150 = vpop.f32.mrb[0].mxu0
        %v4151 = vadd.f32 0.0, %v4150
        %v4152 = vpop.f32.mrb[0].mxu0
        %4153 = vmatprep.mubr.f32.mxu0 0.0
        %4154 = vmatmul.mubr.f32.gmra.mrb[0].mxu0 %v3933
        %v4155 = vpop.f32.mrb[0].mxu0
        %v4156 = vadd.f32 0.0, %v4155
        %v4157 = vpop.f32.mrb[0].mxu0
        %4158 = vmatprep.mubr.f32.mxu0 0.0
        %4159 = vmatmul.mubr.f32.gmra.mrb[0].mxu0 %v3934
        %v4160 = vpop.f32.mrb[0].mxu0
        %v4161 = vadd.f32 0.0, %v4160
        %v4162 = vpop.f32.mrb[0].mxu0
        %4163 = vmatprep.mubr.f32.mxu0 0.0
        %4164 = vmatmul.mubr.f32.gmra.mrb[0].mxu0 %v3935
        %v4165 = vpop.f32.mrb[0].mxu0
        %v4166 = vadd.f32 0.0, %v4165
        %v4167 = vpop.f32.mrb[0].mxu0
        %4168 = vmatprep.mubr.f32.mxu0 0.0
        %4169 = vmatmul.mubr.f32.gmra.mrb[0].mxu0 %v3936
        %v4170 = vpop.f32.mrb[0].mxu0
        %v4171 = vadd.f32 0.0, %v4170
        %v4172 = vpop.f32.mrb[0].mxu0
        %4173 = vmatprep.mubr.f32.mxu0 0.0
        %4174 = vmatmul.mubr.f32.gmra.mrb[0].mxu0 %v3937
        %v4175 = vpop.f32.mrb[0].mxu0
        %v4176 = vadd.f32 0.0, %v4175
        %v4177 = vpop.f32.mrb[0].mxu0
        %4178 = vmatprep.mubr.f32.mxu0 0.0
        %4179 = vmatmul.mubr.f32.gmra.mrb[0].mxu0 %v3938
        %v4180 = vpop.f32.mrb[0].mxu0
        %v4181 = vadd.f32 0.0, %v4180
        %v4182 = vpop.f32.mrb[0].mxu0
        %4183 = vmatprep.mubr.f32.mxu0 0.0
        %4184 = vmatmul.mubr.f32.gmra.mrb[0].mxu0 %v3939
        %v4185 = vpop.f32.mrb[0].mxu0
        %v4186 = vadd.f32 0.0, %v4185
        %v4187 = vpop.f32.mrb[0].mxu0
        %4188 = vmatprep.mubr.f32.mxu0 0.0
        %4189 = vmatmul.mubr.f32.gmra.mrb[0].mxu0 %v3940
        %v4190 = vpop.f32.mrb[0].mxu0
        %v4191 = vadd.f32 0.0, %v4190
        %v4192 = vpop.f32.mrb[0].mxu0
        %4193 = vmatprep.mubr.f32.mxu0 0.0
        %4194 = vmatmul.mubr.f32.gmra.mrb[0].mxu0 %v3941
        %v4195 = vpop.f32.mrb[0].mxu0
        %v4196 = vadd.f32 0.0, %v4195
        %v4197 = vpop.f32.mrb[0].mxu0
        %4198 = vdwg.mxu0
        %4199 = vmatprep.subr.mxu0 0.0
        %4200 = vmatpush1.msra.mxu0 %v3368
        %4201 = vmatprep.subr.mxu0 0.0
        %4202 = vmatpush1.msra.mxu0 %v3373
        %4203 = vmatprep.subr.mxu0 0.0
        %4204 = vmatpush1.msra.mxu0 %v3378
        %4205 = vmatprep.subr.mxu0 0.0
        %4206 = vmatpush1.msra.mxu0 %v3383
        %4207 = vmatprep.subr.mxu0 0.0
        %4208 = vmatpush1.msra.mxu0 %v3388
        %4209 = vmatprep.subr.mxu0 0.0
        %4210 = vmatpush1.msra.mxu0 %v3393
        %4211 = vmatprep.subr.mxu0 0.0
        %4212 = vmatpush1.msra.mxu0 %v3398
        %4213 = vmatprep.subr.mxu0 0.0
        %4214 = vmatpush1.msra.mxu0 %v3403
        %4215 = vmatprep.subr.mxu0 0.0
        %4216 = vmatpush1.msra.mxu0 %v3408
        %4217 = vmatprep.subr.mxu0 0.0
        %4218 = vmatpush1.msra.mxu0 %v3413
        %4219 = vmatprep.subr.mxu0 0.0
        %4220 = vmatpush1.msra.mxu0 %v3418
        %4221 = vmatprep.subr.mxu0 0.0
        %4222 = vmatpush1.msra.mxu0 %v3423
        %4223 = vmatprep.subr.mxu0 0.0
        %4224 = vmatpush1.msra.mxu0 %v3428
        %4225 = vmatprep.subr.mxu0 0.0
        %4226 = vmatpush1.msra.mxu0 %v3433
        %4227 = vmatprep.subr.mxu0 0.0
        %4228 = vmatpush1.msra.mxu0 %v3438
        %4229 = vmatprep.subr.mxu0 0.0
        %4230 = vmatpush1.msra.mxu0 %v3443
        %4231 = vmatprep.subr.mxu0 0.0
        %4232 = vmatpush1.msra.mxu0 0.0
        %4233 = vmatprep.subr.mxu0 0.0
        %4234 = vmatpush1.msra.mxu0 0.0
        %4235 = vmatprep.subr.mxu0 0.0
        %4236 = vmatpush1.msra.mxu0 0.0
        %4237 = vmatprep.subr.mxu0 0.0
        %4238 = vmatpush1.msra.mxu0 0.0
        %4239 = vmatprep.subr.mxu0 0.0
        %4240 = vmatpush1.msra.mxu0 0.0
        %4241 = vmatprep.subr.mxu0 0.0
        %4242 = vmatpush1.msra.mxu0 0.0
        %4243 = vmatprep.subr.mxu0 0.0
        %4244 = vmatpush1.msra.mxu0 0.0
        %4245 = vmatprep.subr.mxu0 0.0
        %4246 = vmatpush1.msra.mxu0 0.0
        %4247 = vmatprep.subr.mxu0 0.0
        %4248 = vmatpush1.msra.mxu0 0.0
        %4249 = vmatprep.subr.mxu0 0.0
        %4250 = vmatpush1.msra.mxu0 0.0
        %4251 = vmatprep.subr.mxu0 0.0
        %4252 = vmatpush1.msra.mxu0 0.0
        %4253 = vmatprep.subr.mxu0 0.0
        %4254 = vmatpush1.msra.mxu0 0.0
        %4255 = vmatprep.subr.mxu0 0.0
        %4256 = vmatpush1.msra.mxu0 0.0
        %4257 = vmatprep.subr.mxu0 0.0
        %4258 = vmatpush1.msra.mxu0 0.0
        %4259 = vmatprep.subr.mxu0 0.0
        %4260 = vmatpush1.msra.mxu0 0.0
        %4261 = vmatprep.subr.mxu0 0.0
        %4262 = vmatpush1.msra.mxu0 0.0
        %4263 = vmatprep.mubr.f32.mxu0 0.0
        %4264 = vmatmul.mubr.f32.gmra.mrb[0].mxu0 %v3942
        %v4265 = vpop.f32.mrb[0].mxu0
        %v4266 = vadd.f32 0.0, %v4265
        %v4267 = vpop.f32.mrb[0].mxu0
        %4268 = vmatprep.mubr.f32.mxu0 0.0
        %4269 = vmatmul.mubr.f32.gmra.mrb[0].mxu0 %v3943
        %v4270 = vpop.f32.mrb[0].mxu0
        %v4271 = vadd.f32 0.0, %v4270
        %v4272 = vpop.f32.mrb[0].mxu0
        %4273 = vmatprep.mubr.f32.mxu0 0.0
        %4274 = vmatmul.mubr.f32.gmra.mrb[0].mxu0 %v3944
        %v4275 = vpop.f32.mrb[0].mxu0
        %v4276 = vadd.f32 0.0, %v4275
        %v4277 = vpop.f32.mrb[0].mxu0
        %4278 = vmatprep.mubr.f32.mxu0 0.0
        %4279 = vmatmul.mubr.f32.gmra.mrb[0].mxu0 %v3945
        %v4280 = vpop.f32.mrb[0].mxu0
        %v4281 = vadd.f32 0.0, %v4280
        %v4282 = vpop.f32.mrb[0].mxu0
        %4283 = vmatprep.mubr.f32.mxu0 0.0
        %4284 = vmatmul.mubr.f32.gmra.mrb[0].mxu0 %v3946
        %v4285 = vpop.f32.mrb[0].mxu0
        %v4286 = vadd.f32 0.0, %v4285
        %v4287 = vpop.f32.mrb[0].mxu0
        %4288 = vmatprep.mubr.f32.mxu0 0.0
        %4289 = vmatmul.mubr.f32.gmra.mrb[0].mxu0 %v3947
        %v4290 = vpop.f32.mrb[0].mxu0
        %v4291 = vadd.f32 0.0, %v4290
        %v4292 = vpop.f32.mrb[0].mxu0
        %4293 = vmatprep.mubr.f32.mxu0 0.0
        %4294 = vmatmul.mubr.f32.gmra.mrb[0].mxu0 %v3948
        %v4295 = vpop.f32.mrb[0].mxu0
        %v4296 = vadd.f32 0.0, %v4295
        %v4297 = vpop.f32.mrb[0].mxu0
        %4298 = vmatprep.mubr.f32.mxu0 0.0
        %4299 = vmatmul.mubr.f32.gmra.mrb[0].mxu0 %v3949
        %v4300 = vpop.f32.mrb[0].mxu0
        %v4301 = vadd.f32 0.0, %v4300
        %v4302 = vpop.f32.mrb[0].mxu0
        %4303 = vmatprep.mubr.f32.mxu0 0.0
        %4304 = vmatmul.mubr.f32.gmra.mrb[0].mxu0 %v3950
        %v4305 = vpop.f32.mrb[0].mxu0
        %v4306 = vadd.f32 0.0, %v4305
        %v4307 = vpop.f32.mrb[0].mxu0
        %4308 = vmatprep.mubr.f32.mxu0 0.0
        %4309 = vmatmul.mubr.f32.gmra.mrb[0].mxu0 %v3951
        %v4310 = vpop.f32.mrb[0].mxu0
        %v4311 = vadd.f32 0.0, %v4310
        %v4312 = vpop.f32.mrb[0].mxu0
        %4313 = vmatprep.mubr.f32.mxu0 0.0
        %4314 = vmatmul.mubr.f32.gmra.mrb[0].mxu0 %v3952
        %v4315 = vpop.f32.mrb[0].mxu0
        %v4316 = vadd.f32 0.0, %v4315
        %v4317 = vpop.f32.mrb[0].mxu0
        %4318 = vmatprep.mubr.f32.mxu0 0.0
        %4319 = vmatmul.mubr.f32.gmra.mrb[0].mxu0 %v3953
        %v4320 = vpop.f32.mrb[0].mxu0
        %v4321 = vadd.f32 0.0, %v4320
        %v4322 = vpop.f32.mrb[0].mxu0
        %4323 = vmatprep.mubr.f32.mxu0 0.0
        %4324 = vmatmul.mubr.f32.gmra.mrb[0].mxu0 %v3954
        %v4325 = vpop.f32.mrb[0].mxu0
        %v4326 = vadd.f32 0.0, %v4325
        %v4327 = vpop.f32.mrb[0].mxu0
        %4328 = vmatprep.mubr.f32.mxu0 0.0
        %4329 = vmatmul.mubr.f32.gmra.mrb[0].mxu0 %v3955
        %v4330 = vpop.f32.mrb[0].mxu0
        %v4331 = vadd.f32 0.0, %v4330
        %v4332 = vpop.f32.mrb[0].mxu0
        %4333 = vmatprep.mubr.f32.mxu0 0.0
        %4334 = vmatmul.mubr.f32.gmra.mrb[0].mxu0 %v3956
        %v4335 = vpop.f32.mrb[0].mxu0
        %v4336 = vadd.f32 0.0, %v4335
        %v4337 = vpop.f32.mrb[0].mxu0
        %4338 = vmatprep.mubr.f32.mxu0 0.0
        %4339 = vmatmul.mubr.f32.gmra.mrb[0].mxu0 %v3957
        %v4340 = vpop.f32.mrb[0].mxu0
        %v4341 = vadd.f32 0.0, %v4340
        %v4342 = vpop.f32.mrb[0].mxu0
        %4343 = vdwg.mxu0
        %4344 = vmatprep.subr.mxu0 0.0
        %4345 = vmatpush1.msra.mxu0 %v3448
        %4346 = vmatprep.subr.mxu0 0.0
        %4347 = vmatpush1.msra.mxu0 %v3453
        %4348 = vmatprep.subr.mxu0 0.0
        %4349 = vmatpush1.msra.mxu0 %v3458
        %4350 = vmatprep.subr.mxu0 0.0
        %4351 = vmatpush1.msra.mxu0 %v3463
        %4352 = vmatprep.subr.mxu0 0.0
        %4353 = vmatpush1.msra.mxu0 %v3468
        %4354 = vmatprep.subr.mxu0 0.0
        %4355 = vmatpush1.msra.mxu0 %v3473
        %4356 = vmatprep.subr.mxu0 0.0
        %4357 = vmatpush1.msra.mxu0 %v3478
        %4358 = vmatprep.subr.mxu0 0.0
        %4359 = vmatpush1.msra.mxu0 %v3483
        %4360 = vmatprep.subr.mxu0 0.0
        %4361 = vmatpush1.msra.mxu0 %v3488
        %4362 = vmatprep.subr.mxu0 0.0
        %4363 = vmatpush1.msra.mxu0 %v3493
        %4364 = vmatprep.subr.mxu0 0.0
        %4365 = vmatpush1.msra.mxu0 %v3498
        %4366 = vmatprep.subr.mxu0 0.0
        %4367 = vmatpush1.msra.mxu0 %v3503
        %4368 = vmatprep.subr.mxu0 0.0
        %4369 = vmatpush1.msra.mxu0 %v3508
        %4370 = vmatprep.subr.mxu0 0.0
        %4371 = vmatpush1.msra.mxu0 %v3513
        %4372 = vmatprep.subr.mxu0 0.0
        %4373 = vmatpush1.msra.mxu0 %v3518
        %4374 = vmatprep.subr.mxu0 0.0
        %4375 = vmatpush1.msra.mxu0 %v3523
        %4376 = vmatprep.subr.mxu0 0.0
        %4377 = vmatpush1.msra.mxu0 0.0
        %4378 = vmatprep.subr.mxu0 0.0
        %4379 = vmatpush1.msra.mxu0 0.0
        %4380 = vmatprep.subr.mxu0 0.0
        %4381 = vmatpush1.msra.mxu0 0.0
        %4382 = vmatprep.subr.mxu0 0.0
        %4383 = vmatpush1.msra.mxu0 0.0
        %4384 = vmatprep.subr.mxu0 0.0
        %4385 = vmatpush1.msra.mxu0 0.0
        %4386 = vmatprep.subr.mxu0 0.0
        %4387 = vmatpush1.msra.mxu0 0.0
        %4388 = vmatprep.subr.mxu0 0.0
        %4389 = vmatpush1.msra.mxu0 0.0
        %4390 = vmatprep.subr.mxu0 0.0
        %4391 = vmatpush1.msra.mxu0 0.0
        %4392 = vmatprep.subr.mxu0 0.0
        %4393 = vmatpush1.msra.mxu0 0.0
        %4394 = vmatprep.subr.mxu0 0.0
        %4395 = vmatpush1.msra.mxu0 0.0
        %4396 = vmatprep.subr.mxu0 0.0
        %4397 = vmatpush1.msra.mxu0 0.0
        %4398 = vmatprep.subr.mxu0 0.0
        %4399 = vmatpush1.msra.mxu0 0.0
        %4400 = vmatprep.subr.mxu0 0.0
        %4401 = vmatpush1.msra.mxu0 0.0
        %4402 = vmatprep.subr.mxu0 0.0
        %4403 = vmatpush1.msra.mxu0 0.0
        %4404 = vmatprep.subr.mxu0 0.0
        %4405 = vmatpush1.msra.mxu0 0.0
        %4406 = vmatprep.subr.mxu0 0.0
        %4407 = vmatpush1.msra.mxu0 0.0
        %4408 = vmatprep.mubr.f32.mxu0 0.0
        %4409 = vmatmul.mubr.f32.gmra.mrb[0].mxu0 %v3958
        %v4410 = vpop.f32.mrb[0].mxu0
        %v4411 = vadd.f32 0.0, %v4410
        %v4412 = vpop.f32.mrb[0].mxu0
        %4413 = vmatprep.mubr.f32.mxu0 0.0
        %4414 = vmatmul.mubr.f32.gmra.mrb[0].mxu0 %v3959
        %v4415 = vpop.f32.mrb[0].mxu0
        %v4416 = vadd.f32 0.0, %v4415
        %v4417 = vpop.f32.mrb[0].mxu0
        %4418 = vmatprep.mubr.f32.mxu0 0.0
        %4419 = vmatmul.mubr.f32.gmra.mrb[0].mxu0 %v3960
        %v4420 = vpop.f32.mrb[0].mxu0
        %v4421 = vadd.f32 0.0, %v4420
        %v4422 = vpop.f32.mrb[0].mxu0
        %4423 = vmatprep.mubr.f32.mxu0 0.0
        %4424 = vmatmul.mubr.f32.gmra.mrb[0].mxu0 %v3961
        %v4425 = vpop.f32.mrb[0].mxu0
        %v4426 = vadd.f32 0.0, %v4425
        %v4427 = vpop.f32.mrb[0].mxu0
        %4428 = vmatprep.mubr.f32.mxu0 0.0
        %4429 = vmatmul.mubr.f32.gmra.mrb[0].mxu0 %v3962
        %v4430 = vpop.f32.mrb[0].mxu0
        %v4431 = vadd.f32 0.0, %v4430
        %v4432 = vpop.f32.mrb[0].mxu0
        %4433 = vmatprep.mubr.f32.mxu0 0.0
        %4434 = vmatmul.mubr.f32.gmra.mrb[0].mxu0 %v3963
        %v4435 = vpop.f32.mrb[0].mxu0
        %v4436 = vadd.f32 0.0, %v4435
        %v4437 = vpop.f32.mrb[0].mxu0
        %4438 = vmatprep.mubr.f32.mxu0 0.0
        %4439 = vmatmul.mubr.f32.gmra.mrb[0].mxu0 %v3964
        %v4440 = vpop.f32.mrb[0].mxu0
        %v4441 = vadd.f32 0.0, %v4440
        %v4442 = vpop.f32.mrb[0].mxu0
        %4443 = vmatprep.mubr.f32.mxu0 0.0
        %4444 = vmatmul.mubr.f32.gmra.mrb[0].mxu0 %v3965
        %v4445 = vpop.f32.mrb[0].mxu0
        %v4446 = vadd.f32 0.0, %v4445
        %v4447 = vpop.f32.mrb[0].mxu0
        %4448 = vmatprep.mubr.f32.mxu0 0.0
        %4449 = vmatmul.mubr.f32.gmra.mrb[0].mxu0 %v3966
        %v4450 = vpop.f32.mrb[0].mxu0
        %v4451 = vadd.f32 0.0, %v4450
        %v4452 = vpop.f32.mrb[0].mxu0
        %4453 = vmatprep.mubr.f32.mxu0 0.0
        %4454 = vmatmul.mubr.f32.gmra.mrb[0].mxu0 %v3967
        %v4455 = vpop.f32.mrb[0].mxu0
        %v4456 = vadd.f32 0.0, %v4455
        %v4457 = vpop.f32.mrb[0].mxu0
        %4458 = vmatprep.mubr.f32.mxu0 0.0
        %4459 = vmatmul.mubr.f32.gmra.mrb[0].mxu0 %v3968
        %v4460 = vpop.f32.mrb[0].mxu0
        %v4461 = vadd.f32 0.0, %v4460
        %v4462 = vpop.f32.mrb[0].mxu0
        %4463 = vmatprep.mubr.f32.mxu0 0.0
        %4464 = vmatmul.mubr.f32.gmra.mrb[0].mxu0 %v3969
        %v4465 = vpop.f32.mrb[0].mxu0
        %v4466 = vadd.f32 0.0, %v4465
        %v4467 = vpop.f32.mrb[0].mxu0
        %4468 = vmatprep.mubr.f32.mxu0 0.0
        %4469 = vmatmul.mubr.f32.gmra.mrb[0].mxu0 %v3970
        %v4470 = vpop.f32.mrb[0].mxu0
        %v4471 = vadd.f32 0.0, %v4470
        %v4472 = vpop.f32.mrb[0].mxu0
        %4473 = vmatprep.mubr.f32.mxu0 0.0
        %4474 = vmatmul.mubr.f32.gmra.mrb[0].mxu0 %v3971
        %v4475 = vpop.f32.mrb[0].mxu0
        %v4476 = vadd.f32 0.0, %v4475
        %v4477 = vpop.f32.mrb[0].mxu0
        %4478 = vmatprep.mubr.f32.mxu0 0.0
        %4479 = vmatmul.mubr.f32.gmra.mrb[0].mxu0 %v3972
        %v4480 = vpop.f32.mrb[0].mxu0
        %v4481 = vadd.f32 0.0, %v4480
        %v4482 = vpop.f32.mrb[0].mxu0
        %4483 = vmatprep.mubr.f32.mxu0 0.0
        %4484 = vmatmul.mubr.f32.gmra.mrb[0].mxu0 %v3973
        %v4485 = vpop.f32.mrb[0].mxu0
        %v4486 = vadd.f32 0.0, %v4485
        %v4487 = vpop.f32.mrb[0].mxu0
        %4488 = vdwg.mxu0
        %4489 = vmatprep.subr.mxu0 0.0
        %4490 = vmatpush1.msra.mxu0 %v3528
        %4491 = vmatprep.subr.mxu0 0.0
        %4492 = vmatpush1.msra.mxu0 %v3533
        %4493 = vmatprep.subr.mxu0 0.0
        %4494 = vmatpush1.msra.mxu0 %v3538
        %4495 = vmatprep.subr.mxu0 0.0
        %4496 = vmatpush1.msra.mxu0 %v3543
        %4497 = vmatprep.subr.mxu0 0.0
        %4498 = vmatpush1.msra.mxu0 %v3548
        %4499 = vmatprep.subr.mxu0 0.0
        %4500 = vmatpush1.msra.mxu0 %v3553
        %4501 = vmatprep.subr.mxu0 0.0
        %4502 = vmatpush1.msra.mxu0 %v3558
        %4503 = vmatprep.subr.mxu0 0.0
        %4504 = vmatpush1.msra.mxu0 %v3563
        %4505 = vmatprep.subr.mxu0 0.0
        %4506 = vmatpush1.msra.mxu0 %v3568
        %4507 = vmatprep.subr.mxu0 0.0
        %4508 = vmatpush1.msra.mxu0 %v3573
        %4509 = vmatprep.subr.mxu0 0.0
        %4510 = vmatpush1.msra.mxu0 %v3578
        %4511 = vmatprep.subr.mxu0 0.0
        %4512 = vmatpush1.msra.mxu0 %v3583
        %4513 = vmatprep.subr.mxu0 0.0
        %4514 = vmatpush1.msra.mxu0 %v3588
        %4515 = vmatprep.subr.mxu0 0.0
        %4516 = vmatpush1.msra.mxu0 %v3593
        %4517 = vmatprep.subr.mxu0 0.0
        %4518 = vmatpush1.msra.mxu0 %v3598
        %4519 = vmatprep.subr.mxu0 0.0
        %4520 = vmatpush1.msra.mxu0 %v3603
        %4521 = vmatprep.subr.mxu0 0.0
        %4522 = vmatpush1.msra.mxu0 0.0
        %4523 = vmatprep.subr.mxu0 0.0
        %4524 = vmatpush1.msra.mxu0 0.0
        %4525 = vmatprep.subr.mxu0 0.0
        %4526 = vmatpush1.msra.mxu0 0.0
        %4527 = vmatprep.subr.mxu0 0.0
        %4528 = vmatpush1.msra.mxu0 0.0
        %4529 = vmatprep.subr.mxu0 0.0
        %4530 = vmatpush1.msra.mxu0 0.0
        %4531 = vmatprep.subr.mxu0 0.0
        %4532 = vmatpush1.msra.mxu0 0.0
        %4533 = vmatprep.subr.mxu0 0.0
        %4534 = vmatpush1.msra.mxu0 0.0
        %4535 = vmatprep.subr.mxu0 0.0
        %4536 = vmatpush1.msra.mxu0 0.0
        %4537 = vmatprep.subr.mxu0 0.0
        %4538 = vmatpush1.msra.mxu0 0.0
        %4539 = vmatprep.subr.mxu0 0.0
        %4540 = vmatpush1.msra.mxu0 0.0
        %4541 = vmatprep.subr.mxu0 0.0
        %4542 = vmatpush1.msra.mxu0 0.0
        %4543 = vmatprep.subr.mxu0 0.0
        %4544 = vmatpush1.msra.mxu0 0.0
        %4545 = vmatprep.subr.mxu0 0.0
        %4546 = vmatpush1.msra.mxu0 0.0
        %4547 = vmatprep.subr.mxu0 0.0
        %4548 = vmatpush1.msra.mxu0 0.0
        %4549 = vmatprep.subr.mxu0 0.0
        %4550 = vmatpush1.msra.mxu0 0.0
        %4551 = vmatprep.subr.mxu0 0.0
        %4552 = vmatpush1.msra.mxu0 0.0
        %4553 = vmatprep.mubr.f32.mxu0 0.0
        %4554 = vmatmul.mubr.f32.gmra.mrb[0].mxu0 %v3974
        %v4555 = vpop.f32.mrb[0].mxu0
        %v4556 = vadd.f32 0.0, %v4555
        %v4557 = vpop.f32.mrb[0].mxu0
        %4558 = vmatprep.mubr.f32.mxu0 0.0
        %4559 = vmatmul.mubr.f32.gmra.mrb[0].mxu0 %v3975
        %v4560 = vpop.f32.mrb[0].mxu0
        %v4561 = vadd.f32 0.0, %v4560
        %v4562 = vpop.f32.mrb[0].mxu0
        %4563 = vmatprep.mubr.f32.mxu0 0.0
        %4564 = vmatmul.mubr.f32.gmra.mrb[0].mxu0 %v3976
        %v4565 = vpop.f32.mrb[0].mxu0
        %v4566 = vadd.f32 0.0, %v4565
        %v4567 = vpop.f32.mrb[0].mxu0
        %4568 = vmatprep.mubr.f32.mxu0 0.0
        %4569 = vmatmul.mubr.f32.gmra.mrb[0].mxu0 %v3977
        %v4570 = vpop.f32.mrb[0].mxu0
        %v4571 = vadd.f32 0.0, %v4570
        %v4572 = vpop.f32.mrb[0].mxu0
        %4573 = vmatprep.mubr.f32.mxu0 0.0
        %4574 = vmatmul.mubr.f32.gmra.mrb[0].mxu0 %v3978
        %v4575 = vpop.f32.mrb[0].mxu0
        %v4576 = vadd.f32 0.0, %v4575
        %v4577 = vpop.f32.mrb[0].mxu0
        %4578 = vmatprep.mubr.f32.mxu0 0.0
        %4579 = vmatmul.mubr.f32.gmra.mrb[0].mxu0 %v3979
        %v4580 = vpop.f32.mrb[0].mxu0
        %v4581 = vadd.f32 0.0, %v4580
        %v4582 = vpop.f32.mrb[0].mxu0
        %4583 = vmatprep.mubr.f32.mxu0 0.0
        %4584 = vmatmul.mubr.f32.gmra.mrb[0].mxu0 %v3980
        %v4585 = vpop.f32.mrb[0].mxu0
        %v4586 = vadd.f32 0.0, %v4585
        %v4587 = vpop.f32.mrb[0].mxu0
        %4588 = vmatprep.mubr.f32.mxu0 0.0
        %4589 = vmatmul.mubr.f32.gmra.mrb[0].mxu0 %v3981
        %v4590 = vpop.f32.mrb[0].mxu0
        %v4591 = vadd.f32 0.0, %v4590
        %v4592 = vpop.f32.mrb[0].mxu0
        %4593 = vmatprep.mubr.f32.mxu0 0.0
        %4594 = vmatmul.mubr.f32.gmra.mrb[0].mxu0 %v3982
        %v4595 = vpop.f32.mrb[0].mxu0
        %v4596 = vadd.f32 0.0, %v4595
        %v4597 = vpop.f32.mrb[0].mxu0
        %4598 = vmatprep.mubr.f32.mxu0 0.0
        %4599 = vmatmul.mubr.f32.gmra.mrb[0].mxu0 %v3983
        %v4600 = vpop.f32.mrb[0].mxu0
        %v4601 = vadd.f32 0.0, %v4600
        %v4602 = vpop.f32.mrb[0].mxu0
        %4603 = vmatprep.mubr.f32.mxu0 0.0
        %4604 = vmatmul.mubr.f32.gmra.mrb[0].mxu0 %v3984
        %v4605 = vpop.f32.mrb[0].mxu0
        %v4606 = vadd.f32 0.0, %v4605
        %v4607 = vpop.f32.mrb[0].mxu0
        %4608 = vmatprep.mubr.f32.mxu0 0.0
        %4609 = vmatmul.mubr.f32.gmra.mrb[0].mxu0 %v3985
        %v4610 = vpop.f32.mrb[0].mxu0
        %v4611 = vadd.f32 0.0, %v4610
        %v4612 = vpop.f32.mrb[0].mxu0
        %4613 = vmatprep.mubr.f32.mxu0 0.0
        %4614 = vmatmul.mubr.f32.gmra.mrb[0].mxu0 %v3986
        %v4615 = vpop.f32.mrb[0].mxu0
        %v4616 = vadd.f32 0.0, %v4615
        %v4617 = vpop.f32.mrb[0].mxu0
        %4618 = vmatprep.mubr.f32.mxu0 0.0
        %4619 = vmatmul.mubr.f32.gmra.mrb[0].mxu0 %v3987
        %v4620 = vpop.f32.mrb[0].mxu0
        %v4621 = vadd.f32 0.0, %v4620
        %v4622 = vpop.f32.mrb[0].mxu0
        %4623 = vmatprep.mubr.f32.mxu0 0.0
        %4624 = vmatmul.mubr.f32.gmra.mrb[0].mxu0 %v3988
        %v4625 = vpop.f32.mrb[0].mxu0
        %v4626 = vadd.f32 0.0, %v4625
        %v4627 = vpop.f32.mrb[0].mxu0
        %4628 = vmatprep.mubr.f32.mxu0 0.0
        %4629 = vmatmul.mubr.f32.gmra.mrb[0].mxu0 %v3989
        %v4630 = vpop.f32.mrb[0].mxu0
        %v4631 = vadd.f32 0.0, %v4630
        %v4632 = vpop.f32.mrb[0].mxu0
        %4633 = vdwg.mxu0
        %4634 = vmatprep.subr.mxu0 0.0
        %4635 = vmatpush1.msra.mxu0 %v3608
        %4636 = vmatprep.subr.mxu0 0.0
        %4637 = vmatpush1.msra.mxu0 %v3613
        %4638 = vmatprep.subr.mxu0 0.0
        %4639 = vmatpush1.msra.mxu0 %v3618
        %4640 = vmatprep.subr.mxu0 0.0
        %4641 = vmatpush1.msra.mxu0 %v3623
        %4642 = vmatprep.subr.mxu0 0.0
        %4643 = vmatpush1.msra.mxu0 %v3628
        %4644 = vmatprep.subr.mxu0 0.0
        %4645 = vmatpush1.msra.mxu0 %v3633
        %4646 = vmatprep.subr.mxu0 0.0
        %4647 = vmatpush1.msra.mxu0 %v3638
        %4648 = vmatprep.subr.mxu0 0.0
        %4649 = vmatpush1.msra.mxu0 %v3643
        %4650 = vmatprep.subr.mxu0 0.0
        %4651 = vmatpush1.msra.mxu0 %v3648
        %4652 = vmatprep.subr.mxu0 0.0
        %4653 = vmatpush1.msra.mxu0 %v3653
        %4654 = vmatprep.subr.mxu0 0.0
        %4655 = vmatpush1.msra.mxu0 %v3658
        %4656 = vmatprep.subr.mxu0 0.0
        %4657 = vmatpush1.msra.mxu0 %v3663
        %4658 = vmatprep.subr.mxu0 0.0
        %4659 = vmatpush1.msra.mxu0 %v3668
        %4660 = vmatprep.subr.mxu0 0.0
        %4661 = vmatpush1.msra.mxu0 %v3673
        %4662 = vmatprep.subr.mxu0 0.0
        %4663 = vmatpush1.msra.mxu0 %v3678
        %4664 = vmatprep.subr.mxu0 0.0
        %4665 = vmatpush1.msra.mxu0 %v3683
        %4666 = vmatprep.subr.mxu0 0.0
        %4667 = vmatpush1.msra.mxu0 0.0
        %4668 = vmatprep.subr.mxu0 0.0
        %4669 = vmatpush1.msra.mxu0 0.0
        %4670 = vmatprep.subr.mxu0 0.0
        %4671 = vmatpush1.msra.mxu0 0.0
        %4672 = vmatprep.subr.mxu0 0.0
        %4673 = vmatpush1.msra.mxu0 0.0
        %4674 = vmatprep.subr.mxu0 0.0
        %4675 = vmatpush1.msra.mxu0 0.0
        %4676 = vmatprep.subr.mxu0 0.0
        %4677 = vmatpush1.msra.mxu0 0.0
        %4678 = vmatprep.subr.mxu0 0.0
        %4679 = vmatpush1.msra.mxu0 0.0
        %4680 = vmatprep.subr.mxu0 0.0
        %4681 = vmatpush1.msra.mxu0 0.0
        %4682 = vmatprep.subr.mxu0 0.0
        %4683 = vmatpush1.msra.mxu0 0.0
        %4684 = vmatprep.subr.mxu0 0.0
        %4685 = vmatpush1.msra.mxu0 0.0
        %4686 = vmatprep.subr.mxu0 0.0
        %4687 = vmatpush1.msra.mxu0 0.0
        %4688 = vmatprep.subr.mxu0 0.0
        %4689 = vmatpush1.msra.mxu0 0.0
        %4690 = vmatprep.subr.mxu0 0.0
        %4691 = vmatpush1.msra.mxu0 0.0
        %4692 = vmatprep.subr.mxu0 0.0
        %4693 = vmatpush1.msra.mxu0 0.0
        %4694 = vmatprep.subr.mxu0 0.0
        %4695 = vmatpush1.msra.mxu0 0.0
        %4696 = vmatprep.subr.mxu0 0.0
        %4697 = vmatpush1.msra.mxu0 0.0
        %4698 = vmatprep.mubr.f32.mxu0 0.0
        %4699 = vmatmul.mubr.f32.gmra.mrb[0].mxu0 %v3990
        %v4700 = vpop.f32.mrb[0].mxu0
        %v4701 = vadd.f32 0.0, %v4700
        %v4702 = vpop.f32.mrb[0].mxu0
        %4703 = vmatprep.mubr.f32.mxu0 0.0
        %4704 = vmatmul.mubr.f32.gmra.mrb[0].mxu0 %v3991
        %v4705 = vpop.f32.mrb[0].mxu0
        %v4706 = vadd.f32 0.0, %v4705
        %v4707 = vpop.f32.mrb[0].mxu0
        %4708 = vmatprep.mubr.f32.mxu0 0.0
        %4709 = vmatmul.mubr.f32.gmra.mrb[0].mxu0 %v3992
        %v4710 = vpop.f32.mrb[0].mxu0
        %v4711 = vadd.f32 0.0, %v4710
        %v4712 = vpop.f32.mrb[0].mxu0
        %4713 = vmatprep.mubr.f32.mxu0 0.0
        %4714 = vmatmul.mubr.f32.gmra.mrb[0].mxu0 %v3993
        %v4715 = vpop.f32.mrb[0].mxu0
        %v4716 = vadd.f32 0.0, %v4715
        %v4717 = vpop.f32.mrb[0].mxu0
        %4718 = vmatprep.mubr.f32.mxu0 0.0
        %4719 = vmatmul.mubr.f32.gmra.mrb[0].mxu0 %v3994
        %v4720 = vpop.f32.mrb[0].mxu0
        %v4721 = vadd.f32 0.0, %v4720
        %v4722 = vpop.f32.mrb[0].mxu0
        %4723 = vmatprep.mubr.f32.mxu0 0.0
        %4724 = vmatmul.mubr.f32.gmra.mrb[0].mxu0 %v3995
        %v4725 = vpop.f32.mrb[0].mxu0
        %v4726 = vadd.f32 0.0, %v4725
        %v4727 = vpop.f32.mrb[0].mxu0
        %4728 = vmatprep.mubr.f32.mxu0 0.0
        %4729 = vmatmul.mubr.f32.gmra.mrb[0].mxu0 %v3996
        %v4730 = vpop.f32.mrb[0].mxu0
        %v4731 = vadd.f32 0.0, %v4730
        %v4732 = vpop.f32.mrb[0].mxu0
        %4733 = vmatprep.mubr.f32.mxu0 0.0
        %4734 = vmatmul.mubr.f32.gmra.mrb[0].mxu0 %v3997
        %v4735 = vpop.f32.mrb[0].mxu0
        %v4736 = vadd.f32 0.0, %v4735
        %v4737 = vpop.f32.mrb[0].mxu0
        %4738 = vmatprep.mubr.f32.mxu0 0.0
        %4739 = vmatmul.mubr.f32.gmra.mrb[0].mxu0 %v3998
        %v4740 = vpop.f32.mrb[0].mxu0
        %v4741 = vadd.f32 0.0, %v4740
        %v4742 = vpop.f32.mrb[0].mxu0
        %4743 = vmatprep.mubr.f32.mxu0 0.0
        %4744 = vmatmul.mubr.f32.gmra.mrb[0].mxu0 %v3999
        %v4745 = vpop.f32.mrb[0].mxu0
        %v4746 = vadd.f32 0.0, %v4745
        %v4747 = vpop.f32.mrb[0].mxu0
        %4748 = vmatprep.mubr.f32.mxu0 0.0
        %4749 = vmatmul.mubr.f32.gmra.mrb[0].mxu0 %v4000
        %v4750 = vpop.f32.mrb[0].mxu0
        %v4751 = vadd.f32 0.0, %v4750
        %v4752 = vpop.f32.mrb[0].mxu0
        %4753 = vmatprep.mubr.f32.mxu0 0.0
        %4754 = vmatmul.mubr.f32.gmra.mrb[0].mxu0 %v4001
        %v4755 = vpop.f32.mrb[0].mxu0
        %v4756 = vadd.f32 0.0, %v4755
        %v4757 = vpop.f32.mrb[0].mxu0
        %4758 = vmatprep.mubr.f32.mxu0 0.0
        %4759 = vmatmul.mubr.f32.gmra.mrb[0].mxu0 %v4002
        %v4760 = vpop.f32.mrb[0].mxu0
        %v4761 = vadd.f32 0.0, %v4760
        %v4762 = vpop.f32.mrb[0].mxu0
        %4763 = vmatprep.mubr.f32.mxu0 0.0
        %4764 = vmatmul.mubr.f32.gmra.mrb[0].mxu0 %v4003
        %v4765 = vpop.f32.mrb[0].mxu0
        %v4766 = vadd.f32 0.0, %v4765
        %v4767 = vpop.f32.mrb[0].mxu0
        %4768 = vmatprep.mubr.f32.mxu0 0.0
        %4769 = vmatmul.mubr.f32.gmra.mrb[0].mxu0 %v4004
        %v4770 = vpop.f32.mrb[0].mxu0
        %v4771 = vadd.f32 0.0, %v4770
        %v4772 = vpop.f32.mrb[0].mxu0
        %4773 = vmatprep.mubr.f32.mxu0 0.0
        %4774 = vmatmul.mubr.f32.gmra.mrb[0].mxu0 %v4005
        %v4775 = vpop.f32.mrb[0].mxu0
        %v4776 = vadd.f32 0.0, %v4775
        %v4777 = vpop.f32.mrb[0].mxu0
        %4778 = vdwg.mxu0
        %4779 = vmatprep.subr.mxu0 0.0
        %4780 = vmatpush1.msra.mxu0 %v3688
        %4781 = vmatprep.subr.mxu0 0.0
        %4782 = vmatpush1.msra.mxu0 %v3693
        %4783 = vmatprep.subr.mxu0 0.0
        %4784 = vmatpush1.msra.mxu0 %v3698
        %4785 = vmatprep.subr.mxu0 0.0
        %4786 = vmatpush1.msra.mxu0 %v3703
        %4787 = vmatprep.subr.mxu0 0.0
        %4788 = vmatpush1.msra.mxu0 %v3708
        %4789 = vmatprep.subr.mxu0 0.0
        %4790 = vmatpush1.msra.mxu0 %v3713
        %4791 = vmatprep.subr.mxu0 0.0
        %4792 = vmatpush1.msra.mxu0 %v3718
        %4793 = vmatprep.subr.mxu0 0.0
        %4794 = vmatpush1.msra.mxu0 %v3723
        %4795 = vmatprep.subr.mxu0 0.0
        %4796 = vmatpush1.msra.mxu0 %v3728
        %4797 = vmatprep.subr.mxu0 0.0
        %4798 = vmatpush1.msra.mxu0 %v3733
        %4799 = vmatprep.subr.mxu0 0.0
        %4800 = vmatpush1.msra.mxu0 %v3738
        %4801 = vmatprep.subr.mxu0 0.0
        %4802 = vmatpush1.msra.mxu0 %v3743
        %4803 = vmatprep.subr.mxu0 0.0
        %4804 = vmatpush1.msra.mxu0 %v3748
        %4805 = vmatprep.subr.mxu0 0.0
        %4806 = vmatpush1.msra.mxu0 %v3753
        %4807 = vmatprep.subr.mxu0 0.0
        %4808 = vmatpush1.msra.mxu0 %v3758
        %4809 = vmatprep.subr.mxu0 0.0
        %4810 = vmatpush1.msra.mxu0 %v3763
        %4811 = vmatprep.subr.mxu0 0.0
        %4812 = vmatpush1.msra.mxu0 0.0
        %4813 = vmatprep.subr.mxu0 0.0
        %4814 = vmatpush1.msra.mxu0 0.0
        %4815 = vmatprep.subr.mxu0 0.0
        %4816 = vmatpush1.msra.mxu0 0.0
        %4817 = vmatprep.subr.mxu0 0.0
        %4818 = vmatpush1.msra.mxu0 0.0
        %4819 = vmatprep.subr.mxu0 0.0
        %4820 = vmatpush1.msra.mxu0 0.0
        %4821 = vmatprep.subr.mxu0 0.0
        %4822 = vmatpush1.msra.mxu0 0.0
        %4823 = vmatprep.subr.mxu0 0.0
        %4824 = vmatpush1.msra.mxu0 0.0
        %4825 = vmatprep.subr.mxu0 0.0
        %4826 = vmatpush1.msra.mxu0 0.0
        %4827 = vmatprep.subr.mxu0 0.0
        %4828 = vmatpush1.msra.mxu0 0.0
        %4829 = vmatprep.subr.mxu0 0.0
        %4830 = vmatpush1.msra.mxu0 0.0
        %4831 = vmatprep.subr.mxu0 0.0
        %4832 = vmatpush1.msra.mxu0 0.0
        %4833 = vmatprep.subr.mxu0 0.0
        %4834 = vmatpush1.msra.mxu0 0.0
        %4835 = vmatprep.subr.mxu0 0.0
        %4836 = vmatpush1.msra.mxu0 0.0
        %4837 = vmatprep.subr.mxu0 0.0
        %4838 = vmatpush1.msra.mxu0 0.0
        %4839 = vmatprep.subr.mxu0 0.0
        %4840 = vmatpush1.msra.mxu0 0.0
        %4841 = vmatprep.subr.mxu0 0.0
        %4842 = vmatpush1.msra.mxu0 0.0
        %4843 = vmatprep.mubr.f32.mxu0 0.0
        %4844 = vmatmul.mubr.f32.gmra.mrb[0].mxu0 %v4006
        %v4845 = vpop.f32.mrb[0].mxu0
        %v4846 = vadd.f32 0.0, %v4845
        %v4847 = vpop.f32.mrb[0].mxu0
        %4848 = vmatprep.mubr.f32.mxu0 0.0
        %4849 = vmatmul.mubr.f32.gmra.mrb[0].mxu0 %v4007
        %v4850 = vpop.f32.mrb[0].mxu0
        %v4851 = vadd.f32 0.0, %v4850
        %v4852 = vpop.f32.mrb[0].mxu0
        %4853 = vmatprep.mubr.f32.mxu0 0.0
        %4854 = vmatmul.mubr.f32.gmra.mrb[0].mxu0 %v4008
        %v4855 = vpop.f32.mrb[0].mxu0
        %v4856 = vadd.f32 0.0, %v4855
        %v4857 = vpop.f32.mrb[0].mxu0
        %4858 = vmatprep.mubr.f32.mxu0 0.0
        %4859 = vmatmul.mubr.f32.gmra.mrb[0].mxu0 %v4009
        %v4860 = vpop.f32.mrb[0].mxu0
        %v4861 = vadd.f32 0.0, %v4860
        %v4862 = vpop.f32.mrb[0].mxu0
        %4863 = vmatprep.mubr.f32.mxu0 0.0
        %4864 = vmatmul.mubr.f32.gmra.mrb[0].mxu0 %v4010
        %v4865 = vpop.f32.mrb[0].mxu0
        %v4866 = vadd.f32 0.0, %v4865
        %v4867 = vpop.f32.mrb[0].mxu0
        %4868 = vmatprep.mubr.f32.mxu0 0.0
        %4869 = vmatmul.mubr.f32.gmra.mrb[0].mxu0 %v4011
        %v4870 = vpop.f32.mrb[0].mxu0
        %v4871 = vadd.f32 0.0, %v4870
        %v4872 = vpop.f32.mrb[0].mxu0
        %4873 = vmatprep.mubr.f32.mxu0 0.0
        %4874 = vmatmul.mubr.f32.gmra.mrb[0].mxu0 %v4012
        %v4875 = vpop.f32.mrb[0].mxu0
        %v4876 = vadd.f32 0.0, %v4875
        %v4877 = vpop.f32.mrb[0].mxu0
        %4878 = vmatprep.mubr.f32.mxu0 0.0
        %4879 = vmatmul.mubr.f32.gmra.mrb[0].mxu0 %v4013
        %v4880 = vpop.f32.mrb[0].mxu0
        %v4881 = vadd.f32 0.0, %v4880
        %v4882 = vpop.f32.mrb[0].mxu0
        %4883 = vmatprep.mubr.f32.mxu0 0.0
        %4884 = vmatmul.mubr.f32.gmra.mrb[0].mxu0 %v4014
        %v4885 = vpop.f32.mrb[0].mxu0
        %v4886 = vadd.f32 0.0, %v4885
        %v4887 = vpop.f32.mrb[0].mxu0
        %4888 = vmatprep.mubr.f32.mxu0 0.0
        %4889 = vmatmul.mubr.f32.gmra.mrb[0].mxu0 %v4015
        %v4890 = vpop.f32.mrb[0].mxu0
        %v4891 = vadd.f32 0.0, %v4890
        %v4892 = vpop.f32.mrb[0].mxu0
        %4893 = vmatprep.mubr.f32.mxu0 0.0
        %4894 = vmatmul.mubr.f32.gmra.mrb[0].mxu0 %v4016
        %v4895 = vpop.f32.mrb[0].mxu0
        %v4896 = vadd.f32 0.0, %v4895
        %v4897 = vpop.f32.mrb[0].mxu0
        %4898 = vmatprep.mubr.f32.mxu0 0.0
        %4899 = vmatmul.mubr.f32.gmra.mrb[0].mxu0 %v4017
        %v4900 = vpop.f32.mrb[0].mxu0
        %v4901 = vadd.f32 0.0, %v4900
        %v4902 = vpop.f32.mrb[0].mxu0
        %4903 = vmatprep.mubr.f32.mxu0 0.0
        %4904 = vmatmul.mubr.f32.gmra.mrb[0].mxu0 %v4018
        %v4905 = vpop.f32.mrb[0].mxu0
        %v4906 = vadd.f32 0.0, %v4905
        %v4907 = vpop.f32.mrb[0].mxu0
        %4908 = vmatprep.mubr.f32.mxu0 0.0
        %4909 = vmatmul.mubr.f32.gmra.mrb[0].mxu0 %v4019
        %v4910 = vpop.f32.mrb[0].mxu0
        %v4911 = vadd.f32 0.0, %v4910
        %v4912 = vpop.f32.mrb[0].mxu0
        %4913 = vmatprep.mubr.f32.mxu0 0.0
        %4914 = vmatmul.mubr.f32.gmra.mrb[0].mxu0 %v4020
        %v4915 = vpop.f32.mrb[0].mxu0
        %v4916 = vadd.f32 0.0, %v4915
        %v4917 = vpop.f32.mrb[0].mxu0
        %4918 = vmatprep.mubr.f32.mxu0 0.0
        %4919 = vmatmul.mubr.f32.gmra.mrb[0].mxu0 %v4021
        %v4920 = vpop.f32.mrb[0].mxu0
        %v4921 = vadd.f32 0.0, %v4920
        %v4922 = vpop.f32.mrb[0].mxu0
        %4923 = vdwg.mxu0
        %4924 = vmatprep.subr.mxu0 0.0
        %4925 = vmatpush1.msra.mxu0 %v3768
        %4926 = vmatprep.subr.mxu0 0.0
        %4927 = vmatpush1.msra.mxu0 %v3773
        %4928 = vmatprep.subr.mxu0 0.0
        %4929 = vmatpush1.msra.mxu0 %v3778
        %4930 = vmatprep.subr.mxu0 0.0
        %4931 = vmatpush1.msra.mxu0 %v3783
        %4932 = vmatprep.subr.mxu0 0.0
        %4933 = vmatpush1.msra.mxu0 %v3788
        %4934 = vmatprep.subr.mxu0 0.0
        %4935 = vmatpush1.msra.mxu0 %v3793
        %4936 = vmatprep.subr.mxu0 0.0
        %4937 = vmatpush1.msra.mxu0 %v3798
        %4938 = vmatprep.subr.mxu0 0.0
        %4939 = vmatpush1.msra.mxu0 %v3803
        %4940 = vmatprep.subr.mxu0 0.0
        %4941 = vmatpush1.msra.mxu0 %v3808
        %4942 = vmatprep.subr.mxu0 0.0
        %4943 = vmatpush1.msra.mxu0 %v3813
        %4944 = vmatprep.subr.mxu0 0.0
        %4945 = vmatpush1.msra.mxu0 %v3818
        %4946 = vmatprep.subr.mxu0 0.0
        %4947 = vmatpush1.msra.mxu0 %v3823
        %4948 = vmatprep.subr.mxu0 0.0
        %4949 = vmatpush1.msra.mxu0 %v3828
        %4950 = vmatprep.subr.mxu0 0.0
        %4951 = vmatpush1.msra.mxu0 %v3833
        %4952 = vmatprep.subr.mxu0 0.0
        %4953 = vmatpush1.msra.mxu0 %v3838
        %4954 = vmatprep.subr.mxu0 0.0
        %4955 = vmatpush1.msra.mxu0 %v3843
        %4956 = vmatprep.subr.mxu0 0.0
        %4957 = vmatpush1.msra.mxu0 0.0
        %4958 = vmatprep.subr.mxu0 0.0
        %4959 = vmatpush1.msra.mxu0 0.0
        %4960 = vmatprep.subr.mxu0 0.0
        %4961 = vmatpush1.msra.mxu0 0.0
        %4962 = vmatprep.subr.mxu0 0.0
        %4963 = vmatpush1.msra.mxu0 0.0
        %4964 = vmatprep.subr.mxu0 0.0
        %4965 = vmatpush1.msra.mxu0 0.0
        %4966 = vmatprep.subr.mxu0 0.0
        %4967 = vmatpush1.msra.mxu0 0.0
        %4968 = vmatprep.subr.mxu0 0.0
        %4969 = vmatpush1.msra.mxu0 0.0
        %4970 = vmatprep.subr.mxu0 0.0
        %4971 = vmatpush1.msra.mxu0 0.0
        %4972 = vmatprep.subr.mxu0 0.0
        %4973 = vmatpush1.msra.mxu0 0.0
        %4974 = vmatprep.subr.mxu0 0.0
        %4975 = vmatpush1.msra.mxu0 0.0
        %4976 = vmatprep.subr.mxu0 0.0
        %4977 = vmatpush1.msra.mxu0 0.0
        %4978 = vmatprep.subr.mxu0 0.0
        %4979 = vmatpush1.msra.mxu0 0.0
        %4980 = vmatprep.subr.mxu0 0.0
        %4981 = vmatpush1.msra.mxu0 0.0
        %4982 = vmatprep.subr.mxu0 0.0
        %4983 = vmatpush1.msra.mxu0 0.0
        %4984 = vmatprep.subr.mxu0 0.0
        %4985 = vmatpush1.msra.mxu0 0.0
        %4986 = vmatprep.subr.mxu0 0.0
        %4987 = vmatpush1.msra.mxu0 0.0
        %4988 = vmatprep.mubr.f32.mxu0 0.0
        %4989 = vmatmul.mubr.f32.gmra.mrb[0].mxu0 %v4022
        %v4990 = vpop.f32.mrb[0].mxu0
        %v4991 = vadd.f32 0.0, %v4990
        %v4992 = vpop.f32.mrb[0].mxu0
        %4993 = vmatprep.mubr.f32.mxu0 0.0
        %4994 = vmatmul.mubr.f32.gmra.mrb[0].mxu0 %v4023
        %v4995 = vpop.f32.mrb[0].mxu0
        %v4996 = vadd.f32 0.0, %v4995
        %v4997 = vpop.f32.mrb[0].mxu0
        %4998 = vmatprep.mubr.f32.mxu0 0.0
        %4999 = vmatmul.mubr.f32.gmra.mrb[0].mxu0 %v4024
        %v5000 = vpop.f32.mrb[0].mxu0
        %v5001 = vadd.f32 0.0, %v5000
        %v5002 = vpop.f32.mrb[0].mxu0
        %5003 = vmatprep.mubr.f32.mxu0 0.0
        %5004 = vmatmul.mubr.f32.gmra.mrb[0].mxu0 %v4025
        %v5005 = vpop.f32.mrb[0].mxu0
        %v5006 = vadd.f32 0.0, %v5005
        %v5007 = vpop.f32.mrb[0].mxu0
        %5008 = vmatprep.mubr.f32.mxu0 0.0
        %5009 = vmatmul.mubr.f32.gmra.mrb[0].mxu0 %v4026
        %v5010 = vpop.f32.mrb[0].mxu0
        %v5011 = vadd.f32 0.0, %v5010
        %v5012 = vpop.f32.mrb[0].mxu0
        %5013 = vmatprep.mubr.f32.mxu0 0.0
        %5014 = vmatmul.mubr.f32.gmra.mrb[0].mxu0 %v4027
        %v5015 = vpop.f32.mrb[0].mxu0
        %v5016 = vadd.f32 0.0, %v5015
        %v5017 = vpop.f32.mrb[0].mxu0
        %5018 = vmatprep.mubr.f32.mxu0 0.0
        %5019 = vmatmul.mubr.f32.gmra.mrb[0].mxu0 %v4028
        %v5020 = vpop.f32.mrb[0].mxu0
        %v5021 = vadd.f32 0.0, %v5020
        %v5022 = vpop.f32.mrb[0].mxu0
        %5023 = vmatprep.mubr.f32.mxu0 0.0
        %5024 = vmatmul.mubr.f32.gmra.mrb[0].mxu0 %v4029
        %v5025 = vpop.f32.mrb[0].mxu0
        %v5026 = vadd.f32 0.0, %v5025
        %v5027 = vpop.f32.mrb[0].mxu0
        %5028 = vmatprep.mubr.f32.mxu0 0.0
        %5029 = vmatmul.mubr.f32.gmra.mrb[0].mxu0 %v4030
        %v5030 = vpop.f32.mrb[0].mxu0
        %v5031 = vadd.f32 0.0, %v5030
        %v5032 = vpop.f32.mrb[0].mxu0
        %5033 = vmatprep.mubr.f32.mxu0 0.0
        %5034 = vmatmul.mubr.f32.gmra.mrb[0].mxu0 %v4031
        %v5035 = vpop.f32.mrb[0].mxu0
        %v5036 = vadd.f32 0.0, %v5035
        %v5037 = vpop.f32.mrb[0].mxu0
        %5038 = vmatprep.mubr.f32.mxu0 0.0
        %5039 = vmatmul.mubr.f32.gmra.mrb[0].mxu0 %v4032
        %v5040 = vpop.f32.mrb[0].mxu0
        %v5041 = vadd.f32 0.0, %v5040
        %v5042 = vpop.f32.mrb[0].mxu0
        %5043 = vmatprep.mubr.f32.mxu0 0.0
        %5044 = vmatmul.mubr.f32.gmra.mrb[0].mxu0 %v4033
        %v5045 = vpop.f32.mrb[0].mxu0
        %v5046 = vadd.f32 0.0, %v5045
        %v5047 = vpop.f32.mrb[0].mxu0
        %5048 = vmatprep.mubr.f32.mxu0 0.0
        %5049 = vmatmul.mubr.f32.gmra.mrb[0].mxu0 %v4034
        %v5050 = vpop.f32.mrb[0].mxu0
        %v5051 = vadd.f32 0.0, %v5050
        %v5052 = vpop.f32.mrb[0].mxu0
        %5053 = vmatprep.mubr.f32.mxu0 0.0
        %5054 = vmatmul.mubr.f32.gmra.mrb[0].mxu0 %v4035
        %v5055 = vpop.f32.mrb[0].mxu0
        %v5056 = vadd.f32 0.0, %v5055
        %v5057 = vpop.f32.mrb[0].mxu0
        %5058 = vmatprep.mubr.f32.mxu0 0.0
        %5059 = vmatmul.mubr.f32.gmra.mrb[0].mxu0 %v4036
        %v5060 = vpop.f32.mrb[0].mxu0
        %v5061 = vadd.f32 0.0, %v5060
        %v5062 = vpop.f32.mrb[0].mxu0
        %5063 = vmatprep.mubr.f32.mxu0 0.0
        %5064 = vmatmul.mubr.f32.gmra.mrb[0].mxu0 %v4037
        %v5065 = vpop.f32.mrb[0].mxu0
        %v5066 = vadd.f32 0.0, %v5065
        %v5067 = vpop.f32.mrb[0].mxu0
        %5068 = vdwg.mxu0
        %5069 = vmatprep.subr.mxu0 0.0
        %5070 = vmatpush1.msra.mxu0 %v3848
        %5071 = vmatprep.subr.mxu0 0.0
        %5072 = vmatpush1.msra.mxu0 %v3853
        %5073 = vmatprep.subr.mxu0 0.0
        %5074 = vmatpush1.msra.mxu0 %v3858
        %5075 = vmatprep.subr.mxu0 0.0
        %5076 = vmatpush1.msra.mxu0 %v3863
        %5077 = vmatprep.subr.mxu0 0.0
        %5078 = vmatpush1.msra.mxu0 %v3868
        %5079 = vmatprep.subr.mxu0 0.0
        %5080 = vmatpush1.msra.mxu0 %v3873
        %5081 = vmatprep.subr.mxu0 0.0
        %5082 = vmatpush1.msra.mxu0 %v3878
        %5083 = vmatprep.subr.mxu0 0.0
        %5084 = vmatpush1.msra.mxu0 %v3883
        %5085 = vmatprep.subr.mxu0 0.0
        %5086 = vmatpush1.msra.mxu0 %v3888
        %5087 = vmatprep.subr.mxu0 0.0
        %5088 = vmatpush1.msra.mxu0 %v3893
        %5089 = vmatprep.subr.mxu0 0.0
        %5090 = vmatpush1.msra.mxu0 %v3898
        %5091 = vmatprep.subr.mxu0 0.0
        %5092 = vmatpush1.msra.mxu0 %v3903
        %5093 = vmatprep.subr.mxu0 0.0
        %5094 = vmatpush1.msra.mxu0 %v3908
        %5095 = vmatprep.subr.mxu0 0.0
        %5096 = vmatpush1.msra.mxu0 %v3913
        %5097 = vmatprep.subr.mxu0 0.0
        %5098 = vmatpush1.msra.mxu0 %v3918
        %5099 = vmatprep.subr.mxu0 0.0
        %5100 = vmatpush1.msra.mxu0 %v3923
        %5101 = vmatprep.subr.mxu0 0.0
        %5102 = vmatpush1.msra.mxu0 0.0
        %5103 = vmatprep.subr.mxu0 0.0
        %5104 = vmatpush1.msra.mxu0 0.0
        %5105 = vmatprep.subr.mxu0 0.0
        %5106 = vmatpush1.msra.mxu0 0.0
        %5107 = vmatprep.subr.mxu0 0.0
        %5108 = vmatpush1.msra.mxu0 0.0
        %5109 = vmatprep.subr.mxu0 0.0
        %5110 = vmatpush1.msra.mxu0 0.0
        %5111 = vmatprep.subr.mxu0 0.0
        %5112 = vmatpush1.msra.mxu0 0.0
        %5113 = vmatprep.subr.mxu0 0.0
        %5114 = vmatpush1.msra.mxu0 0.0
        %5115 = vmatprep.subr.mxu0 0.0
        %5116 = vmatpush1.msra.mxu0 0.0
        %5117 = vmatprep.subr.mxu0 0.0
        %5118 = vmatpush1.msra.mxu0 0.0
        %5119 = vmatprep.subr.mxu0 0.0
        %5120 = vmatpush1.msra.mxu0 0.0
        %5121 = vmatprep.subr.mxu0 0.0
        %5122 = vmatpush1.msra.mxu0 0.0
        %5123 = vmatprep.subr.mxu0 0.0
        %5124 = vmatpush1.msra.mxu0 0.0
        %5125 = vmatprep.subr.mxu0 0.0
        %5126 = vmatpush1.msra.mxu0 0.0
        %5127 = vmatprep.subr.mxu0 0.0
        %5128 = vmatpush1.msra.mxu0 0.0
        %5129 = vmatprep.subr.mxu0 0.0
        %5130 = vmatpush1.msra.mxu0 0.0
        %5131 = vmatprep.subr.mxu0 0.0
        %5132 = vmatpush1.msra.mxu0 0.0
        %5133 = vmatprep.mubr.f32.mxu0 0.0
        %5134 = vmatmul.mubr.f32.gmra.mrb[0].mxu0 %v4038
        %v5135 = vpop.f32.mrb[0].mxu0
        %v5136 = vadd.f32 0.0, %v5135
        %v5137 = vpop.f32.mrb[0].mxu0
        %5138 = vmatprep.mubr.f32.mxu0 0.0
        %5139 = vmatmul.mubr.f32.gmra.mrb[0].mxu0 %v4039
        %v5140 = vpop.f32.mrb[0].mxu0
        %v5141 = vadd.f32 0.0, %v5140
        %v5142 = vpop.f32.mrb[0].mxu0
        %5143 = vmatprep.mubr.f32.mxu0 0.0
        %5144 = vmatmul.mubr.f32.gmra.mrb[0].mxu0 %v4040
        %v5145 = vpop.f32.mrb[0].mxu0
        %v5146 = vadd.f32 0.0, %v5145
        %v5147 = vpop.f32.mrb[0].mxu0
        %5148 = vmatprep.mubr.f32.mxu0 0.0
        %5149 = vmatmul.mubr.f32.gmra.mrb[0].mxu0 %v4041
        %v5150 = vpop.f32.mrb[0].mxu0
        %v5151 = vadd.f32 0.0, %v5150
        %v5152 = vpop.f32.mrb[0].mxu0
        %5153 = vmatprep.mubr.f32.mxu0 0.0
        %5154 = vmatmul.mubr.f32.gmra.mrb[0].mxu0 %v4042
        %v5155 = vpop.f32.mrb[0].mxu0
        %v5156 = vadd.f32 0.0, %v5155
        %v5157 = vpop.f32.mrb[0].mxu0
        %5158 = vmatprep.mubr.f32.mxu0 0.0
        %5159 = vmatmul.mubr.f32.gmra.mrb[0].mxu0 %v4043
        %v5160 = vpop.f32.mrb[0].mxu0
        %v5161 = vadd.f32 0.0, %v5160
        %v5162 = vpop.f32.mrb[0].mxu0
        %5163 = vmatprep.mubr.f32.mxu0 0.0
        %5164 = vmatmul.mubr.f32.gmra.mrb[0].mxu0 %v4044
        %v5165 = vpop.f32.mrb[0].mxu0
        %v5166 = vadd.f32 0.0, %v5165
        %v5167 = vpop.f32.mrb[0].mxu0
        %5168 = vmatprep.mubr.f32.mxu0 0.0
        %5169 = vmatmul.mubr.f32.gmra.mrb[0].mxu0 %v4045
        %v5170 = vpop.f32.mrb[0].mxu0
        %v5171 = vadd.f32 0.0, %v5170
        %v5172 = vpop.f32.mrb[0].mxu0
        %5173 = vmatprep.mubr.f32.mxu0 0.0
        %5174 = vmatmul.mubr.f32.gmra.mrb[0].mxu0 %v4046
        %v5175 = vpop.f32.mrb[0].mxu0
        %v5176 = vadd.f32 0.0, %v5175
        %v5177 = vpop.f32.mrb[0].mxu0
        %5178 = vmatprep.mubr.f32.mxu0 0.0
        %5179 = vmatmul.mubr.f32.gmra.mrb[0].mxu0 %v4047
        %v5180 = vpop.f32.mrb[0].mxu0
        %v5181 = vadd.f32 0.0, %v5180
        %v5182 = vpop.f32.mrb[0].mxu0
        %5183 = vmatprep.mubr.f32.mxu0 0.0
        %5184 = vmatmul.mubr.f32.gmra.mrb[0].mxu0 %v4048
        %v5185 = vpop.f32.mrb[0].mxu0
        %v5186 = vadd.f32 0.0, %v5185
        %v5187 = vpop.f32.mrb[0].mxu0
        %5188 = vmatprep.mubr.f32.mxu0 0.0
        %5189 = vmatmul.mubr.f32.gmra.mrb[0].mxu0 %v4049
        %v5190 = vpop.f32.mrb[0].mxu0
        %v5191 = vadd.f32 0.0, %v5190
        %v5192 = vpop.f32.mrb[0].mxu0
        %5193 = vmatprep.mubr.f32.mxu0 0.0
        %5194 = vmatmul.mubr.f32.gmra.mrb[0].mxu0 %v4050
        %v5195 = vpop.f32.mrb[0].mxu0
        %v5196 = vadd.f32 0.0, %v5195
        %v5197 = vpop.f32.mrb[0].mxu0
        %5198 = vmatprep.mubr.f32.mxu0 0.0
        %5199 = vmatmul.mubr.f32.gmra.mrb[0].mxu0 %v4051
        %v5200 = vpop.f32.mrb[0].mxu0
        %v5201 = vadd.f32 0.0, %v5200
        %v5202 = vpop.f32.mrb[0].mxu0
        %5203 = vmatprep.mubr.f32.mxu0 0.0
        %5204 = vmatmul.mubr.f32.gmra.mrb[0].mxu0 %v4052
        %v5205 = vpop.f32.mrb[0].mxu0
        %v5206 = vadd.f32 0.0, %v5205
        %v5207 = vpop.f32.mrb[0].mxu0
        %5208 = vmatprep.mubr.f32.mxu0 0.0
        %5209 = vmatmul.mubr.f32.gmra.mrb[0].mxu0 %v4053
        %v5210 = vpop.f32.mrb[0].mxu0
        %v5211 = vadd.f32 0.0, %v5210
        %v5212 = vpop.f32.mrb[0].mxu0
        %5213 = vdwg.mxu0
        %v5214 = vld [vmem:[%s6] sm:$0x1]
        %v5216 = vlaneseq
        %v5217 = vshrl.u32 %v5216, 7
        %v5218 = vsub.s32 0, %v5217
        %v5219 = vrot.slane %v5214, %v5218
        %v5221 = vadd.f32 %v4121, %v5219
        %v5222 = vadd.f32 %v4126, %v5219
        %v5223 = vadd.f32 %v4131, %v5219
        %v5224 = vadd.f32 %v4136, %v5219
        %v5225 = vadd.f32 %v4141, %v5219
        %v5226 = vadd.f32 %v4146, %v5219
        %v5227 = vadd.f32 %v4151, %v5219
        %v5228 = vadd.f32 %v4156, %v5219
        %v5229 = vadd.f32 %v4161, %v5219
        %v5230 = vadd.f32 %v4166, %v5219
        %v5231 = vadd.f32 %v4171, %v5219
        %v5232 = vadd.f32 %v4176, %v5219
        %v5233 = vadd.f32 %v4181, %v5219
        %v5234 = vadd.f32 %v4186, %v5219
        %v5235 = vadd.f32 %v4191, %v5219
        %v5236 = vadd.f32 %v4196, %v5219
        %v5237 = vadd.f32 %v4266, %v5219
        %v5238 = vadd.f32 %v4271, %v5219
        %v5239 = vadd.f32 %v4276, %v5219
        %v5240 = vadd.f32 %v4281, %v5219
        %v5241 = vadd.f32 %v4286, %v5219
        %v5242 = vadd.f32 %v4291, %v5219
        %v5243 = vadd.f32 %v4296, %v5219
        %v5244 = vadd.f32 %v4301, %v5219
        %v5245 = vadd.f32 %v4306, %v5219
        %v5246 = vadd.f32 %v4311, %v5219
        %v5247 = vadd.f32 %v4316, %v5219
        %v5248 = vadd.f32 %v4321, %v5219
        %v5249 = vadd.f32 %v4326, %v5219
        %v5250 = vadd.f32 %v4331, %v5219
        %v5251 = vadd.f32 %v4336, %v5219
        %v5252 = vadd.f32 %v4341, %v5219
        %v5253 = vadd.f32 %v4411, %v5219
        %v5254 = vadd.f32 %v4416, %v5219
        %v5255 = vadd.f32 %v4421, %v5219
        %v5256 = vadd.f32 %v4426, %v5219
        %v5257 = vadd.f32 %v4431, %v5219
        %v5258 = vadd.f32 %v4436, %v5219
        %v5259 = vadd.f32 %v4441, %v5219
        %v5260 = vadd.f32 %v4446, %v5219
        %v5261 = vadd.f32 %v4451, %v5219
        %v5262 = vadd.f32 %v4456, %v5219
        %v5263 = vadd.f32 %v4461, %v5219
        %v5264 = vadd.f32 %v4466, %v5219
        %v5265 = vadd.f32 %v4471, %v5219
        %v5266 = vadd.f32 %v4476, %v5219
        %v5267 = vadd.f32 %v4481, %v5219
        %v5268 = vadd.f32 %v4486, %v5219
        %v5269 = vadd.f32 %v4556, %v5219
        %v5270 = vadd.f32 %v4561, %v5219
        %v5271 = vadd.f32 %v4566, %v5219
        %v5272 = vadd.f32 %v4571, %v5219
        %v5273 = vadd.f32 %v4576, %v5219
        %v5274 = vadd.f32 %v4581, %v5219
        %v5275 = vadd.f32 %v4586, %v5219
        %v5276 = vadd.f32 %v4591, %v5219
        %v5277 = vadd.f32 %v4596, %v5219
        %v5278 = vadd.f32 %v4601, %v5219
        %v5279 = vadd.f32 %v4606, %v5219
        %v5280 = vadd.f32 %v4611, %v5219
        %v5281 = vadd.f32 %v4616, %v5219
        %v5282 = vadd.f32 %v4621, %v5219
        %v5283 = vadd.f32 %v4626, %v5219
        %v5284 = vadd.f32 %v4631, %v5219
        %v5285 = vadd.f32 %v4701, %v5219
        %v5286 = vadd.f32 %v4706, %v5219
        %v5287 = vadd.f32 %v4711, %v5219
        %v5288 = vadd.f32 %v4716, %v5219
        %v5289 = vadd.f32 %v4721, %v5219
        %v5290 = vadd.f32 %v4726, %v5219
        %v5291 = vadd.f32 %v4731, %v5219
        %v5292 = vadd.f32 %v4736, %v5219
        %v5293 = vadd.f32 %v4741, %v5219
        %v5294 = vadd.f32 %v4746, %v5219
        %v5295 = vadd.f32 %v4751, %v5219
        %v5296 = vadd.f32 %v4756, %v5219
        %v5297 = vadd.f32 %v4761, %v5219
        %v5298 = vadd.f32 %v4766, %v5219
        %v5299 = vadd.f32 %v4771, %v5219
        %v5300 = vadd.f32 %v4776, %v5219
        %v5301 = vadd.f32 %v4846, %v5219
        %v5302 = vadd.f32 %v4851, %v5219
        %v5303 = vadd.f32 %v4856, %v5219
        %v5304 = vadd.f32 %v4861, %v5219
        %v5305 = vadd.f32 %v4866, %v5219
        %v5306 = vadd.f32 %v4871, %v5219
        %v5307 = vadd.f32 %v4876, %v5219
        %v5308 = vadd.f32 %v4881, %v5219
        %v5309 = vadd.f32 %v4886, %v5219
        %v5310 = vadd.f32 %v4891, %v5219
        %v5311 = vadd.f32 %v4896, %v5219
        %v5312 = vadd.f32 %v4901, %v5219
        %v5313 = vadd.f32 %v4906, %v5219
        %v5314 = vadd.f32 %v4911, %v5219
        %v5315 = vadd.f32 %v4916, %v5219
        %v5316 = vadd.f32 %v4921, %v5219
        %v5317 = vadd.f32 %v4991, %v5219
        %v5318 = vadd.f32 %v4996, %v5219
        %v5319 = vadd.f32 %v5001, %v5219
        %v5320 = vadd.f32 %v5006, %v5219
        %v5321 = vadd.f32 %v5011, %v5219
        %v5322 = vadd.f32 %v5016, %v5219
        %v5323 = vadd.f32 %v5021, %v5219
        %v5324 = vadd.f32 %v5026, %v5219
        %v5325 = vadd.f32 %v5031, %v5219
        %v5326 = vadd.f32 %v5036, %v5219
        %v5327 = vadd.f32 %v5041, %v5219
        %v5328 = vadd.f32 %v5046, %v5219
        %v5329 = vadd.f32 %v5051, %v5219
        %v5330 = vadd.f32 %v5056, %v5219
        %v5331 = vadd.f32 %v5061, %v5219
        %v5332 = vadd.f32 %v5066, %v5219
        %v5333 = vadd.f32 %v5136, %v5219
        %v5334 = vadd.f32 %v5141, %v5219
        %v5335 = vadd.f32 %v5146, %v5219
        %v5336 = vadd.f32 %v5151, %v5219
        %v5337 = vadd.f32 %v5156, %v5219
        %v5338 = vadd.f32 %v5161, %v5219
        %v5339 = vadd.f32 %v5166, %v5219
        %v5340 = vadd.f32 %v5171, %v5219
        %v5341 = vadd.f32 %v5176, %v5219
        %v5342 = vadd.f32 %v5181, %v5219
        %v5343 = vadd.f32 %v5186, %v5219
        %v5344 = vadd.f32 %v5191, %v5219
        %v5345 = vadd.f32 %v5196, %v5219
        %v5346 = vadd.f32 %v5201, %v5219
        %v5347 = vadd.f32 %v5206, %v5219
        %v5348 = vadd.f32 %v5211, %v5219
        %v5349 = vmax.f32 %v5221, 0.0
        %v5350 = vmax.f32 %v5222, 0.0
        %v5351 = vmax.f32 %v5223, 0.0
        %v5352 = vmax.f32 %v5224, 0.0
        %v5353 = vmax.f32 %v5225, 0.0
        %v5354 = vmax.f32 %v5226, 0.0
        %v5355 = vmax.f32 %v5227, 0.0
        %v5356 = vmax.f32 %v5228, 0.0
        %v5357 = vmax.f32 %v5229, 0.0
        %v5358 = vmax.f32 %v5230, 0.0
        %v5359 = vmax.f32 %v5231, 0.0
        %v5360 = vmax.f32 %v5232, 0.0
        %v5361 = vmax.f32 %v5233, 0.0
        %v5362 = vmax.f32 %v5234, 0.0
        %v5363 = vmax.f32 %v5235, 0.0
        %v5364 = vmax.f32 %v5236, 0.0
        %v5365 = vmax.f32 %v5237, 0.0
        %v5366 = vmax.f32 %v5238, 0.0
        %v5367 = vmax.f32 %v5239, 0.0
        %v5368 = vmax.f32 %v5240, 0.0
        %v5369 = vmax.f32 %v5241, 0.0
        %v5370 = vmax.f32 %v5242, 0.0
        %v5371 = vmax.f32 %v5243, 0.0
        %v5372 = vmax.f32 %v5244, 0.0
        %v5373 = vmax.f32 %v5245, 0.0
        %v5374 = vmax.f32 %v5246, 0.0
        %v5375 = vmax.f32 %v5247, 0.0
        %v5376 = vmax.f32 %v5248, 0.0
        %v5377 = vmax.f32 %v5249, 0.0
        %v5378 = vmax.f32 %v5250, 0.0
        %v5379 = vmax.f32 %v5251, 0.0
        %v5380 = vmax.f32 %v5252, 0.0
        %v5381 = vmax.f32 %v5253, 0.0
        %v5382 = vmax.f32 %v5254, 0.0
        %v5383 = vmax.f32 %v5255, 0.0
        %v5384 = vmax.f32 %v5256, 0.0
        %v5385 = vmax.f32 %v5257, 0.0
        %v5386 = vmax.f32 %v5258, 0.0
        %v5387 = vmax.f32 %v5259, 0.0
        %v5388 = vmax.f32 %v5260, 0.0
        %v5389 = vmax.f32 %v5261, 0.0
        %v5390 = vmax.f32 %v5262, 0.0
        %v5391 = vmax.f32 %v5263, 0.0
        %v5392 = vmax.f32 %v5264, 0.0
        %v5393 = vmax.f32 %v5265, 0.0
        %v5394 = vmax.f32 %v5266, 0.0
        %v5395 = vmax.f32 %v5267, 0.0
        %v5396 = vmax.f32 %v5268, 0.0
        %v5397 = vmax.f32 %v5269, 0.0
        %v5398 = vmax.f32 %v5270, 0.0
        %v5399 = vmax.f32 %v5271, 0.0
        %v5400 = vmax.f32 %v5272, 0.0
        %v5401 = vmax.f32 %v5273, 0.0
        %v5402 = vmax.f32 %v5274, 0.0
        %v5403 = vmax.f32 %v5275, 0.0
        %v5404 = vmax.f32 %v5276, 0.0
        %v5405 = vmax.f32 %v5277, 0.0
        %v5406 = vmax.f32 %v5278, 0.0
        %v5407 = vmax.f32 %v5279, 0.0
        %v5408 = vmax.f32 %v5280, 0.0
        %v5409 = vmax.f32 %v5281, 0.0
        %v5410 = vmax.f32 %v5282, 0.0
        %v5411 = vmax.f32 %v5283, 0.0
        %v5412 = vmax.f32 %v5284, 0.0
        %v5413 = vmax.f32 %v5285, 0.0
        %v5414 = vmax.f32 %v5286, 0.0
        %v5415 = vmax.f32 %v5287, 0.0
        %v5416 = vmax.f32 %v5288, 0.0
        %v5417 = vmax.f32 %v5289, 0.0
        %v5418 = vmax.f32 %v5290, 0.0
        %v5419 = vmax.f32 %v5291, 0.0
        %v5420 = vmax.f32 %v5292, 0.0
        %v5421 = vmax.f32 %v5293, 0.0
        %v5422 = vmax.f32 %v5294, 0.0
        %v5423 = vmax.f32 %v5295, 0.0
        %v5424 = vmax.f32 %v5296, 0.0
        %v5425 = vmax.f32 %v5297, 0.0
        %v5426 = vmax.f32 %v5298, 0.0
        %v5427 = vmax.f32 %v5299, 0.0
        %v5428 = vmax.f32 %v5300, 0.0
        %v5429 = vmax.f32 %v5301, 0.0
        %v5430 = vmax.f32 %v5302, 0.0
        %v5431 = vmax.f32 %v5303, 0.0
        %v5432 = vmax.f32 %v5304, 0.0
        %v5433 = vmax.f32 %v5305, 0.0
        %v5434 = vmax.f32 %v5306, 0.0
        %v5435 = vmax.f32 %v5307, 0.0
        %v5436 = vmax.f32 %v5308, 0.0
        %v5437 = vmax.f32 %v5309, 0.0
        %v5438 = vmax.f32 %v5310, 0.0
        %v5439 = vmax.f32 %v5311, 0.0
        %v5440 = vmax.f32 %v5312, 0.0
        %v5441 = vmax.f32 %v5313, 0.0
        %v5442 = vmax.f32 %v5314, 0.0
        %v5443 = vmax.f32 %v5315, 0.0
        %v5444 = vmax.f32 %v5316, 0.0
        %v5445 = vmax.f32 %v5317, 0.0
        %v5446 = vmax.f32 %v5318, 0.0
        %v5447 = vmax.f32 %v5319, 0.0
        %v5448 = vmax.f32 %v5320, 0.0
        %v5449 = vmax.f32 %v5321, 0.0
        %v5450 = vmax.f32 %v5322, 0.0
        %v5451 = vmax.f32 %v5323, 0.0
        %v5452 = vmax.f32 %v5324, 0.0
        %v5453 = vmax.f32 %v5325, 0.0
        %v5454 = vmax.f32 %v5326, 0.0
        %v5455 = vmax.f32 %v5327, 0.0
        %v5456 = vmax.f32 %v5328, 0.0
        %v5457 = vmax.f32 %v5329, 0.0
        %v5458 = vmax.f32 %v5330, 0.0
        %v5459 = vmax.f32 %v5331, 0.0
        %v5460 = vmax.f32 %v5332, 0.0
        %v5461 = vmax.f32 %v5333, 0.0
        %v5462 = vmax.f32 %v5334, 0.0
        %v5463 = vmax.f32 %v5335, 0.0
        %v5464 = vmax.f32 %v5336, 0.0
        %v5465 = vmax.f32 %v5337, 0.0
        %v5466 = vmax.f32 %v5338, 0.0
        %v5467 = vmax.f32 %v5339, 0.0
        %v5468 = vmax.f32 %v5340, 0.0
        %v5469 = vmax.f32 %v5341, 0.0
        %v5470 = vmax.f32 %v5342, 0.0
        %v5471 = vmax.f32 %v5343, 0.0
        %v5472 = vmax.f32 %v5344, 0.0
        %v5473 = vmax.f32 %v5345, 0.0
        %v5474 = vmax.f32 %v5346, 0.0
        %v5475 = vmax.f32 %v5347, 0.0
        %v5476 = vmax.f32 %v5348, 0.0
        %v5477 = vld [vmem:[%s7] sm:$0xff]
        %v5478 = vld [vmem:[%s7 + $0x8] sm:$0xff]
        %v5479 = vld [vmem:[%s7 + $0x10] sm:$0xff]
        %v5480 = vld [vmem:[%s7 + $0x18] sm:$0xff]
        %v5481 = vld [vmem:[%s7 + $0x20] sm:$0xff]
        %v5482 = vld [vmem:[%s7 + $0x28] sm:$0xff]
        %v5483 = vld [vmem:[%s7 + $0x30] sm:$0xff]
        %v5484 = vld [vmem:[%s7 + $0x38] sm:$0xff]
        %v5485 = vld [vmem:[%s7 + $0x40] sm:$0xff]
        %v5486 = vld [vmem:[%s7 + $0x48] sm:$0xff]
        %v5487 = vld [vmem:[%s7 + $0x50] sm:$0xff]
        %v5488 = vld [vmem:[%s7 + $0x58] sm:$0xff]
        %v5489 = vld [vmem:[%s7 + $0x60] sm:$0xff]
        %v5490 = vld [vmem:[%s7 + $0x68] sm:$0xff]
        %v5491 = vld [vmem:[%s7 + $0x70] sm:$0xff]
        %v5492 = vld [vmem:[%s7 + $0x78] sm:$0xff]
        %5493 = vmatprep.subr.mxu0 0.0
        %5494 = vmatpush1.msra.mxu0 %v5477
        %5495 = vmatprep.subr.mxu0 0.0
        %5496 = vmatpush1.msra.mxu0 %v5478
        %5497 = vmatprep.subr.mxu0 0.0
        %5498 = vmatpush1.msra.mxu0 %v5479
        %5499 = vmatprep.subr.mxu0 0.0
        %5500 = vmatpush1.msra.mxu0 %v5480
        %5501 = vmatprep.subr.mxu0 0.0
        %5502 = vmatpush1.msra.mxu0 %v5481
        %5503 = vmatprep.subr.mxu0 0.0
        %5504 = vmatpush1.msra.mxu0 %v5482
        %5505 = vmatprep.subr.mxu0 0.0
        %5506 = vmatpush1.msra.mxu0 %v5483
        %5507 = vmatprep.subr.mxu0 0.0
        %5508 = vmatpush1.msra.mxu0 %v5484
        %5509 = vmatprep.subr.mxu0 0.0
        %5510 = vmatpush1.msra.mxu0 %v5485
        %5511 = vmatprep.subr.mxu0 0.0
        %5512 = vmatpush1.msra.mxu0 %v5486
        %5513 = vmatprep.subr.mxu0 0.0
        %5514 = vmatpush1.msra.mxu0 %v5487
        %5515 = vmatprep.subr.mxu0 0.0
        %5516 = vmatpush1.msra.mxu0 %v5488
        %5517 = vmatprep.subr.mxu0 0.0
        %5518 = vmatpush1.msra.mxu0 %v5489
        %5519 = vmatprep.subr.mxu0 0.0
        %5520 = vmatpush1.msra.mxu0 %v5490
        %5521 = vmatprep.subr.mxu0 0.0
        %5522 = vmatpush1.msra.mxu0 %v5491
        %5523 = vmatprep.subr.mxu0 0.0
        %5524 = vmatpush1.msra.mxu0 %v5492
        %5525 = vmatprep.subr.mxu0 0.0
        %5526 = vmatpush1.msra.mxu0 0.0
        %5527 = vmatprep.subr.mxu0 0.0
        %5528 = vmatpush1.msra.mxu0 0.0
        %5529 = vmatprep.subr.mxu0 0.0
        %5530 = vmatpush1.msra.mxu0 0.0
        %5531 = vmatprep.subr.mxu0 0.0
        %5532 = vmatpush1.msra.mxu0 0.0
        %5533 = vmatprep.subr.mxu0 0.0
        %5534 = vmatpush1.msra.mxu0 0.0
        %5535 = vmatprep.subr.mxu0 0.0
        %5536 = vmatpush1.msra.mxu0 0.0
        %5537 = vmatprep.subr.mxu0 0.0
        %5538 = vmatpush1.msra.mxu0 0.0
        %5539 = vmatprep.subr.mxu0 0.0
        %5540 = vmatpush1.msra.mxu0 0.0
        %5541 = vmatprep.subr.mxu0 0.0
        %5542 = vmatpush1.msra.mxu0 0.0
        %5543 = vmatprep.subr.mxu0 0.0
        %5544 = vmatpush1.msra.mxu0 0.0
        %5545 = vmatprep.subr.mxu0 0.0
        %5546 = vmatpush1.msra.mxu0 0.0
        %5547 = vmatprep.subr.mxu0 0.0
        %5548 = vmatpush1.msra.mxu0 0.0
        %5549 = vmatprep.subr.mxu0 0.0
        %5550 = vmatpush1.msra.mxu0 0.0
        %5551 = vmatprep.subr.mxu0 0.0
        %5552 = vmatpush1.msra.mxu0 0.0
        %5553 = vmatprep.subr.mxu0 0.0
        %5554 = vmatpush1.msra.mxu0 0.0
        %5555 = vmatprep.subr.mxu0 0.0
        %5556 = vmatpush1.msra.mxu0 0.0
        %5557 = vmatprep.mubr.f32.mxu0 0.0
        %5558 = vmatmul.mubr.f32.gmra.mrb[0].mxu0 %v5349
        %v5559 = vpop.f32.mrb[0].mxu0
        %v5560 = vadd.f32 0.0, %v5559
        %v5561 = vpop.f32.mrb[0].mxu0
        %5562 = vmatprep.mubr.f32.mxu0 0.0
        %5563 = vmatmul.mubr.f32.gmra.mrb[0].mxu0 %v5350
        %v5564 = vpop.f32.mrb[0].mxu0
        %v5565 = vadd.f32 0.0, %v5564
        %v5566 = vpop.f32.mrb[0].mxu0
        %5567 = vmatprep.mubr.f32.mxu0 0.0
        %5568 = vmatmul.mubr.f32.gmra.mrb[0].mxu0 %v5351
        %v5569 = vpop.f32.mrb[0].mxu0
        %v5570 = vadd.f32 0.0, %v5569
        %v5571 = vpop.f32.mrb[0].mxu0
        %5572 = vmatprep.mubr.f32.mxu0 0.0
        %5573 = vmatmul.mubr.f32.gmra.mrb[0].mxu0 %v5352
        %v5574 = vpop.f32.mrb[0].mxu0
        %v5575 = vadd.f32 0.0, %v5574
        %v5576 = vpop.f32.mrb[0].mxu0
        %5577 = vmatprep.mubr.f32.mxu0 0.0
        %5578 = vmatmul.mubr.f32.gmra.mrb[0].mxu0 %v5353
        %v5579 = vpop.f32.mrb[0].mxu0
        %v5580 = vadd.f32 0.0, %v5579
        %v5581 = vpop.f32.mrb[0].mxu0
        %5582 = vmatprep.mubr.f32.mxu0 0.0
        %5583 = vmatmul.mubr.f32.gmra.mrb[0].mxu0 %v5354
        %v5584 = vpop.f32.mrb[0].mxu0
        %v5585 = vadd.f32 0.0, %v5584
        %v5586 = vpop.f32.mrb[0].mxu0
        %5587 = vmatprep.mubr.f32.mxu0 0.0
        %5588 = vmatmul.mubr.f32.gmra.mrb[0].mxu0 %v5355
        %v5589 = vpop.f32.mrb[0].mxu0
        %v5590 = vadd.f32 0.0, %v5589
        %v5591 = vpop.f32.mrb[0].mxu0
        %5592 = vmatprep.mubr.f32.mxu0 0.0
        %5593 = vmatmul.mubr.f32.gmra.mrb[0].mxu0 %v5356
        %v5594 = vpop.f32.mrb[0].mxu0
        %v5595 = vadd.f32 0.0, %v5594
        %v5596 = vpop.f32.mrb[0].mxu0
        %5597 = vmatprep.mubr.f32.mxu0 0.0
        %5598 = vmatmul.mubr.f32.gmra.mrb[0].mxu0 %v5357
        %v5599 = vpop.f32.mrb[0].mxu0
        %v5600 = vadd.f32 0.0, %v5599
        %v5601 = vpop.f32.mrb[0].mxu0
        %5602 = vmatprep.mubr.f32.mxu0 0.0
        %5603 = vmatmul.mubr.f32.gmra.mrb[0].mxu0 %v5358
        %v5604 = vpop.f32.mrb[0].mxu0
        %v5605 = vadd.f32 0.0, %v5604
        %v5606 = vpop.f32.mrb[0].mxu0
        %5607 = vmatprep.mubr.f32.mxu0 0.0
        %5608 = vmatmul.mubr.f32.gmra.mrb[0].mxu0 %v5359
        %v5609 = vpop.f32.mrb[0].mxu0
        %v5610 = vadd.f32 0.0, %v5609
        %v5611 = vpop.f32.mrb[0].mxu0
        %5612 = vmatprep.mubr.f32.mxu0 0.0
        %5613 = vmatmul.mubr.f32.gmra.mrb[0].mxu0 %v5360
        %v5614 = vpop.f32.mrb[0].mxu0
        %v5615 = vadd.f32 0.0, %v5614
        %v5616 = vpop.f32.mrb[0].mxu0
        %5617 = vmatprep.mubr.f32.mxu0 0.0
        %5618 = vmatmul.mubr.f32.gmra.mrb[0].mxu0 %v5361
        %v5619 = vpop.f32.mrb[0].mxu0
        %v5620 = vadd.f32 0.0, %v5619
        %v5621 = vpop.f32.mrb[0].mxu0
        %5622 = vmatprep.mubr.f32.mxu0 0.0
        %5623 = vmatmul.mubr.f32.gmra.mrb[0].mxu0 %v5362
        %v5624 = vpop.f32.mrb[0].mxu0
        %v5625 = vadd.f32 0.0, %v5624
        %v5626 = vpop.f32.mrb[0].mxu0
        %5627 = vmatprep.mubr.f32.mxu0 0.0
        %5628 = vmatmul.mubr.f32.gmra.mrb[0].mxu0 %v5363
        %v5629 = vpop.f32.mrb[0].mxu0
        %v5630 = vadd.f32 0.0, %v5629
        %v5631 = vpop.f32.mrb[0].mxu0
        %5632 = vmatprep.mubr.f32.mxu0 0.0
        %5633 = vmatmul.mubr.f32.gmra.mrb[0].mxu0 %v5364
        %v5634 = vpop.f32.mrb[0].mxu0
        %v5635 = vadd.f32 0.0, %v5634
        %v5636 = vpop.f32.mrb[0].mxu0
        %5637 = vmatprep.mubr.f32.mxu0 0.0
        %5638 = vmatmul.mubr.f32.gmra.mrb[0].mxu0 %v5365
        %v5639 = vpop.f32.mrb[0].mxu0
        %v5640 = vadd.f32 0.0, %v5639
        %v5641 = vpop.f32.mrb[0].mxu0
        %5642 = vmatprep.mubr.f32.mxu0 0.0
        %5643 = vmatmul.mubr.f32.gmra.mrb[0].mxu0 %v5366
        %v5644 = vpop.f32.mrb[0].mxu0
        %v5645 = vadd.f32 0.0, %v5644
        %v5646 = vpop.f32.mrb[0].mxu0
        %5647 = vmatprep.mubr.f32.mxu0 0.0
        %5648 = vmatmul.mubr.f32.gmra.mrb[0].mxu0 %v5367
        %v5649 = vpop.f32.mrb[0].mxu0
        %v5650 = vadd.f32 0.0, %v5649
        %v5651 = vpop.f32.mrb[0].mxu0
        %5652 = vmatprep.mubr.f32.mxu0 0.0
        %5653 = vmatmul.mubr.f32.gmra.mrb[0].mxu0 %v5368
        %v5654 = vpop.f32.mrb[0].mxu0
        %v5655 = vadd.f32 0.0, %v5654
        %v5656 = vpop.f32.mrb[0].mxu0
        %5657 = vmatprep.mubr.f32.mxu0 0.0
        %5658 = vmatmul.mubr.f32.gmra.mrb[0].mxu0 %v5369
        %v5659 = vpop.f32.mrb[0].mxu0
        %v5660 = vadd.f32 0.0, %v5659
        %v5661 = vpop.f32.mrb[0].mxu0
        %5662 = vmatprep.mubr.f32.mxu0 0.0
        %5663 = vmatmul.mubr.f32.gmra.mrb[0].mxu0 %v5370
        %v5664 = vpop.f32.mrb[0].mxu0
        %v5665 = vadd.f32 0.0, %v5664
        %v5666 = vpop.f32.mrb[0].mxu0
        %5667 = vmatprep.mubr.f32.mxu0 0.0
        %5668 = vmatmul.mubr.f32.gmra.mrb[0].mxu0 %v5371
        %v5669 = vpop.f32.mrb[0].mxu0
        %v5670 = vadd.f32 0.0, %v5669
        %v5671 = vpop.f32.mrb[0].mxu0
        %5672 = vmatprep.mubr.f32.mxu0 0.0
        %5673 = vmatmul.mubr.f32.gmra.mrb[0].mxu0 %v5372
        %v5674 = vpop.f32.mrb[0].mxu0
        %v5675 = vadd.f32 0.0, %v5674
        %v5676 = vpop.f32.mrb[0].mxu0
        %5677 = vmatprep.mubr.f32.mxu0 0.0
        %5678 = vmatmul.mubr.f32.gmra.mrb[0].mxu0 %v5373
        %v5679 = vpop.f32.mrb[0].mxu0
        %v5680 = vadd.f32 0.0, %v5679
        %v5681 = vpop.f32.mrb[0].mxu0
        %5682 = vmatprep.mubr.f32.mxu0 0.0
        %5683 = vmatmul.mubr.f32.gmra.mrb[0].mxu0 %v5374
        %v5684 = vpop.f32.mrb[0].mxu0
        %v5685 = vadd.f32 0.0, %v5684
        %v5686 = vpop.f32.mrb[0].mxu0
        %5687 = vmatprep.mubr.f32.mxu0 0.0
        %5688 = vmatmul.mubr.f32.gmra.mrb[0].mxu0 %v5375
        %v5689 = vpop.f32.mrb[0].mxu0
        %v5690 = vadd.f32 0.0, %v5689
        %v5691 = vpop.f32.mrb[0].mxu0
        %5692 = vmatprep.mubr.f32.mxu0 0.0
        %5693 = vmatmul.mubr.f32.gmra.mrb[0].mxu0 %v5376
        %v5694 = vpop.f32.mrb[0].mxu0
        %v5695 = vadd.f32 0.0, %v5694
        %v5696 = vpop.f32.mrb[0].mxu0
        %5697 = vmatprep.mubr.f32.mxu0 0.0
        %5698 = vmatmul.mubr.f32.gmra.mrb[0].mxu0 %v5377
        %v5699 = vpop.f32.mrb[0].mxu0
        %v5700 = vadd.f32 0.0, %v5699
        %v5701 = vpop.f32.mrb[0].mxu0
        %5702 = vmatprep.mubr.f32.mxu0 0.0
        %5703 = vmatmul.mubr.f32.gmra.mrb[0].mxu0 %v5378
        %v5704 = vpop.f32.mrb[0].mxu0
        %v5705 = vadd.f32 0.0, %v5704
        %v5706 = vpop.f32.mrb[0].mxu0
        %5707 = vmatprep.mubr.f32.mxu0 0.0
        %5708 = vmatmul.mubr.f32.gmra.mrb[0].mxu0 %v5379
        %v5709 = vpop.f32.mrb[0].mxu0
        %v5710 = vadd.f32 0.0, %v5709
        %v5711 = vpop.f32.mrb[0].mxu0
        %5712 = vmatprep.mubr.f32.mxu0 0.0
        %5713 = vmatmul.mubr.f32.gmra.mrb[0].mxu0 %v5380
        %v5714 = vpop.f32.mrb[0].mxu0
        %v5715 = vadd.f32 0.0, %v5714
        %v5716 = vpop.f32.mrb[0].mxu0
        %5717 = vmatprep.mubr.f32.mxu0 0.0
        %5718 = vmatmul.mubr.f32.gmra.mrb[0].mxu0 %v5381
        %v5719 = vpop.f32.mrb[0].mxu0
        %v5720 = vadd.f32 0.0, %v5719
        %v5721 = vpop.f32.mrb[0].mxu0
        %5722 = vmatprep.mubr.f32.mxu0 0.0
        %5723 = vmatmul.mubr.f32.gmra.mrb[0].mxu0 %v5382
        %v5724 = vpop.f32.mrb[0].mxu0
        %v5725 = vadd.f32 0.0, %v5724
        %v5726 = vpop.f32.mrb[0].mxu0
        %5727 = vmatprep.mubr.f32.mxu0 0.0
        %5728 = vmatmul.mubr.f32.gmra.mrb[0].mxu0 %v5383
        %v5729 = vpop.f32.mrb[0].mxu0
        %v5730 = vadd.f32 0.0, %v5729
        %v5731 = vpop.f32.mrb[0].mxu0
        %5732 = vmatprep.mubr.f32.mxu0 0.0
        %5733 = vmatmul.mubr.f32.gmra.mrb[0].mxu0 %v5384
        %v5734 = vpop.f32.mrb[0].mxu0
        %v5735 = vadd.f32 0.0, %v5734
        %v5736 = vpop.f32.mrb[0].mxu0
        %5737 = vmatprep.mubr.f32.mxu0 0.0
        %5738 = vmatmul.mubr.f32.gmra.mrb[0].mxu0 %v5385
        %v5739 = vpop.f32.mrb[0].mxu0
        %v5740 = vadd.f32 0.0, %v5739
        %v5741 = vpop.f32.mrb[0].mxu0
        %5742 = vmatprep.mubr.f32.mxu0 0.0
        %5743 = vmatmul.mubr.f32.gmra.mrb[0].mxu0 %v5386
        %v5744 = vpop.f32.mrb[0].mxu0
        %v5745 = vadd.f32 0.0, %v5744
        %v5746 = vpop.f32.mrb[0].mxu0
        %5747 = vmatprep.mubr.f32.mxu0 0.0
        %5748 = vmatmul.mubr.f32.gmra.mrb[0].mxu0 %v5387
        %v5749 = vpop.f32.mrb[0].mxu0
        %v5750 = vadd.f32 0.0, %v5749
        %v5751 = vpop.f32.mrb[0].mxu0
        %5752 = vmatprep.mubr.f32.mxu0 0.0
        %5753 = vmatmul.mubr.f32.gmra.mrb[0].mxu0 %v5388
        %v5754 = vpop.f32.mrb[0].mxu0
        %v5755 = vadd.f32 0.0, %v5754
        %v5756 = vpop.f32.mrb[0].mxu0
        %5757 = vmatprep.mubr.f32.mxu0 0.0
        %5758 = vmatmul.mubr.f32.gmra.mrb[0].mxu0 %v5389
        %v5759 = vpop.f32.mrb[0].mxu0
        %v5760 = vadd.f32 0.0, %v5759
        %v5761 = vpop.f32.mrb[0].mxu0
        %5762 = vmatprep.mubr.f32.mxu0 0.0
        %5763 = vmatmul.mubr.f32.gmra.mrb[0].mxu0 %v5390
        %v5764 = vpop.f32.mrb[0].mxu0
        %v5765 = vadd.f32 0.0, %v5764
        %v5766 = vpop.f32.mrb[0].mxu0
        %5767 = vmatprep.mubr.f32.mxu0 0.0
        %5768 = vmatmul.mubr.f32.gmra.mrb[0].mxu0 %v5391
        %v5769 = vpop.f32.mrb[0].mxu0
        %v5770 = vadd.f32 0.0, %v5769
        %v5771 = vpop.f32.mrb[0].mxu0
        %5772 = vmatprep.mubr.f32.mxu0 0.0
        %5773 = vmatmul.mubr.f32.gmra.mrb[0].mxu0 %v5392
        %v5774 = vpop.f32.mrb[0].mxu0
        %v5775 = vadd.f32 0.0, %v5774
        %v5776 = vpop.f32.mrb[0].mxu0
        %5777 = vmatprep.mubr.f32.mxu0 0.0
        %5778 = vmatmul.mubr.f32.gmra.mrb[0].mxu0 %v5393
        %v5779 = vpop.f32.mrb[0].mxu0
        %v5780 = vadd.f32 0.0, %v5779
        %v5781 = vpop.f32.mrb[0].mxu0
        %5782 = vmatprep.mubr.f32.mxu0 0.0
        %5783 = vmatmul.mubr.f32.gmra.mrb[0].mxu0 %v5394
        %v5784 = vpop.f32.mrb[0].mxu0
        %v5785 = vadd.f32 0.0, %v5784
        %v5786 = vpop.f32.mrb[0].mxu0
        %5787 = vmatprep.mubr.f32.mxu0 0.0
        %5788 = vmatmul.mubr.f32.gmra.mrb[0].mxu0 %v5395
        %v5789 = vpop.f32.mrb[0].mxu0
        %v5790 = vadd.f32 0.0, %v5789
        %v5791 = vpop.f32.mrb[0].mxu0
        %5792 = vmatprep.mubr.f32.mxu0 0.0
        %5793 = vmatmul.mubr.f32.gmra.mrb[0].mxu0 %v5396
        %v5794 = vpop.f32.mrb[0].mxu0
        %v5795 = vadd.f32 0.0, %v5794
        %v5796 = vpop.f32.mrb[0].mxu0
        %5797 = vmatprep.mubr.f32.mxu0 0.0
        %5798 = vmatmul.mubr.f32.gmra.mrb[0].mxu0 %v5397
        %v5799 = vpop.f32.mrb[0].mxu0
        %v5800 = vadd.f32 0.0, %v5799
        %v5801 = vpop.f32.mrb[0].mxu0
        %5802 = vmatprep.mubr.f32.mxu0 0.0
        %5803 = vmatmul.mubr.f32.gmra.mrb[0].mxu0 %v5398
        %v5804 = vpop.f32.mrb[0].mxu0
        %v5805 = vadd.f32 0.0, %v5804
        %v5806 = vpop.f32.mrb[0].mxu0
        %5807 = vmatprep.mubr.f32.mxu0 0.0
        %5808 = vmatmul.mubr.f32.gmra.mrb[0].mxu0 %v5399
        %v5809 = vpop.f32.mrb[0].mxu0
        %v5810 = vadd.f32 0.0, %v5809
        %v5811 = vpop.f32.mrb[0].mxu0
        %5812 = vmatprep.mubr.f32.mxu0 0.0
        %5813 = vmatmul.mubr.f32.gmra.mrb[0].mxu0 %v5400
        %v5814 = vpop.f32.mrb[0].mxu0
        %v5815 = vadd.f32 0.0, %v5814
        %v5816 = vpop.f32.mrb[0].mxu0
        %5817 = vmatprep.mubr.f32.mxu0 0.0
        %5818 = vmatmul.mubr.f32.gmra.mrb[0].mxu0 %v5401
        %v5819 = vpop.f32.mrb[0].mxu0
        %v5820 = vadd.f32 0.0, %v5819
        %v5821 = vpop.f32.mrb[0].mxu0
        %5822 = vmatprep.mubr.f32.mxu0 0.0
        %5823 = vmatmul.mubr.f32.gmra.mrb[0].mxu0 %v5402
        %v5824 = vpop.f32.mrb[0].mxu0
        %v5825 = vadd.f32 0.0, %v5824
        %v5826 = vpop.f32.mrb[0].mxu0
        %5827 = vmatprep.mubr.f32.mxu0 0.0
        %5828 = vmatmul.mubr.f32.gmra.mrb[0].mxu0 %v5403
        %v5829 = vpop.f32.mrb[0].mxu0
        %v5830 = vadd.f32 0.0, %v5829
        %v5831 = vpop.f32.mrb[0].mxu0
        %5832 = vmatprep.mubr.f32.mxu0 0.0
        %5833 = vmatmul.mubr.f32.gmra.mrb[0].mxu0 %v5404
        %v5834 = vpop.f32.mrb[0].mxu0
        %v5835 = vadd.f32 0.0, %v5834
        %v5836 = vpop.f32.mrb[0].mxu0
        %5837 = vmatprep.mubr.f32.mxu0 0.0
        %5838 = vmatmul.mubr.f32.gmra.mrb[0].mxu0 %v5405
        %v5839 = vpop.f32.mrb[0].mxu0
        %v5840 = vadd.f32 0.0, %v5839
        %v5841 = vpop.f32.mrb[0].mxu0
        %5842 = vmatprep.mubr.f32.mxu0 0.0
        %5843 = vmatmul.mubr.f32.gmra.mrb[0].mxu0 %v5406
        %v5844 = vpop.f32.mrb[0].mxu0
        %v5845 = vadd.f32 0.0, %v5844
        %v5846 = vpop.f32.mrb[0].mxu0
        %5847 = vmatprep.mubr.f32.mxu0 0.0
        %5848 = vmatmul.mubr.f32.gmra.mrb[0].mxu0 %v5407
        %v5849 = vpop.f32.mrb[0].mxu0
        %v5850 = vadd.f32 0.0, %v5849
        %v5851 = vpop.f32.mrb[0].mxu0
        %5852 = vmatprep.mubr.f32.mxu0 0.0
        %5853 = vmatmul.mubr.f32.gmra.mrb[0].mxu0 %v5408
        %v5854 = vpop.f32.mrb[0].mxu0
        %v5855 = vadd.f32 0.0, %v5854
        %v5856 = vpop.f32.mrb[0].mxu0
        %5857 = vmatprep.mubr.f32.mxu0 0.0
        %5858 = vmatmul.mubr.f32.gmra.mrb[0].mxu0 %v5409
        %v5859 = vpop.f32.mrb[0].mxu0
        %v5860 = vadd.f32 0.0, %v5859
        %v5861 = vpop.f32.mrb[0].mxu0
        %5862 = vmatprep.mubr.f32.mxu0 0.0
        %5863 = vmatmul.mubr.f32.gmra.mrb[0].mxu0 %v5410
        %v5864 = vpop.f32.mrb[0].mxu0
        %v5865 = vadd.f32 0.0, %v5864
        %v5866 = vpop.f32.mrb[0].mxu0
        %5867 = vmatprep.mubr.f32.mxu0 0.0
        %5868 = vmatmul.mubr.f32.gmra.mrb[0].mxu0 %v5411
        %v5869 = vpop.f32.mrb[0].mxu0
        %v5870 = vadd.f32 0.0, %v5869
        %v5871 = vpop.f32.mrb[0].mxu0
        %5872 = vmatprep.mubr.f32.mxu0 0.0
        %5873 = vmatmul.mubr.f32.gmra.mrb[0].mxu0 %v5412
        %v5874 = vpop.f32.mrb[0].mxu0
        %v5875 = vadd.f32 0.0, %v5874
        %v5876 = vpop.f32.mrb[0].mxu0
        %5877 = vmatprep.mubr.f32.mxu0 0.0
        %5878 = vmatmul.mubr.f32.gmra.mrb[0].mxu0 %v5413
        %v5879 = vpop.f32.mrb[0].mxu0
        %v5880 = vadd.f32 0.0, %v5879
        %v5881 = vpop.f32.mrb[0].mxu0
        %5882 = vmatprep.mubr.f32.mxu0 0.0
        %5883 = vmatmul.mubr.f32.gmra.mrb[0].mxu0 %v5414
        %v5884 = vpop.f32.mrb[0].mxu0
        %v5885 = vadd.f32 0.0, %v5884
        %v5886 = vpop.f32.mrb[0].mxu0
        %5887 = vmatprep.mubr.f32.mxu0 0.0
        %5888 = vmatmul.mubr.f32.gmra.mrb[0].mxu0 %v5415
        %v5889 = vpop.f32.mrb[0].mxu0
        %v5890 = vadd.f32 0.0, %v5889
        %v5891 = vpop.f32.mrb[0].mxu0
        %5892 = vmatprep.mubr.f32.mxu0 0.0
        %5893 = vmatmul.mubr.f32.gmra.mrb[0].mxu0 %v5416
        %v5894 = vpop.f32.mrb[0].mxu0
        %v5895 = vadd.f32 0.0, %v5894
        %v5896 = vpop.f32.mrb[0].mxu0
        %5897 = vmatprep.mubr.f32.mxu0 0.0
        %5898 = vmatmul.mubr.f32.gmra.mrb[0].mxu0 %v5417
        %v5899 = vpop.f32.mrb[0].mxu0
        %v5900 = vadd.f32 0.0, %v5899
        %v5901 = vpop.f32.mrb[0].mxu0
        %5902 = vmatprep.mubr.f32.mxu0 0.0
        %5903 = vmatmul.mubr.f32.gmra.mrb[0].mxu0 %v5418
        %v5904 = vpop.f32.mrb[0].mxu0
        %v5905 = vadd.f32 0.0, %v5904
        %v5906 = vpop.f32.mrb[0].mxu0
        %5907 = vmatprep.mubr.f32.mxu0 0.0
        %5908 = vmatmul.mubr.f32.gmra.mrb[0].mxu0 %v5419
        %v5909 = vpop.f32.mrb[0].mxu0
        %v5910 = vadd.f32 0.0, %v5909
        %v5911 = vpop.f32.mrb[0].mxu0
        %5912 = vmatprep.mubr.f32.mxu0 0.0
        %5913 = vmatmul.mubr.f32.gmra.mrb[0].mxu0 %v5420
        %v5914 = vpop.f32.mrb[0].mxu0
        %v5915 = vadd.f32 0.0, %v5914
        %v5916 = vpop.f32.mrb[0].mxu0
        %5917 = vmatprep.mubr.f32.mxu0 0.0
        %5918 = vmatmul.mubr.f32.gmra.mrb[0].mxu0 %v5421
        %v5919 = vpop.f32.mrb[0].mxu0
        %v5920 = vadd.f32 0.0, %v5919
        %v5921 = vpop.f32.mrb[0].mxu0
        %5922 = vmatprep.mubr.f32.mxu0 0.0
        %5923 = vmatmul.mubr.f32.gmra.mrb[0].mxu0 %v5422
        %v5924 = vpop.f32.mrb[0].mxu0
        %v5925 = vadd.f32 0.0, %v5924
        %v5926 = vpop.f32.mrb[0].mxu0
        %5927 = vmatprep.mubr.f32.mxu0 0.0
        %5928 = vmatmul.mubr.f32.gmra.mrb[0].mxu0 %v5423
        %v5929 = vpop.f32.mrb[0].mxu0
        %v5930 = vadd.f32 0.0, %v5929
        %v5931 = vpop.f32.mrb[0].mxu0
        %5932 = vmatprep.mubr.f32.mxu0 0.0
        %5933 = vmatmul.mubr.f32.gmra.mrb[0].mxu0 %v5424
        %v5934 = vpop.f32.mrb[0].mxu0
        %v5935 = vadd.f32 0.0, %v5934
        %v5936 = vpop.f32.mrb[0].mxu0
        %5937 = vmatprep.mubr.f32.mxu0 0.0
        %5938 = vmatmul.mubr.f32.gmra.mrb[0].mxu0 %v5425
        %v5939 = vpop.f32.mrb[0].mxu0
        %v5940 = vadd.f32 0.0, %v5939
        %v5941 = vpop.f32.mrb[0].mxu0
        %5942 = vmatprep.mubr.f32.mxu0 0.0
        %5943 = vmatmul.mubr.f32.gmra.mrb[0].mxu0 %v5426
        %v5944 = vpop.f32.mrb[0].mxu0
        %v5945 = vadd.f32 0.0, %v5944
        %v5946 = vpop.f32.mrb[0].mxu0
        %5947 = vmatprep.mubr.f32.mxu0 0.0
        %5948 = vmatmul.mubr.f32.gmra.mrb[0].mxu0 %v5427
        %v5949 = vpop.f32.mrb[0].mxu0
        %v5950 = vadd.f32 0.0, %v5949
        %v5951 = vpop.f32.mrb[0].mxu0
        %5952 = vmatprep.mubr.f32.mxu0 0.0
        %5953 = vmatmul.mubr.f32.gmra.mrb[0].mxu0 %v5428
        %v5954 = vpop.f32.mrb[0].mxu0
        %v5955 = vadd.f32 0.0, %v5954
        %v5956 = vpop.f32.mrb[0].mxu0
        %5957 = vmatprep.mubr.f32.mxu0 0.0
        %5958 = vmatmul.mubr.f32.gmra.mrb[0].mxu0 %v5429
        %v5959 = vpop.f32.mrb[0].mxu0
        %v5960 = vadd.f32 0.0, %v5959
        %v5961 = vpop.f32.mrb[0].mxu0
        %5962 = vmatprep.mubr.f32.mxu0 0.0
        %5963 = vmatmul.mubr.f32.gmra.mrb[0].mxu0 %v5430
        %v5964 = vpop.f32.mrb[0].mxu0
        %v5965 = vadd.f32 0.0, %v5964
        %v5966 = vpop.f32.mrb[0].mxu0
        %5967 = vmatprep.mubr.f32.mxu0 0.0
        %5968 = vmatmul.mubr.f32.gmra.mrb[0].mxu0 %v5431
        %v5969 = vpop.f32.mrb[0].mxu0
        %v5970 = vadd.f32 0.0, %v5969
        %v5971 = vpop.f32.mrb[0].mxu0
        %5972 = vmatprep.mubr.f32.mxu0 0.0
        %5973 = vmatmul.mubr.f32.gmra.mrb[0].mxu0 %v5432
        %v5974 = vpop.f32.mrb[0].mxu0
        %v5975 = vadd.f32 0.0, %v5974
        %v5976 = vpop.f32.mrb[0].mxu0
        %5977 = vmatprep.mubr.f32.mxu0 0.0
        %5978 = vmatmul.mubr.f32.gmra.mrb[0].mxu0 %v5433
        %v5979 = vpop.f32.mrb[0].mxu0
        %v5980 = vadd.f32 0.0, %v5979
        %v5981 = vpop.f32.mrb[0].mxu0
        %5982 = vmatprep.mubr.f32.mxu0 0.0
        %5983 = vmatmul.mubr.f32.gmra.mrb[0].mxu0 %v5434
        %v5984 = vpop.f32.mrb[0].mxu0
        %v5985 = vadd.f32 0.0, %v5984
        %v5986 = vpop.f32.mrb[0].mxu0
        %5987 = vmatprep.mubr.f32.mxu0 0.0
        %5988 = vmatmul.mubr.f32.gmra.mrb[0].mxu0 %v5435
        %v5989 = vpop.f32.mrb[0].mxu0
        %v5990 = vadd.f32 0.0, %v5989
        %v5991 = vpop.f32.mrb[0].mxu0
        %5992 = vmatprep.mubr.f32.mxu0 0.0
        %5993 = vmatmul.mubr.f32.gmra.mrb[0].mxu0 %v5436
        %v5994 = vpop.f32.mrb[0].mxu0
        %v5995 = vadd.f32 0.0, %v5994
        %v5996 = vpop.f32.mrb[0].mxu0
        %5997 = vmatprep.mubr.f32.mxu0 0.0
        %5998 = vmatmul.mubr.f32.gmra.mrb[0].mxu0 %v5437
        %v5999 = vpop.f32.mrb[0].mxu0
        %v6000 = vadd.f32 0.0, %v5999
        %v6001 = vpop.f32.mrb[0].mxu0
        %6002 = vmatprep.mubr.f32.mxu0 0.0
        %6003 = vmatmul.mubr.f32.gmra.mrb[0].mxu0 %v5438
        %v6004 = vpop.f32.mrb[0].mxu0
        %v6005 = vadd.f32 0.0, %v6004
        %v6006 = vpop.f32.mrb[0].mxu0
        %6007 = vmatprep.mubr.f32.mxu0 0.0
        %6008 = vmatmul.mubr.f32.gmra.mrb[0].mxu0 %v5439
        %v6009 = vpop.f32.mrb[0].mxu0
        %v6010 = vadd.f32 0.0, %v6009
        %v6011 = vpop.f32.mrb[0].mxu0
        %6012 = vmatprep.mubr.f32.mxu0 0.0
        %6013 = vmatmul.mubr.f32.gmra.mrb[0].mxu0 %v5440
        %v6014 = vpop.f32.mrb[0].mxu0
        %v6015 = vadd.f32 0.0, %v6014
        %v6016 = vpop.f32.mrb[0].mxu0
        %6017 = vmatprep.mubr.f32.mxu0 0.0
        %6018 = vmatmul.mubr.f32.gmra.mrb[0].mxu0 %v5441
        %v6019 = vpop.f32.mrb[0].mxu0
        %v6020 = vadd.f32 0.0, %v6019
        %v6021 = vpop.f32.mrb[0].mxu0
        %6022 = vmatprep.mubr.f32.mxu0 0.0
        %6023 = vmatmul.mubr.f32.gmra.mrb[0].mxu0 %v5442
        %v6024 = vpop.f32.mrb[0].mxu0
        %v6025 = vadd.f32 0.0, %v6024
        %v6026 = vpop.f32.mrb[0].mxu0
        %6027 = vmatprep.mubr.f32.mxu0 0.0
        %6028 = vmatmul.mubr.f32.gmra.mrb[0].mxu0 %v5443
        %v6029 = vpop.f32.mrb[0].mxu0
        %v6030 = vadd.f32 0.0, %v6029
        %v6031 = vpop.f32.mrb[0].mxu0
        %6032 = vmatprep.mubr.f32.mxu0 0.0
        %6033 = vmatmul.mubr.f32.gmra.mrb[0].mxu0 %v5444
        %v6034 = vpop.f32.mrb[0].mxu0
        %v6035 = vadd.f32 0.0, %v6034
        %v6036 = vpop.f32.mrb[0].mxu0
        %6037 = vmatprep.mubr.f32.mxu0 0.0
        %6038 = vmatmul.mubr.f32.gmra.mrb[0].mxu0 %v5445
        %v6039 = vpop.f32.mrb[0].mxu0
        %v6040 = vadd.f32 0.0, %v6039
        %v6041 = vpop.f32.mrb[0].mxu0
        %6042 = vmatprep.mubr.f32.mxu0 0.0
        %6043 = vmatmul.mubr.f32.gmra.mrb[0].mxu0 %v5446
        %v6044 = vpop.f32.mrb[0].mxu0
        %v6045 = vadd.f32 0.0, %v6044
        %v6046 = vpop.f32.mrb[0].mxu0
        %6047 = vmatprep.mubr.f32.mxu0 0.0
        %6048 = vmatmul.mubr.f32.gmra.mrb[0].mxu0 %v5447
        %v6049 = vpop.f32.mrb[0].mxu0
        %v6050 = vadd.f32 0.0, %v6049
        %v6051 = vpop.f32.mrb[0].mxu0
        %6052 = vmatprep.mubr.f32.mxu0 0.0
        %6053 = vmatmul.mubr.f32.gmra.mrb[0].mxu0 %v5448
        %v6054 = vpop.f32.mrb[0].mxu0
        %v6055 = vadd.f32 0.0, %v6054
        %v6056 = vpop.f32.mrb[0].mxu0
        %6057 = vmatprep.mubr.f32.mxu0 0.0
        %6058 = vmatmul.mubr.f32.gmra.mrb[0].mxu0 %v5449
        %v6059 = vpop.f32.mrb[0].mxu0
        %v6060 = vadd.f32 0.0, %v6059
        %v6061 = vpop.f32.mrb[0].mxu0
        %6062 = vmatprep.mubr.f32.mxu0 0.0
        %6063 = vmatmul.mubr.f32.gmra.mrb[0].mxu0 %v5450
        %v6064 = vpop.f32.mrb[0].mxu0
        %v6065 = vadd.f32 0.0, %v6064
        %v6066 = vpop.f32.mrb[0].mxu0
        %6067 = vmatprep.mubr.f32.mxu0 0.0
        %6068 = vmatmul.mubr.f32.gmra.mrb[0].mxu0 %v5451
        %v6069 = vpop.f32.mrb[0].mxu0
        %v6070 = vadd.f32 0.0, %v6069
        %v6071 = vpop.f32.mrb[0].mxu0
        %6072 = vmatprep.mubr.f32.mxu0 0.0
        %6073 = vmatmul.mubr.f32.gmra.mrb[0].mxu0 %v5452
        %v6074 = vpop.f32.mrb[0].mxu0
        %v6075 = vadd.f32 0.0, %v6074
        %v6076 = vpop.f32.mrb[0].mxu0
        %6077 = vmatprep.mubr.f32.mxu0 0.0
        %6078 = vmatmul.mubr.f32.gmra.mrb[0].mxu0 %v5453
        %v6079 = vpop.f32.mrb[0].mxu0
        %v6080 = vadd.f32 0.0, %v6079
        %v6081 = vpop.f32.mrb[0].mxu0
        %6082 = vmatprep.mubr.f32.mxu0 0.0
        %6083 = vmatmul.mubr.f32.gmra.mrb[0].mxu0 %v5454
        %v6084 = vpop.f32.mrb[0].mxu0
        %v6085 = vadd.f32 0.0, %v6084
        %v6086 = vpop.f32.mrb[0].mxu0
        %6087 = vmatprep.mubr.f32.mxu0 0.0
        %6088 = vmatmul.mubr.f32.gmra.mrb[0].mxu0 %v5455
        %v6089 = vpop.f32.mrb[0].mxu0
        %v6090 = vadd.f32 0.0, %v6089
        %v6091 = vpop.f32.mrb[0].mxu0
        %6092 = vmatprep.mubr.f32.mxu0 0.0
        %6093 = vmatmul.mubr.f32.gmra.mrb[0].mxu0 %v5456
        %v6094 = vpop.f32.mrb[0].mxu0
        %v6095 = vadd.f32 0.0, %v6094
        %v6096 = vpop.f32.mrb[0].mxu0
        %6097 = vmatprep.mubr.f32.mxu0 0.0
        %6098 = vmatmul.mubr.f32.gmra.mrb[0].mxu0 %v5457
        %v6099 = vpop.f32.mrb[0].mxu0
        %v6100 = vadd.f32 0.0, %v6099
        %v6101 = vpop.f32.mrb[0].mxu0
        %6102 = vmatprep.mubr.f32.mxu0 0.0
        %6103 = vmatmul.mubr.f32.gmra.mrb[0].mxu0 %v5458
        %v6104 = vpop.f32.mrb[0].mxu0
        %v6105 = vadd.f32 0.0, %v6104
        %v6106 = vpop.f32.mrb[0].mxu0
        %6107 = vmatprep.mubr.f32.mxu0 0.0
        %6108 = vmatmul.mubr.f32.gmra.mrb[0].mxu0 %v5459
        %v6109 = vpop.f32.mrb[0].mxu0
        %v6110 = vadd.f32 0.0, %v6109
        %v6111 = vpop.f32.mrb[0].mxu0
        %6112 = vmatprep.mubr.f32.mxu0 0.0
        %6113 = vmatmul.mubr.f32.gmra.mrb[0].mxu0 %v5460
        %v6114 = vpop.f32.mrb[0].mxu0
        %v6115 = vadd.f32 0.0, %v6114
        %v6116 = vpop.f32.mrb[0].mxu0
        %6117 = vmatprep.mubr.f32.mxu0 0.0
        %6118 = vmatmul.mubr.f32.gmra.mrb[0].mxu0 %v5461
        %v6119 = vpop.f32.mrb[0].mxu0
        %v6120 = vadd.f32 0.0, %v6119
        %v6121 = vpop.f32.mrb[0].mxu0
        %6122 = vmatprep.mubr.f32.mxu0 0.0
        %6123 = vmatmul.mubr.f32.gmra.mrb[0].mxu0 %v5462
        %v6124 = vpop.f32.mrb[0].mxu0
        %v6125 = vadd.f32 0.0, %v6124
        %v6126 = vpop.f32.mrb[0].mxu0
        %6127 = vmatprep.mubr.f32.mxu0 0.0
        %6128 = vmatmul.mubr.f32.gmra.mrb[0].mxu0 %v5463
        %v6129 = vpop.f32.mrb[0].mxu0
        %v6130 = vadd.f32 0.0, %v6129
        %v6131 = vpop.f32.mrb[0].mxu0
        %6132 = vmatprep.mubr.f32.mxu0 0.0
        %6133 = vmatmul.mubr.f32.gmra.mrb[0].mxu0 %v5464
        %v6134 = vpop.f32.mrb[0].mxu0
        %v6135 = vadd.f32 0.0, %v6134
        %v6136 = vpop.f32.mrb[0].mxu0
        %6137 = vmatprep.mubr.f32.mxu0 0.0
        %6138 = vmatmul.mubr.f32.gmra.mrb[0].mxu0 %v5465
        %v6139 = vpop.f32.mrb[0].mxu0
        %v6140 = vadd.f32 0.0, %v6139
        %v6141 = vpop.f32.mrb[0].mxu0
        %6142 = vmatprep.mubr.f32.mxu0 0.0
        %6143 = vmatmul.mubr.f32.gmra.mrb[0].mxu0 %v5466
        %v6144 = vpop.f32.mrb[0].mxu0
        %v6145 = vadd.f32 0.0, %v6144
        %v6146 = vpop.f32.mrb[0].mxu0
        %6147 = vmatprep.mubr.f32.mxu0 0.0
        %6148 = vmatmul.mubr.f32.gmra.mrb[0].mxu0 %v5467
        %v6149 = vpop.f32.mrb[0].mxu0
        %v6150 = vadd.f32 0.0, %v6149
        %v6151 = vpop.f32.mrb[0].mxu0
        %6152 = vmatprep.mubr.f32.mxu0 0.0
        %6153 = vmatmul.mubr.f32.gmra.mrb[0].mxu0 %v5468
        %v6154 = vpop.f32.mrb[0].mxu0
        %v6155 = vadd.f32 0.0, %v6154
        %v6156 = vpop.f32.mrb[0].mxu0
        %6157 = vmatprep.mubr.f32.mxu0 0.0
        %6158 = vmatmul.mubr.f32.gmra.mrb[0].mxu0 %v5469
        %v6159 = vpop.f32.mrb[0].mxu0
        %v6160 = vadd.f32 0.0, %v6159
        %v6161 = vpop.f32.mrb[0].mxu0
        %6162 = vmatprep.mubr.f32.mxu0 0.0
        %6163 = vmatmul.mubr.f32.gmra.mrb[0].mxu0 %v5470
        %v6164 = vpop.f32.mrb[0].mxu0
        %v6165 = vadd.f32 0.0, %v6164
        %v6166 = vpop.f32.mrb[0].mxu0
        %6167 = vmatprep.mubr.f32.mxu0 0.0
        %6168 = vmatmul.mubr.f32.gmra.mrb[0].mxu0 %v5471
        %v6169 = vpop.f32.mrb[0].mxu0
        %v6170 = vadd.f32 0.0, %v6169
        %v6171 = vpop.f32.mrb[0].mxu0
        %6172 = vmatprep.mubr.f32.mxu0 0.0
        %6173 = vmatmul.mubr.f32.gmra.mrb[0].mxu0 %v5472
        %v6174 = vpop.f32.mrb[0].mxu0
        %v6175 = vadd.f32 0.0, %v6174
        %v6176 = vpop.f32.mrb[0].mxu0
        %6177 = vmatprep.mubr.f32.mxu0 0.0
        %6178 = vmatmul.mubr.f32.gmra.mrb[0].mxu0 %v5473
        %v6179 = vpop.f32.mrb[0].mxu0
        %v6180 = vadd.f32 0.0, %v6179
        %v6181 = vpop.f32.mrb[0].mxu0
        %6182 = vmatprep.mubr.f32.mxu0 0.0
        %6183 = vmatmul.mubr.f32.gmra.mrb[0].mxu0 %v5474
        %v6184 = vpop.f32.mrb[0].mxu0
        %v6185 = vadd.f32 0.0, %v6184
        %v6186 = vpop.f32.mrb[0].mxu0
        %6187 = vmatprep.mubr.f32.mxu0 0.0
        %6188 = vmatmul.mubr.f32.gmra.mrb[0].mxu0 %v5475
        %v6189 = vpop.f32.mrb[0].mxu0
        %v6190 = vadd.f32 0.0, %v6189
        %v6191 = vpop.f32.mrb[0].mxu0
        %6192 = vmatprep.mubr.f32.mxu0 0.0
        %6193 = vmatmul.mubr.f32.gmra.mrb[0].mxu0 %v5476
        %v6194 = vpop.f32.mrb[0].mxu0
        %v6195 = vadd.f32 0.0, %v6194
        %v6196 = vpop.f32.mrb[0].mxu0
        %6197 = vdwg.mxu0
        %v6198 = vld [vmem:[%s420] sm:$0xff]
        %v6199 = vld [vmem:[%s420 + $0x8] sm:$0xff]
        %v6200 = vld [vmem:[%s420 + $0x10] sm:$0xff]
        %v6201 = vld [vmem:[%s420 + $0x18] sm:$0xff]
        %v6202 = vld [vmem:[%s420 + $0x20] sm:$0xff]
        %v6203 = vld [vmem:[%s420 + $0x28] sm:$0xff]
        %v6204 = vld [vmem:[%s420 + $0x30] sm:$0xff]
        %v6205 = vld [vmem:[%s420 + $0x38] sm:$0xff]
        %v6206 = vld [vmem:[%s420 + $0x40] sm:$0xff]
        %v6207 = vld [vmem:[%s420 + $0x48] sm:$0xff]
        %v6208 = vld [vmem:[%s420 + $0x50] sm:$0xff]
        %v6209 = vld [vmem:[%s420 + $0x58] sm:$0xff]
        %v6210 = vld [vmem:[%s420 + $0x60] sm:$0xff]
        %v6211 = vld [vmem:[%s420 + $0x68] sm:$0xff]
        %v6212 = vld [vmem:[%s420 + $0x70] sm:$0xff]
        %v6213 = vld [vmem:[%s420 + $0x78] sm:$0xff]
        %v6214 = vld [vmem:[%s420 + $0x80] sm:$0xff]
        %v6215 = vld [vmem:[%s420 + $0x88] sm:$0xff]
        %v6216 = vld [vmem:[%s420 + $0x90] sm:$0xff]
        %v6217 = vld [vmem:[%s420 + $0x98] sm:$0xff]
        %v6218 = vld [vmem:[%s420 + $0xa0] sm:$0xff]
        %v6219 = vld [vmem:[%s420 + $0xa8] sm:$0xff]
        %v6220 = vld [vmem:[%s420 + $0xb0] sm:$0xff]
        %v6221 = vld [vmem:[%s420 + $0xb8] sm:$0xff]
        %v6222 = vld [vmem:[%s420 + $0xc0] sm:$0xff]
        %v6223 = vld [vmem:[%s420 + $0xc8] sm:$0xff]
        %v6224 = vld [vmem:[%s420 + $0xd0] sm:$0xff]
        %v6225 = vld [vmem:[%s420 + $0xd8] sm:$0xff]
        %v6226 = vld [vmem:[%s420 + $0xe0] sm:$0xff]
        %v6227 = vld [vmem:[%s420 + $0xe8] sm:$0xff]
        %v6228 = vld [vmem:[%s420 + $0xf0] sm:$0xff]
        %v6229 = vld [vmem:[%s420 + $0xf8] sm:$0xff]
        %v6230 = vld [vmem:[%s420 + $0x100] sm:$0xff]
        %v6231 = vld [vmem:[%s420 + $0x108] sm:$0xff]
        %v6232 = vld [vmem:[%s420 + $0x110] sm:$0xff]
        %v6233 = vld [vmem:[%s420 + $0x118] sm:$0xff]
        %v6234 = vld [vmem:[%s420 + $0x120] sm:$0xff]
        %v6235 = vld [vmem:[%s420 + $0x128] sm:$0xff]
        %v6236 = vld [vmem:[%s420 + $0x130] sm:$0xff]
        %v6237 = vld [vmem:[%s420 + $0x138] sm:$0xff]
        %v6238 = vld [vmem:[%s420 + $0x140] sm:$0xff]
        %v6239 = vld [vmem:[%s420 + $0x148] sm:$0xff]
        %v6240 = vld [vmem:[%s420 + $0x150] sm:$0xff]
        %v6241 = vld [vmem:[%s420 + $0x158] sm:$0xff]
        %v6242 = vld [vmem:[%s420 + $0x160] sm:$0xff]
        %v6243 = vld [vmem:[%s420 + $0x168] sm:$0xff]
        %v6244 = vld [vmem:[%s420 + $0x170] sm:$0xff]
        %v6245 = vld [vmem:[%s420 + $0x178] sm:$0xff]
        %v6246 = vld [vmem:[%s420 + $0x180] sm:$0xff]
        %v6247 = vld [vmem:[%s420 + $0x188] sm:$0xff]
        %v6248 = vld [vmem:[%s420 + $0x190] sm:$0xff]
        %v6249 = vld [vmem:[%s420 + $0x198] sm:$0xff]
        %v6250 = vld [vmem:[%s420 + $0x1a0] sm:$0xff]
        %v6251 = vld [vmem:[%s420 + $0x1a8] sm:$0xff]
        %v6252 = vld [vmem:[%s420 + $0x1b0] sm:$0xff]
        %v6253 = vld [vmem:[%s420 + $0x1b8] sm:$0xff]
        %v6254 = vld [vmem:[%s420 + $0x1c0] sm:$0xff]
        %v6255 = vld [vmem:[%s420 + $0x1c8] sm:$0xff]
        %v6256 = vld [vmem:[%s420 + $0x1d0] sm:$0xff]
        %v6257 = vld [vmem:[%s420 + $0x1d8] sm:$0xff]
        %v6258 = vld [vmem:[%s420 + $0x1e0] sm:$0xff]
        %v6259 = vld [vmem:[%s420 + $0x1e8] sm:$0xff]
        %v6260 = vld [vmem:[%s420 + $0x1f0] sm:$0xff]
        %v6261 = vld [vmem:[%s420 + $0x1f8] sm:$0xff]
        %v6262 = vld [vmem:[%s420 + $0x200] sm:$0xff]
        %v6263 = vld [vmem:[%s420 + $0x208] sm:$0xff]
        %v6264 = vld [vmem:[%s420 + $0x210] sm:$0xff]
        %v6265 = vld [vmem:[%s420 + $0x218] sm:$0xff]
        %v6266 = vld [vmem:[%s420 + $0x220] sm:$0xff]
        %v6267 = vld [vmem:[%s420 + $0x228] sm:$0xff]
        %v6268 = vld [vmem:[%s420 + $0x230] sm:$0xff]
        %v6269 = vld [vmem:[%s420 + $0x238] sm:$0xff]
        %v6270 = vld [vmem:[%s420 + $0x240] sm:$0xff]
        %v6271 = vld [vmem:[%s420 + $0x248] sm:$0xff]
        %v6272 = vld [vmem:[%s420 + $0x250] sm:$0xff]
        %v6273 = vld [vmem:[%s420 + $0x258] sm:$0xff]
        %v6274 = vld [vmem:[%s420 + $0x260] sm:$0xff]
        %v6275 = vld [vmem:[%s420 + $0x268] sm:$0xff]
        %v6276 = vld [vmem:[%s420 + $0x270] sm:$0xff]
        %v6277 = vld [vmem:[%s420 + $0x278] sm:$0xff]
        %v6278 = vld [vmem:[%s420 + $0x280] sm:$0xff]
        %v6279 = vld [vmem:[%s420 + $0x288] sm:$0xff]
        %v6280 = vld [vmem:[%s420 + $0x290] sm:$0xff]
        %v6281 = vld [vmem:[%s420 + $0x298] sm:$0xff]
        %v6282 = vld [vmem:[%s420 + $0x2a0] sm:$0xff]
        %v6283 = vld [vmem:[%s420 + $0x2a8] sm:$0xff]
        %v6284 = vld [vmem:[%s420 + $0x2b0] sm:$0xff]
        %v6285 = vld [vmem:[%s420 + $0x2b8] sm:$0xff]
        %v6286 = vld [vmem:[%s420 + $0x2c0] sm:$0xff]
        %v6287 = vld [vmem:[%s420 + $0x2c8] sm:$0xff]
        %v6288 = vld [vmem:[%s420 + $0x2d0] sm:$0xff]
        %v6289 = vld [vmem:[%s420 + $0x2d8] sm:$0xff]
        %v6290 = vld [vmem:[%s420 + $0x2e0] sm:$0xff]
        %v6291 = vld [vmem:[%s420 + $0x2e8] sm:$0xff]
        %v6292 = vld [vmem:[%s420 + $0x2f0] sm:$0xff]
        %v6293 = vld [vmem:[%s420 + $0x2f8] sm:$0xff]
        %v6294 = vld [vmem:[%s420 + $0x300] sm:$0xff]
        %v6295 = vld [vmem:[%s420 + $0x308] sm:$0xff]
        %v6296 = vld [vmem:[%s420 + $0x310] sm:$0xff]
        %v6297 = vld [vmem:[%s420 + $0x318] sm:$0xff]
        %v6298 = vld [vmem:[%s420 + $0x320] sm:$0xff]
        %v6299 = vld [vmem:[%s420 + $0x328] sm:$0xff]
        %v6300 = vld [vmem:[%s420 + $0x330] sm:$0xff]
        %v6301 = vld [vmem:[%s420 + $0x338] sm:$0xff]
        %v6302 = vld [vmem:[%s420 + $0x340] sm:$0xff]
        %v6303 = vld [vmem:[%s420 + $0x348] sm:$0xff]
        %v6304 = vld [vmem:[%s420 + $0x350] sm:$0xff]
        %v6305 = vld [vmem:[%s420 + $0x358] sm:$0xff]
        %v6306 = vld [vmem:[%s420 + $0x360] sm:$0xff]
        %v6307 = vld [vmem:[%s420 + $0x368] sm:$0xff]
        %v6308 = vld [vmem:[%s420 + $0x370] sm:$0xff]
        %v6309 = vld [vmem:[%s420 + $0x378] sm:$0xff]
        %v6310 = vld [vmem:[%s420 + $0x380] sm:$0xff]
        %v6311 = vld [vmem:[%s420 + $0x388] sm:$0xff]
        %v6312 = vld [vmem:[%s420 + $0x390] sm:$0xff]
        %v6313 = vld [vmem:[%s420 + $0x398] sm:$0xff]
        %v6314 = vld [vmem:[%s420 + $0x3a0] sm:$0xff]
        %v6315 = vld [vmem:[%s420 + $0x3a8] sm:$0xff]
        %v6316 = vld [vmem:[%s420 + $0x3b0] sm:$0xff]
        %v6317 = vld [vmem:[%s420 + $0x3b8] sm:$0xff]
        %v6318 = vld [vmem:[%s420 + $0x3c0] sm:$0xff]
        %v6319 = vld [vmem:[%s420 + $0x3c8] sm:$0xff]
        %v6320 = vld [vmem:[%s420 + $0x3d0] sm:$0xff]
        %v6321 = vld [vmem:[%s420 + $0x3d8] sm:$0xff]
        %v6322 = vld [vmem:[%s420 + $0x3e0] sm:$0xff]
        %v6323 = vld [vmem:[%s420 + $0x3e8] sm:$0xff]
        %v6324 = vld [vmem:[%s420 + $0x3f0] sm:$0xff]
        %v6325 = vld [vmem:[%s420 + $0x3f8] sm:$0xff]
        %6326 = vmatprep.subr.mxu0 0.0
        %6327 = vmatpush1.msra.mxu0 %v5560
        %6328 = vmatprep.subr.mxu0 0.0
        %6329 = vmatpush1.msra.mxu0 %v5565
        %6330 = vmatprep.subr.mxu0 0.0
        %6331 = vmatpush1.msra.mxu0 %v5570
        %6332 = vmatprep.subr.mxu0 0.0
        %6333 = vmatpush1.msra.mxu0 %v5575
        %6334 = vmatprep.subr.mxu0 0.0
        %6335 = vmatpush1.msra.mxu0 %v5580
        %6336 = vmatprep.subr.mxu0 0.0
        %6337 = vmatpush1.msra.mxu0 %v5585
        %6338 = vmatprep.subr.mxu0 0.0
        %6339 = vmatpush1.msra.mxu0 %v5590
        %6340 = vmatprep.subr.mxu0 0.0
        %6341 = vmatpush1.msra.mxu0 %v5595
        %6342 = vmatprep.subr.mxu0 0.0
        %6343 = vmatpush1.msra.mxu0 %v5600
        %6344 = vmatprep.subr.mxu0 0.0
        %6345 = vmatpush1.msra.mxu0 %v5605
        %6346 = vmatprep.subr.mxu0 0.0
        %6347 = vmatpush1.msra.mxu0 %v5610
        %6348 = vmatprep.subr.mxu0 0.0
        %6349 = vmatpush1.msra.mxu0 %v5615
        %6350 = vmatprep.subr.mxu0 0.0
        %6351 = vmatpush1.msra.mxu0 %v5620
        %6352 = vmatprep.subr.mxu0 0.0
        %6353 = vmatpush1.msra.mxu0 %v5625
        %6354 = vmatprep.subr.mxu0 0.0
        %6355 = vmatpush1.msra.mxu0 %v5630
        %6356 = vmatprep.subr.mxu0 0.0
        %6357 = vmatpush1.msra.mxu0 %v5635
        %6358 = vmatprep.subr.mxu0 0.0
        %6359 = vmatpush1.msra.mxu0 0.0
        %6360 = vmatprep.subr.mxu0 0.0
        %6361 = vmatpush1.msra.mxu0 0.0
        %6362 = vmatprep.subr.mxu0 0.0
        %6363 = vmatpush1.msra.mxu0 0.0
        %6364 = vmatprep.subr.mxu0 0.0
        %6365 = vmatpush1.msra.mxu0 0.0
        %6366 = vmatprep.subr.mxu0 0.0
        %6367 = vmatpush1.msra.mxu0 0.0
        %6368 = vmatprep.subr.mxu0 0.0
        %6369 = vmatpush1.msra.mxu0 0.0
        %6370 = vmatprep.subr.mxu0 0.0
        %6371 = vmatpush1.msra.mxu0 0.0
        %6372 = vmatprep.subr.mxu0 0.0
        %6373 = vmatpush1.msra.mxu0 0.0
        %6374 = vmatprep.subr.mxu0 0.0
        %6375 = vmatpush1.msra.mxu0 0.0
        %6376 = vmatprep.subr.mxu0 0.0
        %6377 = vmatpush1.msra.mxu0 0.0
        %6378 = vmatprep.subr.mxu0 0.0
        %6379 = vmatpush1.msra.mxu0 0.0
        %6380 = vmatprep.subr.mxu0 0.0
        %6381 = vmatpush1.msra.mxu0 0.0
        %6382 = vmatprep.subr.mxu0 0.0
        %6383 = vmatpush1.msra.mxu0 0.0
        %6384 = vmatprep.subr.mxu0 0.0
        %6385 = vmatpush1.msra.mxu0 0.0
        %6386 = vmatprep.subr.mxu0 0.0
        %6387 = vmatpush1.msra.mxu0 0.0
        %6388 = vmatprep.subr.mxu0 0.0
        %6389 = vmatpush1.msra.mxu0 0.0
        %6390 = vmatprep.mubr.f32.mxu0 0.0
        %6391 = vmatmul.mubr.f32.gmra.mrb[0].mxu0 %v6198
        %v6392 = vpop.f32.mrb[0].mxu0
        %v6393 = vadd.f32 0.0, %v6392
        %v6394 = vpop.f32.mrb[0].mxu0
        %6395 = vmatprep.mubr.f32.mxu0 0.0
        %6396 = vmatmul.mubr.f32.gmra.mrb[0].mxu0 %v6199
        %v6397 = vpop.f32.mrb[0].mxu0
        %v6398 = vadd.f32 0.0, %v6397
        %v6399 = vpop.f32.mrb[0].mxu0
        %6400 = vmatprep.mubr.f32.mxu0 0.0
        %6401 = vmatmul.mubr.f32.gmra.mrb[0].mxu0 %v6200
        %v6402 = vpop.f32.mrb[0].mxu0
        %v6403 = vadd.f32 0.0, %v6402
        %v6404 = vpop.f32.mrb[0].mxu0
        %6405 = vmatprep.mubr.f32.mxu0 0.0
        %6406 = vmatmul.mubr.f32.gmra.mrb[0].mxu0 %v6201
        %v6407 = vpop.f32.mrb[0].mxu0
        %v6408 = vadd.f32 0.0, %v6407
        %v6409 = vpop.f32.mrb[0].mxu0
        %6410 = vmatprep.mubr.f32.mxu0 0.0
        %6411 = vmatmul.mubr.f32.gmra.mrb[0].mxu0 %v6202
        %v6412 = vpop.f32.mrb[0].mxu0
        %v6413 = vadd.f32 0.0, %v6412
        %v6414 = vpop.f32.mrb[0].mxu0
        %6415 = vmatprep.mubr.f32.mxu0 0.0
        %6416 = vmatmul.mubr.f32.gmra.mrb[0].mxu0 %v6203
        %v6417 = vpop.f32.mrb[0].mxu0
        %v6418 = vadd.f32 0.0, %v6417
        %v6419 = vpop.f32.mrb[0].mxu0
        %6420 = vmatprep.mubr.f32.mxu0 0.0
        %6421 = vmatmul.mubr.f32.gmra.mrb[0].mxu0 %v6204
        %v6422 = vpop.f32.mrb[0].mxu0
        %v6423 = vadd.f32 0.0, %v6422
        %v6424 = vpop.f32.mrb[0].mxu0
        %6425 = vmatprep.mubr.f32.mxu0 0.0
        %6426 = vmatmul.mubr.f32.gmra.mrb[0].mxu0 %v6205
        %v6427 = vpop.f32.mrb[0].mxu0
        %v6428 = vadd.f32 0.0, %v6427
        %v6429 = vpop.f32.mrb[0].mxu0
        %6430 = vmatprep.mubr.f32.mxu0 0.0
        %6431 = vmatmul.mubr.f32.gmra.mrb[0].mxu0 %v6206
        %v6432 = vpop.f32.mrb[0].mxu0
        %v6433 = vadd.f32 0.0, %v6432
        %v6434 = vpop.f32.mrb[0].mxu0
        %6435 = vmatprep.mubr.f32.mxu0 0.0
        %6436 = vmatmul.mubr.f32.gmra.mrb[0].mxu0 %v6207
        %v6437 = vpop.f32.mrb[0].mxu0
        %v6438 = vadd.f32 0.0, %v6437
        %v6439 = vpop.f32.mrb[0].mxu0
        %6440 = vmatprep.mubr.f32.mxu0 0.0
        %6441 = vmatmul.mubr.f32.gmra.mrb[0].mxu0 %v6208
        %v6442 = vpop.f32.mrb[0].mxu0
        %v6443 = vadd.f32 0.0, %v6442
        %v6444 = vpop.f32.mrb[0].mxu0
        %6445 = vmatprep.mubr.f32.mxu0 0.0
        %6446 = vmatmul.mubr.f32.gmra.mrb[0].mxu0 %v6209
        %v6447 = vpop.f32.mrb[0].mxu0
        %v6448 = vadd.f32 0.0, %v6447
        %v6449 = vpop.f32.mrb[0].mxu0
        %6450 = vmatprep.mubr.f32.mxu0 0.0
        %6451 = vmatmul.mubr.f32.gmra.mrb[0].mxu0 %v6210
        %v6452 = vpop.f32.mrb[0].mxu0
        %v6453 = vadd.f32 0.0, %v6452
        %v6454 = vpop.f32.mrb[0].mxu0
        %6455 = vmatprep.mubr.f32.mxu0 0.0
        %6456 = vmatmul.mubr.f32.gmra.mrb[0].mxu0 %v6211
        %v6457 = vpop.f32.mrb[0].mxu0
        %v6458 = vadd.f32 0.0, %v6457
        %v6459 = vpop.f32.mrb[0].mxu0
        %6460 = vmatprep.mubr.f32.mxu0 0.0
        %6461 = vmatmul.mubr.f32.gmra.mrb[0].mxu0 %v6212
        %v6462 = vpop.f32.mrb[0].mxu0
        %v6463 = vadd.f32 0.0, %v6462
        %v6464 = vpop.f32.mrb[0].mxu0
        %6465 = vmatprep.mubr.f32.mxu0 0.0
        %6466 = vmatmul.mubr.f32.gmra.mrb[0].mxu0 %v6213
        %v6467 = vpop.f32.mrb[0].mxu0
        %v6468 = vadd.f32 0.0, %v6467
        %v6469 = vpop.f32.mrb[0].mxu0
        %6470 = vdwg.mxu0
        %6471 = vmatprep.subr.mxu0 0.0
        %6472 = vmatpush1.msra.mxu0 %v5640
        %6473 = vmatprep.subr.mxu0 0.0
        %6474 = vmatpush1.msra.mxu0 %v5645
        %6475 = vmatprep.subr.mxu0 0.0
        %6476 = vmatpush1.msra.mxu0 %v5650
        %6477 = vmatprep.subr.mxu0 0.0
        %6478 = vmatpush1.msra.mxu0 %v5655
        %6479 = vmatprep.subr.mxu0 0.0
        %6480 = vmatpush1.msra.mxu0 %v5660
        %6481 = vmatprep.subr.mxu0 0.0
        %6482 = vmatpush1.msra.mxu0 %v5665
        %6483 = vmatprep.subr.mxu0 0.0
        %6484 = vmatpush1.msra.mxu0 %v5670
        %6485 = vmatprep.subr.mxu0 0.0
        %6486 = vmatpush1.msra.mxu0 %v5675
        %6487 = vmatprep.subr.mxu0 0.0
        %6488 = vmatpush1.msra.mxu0 %v5680
        %6489 = vmatprep.subr.mxu0 0.0
        %6490 = vmatpush1.msra.mxu0 %v5685
        %6491 = vmatprep.subr.mxu0 0.0
        %6492 = vmatpush1.msra.mxu0 %v5690
        %6493 = vmatprep.subr.mxu0 0.0
        %6494 = vmatpush1.msra.mxu0 %v5695
        %6495 = vmatprep.subr.mxu0 0.0
        %6496 = vmatpush1.msra.mxu0 %v5700
        %6497 = vmatprep.subr.mxu0 0.0
        %6498 = vmatpush1.msra.mxu0 %v5705
        %6499 = vmatprep.subr.mxu0 0.0
        %6500 = vmatpush1.msra.mxu0 %v5710
        %6501 = vmatprep.subr.mxu0 0.0
        %6502 = vmatpush1.msra.mxu0 %v5715
        %6503 = vmatprep.subr.mxu0 0.0
        %6504 = vmatpush1.msra.mxu0 0.0
        %6505 = vmatprep.subr.mxu0 0.0
        %6506 = vmatpush1.msra.mxu0 0.0
        %6507 = vmatprep.subr.mxu0 0.0
        %6508 = vmatpush1.msra.mxu0 0.0
        %6509 = vmatprep.subr.mxu0 0.0
        %6510 = vmatpush1.msra.mxu0 0.0
        %6511 = vmatprep.subr.mxu0 0.0
        %6512 = vmatpush1.msra.mxu0 0.0
        %6513 = vmatprep.subr.mxu0 0.0
        %6514 = vmatpush1.msra.mxu0 0.0
        %6515 = vmatprep.subr.mxu0 0.0
        %6516 = vmatpush1.msra.mxu0 0.0
        %6517 = vmatprep.subr.mxu0 0.0
        %6518 = vmatpush1.msra.mxu0 0.0
        %6519 = vmatprep.subr.mxu0 0.0
        %6520 = vmatpush1.msra.mxu0 0.0
        %6521 = vmatprep.subr.mxu0 0.0
        %6522 = vmatpush1.msra.mxu0 0.0
        %6523 = vmatprep.subr.mxu0 0.0
        %6524 = vmatpush1.msra.mxu0 0.0
        %6525 = vmatprep.subr.mxu0 0.0
        %6526 = vmatpush1.msra.mxu0 0.0
        %6527 = vmatprep.subr.mxu0 0.0
        %6528 = vmatpush1.msra.mxu0 0.0
        %6529 = vmatprep.subr.mxu0 0.0
        %6530 = vmatpush1.msra.mxu0 0.0
        %6531 = vmatprep.subr.mxu0 0.0
        %6532 = vmatpush1.msra.mxu0 0.0
        %6533 = vmatprep.subr.mxu0 0.0
        %6534 = vmatpush1.msra.mxu0 0.0
        %6535 = vmatprep.mubr.f32.mxu0 0.0
        %6536 = vmatmul.mubr.f32.gmra.mrb[0].mxu0 %v6214
        %v6537 = vpop.f32.mrb[0].mxu0
        %v6538 = vadd.f32 0.0, %v6537
        %v6539 = vpop.f32.mrb[0].mxu0
        %6540 = vmatprep.mubr.f32.mxu0 0.0
        %6541 = vmatmul.mubr.f32.gmra.mrb[0].mxu0 %v6215
        %v6542 = vpop.f32.mrb[0].mxu0
        %v6543 = vadd.f32 0.0, %v6542
        %v6544 = vpop.f32.mrb[0].mxu0
        %6545 = vmatprep.mubr.f32.mxu0 0.0
        %6546 = vmatmul.mubr.f32.gmra.mrb[0].mxu0 %v6216
        %v6547 = vpop.f32.mrb[0].mxu0
        %v6548 = vadd.f32 0.0, %v6547
        %v6549 = vpop.f32.mrb[0].mxu0
        %6550 = vmatprep.mubr.f32.mxu0 0.0
        %6551 = vmatmul.mubr.f32.gmra.mrb[0].mxu0 %v6217
        %v6552 = vpop.f32.mrb[0].mxu0
        %v6553 = vadd.f32 0.0, %v6552
        %v6554 = vpop.f32.mrb[0].mxu0
        %6555 = vmatprep.mubr.f32.mxu0 0.0
        %6556 = vmatmul.mubr.f32.gmra.mrb[0].mxu0 %v6218
        %v6557 = vpop.f32.mrb[0].mxu0
        %v6558 = vadd.f32 0.0, %v6557
        %v6559 = vpop.f32.mrb[0].mxu0
        %6560 = vmatprep.mubr.f32.mxu0 0.0
        %6561 = vmatmul.mubr.f32.gmra.mrb[0].mxu0 %v6219
        %v6562 = vpop.f32.mrb[0].mxu0
        %v6563 = vadd.f32 0.0, %v6562
        %v6564 = vpop.f32.mrb[0].mxu0
        %6565 = vmatprep.mubr.f32.mxu0 0.0
        %6566 = vmatmul.mubr.f32.gmra.mrb[0].mxu0 %v6220
        %v6567 = vpop.f32.mrb[0].mxu0
        %v6568 = vadd.f32 0.0, %v6567
        %v6569 = vpop.f32.mrb[0].mxu0
        %6570 = vmatprep.mubr.f32.mxu0 0.0
        %6571 = vmatmul.mubr.f32.gmra.mrb[0].mxu0 %v6221
        %v6572 = vpop.f32.mrb[0].mxu0
        %v6573 = vadd.f32 0.0, %v6572
        %v6574 = vpop.f32.mrb[0].mxu0
        %6575 = vmatprep.mubr.f32.mxu0 0.0
        %6576 = vmatmul.mubr.f32.gmra.mrb[0].mxu0 %v6222
        %v6577 = vpop.f32.mrb[0].mxu0
        %v6578 = vadd.f32 0.0, %v6577
        %v6579 = vpop.f32.mrb[0].mxu0
        %6580 = vmatprep.mubr.f32.mxu0 0.0
        %6581 = vmatmul.mubr.f32.gmra.mrb[0].mxu0 %v6223
        %v6582 = vpop.f32.mrb[0].mxu0
        %v6583 = vadd.f32 0.0, %v6582
        %v6584 = vpop.f32.mrb[0].mxu0
        %6585 = vmatprep.mubr.f32.mxu0 0.0
        %6586 = vmatmul.mubr.f32.gmra.mrb[0].mxu0 %v6224
        %v6587 = vpop.f32.mrb[0].mxu0
        %v6588 = vadd.f32 0.0, %v6587
        %v6589 = vpop.f32.mrb[0].mxu0
        %6590 = vmatprep.mubr.f32.mxu0 0.0
        %6591 = vmatmul.mubr.f32.gmra.mrb[0].mxu0 %v6225
        %v6592 = vpop.f32.mrb[0].mxu0
        %v6593 = vadd.f32 0.0, %v6592
        %v6594 = vpop.f32.mrb[0].mxu0
        %6595 = vmatprep.mubr.f32.mxu0 0.0
        %6596 = vmatmul.mubr.f32.gmra.mrb[0].mxu0 %v6226
        %v6597 = vpop.f32.mrb[0].mxu0
        %v6598 = vadd.f32 0.0, %v6597
        %v6599 = vpop.f32.mrb[0].mxu0
        %6600 = vmatprep.mubr.f32.mxu0 0.0
        %6601 = vmatmul.mubr.f32.gmra.mrb[0].mxu0 %v6227
        %v6602 = vpop.f32.mrb[0].mxu0
        %v6603 = vadd.f32 0.0, %v6602
        %v6604 = vpop.f32.mrb[0].mxu0
        %6605 = vmatprep.mubr.f32.mxu0 0.0
        %6606 = vmatmul.mubr.f32.gmra.mrb[0].mxu0 %v6228
        %v6607 = vpop.f32.mrb[0].mxu0
        %v6608 = vadd.f32 0.0, %v6607
        %v6609 = vpop.f32.mrb[0].mxu0
        %6610 = vmatprep.mubr.f32.mxu0 0.0
        %6611 = vmatmul.mubr.f32.gmra.mrb[0].mxu0 %v6229
        %v6612 = vpop.f32.mrb[0].mxu0
        %v6613 = vadd.f32 0.0, %v6612
        %v6614 = vpop.f32.mrb[0].mxu0
        %6615 = vdwg.mxu0
        %6616 = vmatprep.subr.mxu0 0.0
        %6617 = vmatpush1.msra.mxu0 %v5720
        %6618 = vmatprep.subr.mxu0 0.0
        %6619 = vmatpush1.msra.mxu0 %v5725
        %6620 = vmatprep.subr.mxu0 0.0
        %6621 = vmatpush1.msra.mxu0 %v5730
        %6622 = vmatprep.subr.mxu0 0.0
        %6623 = vmatpush1.msra.mxu0 %v5735
        %6624 = vmatprep.subr.mxu0 0.0
        %6625 = vmatpush1.msra.mxu0 %v5740
        %6626 = vmatprep.subr.mxu0 0.0
        %6627 = vmatpush1.msra.mxu0 %v5745
        %6628 = vmatprep.subr.mxu0 0.0
        %6629 = vmatpush1.msra.mxu0 %v5750
        %6630 = vmatprep.subr.mxu0 0.0
        %6631 = vmatpush1.msra.mxu0 %v5755
        %6632 = vmatprep.subr.mxu0 0.0
        %6633 = vmatpush1.msra.mxu0 %v5760
        %6634 = vmatprep.subr.mxu0 0.0
        %6635 = vmatpush1.msra.mxu0 %v5765
        %6636 = vmatprep.subr.mxu0 0.0
        %6637 = vmatpush1.msra.mxu0 %v5770
        %6638 = vmatprep.subr.mxu0 0.0
        %6639 = vmatpush1.msra.mxu0 %v5775
        %6640 = vmatprep.subr.mxu0 0.0
        %6641 = vmatpush1.msra.mxu0 %v5780
        %6642 = vmatprep.subr.mxu0 0.0
        %6643 = vmatpush1.msra.mxu0 %v5785
        %6644 = vmatprep.subr.mxu0 0.0
        %6645 = vmatpush1.msra.mxu0 %v5790
        %6646 = vmatprep.subr.mxu0 0.0
        %6647 = vmatpush1.msra.mxu0 %v5795
        %6648 = vmatprep.subr.mxu0 0.0
        %6649 = vmatpush1.msra.mxu0 0.0
        %6650 = vmatprep.subr.mxu0 0.0
        %6651 = vmatpush1.msra.mxu0 0.0
        %6652 = vmatprep.subr.mxu0 0.0
        %6653 = vmatpush1.msra.mxu0 0.0
        %6654 = vmatprep.subr.mxu0 0.0
        %6655 = vmatpush1.msra.mxu0 0.0
        %6656 = vmatprep.subr.mxu0 0.0
        %6657 = vmatpush1.msra.mxu0 0.0
        %6658 = vmatprep.subr.mxu0 0.0
        %6659 = vmatpush1.msra.mxu0 0.0
        %6660 = vmatprep.subr.mxu0 0.0
        %6661 = vmatpush1.msra.mxu0 0.0
        %6662 = vmatprep.subr.mxu0 0.0
        %6663 = vmatpush1.msra.mxu0 0.0
        %6664 = vmatprep.subr.mxu0 0.0
        %6665 = vmatpush1.msra.mxu0 0.0
        %6666 = vmatprep.subr.mxu0 0.0
        %6667 = vmatpush1.msra.mxu0 0.0
        %6668 = vmatprep.subr.mxu0 0.0
        %6669 = vmatpush1.msra.mxu0 0.0
        %6670 = vmatprep.subr.mxu0 0.0
        %6671 = vmatpush1.msra.mxu0 0.0
        %6672 = vmatprep.subr.mxu0 0.0
        %6673 = vmatpush1.msra.mxu0 0.0
        %6674 = vmatprep.subr.mxu0 0.0
        %6675 = vmatpush1.msra.mxu0 0.0
        %6676 = vmatprep.subr.mxu0 0.0
        %6677 = vmatpush1.msra.mxu0 0.0
        %6678 = vmatprep.subr.mxu0 0.0
        %6679 = vmatpush1.msra.mxu0 0.0
        %6680 = vmatprep.mubr.f32.mxu0 0.0
        %6681 = vmatmul.mubr.f32.gmra.mrb[0].mxu0 %v6230
        %v6682 = vpop.f32.mrb[0].mxu0
        %v6683 = vadd.f32 0.0, %v6682
        %v6684 = vpop.f32.mrb[0].mxu0
        %6685 = vmatprep.mubr.f32.mxu0 0.0
        %6686 = vmatmul.mubr.f32.gmra.mrb[0].mxu0 %v6231
        %v6687 = vpop.f32.mrb[0].mxu0
        %v6688 = vadd.f32 0.0, %v6687
        %v6689 = vpop.f32.mrb[0].mxu0
        %6690 = vmatprep.mubr.f32.mxu0 0.0
        %6691 = vmatmul.mubr.f32.gmra.mrb[0].mxu0 %v6232
        %v6692 = vpop.f32.mrb[0].mxu0
        %v6693 = vadd.f32 0.0, %v6692
        %v6694 = vpop.f32.mrb[0].mxu0
        %6695 = vmatprep.mubr.f32.mxu0 0.0
        %6696 = vmatmul.mubr.f32.gmra.mrb[0].mxu0 %v6233
        %v6697 = vpop.f32.mrb[0].mxu0
        %v6698 = vadd.f32 0.0, %v6697
        %v6699 = vpop.f32.mrb[0].mxu0
        %6700 = vmatprep.mubr.f32.mxu0 0.0
        %6701 = vmatmul.mubr.f32.gmra.mrb[0].mxu0 %v6234
        %v6702 = vpop.f32.mrb[0].mxu0
        %v6703 = vadd.f32 0.0, %v6702
        %v6704 = vpop.f32.mrb[0].mxu0
        %6705 = vmatprep.mubr.f32.mxu0 0.0
        %6706 = vmatmul.mubr.f32.gmra.mrb[0].mxu0 %v6235
        %v6707 = vpop.f32.mrb[0].mxu0
        %v6708 = vadd.f32 0.0, %v6707
        %v6709 = vpop.f32.mrb[0].mxu0
        %6710 = vmatprep.mubr.f32.mxu0 0.0
        %6711 = vmatmul.mubr.f32.gmra.mrb[0].mxu0 %v6236
        %v6712 = vpop.f32.mrb[0].mxu0
        %v6713 = vadd.f32 0.0, %v6712
        %v6714 = vpop.f32.mrb[0].mxu0
        %6715 = vmatprep.mubr.f32.mxu0 0.0
        %6716 = vmatmul.mubr.f32.gmra.mrb[0].mxu0 %v6237
        %v6717 = vpop.f32.mrb[0].mxu0
        %v6718 = vadd.f32 0.0, %v6717
        %v6719 = vpop.f32.mrb[0].mxu0
        %6720 = vmatprep.mubr.f32.mxu0 0.0
        %6721 = vmatmul.mubr.f32.gmra.mrb[0].mxu0 %v6238
        %v6722 = vpop.f32.mrb[0].mxu0
        %v6723 = vadd.f32 0.0, %v6722
        %v6724 = vpop.f32.mrb[0].mxu0
        %6725 = vmatprep.mubr.f32.mxu0 0.0
        %6726 = vmatmul.mubr.f32.gmra.mrb[0].mxu0 %v6239
        %v6727 = vpop.f32.mrb[0].mxu0
        %v6728 = vadd.f32 0.0, %v6727
        %v6729 = vpop.f32.mrb[0].mxu0
        %6730 = vmatprep.mubr.f32.mxu0 0.0
        %6731 = vmatmul.mubr.f32.gmra.mrb[0].mxu0 %v6240
        %v6732 = vpop.f32.mrb[0].mxu0
        %v6733 = vadd.f32 0.0, %v6732
        %v6734 = vpop.f32.mrb[0].mxu0
        %6735 = vmatprep.mubr.f32.mxu0 0.0
        %6736 = vmatmul.mubr.f32.gmra.mrb[0].mxu0 %v6241
        %v6737 = vpop.f32.mrb[0].mxu0
        %v6738 = vadd.f32 0.0, %v6737
        %v6739 = vpop.f32.mrb[0].mxu0
        %6740 = vmatprep.mubr.f32.mxu0 0.0
        %6741 = vmatmul.mubr.f32.gmra.mrb[0].mxu0 %v6242
        %v6742 = vpop.f32.mrb[0].mxu0
        %v6743 = vadd.f32 0.0, %v6742
        %v6744 = vpop.f32.mrb[0].mxu0
        %6745 = vmatprep.mubr.f32.mxu0 0.0
        %6746 = vmatmul.mubr.f32.gmra.mrb[0].mxu0 %v6243
        %v6747 = vpop.f32.mrb[0].mxu0
        %v6748 = vadd.f32 0.0, %v6747
        %v6749 = vpop.f32.mrb[0].mxu0
        %6750 = vmatprep.mubr.f32.mxu0 0.0
        %6751 = vmatmul.mubr.f32.gmra.mrb[0].mxu0 %v6244
        %v6752 = vpop.f32.mrb[0].mxu0
        %v6753 = vadd.f32 0.0, %v6752
        %v6754 = vpop.f32.mrb[0].mxu0
        %6755 = vmatprep.mubr.f32.mxu0 0.0
        %6756 = vmatmul.mubr.f32.gmra.mrb[0].mxu0 %v6245
        %v6757 = vpop.f32.mrb[0].mxu0
        %v6758 = vadd.f32 0.0, %v6757
        %v6759 = vpop.f32.mrb[0].mxu0
        %6760 = vdwg.mxu0
        %6761 = vmatprep.subr.mxu0 0.0
        %6762 = vmatpush1.msra.mxu0 %v5800
        %6763 = vmatprep.subr.mxu0 0.0
        %6764 = vmatpush1.msra.mxu0 %v5805
        %6765 = vmatprep.subr.mxu0 0.0
        %6766 = vmatpush1.msra.mxu0 %v5810
        %6767 = vmatprep.subr.mxu0 0.0
        %6768 = vmatpush1.msra.mxu0 %v5815
        %6769 = vmatprep.subr.mxu0 0.0
        %6770 = vmatpush1.msra.mxu0 %v5820
        %6771 = vmatprep.subr.mxu0 0.0
        %6772 = vmatpush1.msra.mxu0 %v5825
        %6773 = vmatprep.subr.mxu0 0.0
        %6774 = vmatpush1.msra.mxu0 %v5830
        %6775 = vmatprep.subr.mxu0 0.0
        %6776 = vmatpush1.msra.mxu0 %v5835
        %6777 = vmatprep.subr.mxu0 0.0
        %6778 = vmatpush1.msra.mxu0 %v5840
        %6779 = vmatprep.subr.mxu0 0.0
        %6780 = vmatpush1.msra.mxu0 %v5845
        %6781 = vmatprep.subr.mxu0 0.0
        %6782 = vmatpush1.msra.mxu0 %v5850
        %6783 = vmatprep.subr.mxu0 0.0
        %6784 = vmatpush1.msra.mxu0 %v5855
        %6785 = vmatprep.subr.mxu0 0.0
        %6786 = vmatpush1.msra.mxu0 %v5860
        %6787 = vmatprep.subr.mxu0 0.0
        %6788 = vmatpush1.msra.mxu0 %v5865
        %6789 = vmatprep.subr.mxu0 0.0
        %6790 = vmatpush1.msra.mxu0 %v5870
        %6791 = vmatprep.subr.mxu0 0.0
        %6792 = vmatpush1.msra.mxu0 %v5875
        %6793 = vmatprep.subr.mxu0 0.0
        %6794 = vmatpush1.msra.mxu0 0.0
        %6795 = vmatprep.subr.mxu0 0.0
        %6796 = vmatpush1.msra.mxu0 0.0
        %6797 = vmatprep.subr.mxu0 0.0
        %6798 = vmatpush1.msra.mxu0 0.0
        %6799 = vmatprep.subr.mxu0 0.0
        %6800 = vmatpush1.msra.mxu0 0.0
        %6801 = vmatprep.subr.mxu0 0.0
        %6802 = vmatpush1.msra.mxu0 0.0
        %6803 = vmatprep.subr.mxu0 0.0
        %6804 = vmatpush1.msra.mxu0 0.0
        %6805 = vmatprep.subr.mxu0 0.0
        %6806 = vmatpush1.msra.mxu0 0.0
        %6807 = vmatprep.subr.mxu0 0.0
        %6808 = vmatpush1.msra.mxu0 0.0
        %6809 = vmatprep.subr.mxu0 0.0
        %6810 = vmatpush1.msra.mxu0 0.0
        %6811 = vmatprep.subr.mxu0 0.0
        %6812 = vmatpush1.msra.mxu0 0.0
        %6813 = vmatprep.subr.mxu0 0.0
        %6814 = vmatpush1.msra.mxu0 0.0
        %6815 = vmatprep.subr.mxu0 0.0
        %6816 = vmatpush1.msra.mxu0 0.0
        %6817 = vmatprep.subr.mxu0 0.0
        %6818 = vmatpush1.msra.mxu0 0.0
        %6819 = vmatprep.subr.mxu0 0.0
        %6820 = vmatpush1.msra.mxu0 0.0
        %6821 = vmatprep.subr.mxu0 0.0
        %6822 = vmatpush1.msra.mxu0 0.0
        %6823 = vmatprep.subr.mxu0 0.0
        %6824 = vmatpush1.msra.mxu0 0.0
        %6825 = vmatprep.mubr.f32.mxu0 0.0
        %6826 = vmatmul.mubr.f32.gmra.mrb[0].mxu0 %v6246
        %v6827 = vpop.f32.mrb[0].mxu0
        %v6828 = vadd.f32 0.0, %v6827
        %v6829 = vpop.f32.mrb[0].mxu0
        %6830 = vmatprep.mubr.f32.mxu0 0.0
        %6831 = vmatmul.mubr.f32.gmra.mrb[0].mxu0 %v6247
        %v6832 = vpop.f32.mrb[0].mxu0
        %v6833 = vadd.f32 0.0, %v6832
        %v6834 = vpop.f32.mrb[0].mxu0
        %6835 = vmatprep.mubr.f32.mxu0 0.0
        %6836 = vmatmul.mubr.f32.gmra.mrb[0].mxu0 %v6248
        %v6837 = vpop.f32.mrb[0].mxu0
        %v6838 = vadd.f32 0.0, %v6837
        %v6839 = vpop.f32.mrb[0].mxu0
        %6840 = vmatprep.mubr.f32.mxu0 0.0
        %6841 = vmatmul.mubr.f32.gmra.mrb[0].mxu0 %v6249
        %v6842 = vpop.f32.mrb[0].mxu0
        %v6843 = vadd.f32 0.0, %v6842
        %v6844 = vpop.f32.mrb[0].mxu0
        %6845 = vmatprep.mubr.f32.mxu0 0.0
        %6846 = vmatmul.mubr.f32.gmra.mrb[0].mxu0 %v6250
        %v6847 = vpop.f32.mrb[0].mxu0
        %v6848 = vadd.f32 0.0, %v6847
        %v6849 = vpop.f32.mrb[0].mxu0
        %6850 = vmatprep.mubr.f32.mxu0 0.0
        %6851 = vmatmul.mubr.f32.gmra.mrb[0].mxu0 %v6251
        %v6852 = vpop.f32.mrb[0].mxu0
        %v6853 = vadd.f32 0.0, %v6852
        %v6854 = vpop.f32.mrb[0].mxu0
        %6855 = vmatprep.mubr.f32.mxu0 0.0
        %6856 = vmatmul.mubr.f32.gmra.mrb[0].mxu0 %v6252
        %v6857 = vpop.f32.mrb[0].mxu0
        %v6858 = vadd.f32 0.0, %v6857
        %v6859 = vpop.f32.mrb[0].mxu0
        %6860 = vmatprep.mubr.f32.mxu0 0.0
        %6861 = vmatmul.mubr.f32.gmra.mrb[0].mxu0 %v6253
        %v6862 = vpop.f32.mrb[0].mxu0
        %v6863 = vadd.f32 0.0, %v6862
        %v6864 = vpop.f32.mrb[0].mxu0
        %6865 = vmatprep.mubr.f32.mxu0 0.0
        %6866 = vmatmul.mubr.f32.gmra.mrb[0].mxu0 %v6254
        %v6867 = vpop.f32.mrb[0].mxu0
        %v6868 = vadd.f32 0.0, %v6867
        %v6869 = vpop.f32.mrb[0].mxu0
        %6870 = vmatprep.mubr.f32.mxu0 0.0
        %6871 = vmatmul.mubr.f32.gmra.mrb[0].mxu0 %v6255
        %v6872 = vpop.f32.mrb[0].mxu0
        %v6873 = vadd.f32 0.0, %v6872
        %v6874 = vpop.f32.mrb[0].mxu0
        %6875 = vmatprep.mubr.f32.mxu0 0.0
        %6876 = vmatmul.mubr.f32.gmra.mrb[0].mxu0 %v6256
        %v6877 = vpop.f32.mrb[0].mxu0
        %v6878 = vadd.f32 0.0, %v6877
        %v6879 = vpop.f32.mrb[0].mxu0
        %6880 = vmatprep.mubr.f32.mxu0 0.0
        %6881 = vmatmul.mubr.f32.gmra.mrb[0].mxu0 %v6257
        %v6882 = vpop.f32.mrb[0].mxu0
        %v6883 = vadd.f32 0.0, %v6882
        %v6884 = vpop.f32.mrb[0].mxu0
        %6885 = vmatprep.mubr.f32.mxu0 0.0
        %6886 = vmatmul.mubr.f32.gmra.mrb[0].mxu0 %v6258
        %v6887 = vpop.f32.mrb[0].mxu0
        %v6888 = vadd.f32 0.0, %v6887
        %v6889 = vpop.f32.mrb[0].mxu0
        %6890 = vmatprep.mubr.f32.mxu0 0.0
        %6891 = vmatmul.mubr.f32.gmra.mrb[0].mxu0 %v6259
        %v6892 = vpop.f32.mrb[0].mxu0
        %v6893 = vadd.f32 0.0, %v6892
        %v6894 = vpop.f32.mrb[0].mxu0
        %6895 = vmatprep.mubr.f32.mxu0 0.0
        %6896 = vmatmul.mubr.f32.gmra.mrb[0].mxu0 %v6260
        %v6897 = vpop.f32.mrb[0].mxu0
        %v6898 = vadd.f32 0.0, %v6897
        %v6899 = vpop.f32.mrb[0].mxu0
        %6900 = vmatprep.mubr.f32.mxu0 0.0
        %6901 = vmatmul.mubr.f32.gmra.mrb[0].mxu0 %v6261
        %v6902 = vpop.f32.mrb[0].mxu0
        %v6903 = vadd.f32 0.0, %v6902
        %v6904 = vpop.f32.mrb[0].mxu0
        %6905 = vdwg.mxu0
        %6906 = vmatprep.subr.mxu0 0.0
        %6907 = vmatpush1.msra.mxu0 %v5880
        %6908 = vmatprep.subr.mxu0 0.0
        %6909 = vmatpush1.msra.mxu0 %v5885
        %6910 = vmatprep.subr.mxu0 0.0
        %6911 = vmatpush1.msra.mxu0 %v5890
        %6912 = vmatprep.subr.mxu0 0.0
        %6913 = vmatpush1.msra.mxu0 %v5895
        %6914 = vmatprep.subr.mxu0 0.0
        %6915 = vmatpush1.msra.mxu0 %v5900
        %6916 = vmatprep.subr.mxu0 0.0
        %6917 = vmatpush1.msra.mxu0 %v5905
        %6918 = vmatprep.subr.mxu0 0.0
        %6919 = vmatpush1.msra.mxu0 %v5910
        %6920 = vmatprep.subr.mxu0 0.0
        %6921 = vmatpush1.msra.mxu0 %v5915
        %6922 = vmatprep.subr.mxu0 0.0
        %6923 = vmatpush1.msra.mxu0 %v5920
        %6924 = vmatprep.subr.mxu0 0.0
        %6925 = vmatpush1.msra.mxu0 %v5925
        %6926 = vmatprep.subr.mxu0 0.0
        %6927 = vmatpush1.msra.mxu0 %v5930
        %6928 = vmatprep.subr.mxu0 0.0
        %6929 = vmatpush1.msra.mxu0 %v5935
        %6930 = vmatprep.subr.mxu0 0.0
        %6931 = vmatpush1.msra.mxu0 %v5940
        %6932 = vmatprep.subr.mxu0 0.0
        %6933 = vmatpush1.msra.mxu0 %v5945
        %6934 = vmatprep.subr.mxu0 0.0
        %6935 = vmatpush1.msra.mxu0 %v5950
        %6936 = vmatprep.subr.mxu0 0.0
        %6937 = vmatpush1.msra.mxu0 %v5955
        %6938 = vmatprep.subr.mxu0 0.0
        %6939 = vmatpush1.msra.mxu0 0.0
        %6940 = vmatprep.subr.mxu0 0.0
        %6941 = vmatpush1.msra.mxu0 0.0
        %6942 = vmatprep.subr.mxu0 0.0
        %6943 = vmatpush1.msra.mxu0 0.0
        %6944 = vmatprep.subr.mxu0 0.0
        %6945 = vmatpush1.msra.mxu0 0.0
        %6946 = vmatprep.subr.mxu0 0.0
        %6947 = vmatpush1.msra.mxu0 0.0
        %6948 = vmatprep.subr.mxu0 0.0
        %6949 = vmatpush1.msra.mxu0 0.0
        %6950 = vmatprep.subr.mxu0 0.0
        %6951 = vmatpush1.msra.mxu0 0.0
        %6952 = vmatprep.subr.mxu0 0.0
        %6953 = vmatpush1.msra.mxu0 0.0
        %6954 = vmatprep.subr.mxu0 0.0
        %6955 = vmatpush1.msra.mxu0 0.0
        %6956 = vmatprep.subr.mxu0 0.0
        %6957 = vmatpush1.msra.mxu0 0.0
        %6958 = vmatprep.subr.mxu0 0.0
        %6959 = vmatpush1.msra.mxu0 0.0
        %6960 = vmatprep.subr.mxu0 0.0
        %6961 = vmatpush1.msra.mxu0 0.0
        %6962 = vmatprep.subr.mxu0 0.0
        %6963 = vmatpush1.msra.mxu0 0.0
        %6964 = vmatprep.subr.mxu0 0.0
        %6965 = vmatpush1.msra.mxu0 0.0
        %6966 = vmatprep.subr.mxu0 0.0
        %6967 = vmatpush1.msra.mxu0 0.0
        %6968 = vmatprep.subr.mxu0 0.0
        %6969 = vmatpush1.msra.mxu0 0.0
        %6970 = vmatprep.mubr.f32.mxu0 0.0
        %6971 = vmatmul.mubr.f32.gmra.mrb[0].mxu0 %v6262
        %v6972 = vpop.f32.mrb[0].mxu0
        %v6973 = vadd.f32 0.0, %v6972
        %v6974 = vpop.f32.mrb[0].mxu0
        %6975 = vmatprep.mubr.f32.mxu0 0.0
        %6976 = vmatmul.mubr.f32.gmra.mrb[0].mxu0 %v6263
        %v6977 = vpop.f32.mrb[0].mxu0
        %v6978 = vadd.f32 0.0, %v6977
        %v6979 = vpop.f32.mrb[0].mxu0
        %6980 = vmatprep.mubr.f32.mxu0 0.0
        %6981 = vmatmul.mubr.f32.gmra.mrb[0].mxu0 %v6264
        %v6982 = vpop.f32.mrb[0].mxu0
        %v6983 = vadd.f32 0.0, %v6982
        %v6984 = vpop.f32.mrb[0].mxu0
        %6985 = vmatprep.mubr.f32.mxu0 0.0
        %6986 = vmatmul.mubr.f32.gmra.mrb[0].mxu0 %v6265
        %v6987 = vpop.f32.mrb[0].mxu0
        %v6988 = vadd.f32 0.0, %v6987
        %v6989 = vpop.f32.mrb[0].mxu0
        %6990 = vmatprep.mubr.f32.mxu0 0.0
        %6991 = vmatmul.mubr.f32.gmra.mrb[0].mxu0 %v6266
        %v6992 = vpop.f32.mrb[0].mxu0
        %v6993 = vadd.f32 0.0, %v6992
        %v6994 = vpop.f32.mrb[0].mxu0
        %6995 = vmatprep.mubr.f32.mxu0 0.0
        %6996 = vmatmul.mubr.f32.gmra.mrb[0].mxu0 %v6267
        %v6997 = vpop.f32.mrb[0].mxu0
        %v6998 = vadd.f32 0.0, %v6997
        %v6999 = vpop.f32.mrb[0].mxu0
        %7000 = vmatprep.mubr.f32.mxu0 0.0
        %7001 = vmatmul.mubr.f32.gmra.mrb[0].mxu0 %v6268
        %v7002 = vpop.f32.mrb[0].mxu0
        %v7003 = vadd.f32 0.0, %v7002
        %v7004 = vpop.f32.mrb[0].mxu0
        %7005 = vmatprep.mubr.f32.mxu0 0.0
        %7006 = vmatmul.mubr.f32.gmra.mrb[0].mxu0 %v6269
        %v7007 = vpop.f32.mrb[0].mxu0
        %v7008 = vadd.f32 0.0, %v7007
        %v7009 = vpop.f32.mrb[0].mxu0
        %7010 = vmatprep.mubr.f32.mxu0 0.0
        %7011 = vmatmul.mubr.f32.gmra.mrb[0].mxu0 %v6270
        %v7012 = vpop.f32.mrb[0].mxu0
        %v7013 = vadd.f32 0.0, %v7012
        %v7014 = vpop.f32.mrb[0].mxu0
        %7015 = vmatprep.mubr.f32.mxu0 0.0
        %7016 = vmatmul.mubr.f32.gmra.mrb[0].mxu0 %v6271
        %v7017 = vpop.f32.mrb[0].mxu0
        %v7018 = vadd.f32 0.0, %v7017
        %v7019 = vpop.f32.mrb[0].mxu0
        %7020 = vmatprep.mubr.f32.mxu0 0.0
        %7021 = vmatmul.mubr.f32.gmra.mrb[0].mxu0 %v6272
        %v7022 = vpop.f32.mrb[0].mxu0
        %v7023 = vadd.f32 0.0, %v7022
        %v7024 = vpop.f32.mrb[0].mxu0
        %7025 = vmatprep.mubr.f32.mxu0 0.0
        %7026 = vmatmul.mubr.f32.gmra.mrb[0].mxu0 %v6273
        %v7027 = vpop.f32.mrb[0].mxu0
        %v7028 = vadd.f32 0.0, %v7027
        %v7029 = vpop.f32.mrb[0].mxu0
        %7030 = vmatprep.mubr.f32.mxu0 0.0
        %7031 = vmatmul.mubr.f32.gmra.mrb[0].mxu0 %v6274
        %v7032 = vpop.f32.mrb[0].mxu0
        %v7033 = vadd.f32 0.0, %v7032
        %v7034 = vpop.f32.mrb[0].mxu0
        %7035 = vmatprep.mubr.f32.mxu0 0.0
        %7036 = vmatmul.mubr.f32.gmra.mrb[0].mxu0 %v6275
        %v7037 = vpop.f32.mrb[0].mxu0
        %v7038 = vadd.f32 0.0, %v7037
        %v7039 = vpop.f32.mrb[0].mxu0
        %7040 = vmatprep.mubr.f32.mxu0 0.0
        %7041 = vmatmul.mubr.f32.gmra.mrb[0].mxu0 %v6276
        %v7042 = vpop.f32.mrb[0].mxu0
        %v7043 = vadd.f32 0.0, %v7042
        %v7044 = vpop.f32.mrb[0].mxu0
        %7045 = vmatprep.mubr.f32.mxu0 0.0
        %7046 = vmatmul.mubr.f32.gmra.mrb[0].mxu0 %v6277
        %v7047 = vpop.f32.mrb[0].mxu0
        %v7048 = vadd.f32 0.0, %v7047
        %v7049 = vpop.f32.mrb[0].mxu0
        %7050 = vdwg.mxu0
        %7051 = vmatprep.subr.mxu0 0.0
        %7052 = vmatpush1.msra.mxu0 %v5960
        %7053 = vmatprep.subr.mxu0 0.0
        %7054 = vmatpush1.msra.mxu0 %v5965
        %7055 = vmatprep.subr.mxu0 0.0
        %7056 = vmatpush1.msra.mxu0 %v5970
        %7057 = vmatprep.subr.mxu0 0.0
        %7058 = vmatpush1.msra.mxu0 %v5975
        %7059 = vmatprep.subr.mxu0 0.0
        %7060 = vmatpush1.msra.mxu0 %v5980
        %7061 = vmatprep.subr.mxu0 0.0
        %7062 = vmatpush1.msra.mxu0 %v5985
        %7063 = vmatprep.subr.mxu0 0.0
        %7064 = vmatpush1.msra.mxu0 %v5990
        %7065 = vmatprep.subr.mxu0 0.0
        %7066 = vmatpush1.msra.mxu0 %v5995
        %7067 = vmatprep.subr.mxu0 0.0
        %7068 = vmatpush1.msra.mxu0 %v6000
        %7069 = vmatprep.subr.mxu0 0.0
        %7070 = vmatpush1.msra.mxu0 %v6005
        %7071 = vmatprep.subr.mxu0 0.0
        %7072 = vmatpush1.msra.mxu0 %v6010
        %7073 = vmatprep.subr.mxu0 0.0
        %7074 = vmatpush1.msra.mxu0 %v6015
        %7075 = vmatprep.subr.mxu0 0.0
        %7076 = vmatpush1.msra.mxu0 %v6020
        %7077 = vmatprep.subr.mxu0 0.0
        %7078 = vmatpush1.msra.mxu0 %v6025
        %7079 = vmatprep.subr.mxu0 0.0
        %7080 = vmatpush1.msra.mxu0 %v6030
        %7081 = vmatprep.subr.mxu0 0.0
        %7082 = vmatpush1.msra.mxu0 %v6035
        %7083 = vmatprep.subr.mxu0 0.0
        %7084 = vmatpush1.msra.mxu0 0.0
        %7085 = vmatprep.subr.mxu0 0.0
        %7086 = vmatpush1.msra.mxu0 0.0
        %7087 = vmatprep.subr.mxu0 0.0
        %7088 = vmatpush1.msra.mxu0 0.0
        %7089 = vmatprep.subr.mxu0 0.0
        %7090 = vmatpush1.msra.mxu0 0.0
        %7091 = vmatprep.subr.mxu0 0.0
        %7092 = vmatpush1.msra.mxu0 0.0
        %7093 = vmatprep.subr.mxu0 0.0
        %7094 = vmatpush1.msra.mxu0 0.0
        %7095 = vmatprep.subr.mxu0 0.0
        %7096 = vmatpush1.msra.mxu0 0.0
        %7097 = vmatprep.subr.mxu0 0.0
        %7098 = vmatpush1.msra.mxu0 0.0
        %7099 = vmatprep.subr.mxu0 0.0
        %7100 = vmatpush1.msra.mxu0 0.0
        %7101 = vmatprep.subr.mxu0 0.0
        %7102 = vmatpush1.msra.mxu0 0.0
        %7103 = vmatprep.subr.mxu0 0.0
        %7104 = vmatpush1.msra.mxu0 0.0
        %7105 = vmatprep.subr.mxu0 0.0
        %7106 = vmatpush1.msra.mxu0 0.0
        %7107 = vmatprep.subr.mxu0 0.0
        %7108 = vmatpush1.msra.mxu0 0.0
        %7109 = vmatprep.subr.mxu0 0.0
        %7110 = vmatpush1.msra.mxu0 0.0
        %7111 = vmatprep.subr.mxu0 0.0
        %7112 = vmatpush1.msra.mxu0 0.0
        %7113 = vmatprep.subr.mxu0 0.0
        %7114 = vmatpush1.msra.mxu0 0.0
        %7115 = vmatprep.mubr.f32.mxu0 0.0
        %7116 = vmatmul.mubr.f32.gmra.mrb[0].mxu0 %v6278
        %v7117 = vpop.f32.mrb[0].mxu0
        %v7118 = vadd.f32 0.0, %v7117
        %v7119 = vpop.f32.mrb[0].mxu0
        %7120 = vmatprep.mubr.f32.mxu0 0.0
        %7121 = vmatmul.mubr.f32.gmra.mrb[0].mxu0 %v6279
        %v7122 = vpop.f32.mrb[0].mxu0
        %v7123 = vadd.f32 0.0, %v7122
        %v7124 = vpop.f32.mrb[0].mxu0
        %7125 = vmatprep.mubr.f32.mxu0 0.0
        %7126 = vmatmul.mubr.f32.gmra.mrb[0].mxu0 %v6280
        %v7127 = vpop.f32.mrb[0].mxu0
        %v7128 = vadd.f32 0.0, %v7127
        %v7129 = vpop.f32.mrb[0].mxu0
        %7130 = vmatprep.mubr.f32.mxu0 0.0
        %7131 = vmatmul.mubr.f32.gmra.mrb[0].mxu0 %v6281
        %v7132 = vpop.f32.mrb[0].mxu0
        %v7133 = vadd.f32 0.0, %v7132
        %v7134 = vpop.f32.mrb[0].mxu0
        %7135 = vmatprep.mubr.f32.mxu0 0.0
        %7136 = vmatmul.mubr.f32.gmra.mrb[0].mxu0 %v6282
        %v7137 = vpop.f32.mrb[0].mxu0
        %v7138 = vadd.f32 0.0, %v7137
        %v7139 = vpop.f32.mrb[0].mxu0
        %7140 = vmatprep.mubr.f32.mxu0 0.0
        %7141 = vmatmul.mubr.f32.gmra.mrb[0].mxu0 %v6283
        %v7142 = vpop.f32.mrb[0].mxu0
        %v7143 = vadd.f32 0.0, %v7142
        %v7144 = vpop.f32.mrb[0].mxu0
        %7145 = vmatprep.mubr.f32.mxu0 0.0
        %7146 = vmatmul.mubr.f32.gmra.mrb[0].mxu0 %v6284
        %v7147 = vpop.f32.mrb[0].mxu0
        %v7148 = vadd.f32 0.0, %v7147
        %v7149 = vpop.f32.mrb[0].mxu0
        %7150 = vmatprep.mubr.f32.mxu0 0.0
        %7151 = vmatmul.mubr.f32.gmra.mrb[0].mxu0 %v6285
        %v7152 = vpop.f32.mrb[0].mxu0
        %v7153 = vadd.f32 0.0, %v7152
        %v7154 = vpop.f32.mrb[0].mxu0
        %7155 = vmatprep.mubr.f32.mxu0 0.0
        %7156 = vmatmul.mubr.f32.gmra.mrb[0].mxu0 %v6286
        %v7157 = vpop.f32.mrb[0].mxu0
        %v7158 = vadd.f32 0.0, %v7157
        %v7159 = vpop.f32.mrb[0].mxu0
        %7160 = vmatprep.mubr.f32.mxu0 0.0
        %7161 = vmatmul.mubr.f32.gmra.mrb[0].mxu0 %v6287
        %v7162 = vpop.f32.mrb[0].mxu0
        %v7163 = vadd.f32 0.0, %v7162
        %v7164 = vpop.f32.mrb[0].mxu0
        %7165 = vmatprep.mubr.f32.mxu0 0.0
        %7166 = vmatmul.mubr.f32.gmra.mrb[0].mxu0 %v6288
        %v7167 = vpop.f32.mrb[0].mxu0
        %v7168 = vadd.f32 0.0, %v7167
        %v7169 = vpop.f32.mrb[0].mxu0
        %7170 = vmatprep.mubr.f32.mxu0 0.0
        %7171 = vmatmul.mubr.f32.gmra.mrb[0].mxu0 %v6289
        %v7172 = vpop.f32.mrb[0].mxu0
        %v7173 = vadd.f32 0.0, %v7172
        %v7174 = vpop.f32.mrb[0].mxu0
        %7175 = vmatprep.mubr.f32.mxu0 0.0
        %7176 = vmatmul.mubr.f32.gmra.mrb[0].mxu0 %v6290
        %v7177 = vpop.f32.mrb[0].mxu0
        %v7178 = vadd.f32 0.0, %v7177
        %v7179 = vpop.f32.mrb[0].mxu0
        %7180 = vmatprep.mubr.f32.mxu0 0.0
        %7181 = vmatmul.mubr.f32.gmra.mrb[0].mxu0 %v6291
        %v7182 = vpop.f32.mrb[0].mxu0
        %v7183 = vadd.f32 0.0, %v7182
        %v7184 = vpop.f32.mrb[0].mxu0
        %7185 = vmatprep.mubr.f32.mxu0 0.0
        %7186 = vmatmul.mubr.f32.gmra.mrb[0].mxu0 %v6292
        %v7187 = vpop.f32.mrb[0].mxu0
        %v7188 = vadd.f32 0.0, %v7187
        %v7189 = vpop.f32.mrb[0].mxu0
        %7190 = vmatprep.mubr.f32.mxu0 0.0
        %7191 = vmatmul.mubr.f32.gmra.mrb[0].mxu0 %v6293
        %v7192 = vpop.f32.mrb[0].mxu0
        %v7193 = vadd.f32 0.0, %v7192
        %v7194 = vpop.f32.mrb[0].mxu0
        %7195 = vdwg.mxu0
        %7196 = vmatprep.subr.mxu0 0.0
        %7197 = vmatpush1.msra.mxu0 %v6040
        %7198 = vmatprep.subr.mxu0 0.0
        %7199 = vmatpush1.msra.mxu0 %v6045
        %7200 = vmatprep.subr.mxu0 0.0
        %7201 = vmatpush1.msra.mxu0 %v6050
        %7202 = vmatprep.subr.mxu0 0.0
        %7203 = vmatpush1.msra.mxu0 %v6055
        %7204 = vmatprep.subr.mxu0 0.0
        %7205 = vmatpush1.msra.mxu0 %v6060
        %7206 = vmatprep.subr.mxu0 0.0
        %7207 = vmatpush1.msra.mxu0 %v6065
        %7208 = vmatprep.subr.mxu0 0.0
        %7209 = vmatpush1.msra.mxu0 %v6070
        %7210 = vmatprep.subr.mxu0 0.0
        %7211 = vmatpush1.msra.mxu0 %v6075
        %7212 = vmatprep.subr.mxu0 0.0
        %7213 = vmatpush1.msra.mxu0 %v6080
        %7214 = vmatprep.subr.mxu0 0.0
        %7215 = vmatpush1.msra.mxu0 %v6085
        %7216 = vmatprep.subr.mxu0 0.0
        %7217 = vmatpush1.msra.mxu0 %v6090
        %7218 = vmatprep.subr.mxu0 0.0
        %7219 = vmatpush1.msra.mxu0 %v6095
        %7220 = vmatprep.subr.mxu0 0.0
        %7221 = vmatpush1.msra.mxu0 %v6100
        %7222 = vmatprep.subr.mxu0 0.0
        %7223 = vmatpush1.msra.mxu0 %v6105
        %7224 = vmatprep.subr.mxu0 0.0
        %7225 = vmatpush1.msra.mxu0 %v6110
        %7226 = vmatprep.subr.mxu0 0.0
        %7227 = vmatpush1.msra.mxu0 %v6115
        %7228 = vmatprep.subr.mxu0 0.0
        %7229 = vmatpush1.msra.mxu0 0.0
        %7230 = vmatprep.subr.mxu0 0.0
        %7231 = vmatpush1.msra.mxu0 0.0
        %7232 = vmatprep.subr.mxu0 0.0
        %7233 = vmatpush1.msra.mxu0 0.0
        %7234 = vmatprep.subr.mxu0 0.0
        %7235 = vmatpush1.msra.mxu0 0.0
        %7236 = vmatprep.subr.mxu0 0.0
        %7237 = vmatpush1.msra.mxu0 0.0
        %7238 = vmatprep.subr.mxu0 0.0
        %7239 = vmatpush1.msra.mxu0 0.0
        %7240 = vmatprep.subr.mxu0 0.0
        %7241 = vmatpush1.msra.mxu0 0.0
        %7242 = vmatprep.subr.mxu0 0.0
        %7243 = vmatpush1.msra.mxu0 0.0
        %7244 = vmatprep.subr.mxu0 0.0
        %7245 = vmatpush1.msra.mxu0 0.0
        %7246 = vmatprep.subr.mxu0 0.0
        %7247 = vmatpush1.msra.mxu0 0.0
        %7248 = vmatprep.subr.mxu0 0.0
        %7249 = vmatpush1.msra.mxu0 0.0
        %7250 = vmatprep.subr.mxu0 0.0
        %7251 = vmatpush1.msra.mxu0 0.0
        %7252 = vmatprep.subr.mxu0 0.0
        %7253 = vmatpush1.msra.mxu0 0.0
        %7254 = vmatprep.subr.mxu0 0.0
        %7255 = vmatpush1.msra.mxu0 0.0
        %7256 = vmatprep.subr.mxu0 0.0
        %7257 = vmatpush1.msra.mxu0 0.0
        %7258 = vmatprep.subr.mxu0 0.0
        %7259 = vmatpush1.msra.mxu0 0.0
        %7260 = vmatprep.mubr.f32.mxu0 0.0
        %7261 = vmatmul.mubr.f32.gmra.mrb[0].mxu0 %v6294
        %v7262 = vpop.f32.mrb[0].mxu0
        %v7263 = vadd.f32 0.0, %v7262
        %v7264 = vpop.f32.mrb[0].mxu0
        %7265 = vmatprep.mubr.f32.mxu0 0.0
        %7266 = vmatmul.mubr.f32.gmra.mrb[0].mxu0 %v6295
        %v7267 = vpop.f32.mrb[0].mxu0
        %v7268 = vadd.f32 0.0, %v7267
        %v7269 = vpop.f32.mrb[0].mxu0
        %7270 = vmatprep.mubr.f32.mxu0 0.0
        %7271 = vmatmul.mubr.f32.gmra.mrb[0].mxu0 %v6296
        %v7272 = vpop.f32.mrb[0].mxu0
        %v7273 = vadd.f32 0.0, %v7272
        %v7274 = vpop.f32.mrb[0].mxu0
        %7275 = vmatprep.mubr.f32.mxu0 0.0
        %7276 = vmatmul.mubr.f32.gmra.mrb[0].mxu0 %v6297
        %v7277 = vpop.f32.mrb[0].mxu0
        %v7278 = vadd.f32 0.0, %v7277
        %v7279 = vpop.f32.mrb[0].mxu0
        %7280 = vmatprep.mubr.f32.mxu0 0.0
        %7281 = vmatmul.mubr.f32.gmra.mrb[0].mxu0 %v6298
        %v7282 = vpop.f32.mrb[0].mxu0
        %v7283 = vadd.f32 0.0, %v7282
        %v7284 = vpop.f32.mrb[0].mxu0
        %7285 = vmatprep.mubr.f32.mxu0 0.0
        %7286 = vmatmul.mubr.f32.gmra.mrb[0].mxu0 %v6299
        %v7287 = vpop.f32.mrb[0].mxu0
        %v7288 = vadd.f32 0.0, %v7287
        %v7289 = vpop.f32.mrb[0].mxu0
        %7290 = vmatprep.mubr.f32.mxu0 0.0
        %7291 = vmatmul.mubr.f32.gmra.mrb[0].mxu0 %v6300
        %v7292 = vpop.f32.mrb[0].mxu0
        %v7293 = vadd.f32 0.0, %v7292
        %v7294 = vpop.f32.mrb[0].mxu0
        %7295 = vmatprep.mubr.f32.mxu0 0.0
        %7296 = vmatmul.mubr.f32.gmra.mrb[0].mxu0 %v6301
        %v7297 = vpop.f32.mrb[0].mxu0
        %v7298 = vadd.f32 0.0, %v7297
        %v7299 = vpop.f32.mrb[0].mxu0
        %7300 = vmatprep.mubr.f32.mxu0 0.0
        %7301 = vmatmul.mubr.f32.gmra.mrb[0].mxu0 %v6302
        %v7302 = vpop.f32.mrb[0].mxu0
        %v7303 = vadd.f32 0.0, %v7302
        %v7304 = vpop.f32.mrb[0].mxu0
        %7305 = vmatprep.mubr.f32.mxu0 0.0
        %7306 = vmatmul.mubr.f32.gmra.mrb[0].mxu0 %v6303
        %v7307 = vpop.f32.mrb[0].mxu0
        %v7308 = vadd.f32 0.0, %v7307
        %v7309 = vpop.f32.mrb[0].mxu0
        %7310 = vmatprep.mubr.f32.mxu0 0.0
        %7311 = vmatmul.mubr.f32.gmra.mrb[0].mxu0 %v6304
        %v7312 = vpop.f32.mrb[0].mxu0
        %v7313 = vadd.f32 0.0, %v7312
        %v7314 = vpop.f32.mrb[0].mxu0
        %7315 = vmatprep.mubr.f32.mxu0 0.0
        %7316 = vmatmul.mubr.f32.gmra.mrb[0].mxu0 %v6305
        %v7317 = vpop.f32.mrb[0].mxu0
        %v7318 = vadd.f32 0.0, %v7317
        %v7319 = vpop.f32.mrb[0].mxu0
        %7320 = vmatprep.mubr.f32.mxu0 0.0
        %7321 = vmatmul.mubr.f32.gmra.mrb[0].mxu0 %v6306
        %v7322 = vpop.f32.mrb[0].mxu0
        %v7323 = vadd.f32 0.0, %v7322
        %v7324 = vpop.f32.mrb[0].mxu0
        %7325 = vmatprep.mubr.f32.mxu0 0.0
        %7326 = vmatmul.mubr.f32.gmra.mrb[0].mxu0 %v6307
        %v7327 = vpop.f32.mrb[0].mxu0
        %v7328 = vadd.f32 0.0, %v7327
        %v7329 = vpop.f32.mrb[0].mxu0
        %7330 = vmatprep.mubr.f32.mxu0 0.0
        %7331 = vmatmul.mubr.f32.gmra.mrb[0].mxu0 %v6308
        %v7332 = vpop.f32.mrb[0].mxu0
        %v7333 = vadd.f32 0.0, %v7332
        %v7334 = vpop.f32.mrb[0].mxu0
        %7335 = vmatprep.mubr.f32.mxu0 0.0
        %7336 = vmatmul.mubr.f32.gmra.mrb[0].mxu0 %v6309
        %v7337 = vpop.f32.mrb[0].mxu0
        %v7338 = vadd.f32 0.0, %v7337
        %v7339 = vpop.f32.mrb[0].mxu0
        %7340 = vdwg.mxu0
        %7341 = vmatprep.subr.mxu0 0.0
        %7342 = vmatpush1.msra.mxu0 %v6120
        %7343 = vmatprep.subr.mxu0 0.0
        %7344 = vmatpush1.msra.mxu0 %v6125
        %7345 = vmatprep.subr.mxu0 0.0
        %7346 = vmatpush1.msra.mxu0 %v6130
        %7347 = vmatprep.subr.mxu0 0.0
        %7348 = vmatpush1.msra.mxu0 %v6135
        %7349 = vmatprep.subr.mxu0 0.0
        %7350 = vmatpush1.msra.mxu0 %v6140
        %7351 = vmatprep.subr.mxu0 0.0
        %7352 = vmatpush1.msra.mxu0 %v6145
        %7353 = vmatprep.subr.mxu0 0.0
        %7354 = vmatpush1.msra.mxu0 %v6150
        %7355 = vmatprep.subr.mxu0 0.0
        %7356 = vmatpush1.msra.mxu0 %v6155
        %7357 = vmatprep.subr.mxu0 0.0
        %7358 = vmatpush1.msra.mxu0 %v6160
        %7359 = vmatprep.subr.mxu0 0.0
        %7360 = vmatpush1.msra.mxu0 %v6165
        %7361 = vmatprep.subr.mxu0 0.0
        %7362 = vmatpush1.msra.mxu0 %v6170
        %7363 = vmatprep.subr.mxu0 0.0
        %7364 = vmatpush1.msra.mxu0 %v6175
        %7365 = vmatprep.subr.mxu0 0.0
        %7366 = vmatpush1.msra.mxu0 %v6180
        %7367 = vmatprep.subr.mxu0 0.0
        %7368 = vmatpush1.msra.mxu0 %v6185
        %7369 = vmatprep.subr.mxu0 0.0
        %7370 = vmatpush1.msra.mxu0 %v6190
        %7371 = vmatprep.subr.mxu0 0.0
        %7372 = vmatpush1.msra.mxu0 %v6195
        %7373 = vmatprep.subr.mxu0 0.0
        %7374 = vmatpush1.msra.mxu0 0.0
        %7375 = vmatprep.subr.mxu0 0.0
        %7376 = vmatpush1.msra.mxu0 0.0
        %7377 = vmatprep.subr.mxu0 0.0
        %7378 = vmatpush1.msra.mxu0 0.0
        %7379 = vmatprep.subr.mxu0 0.0
        %7380 = vmatpush1.msra.mxu0 0.0
        %7381 = vmatprep.subr.mxu0 0.0
        %7382 = vmatpush1.msra.mxu0 0.0
        %7383 = vmatprep.subr.mxu0 0.0
        %7384 = vmatpush1.msra.mxu0 0.0
        %7385 = vmatprep.subr.mxu0 0.0
        %7386 = vmatpush1.msra.mxu0 0.0
        %7387 = vmatprep.subr.mxu0 0.0
        %7388 = vmatpush1.msra.mxu0 0.0
        %7389 = vmatprep.subr.mxu0 0.0
        %7390 = vmatpush1.msra.mxu0 0.0
        %7391 = vmatprep.subr.mxu0 0.0
        %7392 = vmatpush1.msra.mxu0 0.0
        %7393 = vmatprep.subr.mxu0 0.0
        %7394 = vmatpush1.msra.mxu0 0.0
        %7395 = vmatprep.subr.mxu0 0.0
        %7396 = vmatpush1.msra.mxu0 0.0
        %7397 = vmatprep.subr.mxu0 0.0
        %7398 = vmatpush1.msra.mxu0 0.0
        %7399 = vmatprep.subr.mxu0 0.0
        %7400 = vmatpush1.msra.mxu0 0.0
        %7401 = vmatprep.subr.mxu0 0.0
        %7402 = vmatpush1.msra.mxu0 0.0
        %7403 = vmatprep.subr.mxu0 0.0
        %7404 = vmatpush1.msra.mxu0 0.0
        %7405 = vmatprep.mubr.f32.mxu0 0.0
        %7406 = vmatmul.mubr.f32.gmra.mrb[0].mxu0 %v6310
        %v7407 = vpop.f32.mrb[0].mxu0
        %v7408 = vadd.f32 0.0, %v7407
        %v7409 = vpop.f32.mrb[0].mxu0
        %7410 = vmatprep.mubr.f32.mxu0 0.0
        %7411 = vmatmul.mubr.f32.gmra.mrb[0].mxu0 %v6311
        %v7412 = vpop.f32.mrb[0].mxu0
        %v7413 = vadd.f32 0.0, %v7412
        %v7414 = vpop.f32.mrb[0].mxu0
        %7415 = vmatprep.mubr.f32.mxu0 0.0
        %7416 = vmatmul.mubr.f32.gmra.mrb[0].mxu0 %v6312
        %v7417 = vpop.f32.mrb[0].mxu0
        %v7418 = vadd.f32 0.0, %v7417
        %v7419 = vpop.f32.mrb[0].mxu0
        %7420 = vmatprep.mubr.f32.mxu0 0.0
        %7421 = vmatmul.mubr.f32.gmra.mrb[0].mxu0 %v6313
        %v7422 = vpop.f32.mrb[0].mxu0
        %v7423 = vadd.f32 0.0, %v7422
        %v7424 = vpop.f32.mrb[0].mxu0
        %7425 = vmatprep.mubr.f32.mxu0 0.0
        %7426 = vmatmul.mubr.f32.gmra.mrb[0].mxu0 %v6314
        %v7427 = vpop.f32.mrb[0].mxu0
        %v7428 = vadd.f32 0.0, %v7427
        %v7429 = vpop.f32.mrb[0].mxu0
        %7430 = vmatprep.mubr.f32.mxu0 0.0
        %7431 = vmatmul.mubr.f32.gmra.mrb[0].mxu0 %v6315
        %v7432 = vpop.f32.mrb[0].mxu0
        %v7433 = vadd.f32 0.0, %v7432
        %v7434 = vpop.f32.mrb[0].mxu0
        %7435 = vmatprep.mubr.f32.mxu0 0.0
        %7436 = vmatmul.mubr.f32.gmra.mrb[0].mxu0 %v6316
        %v7437 = vpop.f32.mrb[0].mxu0
        %v7438 = vadd.f32 0.0, %v7437
        %v7439 = vpop.f32.mrb[0].mxu0
        %7440 = vmatprep.mubr.f32.mxu0 0.0
        %7441 = vmatmul.mubr.f32.gmra.mrb[0].mxu0 %v6317
        %v7442 = vpop.f32.mrb[0].mxu0
        %v7443 = vadd.f32 0.0, %v7442
        %v7444 = vpop.f32.mrb[0].mxu0
        %7445 = vmatprep.mubr.f32.mxu0 0.0
        %7446 = vmatmul.mubr.f32.gmra.mrb[0].mxu0 %v6318
        %v7447 = vpop.f32.mrb[0].mxu0
        %v7448 = vadd.f32 0.0, %v7447
        %v7449 = vpop.f32.mrb[0].mxu0
        %7450 = vmatprep.mubr.f32.mxu0 0.0
        %7451 = vmatmul.mubr.f32.gmra.mrb[0].mxu0 %v6319
        %v7452 = vpop.f32.mrb[0].mxu0
        %v7453 = vadd.f32 0.0, %v7452
        %v7454 = vpop.f32.mrb[0].mxu0
        %7455 = vmatprep.mubr.f32.mxu0 0.0
        %7456 = vmatmul.mubr.f32.gmra.mrb[0].mxu0 %v6320
        %v7457 = vpop.f32.mrb[0].mxu0
        %v7458 = vadd.f32 0.0, %v7457
        %v7459 = vpop.f32.mrb[0].mxu0
        %7460 = vmatprep.mubr.f32.mxu0 0.0
        %7461 = vmatmul.mubr.f32.gmra.mrb[0].mxu0 %v6321
        %v7462 = vpop.f32.mrb[0].mxu0
        %v7463 = vadd.f32 0.0, %v7462
        %v7464 = vpop.f32.mrb[0].mxu0
        %7465 = vmatprep.mubr.f32.mxu0 0.0
        %7466 = vmatmul.mubr.f32.gmra.mrb[0].mxu0 %v6322
        %v7467 = vpop.f32.mrb[0].mxu0
        %v7468 = vadd.f32 0.0, %v7467
        %v7469 = vpop.f32.mrb[0].mxu0
        %7470 = vmatprep.mubr.f32.mxu0 0.0
        %7471 = vmatmul.mubr.f32.gmra.mrb[0].mxu0 %v6323
        %v7472 = vpop.f32.mrb[0].mxu0
        %v7473 = vadd.f32 0.0, %v7472
        %v7474 = vpop.f32.mrb[0].mxu0
        %7475 = vmatprep.mubr.f32.mxu0 0.0
        %7476 = vmatmul.mubr.f32.gmra.mrb[0].mxu0 %v6324
        %v7477 = vpop.f32.mrb[0].mxu0
        %v7478 = vadd.f32 0.0, %v7477
        %v7479 = vpop.f32.mrb[0].mxu0
        %7480 = vmatprep.mubr.f32.mxu0 0.0
        %7481 = vmatmul.mubr.f32.gmra.mrb[0].mxu0 %v6325
        %v7482 = vpop.f32.mrb[0].mxu0
        %v7483 = vadd.f32 0.0, %v7482
        %v7484 = vpop.f32.mrb[0].mxu0
        %7485 = vdwg.mxu0
        %v7486 = vld [vmem:[%s8] sm:$0x1]
        %v7488 = vlaneseq
        %v7489 = vshrl.u32 %v7488, 7
        %v7490 = vsub.s32 0, %v7489
        %v7491 = vrot.slane %v7486, %v7490
        %v7493 = vadd.f32 %v6393, %v7491
        %v7494 = vadd.f32 %v6398, %v7491
        %v7495 = vadd.f32 %v6403, %v7491
        %v7496 = vadd.f32 %v6408, %v7491
        %v7497 = vadd.f32 %v6413, %v7491
        %v7498 = vadd.f32 %v6418, %v7491
        %v7499 = vadd.f32 %v6423, %v7491
        %v7500 = vadd.f32 %v6428, %v7491
        %v7501 = vadd.f32 %v6433, %v7491
        %v7502 = vadd.f32 %v6438, %v7491
        %v7503 = vadd.f32 %v6443, %v7491
        %v7504 = vadd.f32 %v6448, %v7491
        %v7505 = vadd.f32 %v6453, %v7491
        %v7506 = vadd.f32 %v6458, %v7491
        %v7507 = vadd.f32 %v6463, %v7491
        %v7508 = vadd.f32 %v6468, %v7491
        %v7509 = vadd.f32 %v6538, %v7491
        %v7510 = vadd.f32 %v6543, %v7491
        %v7511 = vadd.f32 %v6548, %v7491
        %v7512 = vadd.f32 %v6553, %v7491
        %v7513 = vadd.f32 %v6558, %v7491
        %v7514 = vadd.f32 %v6563, %v7491
        %v7515 = vadd.f32 %v6568, %v7491
        %v7516 = vadd.f32 %v6573, %v7491
        %v7517 = vadd.f32 %v6578, %v7491
        %v7518 = vadd.f32 %v6583, %v7491
        %v7519 = vadd.f32 %v6588, %v7491
        %v7520 = vadd.f32 %v6593, %v7491
        %v7521 = vadd.f32 %v6598, %v7491
        %v7522 = vadd.f32 %v6603, %v7491
        %v7523 = vadd.f32 %v6608, %v7491
        %v7524 = vadd.f32 %v6613, %v7491
        %v7525 = vadd.f32 %v6683, %v7491
        %v7526 = vadd.f32 %v6688, %v7491
        %v7527 = vadd.f32 %v6693, %v7491
        %v7528 = vadd.f32 %v6698, %v7491
        %v7529 = vadd.f32 %v6703, %v7491
        %v7530 = vadd.f32 %v6708, %v7491
        %v7531 = vadd.f32 %v6713, %v7491
        %v7532 = vadd.f32 %v6718, %v7491
        %v7533 = vadd.f32 %v6723, %v7491
        %v7534 = vadd.f32 %v6728, %v7491
        %v7535 = vadd.f32 %v6733, %v7491
        %v7536 = vadd.f32 %v6738, %v7491
        %v7537 = vadd.f32 %v6743, %v7491
        %v7538 = vadd.f32 %v6748, %v7491
        %v7539 = vadd.f32 %v6753, %v7491
        %v7540 = vadd.f32 %v6758, %v7491
        %v7541 = vadd.f32 %v6828, %v7491
        %v7542 = vadd.f32 %v6833, %v7491
        %v7543 = vadd.f32 %v6838, %v7491
        %v7544 = vadd.f32 %v6843, %v7491
        %v7545 = vadd.f32 %v6848, %v7491
        %v7546 = vadd.f32 %v6853, %v7491
        %v7547 = vadd.f32 %v6858, %v7491
        %v7548 = vadd.f32 %v6863, %v7491
        %v7549 = vadd.f32 %v6868, %v7491
        %v7550 = vadd.f32 %v6873, %v7491
        %v7551 = vadd.f32 %v6878, %v7491
        %v7552 = vadd.f32 %v6883, %v7491
        %v7553 = vadd.f32 %v6888, %v7491
        %v7554 = vadd.f32 %v6893, %v7491
        %v7555 = vadd.f32 %v6898, %v7491
        %v7556 = vadd.f32 %v6903, %v7491
        %v7557 = vadd.f32 %v6973, %v7491
        %v7558 = vadd.f32 %v6978, %v7491
        %v7559 = vadd.f32 %v6983, %v7491
        %v7560 = vadd.f32 %v6988, %v7491
        %v7561 = vadd.f32 %v6993, %v7491
        %v7562 = vadd.f32 %v6998, %v7491
        %v7563 = vadd.f32 %v7003, %v7491
        %v7564 = vadd.f32 %v7008, %v7491
        %v7565 = vadd.f32 %v7013, %v7491
        %v7566 = vadd.f32 %v7018, %v7491
        %v7567 = vadd.f32 %v7023, %v7491
        %v7568 = vadd.f32 %v7028, %v7491
        %v7569 = vadd.f32 %v7033, %v7491
        %v7570 = vadd.f32 %v7038, %v7491
        %v7571 = vadd.f32 %v7043, %v7491
        %v7572 = vadd.f32 %v7048, %v7491
        %v7573 = vadd.f32 %v7118, %v7491
        %v7574 = vadd.f32 %v7123, %v7491
        %v7575 = vadd.f32 %v7128, %v7491
        %v7576 = vadd.f32 %v7133, %v7491
        %v7577 = vadd.f32 %v7138, %v7491
        %v7578 = vadd.f32 %v7143, %v7491
        %v7579 = vadd.f32 %v7148, %v7491
        %v7580 = vadd.f32 %v7153, %v7491
        %v7581 = vadd.f32 %v7158, %v7491
        %v7582 = vadd.f32 %v7163, %v7491
        %v7583 = vadd.f32 %v7168, %v7491
        %v7584 = vadd.f32 %v7173, %v7491
        %v7585 = vadd.f32 %v7178, %v7491
        %v7586 = vadd.f32 %v7183, %v7491
        %v7587 = vadd.f32 %v7188, %v7491
        %v7588 = vadd.f32 %v7193, %v7491
        %v7589 = vadd.f32 %v7263, %v7491
        %v7590 = vadd.f32 %v7268, %v7491
        %v7591 = vadd.f32 %v7273, %v7491
        %v7592 = vadd.f32 %v7278, %v7491
        %v7593 = vadd.f32 %v7283, %v7491
        %v7594 = vadd.f32 %v7288, %v7491
        %v7595 = vadd.f32 %v7293, %v7491
        %v7596 = vadd.f32 %v7298, %v7491
        %v7597 = vadd.f32 %v7303, %v7491
        %v7598 = vadd.f32 %v7308, %v7491
        %v7599 = vadd.f32 %v7313, %v7491
        %v7600 = vadd.f32 %v7318, %v7491
        %v7601 = vadd.f32 %v7323, %v7491
        %v7602 = vadd.f32 %v7328, %v7491
        %v7603 = vadd.f32 %v7333, %v7491
        %v7604 = vadd.f32 %v7338, %v7491
        %v7605 = vadd.f32 %v7408, %v7491
        %v7606 = vadd.f32 %v7413, %v7491
        %v7607 = vadd.f32 %v7418, %v7491
        %v7608 = vadd.f32 %v7423, %v7491
        %v7609 = vadd.f32 %v7428, %v7491
        %v7610 = vadd.f32 %v7433, %v7491
        %v7611 = vadd.f32 %v7438, %v7491
        %v7612 = vadd.f32 %v7443, %v7491
        %v7613 = vadd.f32 %v7448, %v7491
        %v7614 = vadd.f32 %v7453, %v7491
        %v7615 = vadd.f32 %v7458, %v7491
        %v7616 = vadd.f32 %v7463, %v7491
        %v7617 = vadd.f32 %v7468, %v7491
        %v7618 = vadd.f32 %v7473, %v7491
        %v7619 = vadd.f32 %v7478, %v7491
        %v7620 = vadd.f32 %v7483, %v7491
        %v7621 = vld [vmem:[%s432] sm:$0x1]
        %v7622 = vld [vmem:[%s432 + $0x1] sm:$0x1]
        %v7623 = vld [vmem:[%s432 + $0x2] sm:$0x1]
        %v7624 = vld [vmem:[%s432 + $0x3] sm:$0x1]
        %v7625 = vld [vmem:[%s432 + $0x4] sm:$0x1]
        %v7626 = vld [vmem:[%s432 + $0x5] sm:$0x1]
        %v7627 = vld [vmem:[%s432 + $0x6] sm:$0x1]
        %v7628 = vld [vmem:[%s432 + $0x7] sm:$0x1]
        %7629 = vmatprep.subr.mxu0 0.0
        %7630 = vmatpush1.msra.mxu0 %v7493
        %7631 = vmatprep.subr.mxu0 0.0
        %7632 = vmatpush1.msra.mxu0 %v7494
        %7633 = vmatprep.subr.mxu0 0.0
        %7634 = vmatpush1.msra.mxu0 %v7495
        %7635 = vmatprep.subr.mxu0 0.0
        %7636 = vmatpush1.msra.mxu0 %v7496
        %7637 = vmatprep.subr.mxu0 0.0
        %7638 = vmatpush1.msra.mxu0 %v7497
        %7639 = vmatprep.subr.mxu0 0.0
        %7640 = vmatpush1.msra.mxu0 %v7498
        %7641 = vmatprep.subr.mxu0 0.0
        %7642 = vmatpush1.msra.mxu0 %v7499
        %7643 = vmatprep.subr.mxu0 0.0
        %7644 = vmatpush1.msra.mxu0 %v7500
        %7645 = vmatprep.subr.mxu0 0.0
        %7646 = vmatpush1.msra.mxu0 %v7501
        %7647 = vmatprep.subr.mxu0 0.0
        %7648 = vmatpush1.msra.mxu0 %v7502
        %7649 = vmatprep.subr.mxu0 0.0
        %7650 = vmatpush1.msra.mxu0 %v7503
        %7651 = vmatprep.subr.mxu0 0.0
        %7652 = vmatpush1.msra.mxu0 %v7504
        %7653 = vmatprep.subr.mxu0 0.0
        %7654 = vmatpush1.msra.mxu0 %v7505
        %7655 = vmatprep.subr.mxu0 0.0
        %7656 = vmatpush1.msra.mxu0 %v7506
        %7657 = vmatprep.subr.mxu0 0.0
        %7658 = vmatpush1.msra.mxu0 %v7507
        %7659 = vmatprep.subr.mxu0 0.0
        %7660 = vmatpush1.msra.mxu0 %v7508
        %7661 = vmatprep.subr.mxu0 0.0
        %7662 = vmatpush1.msra.mxu0 0.0
        %7663 = vmatprep.subr.mxu0 0.0
        %7664 = vmatpush1.msra.mxu0 0.0
        %7665 = vmatprep.subr.mxu0 0.0
        %7666 = vmatpush1.msra.mxu0 0.0
        %7667 = vmatprep.subr.mxu0 0.0
        %7668 = vmatpush1.msra.mxu0 0.0
        %7669 = vmatprep.subr.mxu0 0.0
        %7670 = vmatpush1.msra.mxu0 0.0
        %7671 = vmatprep.subr.mxu0 0.0
        %7672 = vmatpush1.msra.mxu0 0.0
        %7673 = vmatprep.subr.mxu0 0.0
        %7674 = vmatpush1.msra.mxu0 0.0
        %7675 = vmatprep.subr.mxu0 0.0
        %7676 = vmatpush1.msra.mxu0 0.0
        %7677 = vmatprep.subr.mxu0 0.0
        %7678 = vmatpush1.msra.mxu0 0.0
        %7679 = vmatprep.subr.mxu0 0.0
        %7680 = vmatpush1.msra.mxu0 0.0
        %7681 = vmatprep.subr.mxu0 0.0
        %7682 = vmatpush1.msra.mxu0 0.0
        %7683 = vmatprep.subr.mxu0 0.0
        %7684 = vmatpush1.msra.mxu0 0.0
        %7685 = vmatprep.subr.mxu0 0.0
        %7686 = vmatpush1.msra.mxu0 0.0
        %7687 = vmatprep.subr.mxu0 0.0
        %7688 = vmatpush1.msra.mxu0 0.0
        %7689 = vmatprep.subr.mxu0 0.0
        %7690 = vmatpush1.msra.mxu0 0.0
        %7691 = vmatprep.subr.mxu0 0.0
        %7692 = vmatpush1.msra.mxu0 0.0
        %7693 = vmatprep.mubr.f32.mxu0 0.0
        %7694 = vmatmul.mubr.f32.gmra.mrb[0].mxu0 %v7621
        %v7695 = vpop.f32.mrb[0].mxu0
        %v7696 = vadd.f32 0.0, %v7695
        %v7697 = vpop.f32.mrb[0].mxu0
        %7698 = vdwg.mxu0
        %7699 = vmatprep.subr.mxu0 0.0
        %7700 = vmatpush1.msra.mxu0 %v7509
        %7701 = vmatprep.subr.mxu0 0.0
        %7702 = vmatpush1.msra.mxu0 %v7510
        %7703 = vmatprep.subr.mxu0 0.0
        %7704 = vmatpush1.msra.mxu0 %v7511
        %7705 = vmatprep.subr.mxu0 0.0
        %7706 = vmatpush1.msra.mxu0 %v7512
        %7707 = vmatprep.subr.mxu0 0.0
        %7708 = vmatpush1.msra.mxu0 %v7513
        %7709 = vmatprep.subr.mxu0 0.0
        %7710 = vmatpush1.msra.mxu0 %v7514
        %7711 = vmatprep.subr.mxu0 0.0
        %7712 = vmatpush1.msra.mxu0 %v7515
        %7713 = vmatprep.subr.mxu0 0.0
        %7714 = vmatpush1.msra.mxu0 %v7516
        %7715 = vmatprep.subr.mxu0 0.0
        %7716 = vmatpush1.msra.mxu0 %v7517
        %7717 = vmatprep.subr.mxu0 0.0
        %7718 = vmatpush1.msra.mxu0 %v7518
        %7719 = vmatprep.subr.mxu0 0.0
        %7720 = vmatpush1.msra.mxu0 %v7519
        %7721 = vmatprep.subr.mxu0 0.0
        %7722 = vmatpush1.msra.mxu0 %v7520
        %7723 = vmatprep.subr.mxu0 0.0
        %7724 = vmatpush1.msra.mxu0 %v7521
        %7725 = vmatprep.subr.mxu0 0.0
        %7726 = vmatpush1.msra.mxu0 %v7522
        %7727 = vmatprep.subr.mxu0 0.0
        %7728 = vmatpush1.msra.mxu0 %v7523
        %7729 = vmatprep.subr.mxu0 0.0
        %7730 = vmatpush1.msra.mxu0 %v7524
        %7731 = vmatprep.subr.mxu0 0.0
        %7732 = vmatpush1.msra.mxu0 0.0
        %7733 = vmatprep.subr.mxu0 0.0
        %7734 = vmatpush1.msra.mxu0 0.0
        %7735 = vmatprep.subr.mxu0 0.0
        %7736 = vmatpush1.msra.mxu0 0.0
        %7737 = vmatprep.subr.mxu0 0.0
        %7738 = vmatpush1.msra.mxu0 0.0
        %7739 = vmatprep.subr.mxu0 0.0
        %7740 = vmatpush1.msra.mxu0 0.0
        %7741 = vmatprep.subr.mxu0 0.0
        %7742 = vmatpush1.msra.mxu0 0.0
        %7743 = vmatprep.subr.mxu0 0.0
        %7744 = vmatpush1.msra.mxu0 0.0
        %7745 = vmatprep.subr.mxu0 0.0
        %7746 = vmatpush1.msra.mxu0 0.0
        %7747 = vmatprep.subr.mxu0 0.0
        %7748 = vmatpush1.msra.mxu0 0.0
        %7749 = vmatprep.subr.mxu0 0.0
        %7750 = vmatpush1.msra.mxu0 0.0
        %7751 = vmatprep.subr.mxu0 0.0
        %7752 = vmatpush1.msra.mxu0 0.0
        %7753 = vmatprep.subr.mxu0 0.0
        %7754 = vmatpush1.msra.mxu0 0.0
        %7755 = vmatprep.subr.mxu0 0.0
        %7756 = vmatpush1.msra.mxu0 0.0
        %7757 = vmatprep.subr.mxu0 0.0
        %7758 = vmatpush1.msra.mxu0 0.0
        %7759 = vmatprep.subr.mxu0 0.0
        %7760 = vmatpush1.msra.mxu0 0.0
        %7761 = vmatprep.subr.mxu0 0.0
        %7762 = vmatpush1.msra.mxu0 0.0
        %7763 = vmatprep.mubr.f32.mxu0 0.0
        %7764 = vmatmul.mubr.f32.gmra.mrb[0].mxu0 %v7622
        %v7765 = vpop.f32.mrb[0].mxu0
        %v7766 = vadd.f32 0.0, %v7765
        %v7767 = vpop.f32.mrb[0].mxu0
        %7768 = vdwg.mxu0
        %7769 = vmatprep.subr.mxu0 0.0
        %7770 = vmatpush1.msra.mxu0 %v7525
        %7771 = vmatprep.subr.mxu0 0.0
        %7772 = vmatpush1.msra.mxu0 %v7526
        %7773 = vmatprep.subr.mxu0 0.0
        %7774 = vmatpush1.msra.mxu0 %v7527
        %7775 = vmatprep.subr.mxu0 0.0
        %7776 = vmatpush1.msra.mxu0 %v7528
        %7777 = vmatprep.subr.mxu0 0.0
        %7778 = vmatpush1.msra.mxu0 %v7529
        %7779 = vmatprep.subr.mxu0 0.0
        %7780 = vmatpush1.msra.mxu0 %v7530
        %7781 = vmatprep.subr.mxu0 0.0
        %7782 = vmatpush1.msra.mxu0 %v7531
        %7783 = vmatprep.subr.mxu0 0.0
        %7784 = vmatpush1.msra.mxu0 %v7532
        %7785 = vmatprep.subr.mxu0 0.0
        %7786 = vmatpush1.msra.mxu0 %v7533
        %7787 = vmatprep.subr.mxu0 0.0
        %7788 = vmatpush1.msra.mxu0 %v7534
        %7789 = vmatprep.subr.mxu0 0.0
        %7790 = vmatpush1.msra.mxu0 %v7535
        %7791 = vmatprep.subr.mxu0 0.0
        %7792 = vmatpush1.msra.mxu0 %v7536
        %7793 = vmatprep.subr.mxu0 0.0
        %7794 = vmatpush1.msra.mxu0 %v7537
        %7795 = vmatprep.subr.mxu0 0.0
        %7796 = vmatpush1.msra.mxu0 %v7538
        %7797 = vmatprep.subr.mxu0 0.0
        %7798 = vmatpush1.msra.mxu0 %v7539
        %7799 = vmatprep.subr.mxu0 0.0
        %7800 = vmatpush1.msra.mxu0 %v7540
        %7801 = vmatprep.subr.mxu0 0.0
        %7802 = vmatpush1.msra.mxu0 0.0
        %7803 = vmatprep.subr.mxu0 0.0
        %7804 = vmatpush1.msra.mxu0 0.0
        %7805 = vmatprep.subr.mxu0 0.0
        %7806 = vmatpush1.msra.mxu0 0.0
        %7807 = vmatprep.subr.mxu0 0.0
        %7808 = vmatpush1.msra.mxu0 0.0
        %7809 = vmatprep.subr.mxu0 0.0
        %7810 = vmatpush1.msra.mxu0 0.0
        %7811 = vmatprep.subr.mxu0 0.0
        %7812 = vmatpush1.msra.mxu0 0.0
        %7813 = vmatprep.subr.mxu0 0.0
        %7814 = vmatpush1.msra.mxu0 0.0
        %7815 = vmatprep.subr.mxu0 0.0
        %7816 = vmatpush1.msra.mxu0 0.0
        %7817 = vmatprep.subr.mxu0 0.0
        %7818 = vmatpush1.msra.mxu0 0.0
        %7819 = vmatprep.subr.mxu0 0.0
        %7820 = vmatpush1.msra.mxu0 0.0
        %7821 = vmatprep.subr.mxu0 0.0
        %7822 = vmatpush1.msra.mxu0 0.0
        %7823 = vmatprep.subr.mxu0 0.0
        %7824 = vmatpush1.msra.mxu0 0.0
        %7825 = vmatprep.subr.mxu0 0.0
        %7826 = vmatpush1.msra.mxu0 0.0
        %7827 = vmatprep.subr.mxu0 0.0
        %7828 = vmatpush1.msra.mxu0 0.0
        %7829 = vmatprep.subr.mxu0 0.0
        %7830 = vmatpush1.msra.mxu0 0.0
        %7831 = vmatprep.subr.mxu0 0.0
        %7832 = vmatpush1.msra.mxu0 0.0
        %7833 = vmatprep.mubr.f32.mxu0 0.0
        %7834 = vmatmul.mubr.f32.gmra.mrb[0].mxu0 %v7623
        %v7835 = vpop.f32.mrb[0].mxu0
        %v7836 = vadd.f32 0.0, %v7835
        %v7837 = vpop.f32.mrb[0].mxu0
        %7838 = vdwg.mxu0
        %7839 = vmatprep.subr.mxu0 0.0
        %7840 = vmatpush1.msra.mxu0 %v7541
        %7841 = vmatprep.subr.mxu0 0.0
        %7842 = vmatpush1.msra.mxu0 %v7542
        %7843 = vmatprep.subr.mxu0 0.0
        %7844 = vmatpush1.msra.mxu0 %v7543
        %7845 = vmatprep.subr.mxu0 0.0
        %7846 = vmatpush1.msra.mxu0 %v7544
        %7847 = vmatprep.subr.mxu0 0.0
        %7848 = vmatpush1.msra.mxu0 %v7545
        %7849 = vmatprep.subr.mxu0 0.0
        %7850 = vmatpush1.msra.mxu0 %v7546
        %7851 = vmatprep.subr.mxu0 0.0
        %7852 = vmatpush1.msra.mxu0 %v7547
        %7853 = vmatprep.subr.mxu0 0.0
        %7854 = vmatpush1.msra.mxu0 %v7548
        %7855 = vmatprep.subr.mxu0 0.0
        %7856 = vmatpush1.msra.mxu0 %v7549
        %7857 = vmatprep.subr.mxu0 0.0
        %7858 = vmatpush1.msra.mxu0 %v7550
        %7859 = vmatprep.subr.mxu0 0.0
        %7860 = vmatpush1.msra.mxu0 %v7551
        %7861 = vmatprep.subr.mxu0 0.0
        %7862 = vmatpush1.msra.mxu0 %v7552
        %7863 = vmatprep.subr.mxu0 0.0
        %7864 = vmatpush1.msra.mxu0 %v7553
        %7865 = vmatprep.subr.mxu0 0.0
        %7866 = vmatpush1.msra.mxu0 %v7554
        %7867 = vmatprep.subr.mxu0 0.0
        %7868 = vmatpush1.msra.mxu0 %v7555
        %7869 = vmatprep.subr.mxu0 0.0
        %7870 = vmatpush1.msra.mxu0 %v7556
        %7871 = vmatprep.subr.mxu0 0.0
        %7872 = vmatpush1.msra.mxu0 0.0
        %7873 = vmatprep.subr.mxu0 0.0
        %7874 = vmatpush1.msra.mxu0 0.0
        %7875 = vmatprep.subr.mxu0 0.0
        %7876 = vmatpush1.msra.mxu0 0.0
        %7877 = vmatprep.subr.mxu0 0.0
        %7878 = vmatpush1.msra.mxu0 0.0
        %7879 = vmatprep.subr.mxu0 0.0
        %7880 = vmatpush1.msra.mxu0 0.0
        %7881 = vmatprep.subr.mxu0 0.0
        %7882 = vmatpush1.msra.mxu0 0.0
        %7883 = vmatprep.subr.mxu0 0.0
        %7884 = vmatpush1.msra.mxu0 0.0
        %7885 = vmatprep.subr.mxu0 0.0
        %7886 = vmatpush1.msra.mxu0 0.0
        %7887 = vmatprep.subr.mxu0 0.0
        %7888 = vmatpush1.msra.mxu0 0.0
        %7889 = vmatprep.subr.mxu0 0.0
        %7890 = vmatpush1.msra.mxu0 0.0
        %7891 = vmatprep.subr.mxu0 0.0
        %7892 = vmatpush1.msra.mxu0 0.0
        %7893 = vmatprep.subr.mxu0 0.0
        %7894 = vmatpush1.msra.mxu0 0.0
        %7895 = vmatprep.subr.mxu0 0.0
        %7896 = vmatpush1.msra.mxu0 0.0
        %7897 = vmatprep.subr.mxu0 0.0
        %7898 = vmatpush1.msra.mxu0 0.0
        %7899 = vmatprep.subr.mxu0 0.0
        %7900 = vmatpush1.msra.mxu0 0.0
        %7901 = vmatprep.subr.mxu0 0.0
        %7902 = vmatpush1.msra.mxu0 0.0
        %7903 = vmatprep.mubr.f32.mxu0 0.0
        %7904 = vmatmul.mubr.f32.gmra.mrb[0].mxu0 %v7624
        %v7905 = vpop.f32.mrb[0].mxu0
        %v7906 = vadd.f32 0.0, %v7905
        %v7907 = vpop.f32.mrb[0].mxu0
        %7908 = vdwg.mxu0
        %7909 = vmatprep.subr.mxu0 0.0
        %7910 = vmatpush1.msra.mxu0 %v7557
        %7911 = vmatprep.subr.mxu0 0.0
        %7912 = vmatpush1.msra.mxu0 %v7558
        %7913 = vmatprep.subr.mxu0 0.0
        %7914 = vmatpush1.msra.mxu0 %v7559
        %7915 = vmatprep.subr.mxu0 0.0
        %7916 = vmatpush1.msra.mxu0 %v7560
        %7917 = vmatprep.subr.mxu0 0.0
        %7918 = vmatpush1.msra.mxu0 %v7561
        %7919 = vmatprep.subr.mxu0 0.0
        %7920 = vmatpush1.msra.mxu0 %v7562
        %7921 = vmatprep.subr.mxu0 0.0
        %7922 = vmatpush1.msra.mxu0 %v7563
        %7923 = vmatprep.subr.mxu0 0.0
        %7924 = vmatpush1.msra.mxu0 %v7564
        %7925 = vmatprep.subr.mxu0 0.0
        %7926 = vmatpush1.msra.mxu0 %v7565
        %7927 = vmatprep.subr.mxu0 0.0
        %7928 = vmatpush1.msra.mxu0 %v7566
        %7929 = vmatprep.subr.mxu0 0.0
        %7930 = vmatpush1.msra.mxu0 %v7567
        %7931 = vmatprep.subr.mxu0 0.0
        %7932 = vmatpush1.msra.mxu0 %v7568
        %7933 = vmatprep.subr.mxu0 0.0
        %7934 = vmatpush1.msra.mxu0 %v7569
        %7935 = vmatprep.subr.mxu0 0.0
        %7936 = vmatpush1.msra.mxu0 %v7570
        %7937 = vmatprep.subr.mxu0 0.0
        %7938 = vmatpush1.msra.mxu0 %v7571
        %7939 = vmatprep.subr.mxu0 0.0
        %7940 = vmatpush1.msra.mxu0 %v7572
        %7941 = vmatprep.subr.mxu0 0.0
        %7942 = vmatpush1.msra.mxu0 0.0
        %7943 = vmatprep.subr.mxu0 0.0
        %7944 = vmatpush1.msra.mxu0 0.0
        %7945 = vmatprep.subr.mxu0 0.0
        %7946 = vmatpush1.msra.mxu0 0.0
        %7947 = vmatprep.subr.mxu0 0.0
        %7948 = vmatpush1.msra.mxu0 0.0
        %7949 = vmatprep.subr.mxu0 0.0
        %7950 = vmatpush1.msra.mxu0 0.0
        %7951 = vmatprep.subr.mxu0 0.0
        %7952 = vmatpush1.msra.mxu0 0.0
        %7953 = vmatprep.subr.mxu0 0.0
        %7954 = vmatpush1.msra.mxu0 0.0
        %7955 = vmatprep.subr.mxu0 0.0
        %7956 = vmatpush1.msra.mxu0 0.0
        %7957 = vmatprep.subr.mxu0 0.0
        %7958 = vmatpush1.msra.mxu0 0.0
        %7959 = vmatprep.subr.mxu0 0.0
        %7960 = vmatpush1.msra.mxu0 0.0
        %7961 = vmatprep.subr.mxu0 0.0
        %7962 = vmatpush1.msra.mxu0 0.0
        %7963 = vmatprep.subr.mxu0 0.0
        %7964 = vmatpush1.msra.mxu0 0.0
        %7965 = vmatprep.subr.mxu0 0.0
        %7966 = vmatpush1.msra.mxu0 0.0
        %7967 = vmatprep.subr.mxu0 0.0
        %7968 = vmatpush1.msra.mxu0 0.0
        %7969 = vmatprep.subr.mxu0 0.0
        %7970 = vmatpush1.msra.mxu0 0.0
        %7971 = vmatprep.subr.mxu0 0.0
        %7972 = vmatpush1.msra.mxu0 0.0
        %7973 = vmatprep.mubr.f32.mxu0 0.0
        %7974 = vmatmul.mubr.f32.gmra.mrb[0].mxu0 %v7625
        %v7975 = vpop.f32.mrb[0].mxu0
        %v7976 = vadd.f32 0.0, %v7975
        %v7977 = vpop.f32.mrb[0].mxu0
        %7978 = vdwg.mxu0
        %7979 = vmatprep.subr.mxu0 0.0
        %7980 = vmatpush1.msra.mxu0 %v7573
        %7981 = vmatprep.subr.mxu0 0.0
        %7982 = vmatpush1.msra.mxu0 %v7574
        %7983 = vmatprep.subr.mxu0 0.0
        %7984 = vmatpush1.msra.mxu0 %v7575
        %7985 = vmatprep.subr.mxu0 0.0
        %7986 = vmatpush1.msra.mxu0 %v7576
        %7987 = vmatprep.subr.mxu0 0.0
        %7988 = vmatpush1.msra.mxu0 %v7577
        %7989 = vmatprep.subr.mxu0 0.0
        %7990 = vmatpush1.msra.mxu0 %v7578
        %7991 = vmatprep.subr.mxu0 0.0
        %7992 = vmatpush1.msra.mxu0 %v7579
        %7993 = vmatprep.subr.mxu0 0.0
        %7994 = vmatpush1.msra.mxu0 %v7580
        %7995 = vmatprep.subr.mxu0 0.0
        %7996 = vmatpush1.msra.mxu0 %v7581
        %7997 = vmatprep.subr.mxu0 0.0
        %7998 = vmatpush1.msra.mxu0 %v7582
        %7999 = vmatprep.subr.mxu0 0.0
        %8000 = vmatpush1.msra.mxu0 %v7583
        %8001 = vmatprep.subr.mxu0 0.0
        %8002 = vmatpush1.msra.mxu0 %v7584
        %8003 = vmatprep.subr.mxu0 0.0
        %8004 = vmatpush1.msra.mxu0 %v7585
        %8005 = vmatprep.subr.mxu0 0.0
        %8006 = vmatpush1.msra.mxu0 %v7586
        %8007 = vmatprep.subr.mxu0 0.0
        %8008 = vmatpush1.msra.mxu0 %v7587
        %8009 = vmatprep.subr.mxu0 0.0
        %8010 = vmatpush1.msra.mxu0 %v7588
        %8011 = vmatprep.subr.mxu0 0.0
        %8012 = vmatpush1.msra.mxu0 0.0
        %8013 = vmatprep.subr.mxu0 0.0
        %8014 = vmatpush1.msra.mxu0 0.0
        %8015 = vmatprep.subr.mxu0 0.0
        %8016 = vmatpush1.msra.mxu0 0.0
        %8017 = vmatprep.subr.mxu0 0.0
        %8018 = vmatpush1.msra.mxu0 0.0
        %8019 = vmatprep.subr.mxu0 0.0
        %8020 = vmatpush1.msra.mxu0 0.0
        %8021 = vmatprep.subr.mxu0 0.0
        %8022 = vmatpush1.msra.mxu0 0.0
        %8023 = vmatprep.subr.mxu0 0.0
        %8024 = vmatpush1.msra.mxu0 0.0
        %8025 = vmatprep.subr.mxu0 0.0
        %8026 = vmatpush1.msra.mxu0 0.0
        %8027 = vmatprep.subr.mxu0 0.0
        %8028 = vmatpush1.msra.mxu0 0.0
        %8029 = vmatprep.subr.mxu0 0.0
        %8030 = vmatpush1.msra.mxu0 0.0
        %8031 = vmatprep.subr.mxu0 0.0
        %8032 = vmatpush1.msra.mxu0 0.0
        %8033 = vmatprep.subr.mxu0 0.0
        %8034 = vmatpush1.msra.mxu0 0.0
        %8035 = vmatprep.subr.mxu0 0.0
        %8036 = vmatpush1.msra.mxu0 0.0
        %8037 = vmatprep.subr.mxu0 0.0
        %8038 = vmatpush1.msra.mxu0 0.0
        %8039 = vmatprep.subr.mxu0 0.0
        %8040 = vmatpush1.msra.mxu0 0.0
        %8041 = vmatprep.subr.mxu0 0.0
        %8042 = vmatpush1.msra.mxu0 0.0
        %8043 = vmatprep.mubr.f32.mxu0 0.0
        %8044 = vmatmul.mubr.f32.gmra.mrb[0].mxu0 %v7626
        %v8045 = vpop.f32.mrb[0].mxu0
        %v8046 = vadd.f32 0.0, %v8045
        %v8047 = vpop.f32.mrb[0].mxu0
        %8048 = vdwg.mxu0
        %8049 = vmatprep.subr.mxu0 0.0
        %8050 = vmatpush1.msra.mxu0 %v7589
        %8051 = vmatprep.subr.mxu0 0.0
        %8052 = vmatpush1.msra.mxu0 %v7590
        %8053 = vmatprep.subr.mxu0 0.0
        %8054 = vmatpush1.msra.mxu0 %v7591
        %8055 = vmatprep.subr.mxu0 0.0
        %8056 = vmatpush1.msra.mxu0 %v7592
        %8057 = vmatprep.subr.mxu0 0.0
        %8058 = vmatpush1.msra.mxu0 %v7593
        %8059 = vmatprep.subr.mxu0 0.0
        %8060 = vmatpush1.msra.mxu0 %v7594
        %8061 = vmatprep.subr.mxu0 0.0
        %8062 = vmatpush1.msra.mxu0 %v7595
        %8063 = vmatprep.subr.mxu0 0.0
        %8064 = vmatpush1.msra.mxu0 %v7596
        %8065 = vmatprep.subr.mxu0 0.0
        %8066 = vmatpush1.msra.mxu0 %v7597
        %8067 = vmatprep.subr.mxu0 0.0
        %8068 = vmatpush1.msra.mxu0 %v7598
        %8069 = vmatprep.subr.mxu0 0.0
        %8070 = vmatpush1.msra.mxu0 %v7599
        %8071 = vmatprep.subr.mxu0 0.0
        %8072 = vmatpush1.msra.mxu0 %v7600
        %8073 = vmatprep.subr.mxu0 0.0
        %8074 = vmatpush1.msra.mxu0 %v7601
        %8075 = vmatprep.subr.mxu0 0.0
        %8076 = vmatpush1.msra.mxu0 %v7602
        %8077 = vmatprep.subr.mxu0 0.0
        %8078 = vmatpush1.msra.mxu0 %v7603
        %8079 = vmatprep.subr.mxu0 0.0
        %8080 = vmatpush1.msra.mxu0 %v7604
        %8081 = vmatprep.subr.mxu0 0.0
        %8082 = vmatpush1.msra.mxu0 0.0
        %8083 = vmatprep.subr.mxu0 0.0
        %8084 = vmatpush1.msra.mxu0 0.0
        %8085 = vmatprep.subr.mxu0 0.0
        %8086 = vmatpush1.msra.mxu0 0.0
        %8087 = vmatprep.subr.mxu0 0.0
        %8088 = vmatpush1.msra.mxu0 0.0
        %8089 = vmatprep.subr.mxu0 0.0
        %8090 = vmatpush1.msra.mxu0 0.0
        %8091 = vmatprep.subr.mxu0 0.0
        %8092 = vmatpush1.msra.mxu0 0.0
        %8093 = vmatprep.subr.mxu0 0.0
        %8094 = vmatpush1.msra.mxu0 0.0
        %8095 = vmatprep.subr.mxu0 0.0
        %8096 = vmatpush1.msra.mxu0 0.0
        %8097 = vmatprep.subr.mxu0 0.0
        %8098 = vmatpush1.msra.mxu0 0.0
        %8099 = vmatprep.subr.mxu0 0.0
        %8100 = vmatpush1.msra.mxu0 0.0
        %8101 = vmatprep.subr.mxu0 0.0
        %8102 = vmatpush1.msra.mxu0 0.0
        %8103 = vmatprep.subr.mxu0 0.0
        %8104 = vmatpush1.msra.mxu0 0.0
        %8105 = vmatprep.subr.mxu0 0.0
        %8106 = vmatpush1.msra.mxu0 0.0
        %8107 = vmatprep.subr.mxu0 0.0
        %8108 = vmatpush1.msra.mxu0 0.0
        %8109 = vmatprep.subr.mxu0 0.0
        %8110 = vmatpush1.msra.mxu0 0.0
        %8111 = vmatprep.subr.mxu0 0.0
        %8112 = vmatpush1.msra.mxu0 0.0
        %8113 = vmatprep.mubr.f32.mxu0 0.0
        %8114 = vmatmul.mubr.f32.gmra.mrb[0].mxu0 %v7627
        %v8115 = vpop.f32.mrb[0].mxu0
        %v8116 = vadd.f32 0.0, %v8115
        %v8117 = vpop.f32.mrb[0].mxu0
        %8118 = vdwg.mxu0
        %8119 = vmatprep.subr.mxu0 0.0
        %8120 = vmatpush1.msra.mxu0 %v7605
        %8121 = vmatprep.subr.mxu0 0.0
        %8122 = vmatpush1.msra.mxu0 %v7606
        %8123 = vmatprep.subr.mxu0 0.0
        %8124 = vmatpush1.msra.mxu0 %v7607
        %8125 = vmatprep.subr.mxu0 0.0
        %8126 = vmatpush1.msra.mxu0 %v7608
        %8127 = vmatprep.subr.mxu0 0.0
        %8128 = vmatpush1.msra.mxu0 %v7609
        %8129 = vmatprep.subr.mxu0 0.0
        %8130 = vmatpush1.msra.mxu0 %v7610
        %8131 = vmatprep.subr.mxu0 0.0
        %8132 = vmatpush1.msra.mxu0 %v7611
        %8133 = vmatprep.subr.mxu0 0.0
        %8134 = vmatpush1.msra.mxu0 %v7612
        %8135 = vmatprep.subr.mxu0 0.0
        %8136 = vmatpush1.msra.mxu0 %v7613
        %8137 = vmatprep.subr.mxu0 0.0
        %8138 = vmatpush1.msra.mxu0 %v7614
        %8139 = vmatprep.subr.mxu0 0.0
        %8140 = vmatpush1.msra.mxu0 %v7615
        %8141 = vmatprep.subr.mxu0 0.0
        %8142 = vmatpush1.msra.mxu0 %v7616
        %8143 = vmatprep.subr.mxu0 0.0
        %8144 = vmatpush1.msra.mxu0 %v7617
        %8145 = vmatprep.subr.mxu0 0.0
        %8146 = vmatpush1.msra.mxu0 %v7618
        %8147 = vmatprep.subr.mxu0 0.0
        %8148 = vmatpush1.msra.mxu0 %v7619
        %8149 = vmatprep.subr.mxu0 0.0
        %8150 = vmatpush1.msra.mxu0 %v7620
        %8151 = vmatprep.subr.mxu0 0.0
        %8152 = vmatpush1.msra.mxu0 0.0
        %8153 = vmatprep.subr.mxu0 0.0
        %8154 = vmatpush1.msra.mxu0 0.0
        %8155 = vmatprep.subr.mxu0 0.0
        %8156 = vmatpush1.msra.mxu0 0.0
        %8157 = vmatprep.subr.mxu0 0.0
        %8158 = vmatpush1.msra.mxu0 0.0
        %8159 = vmatprep.subr.mxu0 0.0
        %8160 = vmatpush1.msra.mxu0 0.0
        %8161 = vmatprep.subr.mxu0 0.0
        %8162 = vmatpush1.msra.mxu0 0.0
        %8163 = vmatprep.subr.mxu0 0.0
        %8164 = vmatpush1.msra.mxu0 0.0
        %8165 = vmatprep.subr.mxu0 0.0
        %8166 = vmatpush1.msra.mxu0 0.0
        %8167 = vmatprep.subr.mxu0 0.0
        %8168 = vmatpush1.msra.mxu0 0.0
        %8169 = vmatprep.subr.mxu0 0.0
        %8170 = vmatpush1.msra.mxu0 0.0
        %8171 = vmatprep.subr.mxu0 0.0
        %8172 = vmatpush1.msra.mxu0 0.0
        %8173 = vmatprep.subr.mxu0 0.0
        %8174 = vmatpush1.msra.mxu0 0.0
        %8175 = vmatprep.subr.mxu0 0.0
        %8176 = vmatpush1.msra.mxu0 0.0
        %8177 = vmatprep.subr.mxu0 0.0
        %8178 = vmatpush1.msra.mxu0 0.0
        %8179 = vmatprep.subr.mxu0 0.0
        %8180 = vmatpush1.msra.mxu0 0.0
        %8181 = vmatprep.subr.mxu0 0.0
        %8182 = vmatpush1.msra.mxu0 0.0
        %8183 = vmatprep.mubr.f32.mxu0 0.0
        %8184 = vmatmul.mubr.f32.gmra.mrb[0].mxu0 %v7628
        %v8185 = vpop.f32.mrb[0].mxu0
        %v8186 = vadd.f32 0.0, %v8185
        %v8187 = vpop.f32.mrb[0].mxu0
        %8188 = vdwg.mxu0
        %v8189 = vld [vmem:[%s9] sm:$0xff]
        %v8190 = vld [vmem:[%s9 + $0x8] sm:$0xff]
        %v8191 = vld [vmem:[%s9 + $0x10] sm:$0xff]
        %v8192 = vld [vmem:[%s9 + $0x18] sm:$0xff]
        %v8193 = vld [vmem:[%s9 + $0x20] sm:$0xff]
        %v8194 = vld [vmem:[%s9 + $0x28] sm:$0xff]
        %v8195 = vld [vmem:[%s9 + $0x30] sm:$0xff]
        %v8196 = vld [vmem:[%s9 + $0x38] sm:$0xff]
        %v8197 = vld [vmem:[%s9 + $0x40] sm:$0xff]
        %v8198 = vld [vmem:[%s9 + $0x48] sm:$0xff]
        %v8199 = vld [vmem:[%s9 + $0x50] sm:$0xff]
        %v8200 = vld [vmem:[%s9 + $0x58] sm:$0xff]
        %v8201 = vld [vmem:[%s9 + $0x60] sm:$0xff]
        %v8202 = vld [vmem:[%s9 + $0x68] sm:$0xff]
        %v8203 = vld [vmem:[%s9 + $0x70] sm:$0xff]
        %v8204 = vld [vmem:[%s9 + $0x78] sm:$0xff]
        %v8205 = vld [vmem:[%s10] sm:$0x1]
        %v8207 = vlaneseq
        %v8208 = vshrl.u32 %v8207, 7
        %v8209 = vsub.s32 0, %v8208
        %v8210 = vrot.slane %v8205, %v8209
        %v8220 = vrot.slane %v7766, 7
        %vm8221 = vcmask 1041409
        %v8222 = vsel %vm8221, %v8220, %v7696
        %v8223 = vrot.slane %v7836, 6
        %vm8224 = vcmask 1042434
        %v8225 = vsel %vm8224, %v8223, %v8222
        %v8226 = vrot.slane %v7906, 5
        %vm8227 = vcmask 1043459
        %v8228 = vsel %vm8227, %v8226, %v8225
        %v8229 = vrot.slane %v7976, 4
        %vm8230 = vcmask 1044484
        %v8231 = vsel %vm8230, %v8229, %v8228
        %v8232 = vrot.slane %v8046, 3
        %vm8233 = vcmask 1045509
        %v8234 = vsel %vm8233, %v8232, %v8231
        %v8235 = vrot.slane %v8116, 2
        %vm8236 = vcmask 1046534
        %v8237 = vsel %vm8236, %v8235, %v8234
        %v8238 = vrot.slane %v8186, 1
        %vm8239 = vcmask 1047559
        %v8240 = vsel %vm8239, %v8238, %v8237
        %8242 = vmatprep.subr.mxu0 0.0
        %8243 = vmatpush1.msra.mxu0 %v8189
        %8244 = vmatprep.subr.mxu0 0.0
        %8245 = vmatpush1.msra.mxu0 %v8190
        %8246 = vmatprep.subr.mxu0 0.0
        %8247 = vmatpush1.msra.mxu0 %v8191
        %8248 = vmatprep.subr.mxu0 0.0
        %8249 = vmatpush1.msra.mxu0 %v8192
        %8250 = vmatprep.subr.mxu0 0.0
        %8251 = vmatpush1.msra.mxu0 %v8193
        %8252 = vmatprep.subr.mxu0 0.0
        %8253 = vmatpush1.msra.mxu0 %v8194
        %8254 = vmatprep.subr.mxu0 0.0
        %8255 = vmatpush1.msra.mxu0 %v8195
        %8256 = vmatprep.subr.mxu0 0.0
        %8257 = vmatpush1.msra.mxu0 %v8196
        %8258 = vmatprep.subr.mxu0 0.0
        %8259 = vmatpush1.msra.mxu0 %v8197
        %8260 = vmatprep.subr.mxu0 0.0
        %8261 = vmatpush1.msra.mxu0 %v8198
        %8262 = vmatprep.subr.mxu0 0.0
        %8263 = vmatpush1.msra.mxu0 %v8199
        %8264 = vmatprep.subr.mxu0 0.0
        %8265 = vmatpush1.msra.mxu0 %v8200
        %8266 = vmatprep.subr.mxu0 0.0
        %8267 = vmatpush1.msra.mxu0 %v8201
        %8268 = vmatprep.subr.mxu0 0.0
        %8269 = vmatpush1.msra.mxu0 %v8202
        %8270 = vmatprep.subr.mxu0 0.0
        %8271 = vmatpush1.msra.mxu0 %v8203
        %8272 = vmatprep.subr.mxu0 0.0
        %8273 = vmatpush1.msra.mxu0 %v8204
        %8274 = vmatprep.subr.mxu0 0.0
        %8275 = vmatpush1.msra.mxu0 0.0
        %8276 = vmatprep.subr.mxu0 0.0
        %8277 = vmatpush1.msra.mxu0 0.0
        %8278 = vmatprep.subr.mxu0 0.0
        %8279 = vmatpush1.msra.mxu0 0.0
        %8280 = vmatprep.subr.mxu0 0.0
        %8281 = vmatpush1.msra.mxu0 0.0
        %8282 = vmatprep.subr.mxu0 0.0
        %8283 = vmatpush1.msra.mxu0 0.0
        %8284 = vmatprep.subr.mxu0 0.0
        %8285 = vmatpush1.msra.mxu0 0.0
        %8286 = vmatprep.subr.mxu0 0.0
        %8287 = vmatpush1.msra.mxu0 0.0
        %8288 = vmatprep.subr.mxu0 0.0
        %8289 = vmatpush1.msra.mxu0 0.0
        %8290 = vmatprep.subr.mxu0 0.0
        %8291 = vmatpush1.msra.mxu0 0.0
        %8292 = vmatprep.subr.mxu0 0.0
        %8293 = vmatpush1.msra.mxu0 0.0
        %8294 = vmatprep.subr.mxu0 0.0
        %8295 = vmatpush1.msra.mxu0 0.0
        %8296 = vmatprep.subr.mxu0 0.0
        %8297 = vmatpush1.msra.mxu0 0.0
        %8298 = vmatprep.subr.mxu0 0.0
        %8299 = vmatpush1.msra.mxu0 0.0
        %8300 = vmatprep.subr.mxu0 0.0
        %8301 = vmatpush1.msra.mxu0 0.0
        %8302 = vmatprep.subr.mxu0 0.0
        %8303 = vmatpush1.msra.mxu0 0.0
        %8304 = vmatprep.subr.mxu0 0.0
        %8305 = vmatpush1.msra.mxu0 0.0
        %8306 = vmatprep.mubr.f32.mxu0 0.0
        %8307 = vmatmul.mubr.f32.gmra.mrb[0].mxu0 %v8240
        %v8308 = vpop.f32.mrb[0].mxu0
        %v8309 = vadd.f32 %v8210, %v8308
        %v8310 = vpop.f32.mrb[0].mxu0
        %8311 = vdwg.mxu0
        %8312 = vst [vmem:[%s414] sm:$0xff] %v8309
        %s8313 = sand.u32 %s279, 1
        %s8314 = scalar_lea.sflag [#allocation3], %s8313
        %s8315 = sand.u32 %s279, 1
        %s8316 = smul.addr %s8315, 8
        %s8317 = scalar_lea.vmem [#allocation2], %s8316
        // Predicated region
        $region65: #{tpu_custom_call.1} parent=63 // pred_check
          %p8318 = pneg %p289
        $region66: #{tpu_custom_call.1} parent=63 // pred_check_branch
          %8320 = sbr.rel (%p8318) target = $region68
        $region67: #{tpu_custom_call.1} parent=63 // pred_region
          %s8322 = ssub.s32 128, 128
          %8323 = vsyncadd %s8314, %s8322
          %s8324 = smul.addr %s25, 128
          %s8325 = scalar_lea.hbm %s11, %s8324
          %s8327 = sshll.u32 %s8317, 4
          %s8328 = int_to_ptr.vmem [resolvable:$true] %s8327
          %8330 = dma.vmem_to_hbm [thread:$0]  %s8328, 128, %s8325, %s8314
        $region68: #{tpu_custom_call.1} parent=63 // pred_fallthru
          _
      $region64: #{tpu_custom_call.1} parent=5 // pred_fallthru
        _
      %p8331 = scmp.le.s32.totalorder 2, %s20
      // Predicated region
      $region69: #{tpu_custom_call.1} parent=5 // pred_check
        %p8332 = pneg %p8331
      $region70: #{tpu_custom_call.1} parent=5 // pred_check_branch
        %8334 = sbr.rel (%p8332) target = $region72
      $region71: #{tpu_custom_call.1} parent=5 // pred_region
        %s8335 = ssub.s32 %s20, 2
        // Predicated region
        $region73: #{tpu_custom_call.1} parent=71 // pred_check
          %p8336 = pneg %p295
        $region74: #{tpu_custom_call.1} parent=71 // pred_check_branch
          %8338 = sbr.rel (%p8336) target = $region76
        $region75: #{tpu_custom_call.1} parent=71 // pred_region
          %s8339 = sand.u32 %s280, 1
          %s8340 = scalar_lea.sflag [#allocation3], %s8339
          %s8341 = sand.u32 %s280, 1
          %s8342 = smul.addr %s8341, 8
          %s8343 = scalar_lea.vmem [#allocation2], %s8342
          %8344 = dma.done %s8340, 128
        $region76: #{tpu_custom_call.1} parent=71 // pred_fallthru
          _
      $region72: #{tpu_custom_call.1} parent=5 // pred_fallthru
        _
    $region6: #{tpu_custom_call.1} parent=1 // loop_footer
      %s24 = sadd.s32 1, %s20
    $region7: #{tpu_custom_call.1} parent=1 // loop_footer_branch
      %19 = sbr.rel target = $region3
    $region8: #{tpu_custom_call.1} parent=1 // loop_exit
      _
    %8345 = vsyncpa [#allocation3], 1
    %s8346 = scalar_lea.sflag [#allocation3], 1
    %8347 = vsyncpa %s8346, 1

</llo_original>
